<compile_context>
chip_gen: v5e
topology: v5e:2x2
jax: 0.10.0
libtpu: 0.0.40
codegen_flags: <defaults>
</compile_context>

<pallas_src>
import numpy as np
import jax
import jax.numpy as jnp
from jax import lax
from jax.experimental import pallas as pl
from jax.experimental.pallas import tpu as pltpu

RADIUS = 2
DILATION = 2
KSIZE = 2 * RADIUS + 1          # 5
PAD = RADIUS + DILATION         # 4  (single replicate pad applied in XLA)
VMEM_LIMIT_BYTES = 48 * 1024 * 1024   # fits v5e/v6e/v7x scoped VMEM budgets

# The 6 face-neighbours of (1,1,1) used by MIND-SSC (entries in {0,1,2}).
SIX = np.array([[0, 1, 1], [1, 1, 0], [1, 0, 1],
                [1, 1, 2], [2, 1, 1], [1, 2, 1]], dtype=np.int64)

# Channel reorder applied at the end of MINDSSC (from the reference code).
REORDER = np.array([6, 8, 1, 11, 2, 10, 0, 7, 9, 4, 5, 3], dtype=np.int32)


def _mind_shift_pairs():
    """Reproduce the idx_shift1 / idx_shift2 construction of MINDSSC in numpy."""
    diff = SIX[:, None, :] - SIX[None, :, :]
    dist = (diff ** 2).sum(-1)
    ii, jj = np.meshgrid(np.arange(6), np.arange(6), indexing="ij")
    mask = (ii > jj).reshape(-1) & (dist == 2).reshape(-1)
    idx_shift1 = np.repeat(SIX[:, None, :], 6, axis=1).reshape(-1, 3)[mask]
    idx_shift2 = np.repeat(SIX[None, :, :], 6, axis=0).reshape(-1, 3)[mask]
    return idx_shift1, idx_shift2          # each (12, 3), entries in {0, 1, 2}


IDX_SHIFT1, IDX_SHIFT2 = _mind_shift_pairs()


def _row_to_six(row):
    return int(np.where((SIX == row).all(axis=1))[0][0])


# REORDER folded in: output channel c of the kernels uses the shift pair of
# reference channel REORDER[c].  PAIR1/PAIR2 index into the 6 shifted volumes.
PAIR1 = tuple(_row_to_six(IDX_SHIFT1[int(REORDER[c])]) for c in range(12))
PAIR2 = tuple(_row_to_six(IDX_SHIFT2[int(REORDER[c])]) for c in range(12))

# Static slice offsets into the pad-by-4 volume for each of the 6 shifts,
# plus which axis needs the "double clamp" rim fix and in which direction.
_SHIFT_SLICE_OFF = [tuple(DILATION * int(v) for v in row) for row in SIX]
_SHIFT_FIX_AXIS = [int(np.argmax(row != 1)) for row in SIX]
_SHIFT_FIX_SIGN = [int(row[int(np.argmax(row != 1))]) - 1 for row in SIX]  # +1/-1


# ----------------------------------------------------------------------------
# Pallas kernels
# ----------------------------------------------------------------------------

def _ssd_kernel(p4_ref, ssd_ref, var_ref):
    """One batch element.

    p4_ref : (D+8, H+8, W+8)  image replicate-padded by 4
    ssd_ref: (12, D, H, W)    SSD descriptors, channels already in REORDER order
    var_ref: (8, 128)         broadcast scalar: sum_voxels(mean_c - min_c)
    """
    C, D, H, W = ssd_ref.shape
    Dp, Hp, Wp = D + 2 * RADIUS, H + 2 * RADIUS, W + 2 * RADIUS
    pshape = (Dp, Hp, Wp)
    p4 = p4_ref[...]

    # Build the 6 shifted + replicate-padded volumes (exact double-clamp
    # semantics of rpad(RADIUS)(conv_dil(rpad(DILATION)(img)))).
    shifted = []
    for s_idx in range(6):
        od, oh, ow = _SHIFT_SLICE_OFF[s_idx]
        s = p4[od:od + Dp, oh:oh + Hp, ow:ow + Wp]
        ax = _SHIFT_FIX_AXIS[s_idx]
        n_ax = pshape[ax]
        iota = lax.broadcasted_iota(jnp.int32, pshape, ax)
        if _SHIFT_FIX_SIGN[s_idx] > 0:
            # shift +DILATION: the RADIUS low rim planes replicate plane RADIUS.
            edge = lax.slice_in_dim(s, RADIUS, RADIUS + 1, axis=ax)
            s = jnp.where(iota < RADIUS, jnp.broadcast_to(edge, pshape), s)
        else:
            # shift -DILATION: the RADIUS high rim planes replicate plane n-RADIUS-1.
            edge = lax.slice_in_dim(s, n_ax - RADIUS - 1, n_ax - RADIUS, axis=ax)
            s = jnp.where(iota >= n_ax - RADIUS,
                          jnp.broadcast_to(edge, pshape), s)
        shifted.append(s)

    inv_box = 1.0 / float(KSIZE ** 3)
    ch_min = None
    ch_sum = None
    for c in range(C):
        d = shifted[PAIR1[c]] - shifted[PAIR2[c]]
        d = d * d                                   # (Dp, Hp, Wp)
        # separable 5x5x5 box filter (valid) == avg_pool3d(kernel=5, stride=1)
        acc_w = d[:, :, 0:W]
        for k in range(1, KSIZE):
            acc_w = acc_w + d[:, :, k:k + W]
        acc_h = acc_w[:, 0:H, :]
        for k in range(1, KSIZE):
            acc_h = acc_h + acc_w[:, k:k + H, :]
        acc_d = acc_h[0:D, :, :]
        for k in range(1, KSIZE):
            acc_d = acc_d + acc_h[k:k + D, :, :]
        ssd_c = acc_d * inv_box                     # (D, H, W)
        ssd_ref[c] = ssd_c
        ch_min = ssd_c if ch_min is None else jnp.minimum(ch_min, ssd_c)
        ch_sum = ssd_c if ch_sum is None else ch_sum + ssd_c

    mind_var_partial = jnp.sum(ch_sum * (1.0 / C) - ch_min)
    var_ref[...] = jnp.full((8, 128), mind_var_partial, jnp.float32)


def _mind_err_kernel(clamp_ref, sp_ref, st_ref, err_ref, psum_ref):
    """Fused normalise + exp + squared error + loss partial sum.

    clamp_ref: SMEM (2, 2)  [[lo_pred, hi_pred], [lo_true, hi_true]]
    sp_ref   : (12, TS)     ssd tile of y_pred (lane-dense, flattened spatial)
    st_ref   : (12, TS)     ssd tile of y_true
    err_ref  : (12, TS)     (mind_pred - mind_true)^2
    psum_ref : (8, 128)     broadcast scalar: sum of the error tile
    """
    sp = sp_ref[...]
    st = st_ref[...]

    mn_p = jnp.min(sp, axis=0, keepdims=True)
    var_p = jnp.clip(jnp.mean(sp, axis=0, keepdims=True) - mn_p,
                     clamp_ref[0, 0], clamp_ref[0, 1])
    mp = jnp.exp(-(sp - mn_p) / var_p)

    mn_t = jnp.min(st, axis=0, keepdims=True)
    var_t = jnp.clip(jnp.mean(st, axis=0, keepdims=True) - mn_t,
                     clamp_ref[1, 0], clamp_ref[1, 1])
    mt = jnp.exp(-(st - mn_t) / var_t)

    e = mp - mt
    e = e * e
    err_ref[...] = e
    psum_ref[...] = jnp.full((8, 128), jnp.sum(e), jnp.float32)


# ----------------------------------------------------------------------------
# Wrappers
# ----------------------------------------------------------------------------

def _choose_spatial_tile(s, cap=32768):
    """Largest multiple of 128 that divides s and is <= cap, else s itself."""
    if s <= cap:
        return s
    ts = cap - (cap % 128)
    while ts >= 128:
        if s % ts == 0:
            return ts
        ts -= 128
    return s


def _mindssc_ssd(img):
    """img: (N, 1, D, H, W) -> (ssd (N,12,D,H,W) in REORDER order, clamp (2,))."""
    img3 = img[:, 0].astype(jnp.float32)
    N, D, H, W = img3.shape
    p4 = jnp.pad(img3, ((0, 0), (PAD, PAD), (PAD, PAD), (PAD, PAD)), mode="edge")

    ssd, varp = pl.pallas_call(
        _ssd_kernel,
        out_shape=(jax.ShapeDtypeStruct((N, 12, D, H, W), jnp.float32),
                   jax.ShapeDtypeStruct((N, 8, 128), jnp.float32)),
        grid=(N,),
        in_specs=[pl.BlockSpec((None, D + 2 * PAD, H + 2 * PAD, W + 2 * PAD),
                               lambda n: (n, 0, 0, 0))],
        out_specs=(pl.BlockSpec((None, 12, D, H, W), lambda n: (n, 0, 0, 0, 0)),
                   pl.BlockSpec((None, 8, 128), lambda n: (n, 0, 0))),
        compiler_params=pltpu.CompilerParams(
            dimension_semantics=("parallel",),
            vmem_limit_bytes=VMEM_LIMIT_BYTES),
    )(p4)

    # Global clamp bounds (PyTorch uses .item(): scalar over the whole tensor).
    m = jnp.sum(varp[:, 0, 0]) / float(N * D * H * W)
    clamp = jnp.stack([m * 0.001, m * 1000.0]).astype(jnp.float32)
    return ssd, clamp


def _mind_error_pallas(ssd_p, clamp_p, ssd_t, clamp_t):
    N, C, D, H, W = ssd_p.shape
    S = D * H * W
    TS = _choose_spatial_tile(S)
    nT = S // TS

    sp = ssd_p.reshape(N, C, S)      # free: contiguous collapse, lane-dense
    st = ssd_t.reshape(N, C, S)
    clamps = jnp.stack([clamp_p, clamp_t]).astype(jnp.float32)   # (2, 2)

    vol_spec = pl.BlockSpec((None, C, TS), lambda n, t: (n, 0, t))
    err, psum = pl.pallas_call(
        _mind_err_kernel,
        out_shape=(jax.ShapeDtypeStruct((N, C, S), jnp.float32),
                   jax.ShapeDtypeStruct((N, nT, 8, 128), jnp.float32)),
        grid=(N, nT),
        in_specs=[pl.BlockSpec(memory_space=pltpu.MemorySpace.SMEM),
                  vol_spec, vol_spec],
        out_specs=(vol_spec,
                   pl.BlockSpec((None, None, 8, 128), lambda n, t: (n, t, 0, 0))),
        compiler_params=pltpu.CompilerParams(
            dimension_semantics=("parallel", "parallel"),
            vmem_limit_bytes=VMEM_LIMIT_BYTES),
    )(clamps, sp, st)

    loss = jnp.sum(psum[:, :, 0, 0]) / float(N * C * S)
    return loss, err.reshape(N, C, D, H, W)


def mind_loss(y_pred, y_true):
    """Forward of MIND_loss: returns (mean(error), error)."""
    ssd_p, clamp_p = _mindssc_ssd(y_pred)
    ssd_t, clamp_t = _mindssc_ssd(y_true)
    return _mind_error_pallas(ssd_p, clamp_p, ssd_t, clamp_t)


# ----------------------------------------------------------------------------
# Pure-JAX reference (for verification only; mirrors the PyTorch module)
# ----------------------------------------------------------------------------

def _shifted_padded(img3, off):
    """Replicate-clamped shift by DILATION*(off-1), then replicate pad RADIUS."""
    _, D, H, W = img3.shape

    def axis_idx(size, o):
        i = np.arange(size + 2 * RADIUS)
        inner = np.clip(i - RADIUS, 0, size - 1)
        return np.clip(inner + DILATION * (int(o) - 1), 0, size - 1)

    di = axis_idx(D, off[0]); hi = axis_idx(H, off[1]); wi = axis_idx(W, off[2])
    return img3[:, di[:, None, None], hi[None, :, None], wi[None, None, :]]


def _mindssc_ref(img):
    img3 = img[:, 0].astype(jnp.float32)
    N, D, H, W = img3.shape
    s1 = jnp.stack([_shifted_padded(img3, IDX_SHIFT1[k]) for k in range(12)], 1)
    s2 = jnp.stack([_shifted_padded(img3, IDX_SHIFT2[k]) for k in range(12)], 1)
    d = (s1 - s2) ** 2
    acc = jnp.zeros((N, 12, D, H, W), jnp.float32)
    for a in range(KSIZE):
        for b in range(KSIZE):
            for c in range(KSIZE):
                acc = acc + d[:, :, a:a + D, b:b + H, c:c + W]
    ssd = acc / float(KSIZE ** 3)
    mn = jnp.min(ssd, 1, keepdims=True)
    mind = ssd - mn
    var = jnp.mean(mind, 1, keepdims=True)
    m = jnp.mean(var)
    var = jnp.clip(var, 0.001 * m, 1000.0 * m)
    mind = jnp.exp(-mind / var)
    return mind[:, REORDER]


def _mind_loss_ref(y_pred, y_true):
    e = (_mindssc_ref(y_pred) - _mindssc_ref(y_true)) ** 2
    return jnp.mean(e), e


if __name__ == "__main__":
    key = jax.random.PRNGKey(0)
    k1, k2 = jax.random.split(key)
    N, C, D, H, W = 2, 1, 8, 8, 8
    y_pred = jax.random.normal(k1, (N, C, D, H, W), dtype=jnp.float32)
    y_true = jax.random.normal(k2, (N, C, D, H, W), dtype=jnp.float32)

    loss, error = jax.jit(mind_loss)(y_pred, y_true)
    loss = jax.block_until_ready(loss)
    error = jax.block_until_ready(error)

    ref_loss, ref_err = _mind_loss_ref(y_pred, y_true)
    np.testing.assert_allclose(np.asarray(loss), np.asarray(ref_loss),
                               rtol=1e-3, atol=1e-5)
    np.testing.assert_allclose(np.asarray(error), np.asarray(ref_err),
                               rtol=1e-3, atol=1e-5)

    print("KERNEL_OK")
</pallas_src>

<mosaic_0001>
module attributes {stable_mosaic.version = 11 : i64} {
  func.func @_ssd_kernel(%arg0: i32, %arg1: memref<1x16x16x16xf32, #tpu.memory_space<vmem>>, %arg2: memref<1x12x8x8x8xf32, #tpu.memory_space<vmem>>, %arg3: memref<1x8x128xf32, #tpu.memory_space<vmem>>) attributes {dimension_semantics = [#tpu.dimension_semantics<parallel>], iteration_bounds = array<i64: 2>, scalar_prefetch = 0 : i64, scratch_operands = 0 : i64, tpu.core_type = #tpu.core_type<tc>, window_params = [{transform_indices = @transform_0, window_bounds = array<i64: 1, 16, 16, 16>}, {transform_indices = @transform_1, window_bounds = array<i64: 1, 12, 8, 8, 8>}, {transform_indices = @transform_2, window_bounds = array<i64: 1, 8, 128>}]} {
    %c0 = arith.constant 0 : index
    %c0_0 = arith.constant 0 : index
    %c0_1 = arith.constant 0 : index
    %c0_2 = arith.constant 0 : index
    %0 = vector.load %arg1[%c0, %c0_0, %c0_1, %c0_2] : memref<1x16x16x16xf32, #tpu.memory_space<vmem>>, vector<1x16x16x16xf32>
    %1 = vector.shape_cast %0 : vector<1x16x16x16xf32> to vector<16x16x16xf32>
    %2 = vector.extract_strided_slice %1 {offsets = [0, 2, 2], sizes = [12, 12, 12], strides = [1, 1, 1]} : vector<16x16x16xf32> to vector<12x12x12xf32>
    %3 = tpu.iota {dimensions = array<i32: 0>} : vector<12x12x12xi32>
    %4 = vector.extract_strided_slice %2 {offsets = [9, 0, 0], sizes = [1, 12, 12], strides = [1, 1, 1]} : vector<12x12x12xf32> to vector<1x12x12xf32>
    %c10_i32 = arith.constant 10 : i32
    %5 = vector.broadcast %c10_i32 : i32 to vector<12x12x12xi32>
    %6 = arith.cmpi sge, %3, %5 : vector<12x12x12xi32>
    %7 = vector.shape_cast %4 : vector<1x12x12xf32> to vector<1x12x12xf32>
    %8 = vector.broadcast %7 : vector<1x12x12xf32> to vector<12x12x12xf32>
    %9 = arith.select %6, %8, %2 : vector<12x12x12xi1>, vector<12x12x12xf32>
    %10 = vector.extract_strided_slice %1 {offsets = [2, 2, 0], sizes = [12, 12, 12], strides = [1, 1, 1]} : vector<16x16x16xf32> to vector<12x12x12xf32>
    %11 = tpu.iota {dimensions = array<i32: 2>} : vector<12x12x12xi32>
    %12 = vector.extract_strided_slice %10 {offsets = [0, 0, 9], sizes = [12, 12, 1], strides = [1, 1, 1]} : vector<12x12x12xf32> to vector<12x12x1xf32>
    %c10_i32_3 = arith.constant 10 : i32
    %13 = vector.broadcast %c10_i32_3 : i32 to vector<12x12x12xi32>
    %14 = arith.cmpi sge, %11, %13 : vector<12x12x12xi32>
    %15 = vector.shape_cast %12 : vector<12x12x1xf32> to vector<12x12x1xf32>
    %16 = vector.broadcast %15 : vector<12x12x1xf32> to vector<12x12x12xf32>
    %17 = arith.select %14, %16, %10 : vector<12x12x12xi1>, vector<12x12x12xf32>
    %18 = vector.extract_strided_slice %1 {offsets = [2, 0, 2], sizes = [12, 12, 12], strides = [1, 1, 1]} : vector<16x16x16xf32> to vector<12x12x12xf32>
    %19 = tpu.iota {dimensions = array<i32: 1>} : vector<12x12x12xi32>
    %20 = vector.extract_strided_slice %18 {offsets = [0, 9, 0], sizes = [12, 1, 12], strides = [1, 1, 1]} : vector<12x12x12xf32> to vector<12x1x12xf32>
    %c10_i32_4 = arith.constant 10 : i32
    %21 = vector.broadcast %c10_i32_4 : i32 to vector<12x12x12xi32>
    %22 = arith.cmpi sge, %19, %21 : vector<12x12x12xi32>
    %23 = vector.shape_cast %20 : vector<12x1x12xf32> to vector<12x1x12xf32>
    %24 = vector.broadcast %23 : vector<12x1x12xf32> to vector<12x12x12xf32>
    %25 = arith.select %22, %24, %18 : vector<12x12x12xi1>, vector<12x12x12xf32>
    %26 = vector.extract_strided_slice %1 {offsets = [2, 2, 4], sizes = [12, 12, 12], strides = [1, 1, 1]} : vector<16x16x16xf32> to vector<12x12x12xf32>
    %27 = tpu.iota {dimensions = array<i32: 2>} : vector<12x12x12xi32>
    %28 = vector.extract_strided_slice %26 {offsets = [0, 0, 2], sizes = [12, 12, 1], strides = [1, 1, 1]} : vector<12x12x12xf32> to vector<12x12x1xf32>
    %c2_i32 = arith.constant 2 : i32
    %29 = vector.broadcast %c2_i32 : i32 to vector<12x12x12xi32>
    %30 = arith.cmpi slt, %27, %29 : vector<12x12x12xi32>
    %31 = vector.shape_cast %28 : vector<12x12x1xf32> to vector<12x12x1xf32>
    %32 = vector.broadcast %31 : vector<12x12x1xf32> to vector<12x12x12xf32>
    %33 = arith.select %30, %32, %26 : vector<12x12x12xi1>, vector<12x12x12xf32>
    %34 = vector.extract_strided_slice %1 {offsets = [4, 2, 2], sizes = [12, 12, 12], strides = [1, 1, 1]} : vector<16x16x16xf32> to vector<12x12x12xf32>
    %35 = tpu.iota {dimensions = array<i32: 0>} : vector<12x12x12xi32>
    %36 = vector.extract_strided_slice %34 {offsets = [2, 0, 0], sizes = [1, 12, 12], strides = [1, 1, 1]} : vector<12x12x12xf32> to vector<1x12x12xf32>
    %c2_i32_5 = arith.constant 2 : i32
    %37 = vector.broadcast %c2_i32_5 : i32 to vector<12x12x12xi32>
    %38 = arith.cmpi slt, %35, %37 : vector<12x12x12xi32>
    %39 = vector.shape_cast %36 : vector<1x12x12xf32> to vector<1x12x12xf32>
    %40 = vector.broadcast %39 : vector<1x12x12xf32> to vector<12x12x12xf32>
    %41 = arith.select %38, %40, %34 : vector<12x12x12xi1>, vector<12x12x12xf32>
    %42 = vector.extract_strided_slice %1 {offsets = [2, 4, 2], sizes = [12, 12, 12], strides = [1, 1, 1]} : vector<16x16x16xf32> to vector<12x12x12xf32>
    %43 = tpu.iota {dimensions = array<i32: 1>} : vector<12x12x12xi32>
    %44 = vector.extract_strided_slice %42 {offsets = [0, 2, 0], sizes = [12, 1, 12], strides = [1, 1, 1]} : vector<12x12x12xf32> to vector<12x1x12xf32>
    %c2_i32_6 = arith.constant 2 : i32
    %45 = vector.broadcast %c2_i32_6 : i32 to vector<12x12x12xi32>
    %46 = arith.cmpi slt, %43, %45 : vector<12x12x12xi32>
    %47 = vector.shape_cast %44 : vector<12x1x12xf32> to vector<12x1x12xf32>
    %48 = vector.broadcast %47 : vector<12x1x12xf32> to vector<12x12x12xf32>
    %49 = arith.select %46, %48, %42 : vector<12x12x12xi1>, vector<12x12x12xf32>
    %50 = arith.subf %41, %25 : vector<12x12x12xf32>
    %51 = arith.mulf %50, %50 : vector<12x12x12xf32>
    %52 = vector.extract_strided_slice %51 {offsets = [0, 0, 0], sizes = [12, 12, 8], strides = [1, 1, 1]} : vector<12x12x12xf32> to vector<12x12x8xf32>
    %53 = vector.extract_strided_slice %51 {offsets = [0, 0, 1], sizes = [12, 12, 8], strides = [1, 1, 1]} : vector<12x12x12xf32> to vector<12x12x8xf32>
    %54 = arith.addf %52, %53 : vector<12x12x8xf32>
    %55 = vector.extract_strided_slice %51 {offsets = [0, 0, 2], sizes = [12, 12, 8], strides = [1, 1, 1]} : vector<12x12x12xf32> to vector<12x12x8xf32>
    %56 = arith.addf %54, %55 : vector<12x12x8xf32>
    %57 = vector.extract_strided_slice %51 {offsets = [0, 0, 3], sizes = [12, 12, 8], strides = [1, 1, 1]} : vector<12x12x12xf32> to vector<12x12x8xf32>
    %58 = arith.addf %56, %57 : vector<12x12x8xf32>
    %59 = vector.extract_strided_slice %51 {offsets = [0, 0, 4], sizes = [12, 12, 8], strides = [1, 1, 1]} : vector<12x12x12xf32> to vector<12x12x8xf32>
    %60 = arith.addf %58, %59 : vector<12x12x8xf32>
    %61 = vector.extract_strided_slice %60 {offsets = [0, 0, 0], sizes = [12, 8, 8], strides = [1, 1, 1]} : vector<12x12x8xf32> to vector<12x8x8xf32>
    %62 = vector.extract_strided_slice %60 {offsets = [0, 1, 0], sizes = [12, 8, 8], strides = [1, 1, 1]} : vector<12x12x8xf32> to vector<12x8x8xf32>
    %63 = arith.addf %61, %62 : vector<12x8x8xf32>
    %64 = vector.extract_strided_slice %60 {offsets = [0, 2, 0], sizes = [12, 8, 8], strides = [1, 1, 1]} : vector<12x12x8xf32> to vector<12x8x8xf32>
    %65 = arith.addf %63, %64 : vector<12x8x8xf32>
    %66 = vector.extract_strided_slice %60 {offsets = [0, 3, 0], sizes = [12, 8, 8], strides = [1, 1, 1]} : vector<12x12x8xf32> to vector<12x8x8xf32>
    %67 = arith.addf %65, %66 : vector<12x8x8xf32>
    %68 = vector.extract_strided_slice %60 {offsets = [0, 4, 0], sizes = [12, 8, 8], strides = [1, 1, 1]} : vector<12x12x8xf32> to vector<12x8x8xf32>
    %69 = arith.addf %67, %68 : vector<12x8x8xf32>
    %70 = vector.extract_strided_slice %69 {offsets = [0, 0, 0], sizes = [8, 8, 8], strides = [1, 1, 1]} : vector<12x8x8xf32> to vector<8x8x8xf32>
    %71 = vector.extract_strided_slice %69 {offsets = [1, 0, 0], sizes = [8, 8, 8], strides = [1, 1, 1]} : vector<12x8x8xf32> to vector<8x8x8xf32>
    %72 = arith.addf %70, %71 : vector<8x8x8xf32>
    %73 = vector.extract_strided_slice %69 {offsets = [2, 0, 0], sizes = [8, 8, 8], strides = [1, 1, 1]} : vector<12x8x8xf32> to vector<8x8x8xf32>
    %74 = arith.addf %72, %73 : vector<8x8x8xf32>
    %75 = vector.extract_strided_slice %69 {offsets = [3, 0, 0], sizes = [8, 8, 8], strides = [1, 1, 1]} : vector<12x8x8xf32> to vector<8x8x8xf32>
    %76 = arith.addf %74, %75 : vector<8x8x8xf32>
    %77 = vector.extract_strided_slice %69 {offsets = [4, 0, 0], sizes = [8, 8, 8], strides = [1, 1, 1]} : vector<12x8x8xf32> to vector<8x8x8xf32>
    %78 = arith.addf %76, %77 : vector<8x8x8xf32>
    %cst = arith.constant 8.000000e-03 : f32
    %79 = vector.broadcast %cst : f32 to vector<8x8x8xf32>
    %80 = arith.mulf %78, %79 : vector<8x8x8xf32>
    %c0_7 = arith.constant 0 : index
    %c0_8 = arith.constant 0 : index
    %c0_9 = arith.constant 0 : index
    %c0_10 = arith.constant 0 : index
    %c0_11 = arith.constant 0 : index
    %81 = vector.load %arg2[%c0_7, %c0_8, %c0_9, %c0_10, %c0_11] : memref<1x12x8x8x8xf32, #tpu.memory_space<vmem>>, vector<1x1x8x8x8xf32>
    %82 = vector.shape_cast %81 : vector<1x1x8x8x8xf32> to vector<8x8x8xf32>
    %83 = vector.shape_cast %80 : vector<8x8x8xf32> to vector<1x1x8x8x8xf32>
    tpu.vector_store %arg2[%c0_7, %c0_8, %c0_9, %c0_10, %c0_11], %83 {strides = array<i32>} : memref<1x12x8x8x8xf32, #tpu.memory_space<vmem>>, vector<1x1x8x8x8xf32>,
    %84 = arith.subf %49, %9 : vector<12x12x12xf32>
    %85 = arith.mulf %84, %84 : vector<12x12x12xf32>
    %86 = vector.extract_strided_slice %85 {offsets = [0, 0, 0], sizes = [12, 12, 8], strides = [1, 1, 1]} : vector<12x12x12xf32> to vector<12x12x8xf32>
    %87 = vector.extract_strided_slice %85 {offsets = [0, 0, 1], sizes = [12, 12, 8], strides = [1, 1, 1]} : vector<12x12x12xf32> to vector<12x12x8xf32>
    %88 = arith.addf %86, %87 : vector<12x12x8xf32>
    %89 = vector.extract_strided_slice %85 {offsets = [0, 0, 2], sizes = [12, 12, 8], strides = [1, 1, 1]} : vector<12x12x12xf32> to vector<12x12x8xf32>
    %90 = arith.addf %88, %89 : vector<12x12x8xf32>
    %91 = vector.extract_strided_slice %85 {offsets = [0, 0, 3], sizes = [12, 12, 8], strides = [1, 1, 1]} : vector<12x12x12xf32> to vector<12x12x8xf32>
    %92 = arith.addf %90, %91 : vector<12x12x8xf32>
    %93 = vector.extract_strided_slice %85 {offsets = [0, 0, 4], sizes = [12, 12, 8], strides = [1, 1, 1]} : vector<12x12x12xf32> to vector<12x12x8xf32>
    %94 = arith.addf %92, %93 : vector<12x12x8xf32>
    %95 = vector.extract_strided_slice %94 {offsets = [0, 0, 0], sizes = [12, 8, 8], strides = [1, 1, 1]} : vector<12x12x8xf32> to vector<12x8x8xf32>
    %96 = vector.extract_strided_slice %94 {offsets = [0, 1, 0], sizes = [12, 8, 8], strides = [1, 1, 1]} : vector<12x12x8xf32> to vector<12x8x8xf32>
    %97 = arith.addf %95, %96 : vector<12x8x8xf32>
    %98 = vector.extract_strided_slice %94 {offsets = [0, 2, 0], sizes = [12, 8, 8], strides = [1, 1, 1]} : vector<12x12x8xf32> to vector<12x8x8xf32>
    %99 = arith.addf %97, %98 : vector<12x8x8xf32>
    %100 = vector.extract_strided_slice %94 {offsets = [0, 3, 0], sizes = [12, 8, 8], strides = [1, 1, 1]} : vector<12x12x8xf32> to vector<12x8x8xf32>
    %101 = arith.addf %99, %100 : vector<12x8x8xf32>
    %102 = vector.extract_strided_slice %94 {offsets = [0, 4, 0], sizes = [12, 8, 8], strides = [1, 1, 1]} : vector<12x12x8xf32> to vector<12x8x8xf32>
    %103 = arith.addf %101, %102 : vector<12x8x8xf32>
    %104 = vector.extract_strided_slice %103 {offsets = [0, 0, 0], sizes = [8, 8, 8], strides = [1, 1, 1]} : vector<12x8x8xf32> to vector<8x8x8xf32>
    %105 = vector.extract_strided_slice %103 {offsets = [1, 0, 0], sizes = [8, 8, 8], strides = [1, 1, 1]} : vector<12x8x8xf32> to vector<8x8x8xf32>
    %106 = arith.addf %104, %105 : vector<8x8x8xf32>
    %107 = vector.extract_strided_slice %103 {offsets = [2, 0, 0], sizes = [8, 8, 8], strides = [1, 1, 1]} : vector<12x8x8xf32> to vector<8x8x8xf32>
    %108 = arith.addf %106, %107 : vector<8x8x8xf32>
    %109 = vector.extract_strided_slice %103 {offsets = [3, 0, 0], sizes = [8, 8, 8], strides = [1, 1, 1]} : vector<12x8x8xf32> to vector<8x8x8xf32>
    %110 = arith.addf %108, %109 : vector<8x8x8xf32>
    %111 = vector.extract_strided_slice %103 {offsets = [4, 0, 0], sizes = [8, 8, 8], strides = [1, 1, 1]} : vector<12x8x8xf32> to vector<8x8x8xf32>
    %112 = arith.addf %110, %111 : vector<8x8x8xf32>
    %cst_12 = arith.constant 8.000000e-03 : f32
    %113 = vector.broadcast %cst_12 : f32 to vector<8x8x8xf32>
    %114 = arith.mulf %112, %113 : vector<8x8x8xf32>
    %c0_13 = arith.constant 0 : index
    %c1 = arith.constant 1 : index
    %c0_14 = arith.constant 0 : index
    %c0_15 = arith.constant 0 : index
    %c0_16 = arith.constant 0 : index
    %115 = vector.load %arg2[%c0_13, %c1, %c0_14, %c0_15, %c0_16] : memref<1x12x8x8x8xf32, #tpu.memory_space<vmem>>, vector<1x1x8x8x8xf32>
    %116 = vector.shape_cast %115 : vector<1x1x8x8x8xf32> to vector<8x8x8xf32>
    %117 = vector.shape_cast %114 : vector<8x8x8xf32> to vector<1x1x8x8x8xf32>
    tpu.vector_store %arg2[%c0_13, %c1, %c0_14, %c0_15, %c0_16], %117 {strides = array<i32>} : memref<1x12x8x8x8xf32, #tpu.memory_space<vmem>>, vector<1x1x8x8x8xf32>,
    %118 = arith.minimumf %80, %114 : vector<8x8x8xf32>
    %119 = arith.addf %80, %114 : vector<8x8x8xf32>
    %120 = arith.subf %25, %9 : vector<12x12x12xf32>
    %121 = arith.mulf %120, %120 : vector<12x12x12xf32>
    %122 = vector.extract_strided_slice %121 {offsets = [0, 0, 0], sizes = [12, 12, 8], strides = [1, 1, 1]} : vector<12x12x12xf32> to vector<12x12x8xf32>
    %123 = vector.extract_strided_slice %121 {offsets = [0, 0, 1], sizes = [12, 12, 8], strides = [1, 1, 1]} : vector<12x12x12xf32> to vector<12x12x8xf32>
    %124 = arith.addf %122, %123 : vector<12x12x8xf32>
    %125 = vector.extract_strided_slice %121 {offsets = [0, 0, 2], sizes = [12, 12, 8], strides = [1, 1, 1]} : vector<12x12x12xf32> to vector<12x12x8xf32>
    %126 = arith.addf %124, %125 : vector<12x12x8xf32>
    %127 = vector.extract_strided_slice %121 {offsets = [0, 0, 3], sizes = [12, 12, 8], strides = [1, 1, 1]} : vector<12x12x12xf32> to vector<12x12x8xf32>
    %128 = arith.addf %126, %127 : vector<12x12x8xf32>
    %129 = vector.extract_strided_slice %121 {offsets = [0, 0, 4], sizes = [12, 12, 8], strides = [1, 1, 1]} : vector<12x12x12xf32> to vector<12x12x8xf32>
    %130 = arith.addf %128, %129 : vector<12x12x8xf32>
    %131 = vector.extract_strided_slice %130 {offsets = [0, 0, 0], sizes = [12, 8, 8], strides = [1, 1, 1]} : vector<12x12x8xf32> to vector<12x8x8xf32>
    %132 = vector.extract_strided_slice %130 {offsets = [0, 1, 0], sizes = [12, 8, 8], strides = [1, 1, 1]} : vector<12x12x8xf32> to vector<12x8x8xf32>
    %133 = arith.addf %131, %132 : vector<12x8x8xf32>
    %134 = vector.extract_strided_slice %130 {offsets = [0, 2, 0], sizes = [12, 8, 8], strides = [1, 1, 1]} : vector<12x12x8xf32> to vector<12x8x8xf32>
    %135 = arith.addf %133, %134 : vector<12x8x8xf32>
    %136 = vector.extract_strided_slice %130 {offsets = [0, 3, 0], sizes = [12, 8, 8], strides = [1, 1, 1]} : vector<12x12x8xf32> to vector<12x8x8xf32>
    %137 = arith.addf %135, %136 : vector<12x8x8xf32>
    %138 = vector.extract_strided_slice %130 {offsets = [0, 4, 0], sizes = [12, 8, 8], strides = [1, 1, 1]} : vector<12x12x8xf32> to vector<12x8x8xf32>
    %139 = arith.addf %137, %138 : vector<12x8x8xf32>
    %140 = vector.extract_strided_slice %139 {offsets = [0, 0, 0], sizes = [8, 8, 8], strides = [1, 1, 1]} : vector<12x8x8xf32> to vector<8x8x8xf32>
    %141 = vector.extract_strided_slice %139 {offsets = [1, 0, 0], sizes = [8, 8, 8], strides = [1, 1, 1]} : vector<12x8x8xf32> to vector<8x8x8xf32>
    %142 = arith.addf %140, %141 : vector<8x8x8xf32>
    %143 = vector.extract_strided_slice %139 {offsets = [2, 0, 0], sizes = [8, 8, 8], strides = [1, 1, 1]} : vector<12x8x8xf32> to vector<8x8x8xf32>
    %144 = arith.addf %142, %143 : vector<8x8x8xf32>
    %145 = vector.extract_strided_slice %139 {offsets = [3, 0, 0], sizes = [8, 8, 8], strides = [1, 1, 1]} : vector<12x8x8xf32> to vector<8x8x8xf32>
    %146 = arith.addf %144, %145 : vector<8x8x8xf32>
    %147 = vector.extract_strided_slice %139 {offsets = [4, 0, 0], sizes = [8, 8, 8], strides = [1, 1, 1]} : vector<12x8x8xf32> to vector<8x8x8xf32>
    %148 = arith.addf %146, %147 : vector<8x8x8xf32>
    %cst_17 = arith.constant 8.000000e-03 : f32
    %149 = vector.broadcast %cst_17 : f32 to vector<8x8x8xf32>
    %150 = arith.mulf %148, %149 : vector<8x8x8xf32>
    %c0_18 = arith.constant 0 : index
    %c2 = arith.constant 2 : index
    %c0_19 = arith.constant 0 : index
    %c0_20 = arith.constant 0 : index
    %c0_21 = arith.constant 0 : index
    %151 = vector.load %arg2[%c0_18, %c2, %c0_19, %c0_20, %c0_21] : memref<1x12x8x8x8xf32, #tpu.memory_space<vmem>>, vector<1x1x8x8x8xf32>
    %152 = vector.shape_cast %151 : vector<1x1x8x8x8xf32> to vector<8x8x8xf32>
    %153 = vector.shape_cast %150 : vector<8x8x8xf32> to vector<1x1x8x8x8xf32>
    tpu.vector_store %arg2[%c0_18, %c2, %c0_19, %c0_20, %c0_21], %153 {strides = array<i32>} : memref<1x12x8x8x8xf32, #tpu.memory_space<vmem>>, vector<1x1x8x8x8xf32>,
    %154 = arith.minimumf %118, %150 : vector<8x8x8xf32>
    %155 = arith.addf %119, %150 : vector<8x8x8xf32>
    %156 = arith.subf %49, %41 : vector<12x12x12xf32>
    %157 = arith.mulf %156, %156 : vector<12x12x12xf32>
    %158 = vector.extract_strided_slice %157 {offsets = [0, 0, 0], sizes = [12, 12, 8], strides = [1, 1, 1]} : vector<12x12x12xf32> to vector<12x12x8xf32>
    %159 = vector.extract_strided_slice %157 {offsets = [0, 0, 1], sizes = [12, 12, 8], strides = [1, 1, 1]} : vector<12x12x12xf32> to vector<12x12x8xf32>
    %160 = arith.addf %158, %159 : vector<12x12x8xf32>
    %161 = vector.extract_strided_slice %157 {offsets = [0, 0, 2], sizes = [12, 12, 8], strides = [1, 1, 1]} : vector<12x12x12xf32> to vector<12x12x8xf32>
    %162 = arith.addf %160, %161 : vector<12x12x8xf32>
    %163 = vector.extract_strided_slice %157 {offsets = [0, 0, 3], sizes = [12, 12, 8], strides = [1, 1, 1]} : vector<12x12x12xf32> to vector<12x12x8xf32>
    %164 = arith.addf %162, %163 : vector<12x12x8xf32>
    %165 = vector.extract_strided_slice %157 {offsets = [0, 0, 4], sizes = [12, 12, 8], strides = [1, 1, 1]} : vector<12x12x12xf32> to vector<12x12x8xf32>
    %166 = arith.addf %164, %165 : vector<12x12x8xf32>
    %167 = vector.extract_strided_slice %166 {offsets = [0, 0, 0], sizes = [12, 8, 8], strides = [1, 1, 1]} : vector<12x12x8xf32> to vector<12x8x8xf32>
    %168 = vector.extract_strided_slice %166 {offsets = [0, 1, 0], sizes = [12, 8, 8], strides = [1, 1, 1]} : vector<12x12x8xf32> to vector<12x8x8xf32>
    %169 = arith.addf %167, %168 : vector<12x8x8xf32>
    %170 = vector.extract_strided_slice %166 {offsets = [0, 2, 0], sizes = [12, 8, 8], strides = [1, 1, 1]} : vector<12x12x8xf32> to vector<12x8x8xf32>
    %171 = arith.addf %169, %170 : vector<12x8x8xf32>
    %172 = vector.extract_strided_slice %166 {offsets = [0, 3, 0], sizes = [12, 8, 8], strides = [1, 1, 1]} : vector<12x12x8xf32> to vector<12x8x8xf32>
    %173 = arith.addf %171, %172 : vector<12x8x8xf32>
    %174 = vector.extract_strided_slice %166 {offsets = [0, 4, 0], sizes = [12, 8, 8], strides = [1, 1, 1]} : vector<12x12x8xf32> to vector<12x8x8xf32>
    %175 = arith.addf %173, %174 : vector<12x8x8xf32>
    %176 = vector.extract_strided_slice %175 {offsets = [0, 0, 0], sizes = [8, 8, 8], strides = [1, 1, 1]} : vector<12x8x8xf32> to vector<8x8x8xf32>
    %177 = vector.extract_strided_slice %175 {offsets = [1, 0, 0], sizes = [8, 8, 8], strides = [1, 1, 1]} : vector<12x8x8xf32> to vector<8x8x8xf32>
    %178 = arith.addf %176, %177 : vector<8x8x8xf32>
    %179 = vector.extract_strided_slice %175 {offsets = [2, 0, 0], sizes = [8, 8, 8], strides = [1, 1, 1]} : vector<12x8x8xf32> to vector<8x8x8xf32>
    %180 = arith.addf %178, %179 : vector<8x8x8xf32>
    %181 = vector.extract_strided_slice %175 {offsets = [3, 0, 0], sizes = [8, 8, 8], strides = [1, 1, 1]} : vector<12x8x8xf32> to vector<8x8x8xf32>
    %182 = arith.addf %180, %181 : vector<8x8x8xf32>
    %183 = vector.extract_strided_slice %175 {offsets = [4, 0, 0], sizes = [8, 8, 8], strides = [1, 1, 1]} : vector<12x8x8xf32> to vector<8x8x8xf32>
    %184 = arith.addf %182, %183 : vector<8x8x8xf32>
    %cst_22 = arith.constant 8.000000e-03 : f32
    %185 = vector.broadcast %cst_22 : f32 to vector<8x8x8xf32>
    %186 = arith.mulf %184, %185 : vector<8x8x8xf32>
    %c0_23 = arith.constant 0 : index
    %c3 = arith.constant 3 : index
    %c0_24 = arith.constant 0 : index
    %c0_25 = arith.constant 0 : index
    %c0_26 = arith.constant 0 : index
    %187 = vector.load %arg2[%c0_23, %c3, %c0_24, %c0_25, %c0_26] : memref<1x12x8x8x8xf32, #tpu.memory_space<vmem>>, vector<1x1x8x8x8xf32>
    %188 = vector.shape_cast %187 : vector<1x1x8x8x8xf32> to vector<8x8x8xf32>
    %189 = vector.shape_cast %186 : vector<8x8x8xf32> to vector<1x1x8x8x8xf32>
    tpu.vector_store %arg2[%c0_23, %c3, %c0_24, %c0_25, %c0_26], %189 {strides = array<i32>} : memref<1x12x8x8x8xf32, #tpu.memory_space<vmem>>, vector<1x1x8x8x8xf32>,
    %190 = arith.minimumf %154, %186 : vector<8x8x8xf32>
    %191 = arith.addf %155, %186 : vector<8x8x8xf32>
    %192 = arith.subf %25, %17 : vector<12x12x12xf32>
    %193 = arith.mulf %192, %192 : vector<12x12x12xf32>
    %194 = vector.extract_strided_slice %193 {offsets = [0, 0, 0], sizes = [12, 12, 8], strides = [1, 1, 1]} : vector<12x12x12xf32> to vector<12x12x8xf32>
    %195 = vector.extract_strided_slice %193 {offsets = [0, 0, 1], sizes = [12, 12, 8], strides = [1, 1, 1]} : vector<12x12x12xf32> to vector<12x12x8xf32>
    %196 = arith.addf %194, %195 : vector<12x12x8xf32>
    %197 = vector.extract_strided_slice %193 {offsets = [0, 0, 2], sizes = [12, 12, 8], strides = [1, 1, 1]} : vector<12x12x12xf32> to vector<12x12x8xf32>
    %198 = arith.addf %196, %197 : vector<12x12x8xf32>
    %199 = vector.extract_strided_slice %193 {offsets = [0, 0, 3], sizes = [12, 12, 8], strides = [1, 1, 1]} : vector<12x12x12xf32> to vector<12x12x8xf32>
    %200 = arith.addf %198, %199 : vector<12x12x8xf32>
    %201 = vector.extract_strided_slice %193 {offsets = [0, 0, 4], sizes = [12, 12, 8], strides = [1, 1, 1]} : vector<12x12x12xf32> to vector<12x12x8xf32>
    %202 = arith.addf %200, %201 : vector<12x12x8xf32>
    %203 = vector.extract_strided_slice %202 {offsets = [0, 0, 0], sizes = [12, 8, 8], strides = [1, 1, 1]} : vector<12x12x8xf32> to vector<12x8x8xf32>
    %204 = vector.extract_strided_slice %202 {offsets = [0, 1, 0], sizes = [12, 8, 8], strides = [1, 1, 1]} : vector<12x12x8xf32> to vector<12x8x8xf32>
    %205 = arith.addf %203, %204 : vector<12x8x8xf32>
    %206 = vector.extract_strided_slice %202 {offsets = [0, 2, 0], sizes = [12, 8, 8], strides = [1, 1, 1]} : vector<12x12x8xf32> to vector<12x8x8xf32>
    %207 = arith.addf %205, %206 : vector<12x8x8xf32>
    %208 = vector.extract_strided_slice %202 {offsets = [0, 3, 0], sizes = [12, 8, 8], strides = [1, 1, 1]} : vector<12x12x8xf32> to vector<12x8x8xf32>
    %209 = arith.addf %207, %208 : vector<12x8x8xf32>
    %210 = vector.extract_strided_slice %202 {offsets = [0, 4, 0], sizes = [12, 8, 8], strides = [1, 1, 1]} : vector<12x12x8xf32> to vector<12x8x8xf32>
    %211 = arith.addf %209, %210 : vector<12x8x8xf32>
    %212 = vector.extract_strided_slice %211 {offsets = [0, 0, 0], sizes = [8, 8, 8], strides = [1, 1, 1]} : vector<12x8x8xf32> to vector<8x8x8xf32>
    %213 = vector.extract_strided_slice %211 {offsets = [1, 0, 0], sizes = [8, 8, 8], strides = [1, 1, 1]} : vector<12x8x8xf32> to vector<8x8x8xf32>
    %214 = arith.addf %212, %213 : vector<8x8x8xf32>
    %215 = vector.extract_strided_slice %211 {offsets = [2, 0, 0], sizes = [8, 8, 8], strides = [1, 1, 1]} : vector<12x8x8xf32> to vector<8x8x8xf32>
    %216 = arith.addf %214, %215 : vector<8x8x8xf32>
    %217 = vector.extract_strided_slice %211 {offsets = [3, 0, 0], sizes = [8, 8, 8], strides = [1, 1, 1]} : vector<12x8x8xf32> to vector<8x8x8xf32>
    %218 = arith.addf %216, %217 : vector<8x8x8xf32>
    %219 = vector.extract_strided_slice %211 {offsets = [4, 0, 0], sizes = [8, 8, 8], strides = [1, 1, 1]} : vector<12x8x8xf32> to vector<8x8x8xf32>
    %220 = arith.addf %218, %219 : vector<8x8x8xf32>
    %cst_27 = arith.constant 8.000000e-03 : f32
    %221 = vector.broadcast %cst_27 : f32 to vector<8x8x8xf32>
    %222 = arith.mulf %220, %221 : vector<8x8x8xf32>
    %c0_28 = arith.constant 0 : index
    %c4 = arith.constant 4 : index
    %c0_29 = arith.constant 0 : index
    %c0_30 = arith.constant 0 : index
    %c0_31 = arith.constant 0 : index
    %223 = vector.load %arg2[%c0_28, %c4, %c0_29, %c0_30, %c0_31] : memref<1x12x8x8x8xf32, #tpu.memory_space<vmem>>, vector<1x1x8x8x8xf32>
    %224 = vector.shape_cast %223 : vector<1x1x8x8x8xf32> to vector<8x8x8xf32>
    %225 = vector.shape_cast %222 : vector<8x8x8xf32> to vector<1x1x8x8x8xf32>
    tpu.vector_store %arg2[%c0_28, %c4, %c0_29, %c0_30, %c0_31], %225 {strides = array<i32>} : memref<1x12x8x8x8xf32, #tpu.memory_space<vmem>>, vector<1x1x8x8x8xf32>,
    %226 = arith.minimumf %190, %222 : vector<8x8x8xf32>
    %227 = arith.addf %191, %222 : vector<8x8x8xf32>
    %228 = arith.subf %49, %33 : vector<12x12x12xf32>
    %229 = arith.mulf %228, %228 : vector<12x12x12xf32>
    %230 = vector.extract_strided_slice %229 {offsets = [0, 0, 0], sizes = [12, 12, 8], strides = [1, 1, 1]} : vector<12x12x12xf32> to vector<12x12x8xf32>
    %231 = vector.extract_strided_slice %229 {offsets = [0, 0, 1], sizes = [12, 12, 8], strides = [1, 1, 1]} : vector<12x12x12xf32> to vector<12x12x8xf32>
    %232 = arith.addf %230, %231 : vector<12x12x8xf32>
    %233 = vector.extract_strided_slice %229 {offsets = [0, 0, 2], sizes = [12, 12, 8], strides = [1, 1, 1]} : vector<12x12x12xf32> to vector<12x12x8xf32>
    %234 = arith.addf %232, %233 : vector<12x12x8xf32>
    %235 = vector.extract_strided_slice %229 {offsets = [0, 0, 3], sizes = [12, 12, 8], strides = [1, 1, 1]} : vector<12x12x12xf32> to vector<12x12x8xf32>
    %236 = arith.addf %234, %235 : vector<12x12x8xf32>
    %237 = vector.extract_strided_slice %229 {offsets = [0, 0, 4], sizes = [12, 12, 8], strides = [1, 1, 1]} : vector<12x12x12xf32> to vector<12x12x8xf32>
    %238 = arith.addf %236, %237 : vector<12x12x8xf32>
    %239 = vector.extract_strided_slice %238 {offsets = [0, 0, 0], sizes = [12, 8, 8], strides = [1, 1, 1]} : vector<12x12x8xf32> to vector<12x8x8xf32>
    %240 = vector.extract_strided_slice %238 {offsets = [0, 1, 0], sizes = [12, 8, 8], strides = [1, 1, 1]} : vector<12x12x8xf32> to vector<12x8x8xf32>
    %241 = arith.addf %239, %240 : vector<12x8x8xf32>
    %242 = vector.extract_strided_slice %238 {offsets = [0, 2, 0], sizes = [12, 8, 8], strides = [1, 1, 1]} : vector<12x12x8xf32> to vector<12x8x8xf32>
    %243 = arith.addf %241, %242 : vector<12x8x8xf32>
    %244 = vector.extract_strided_slice %238 {offsets = [0, 3, 0], sizes = [12, 8, 8], strides = [1, 1, 1]} : vector<12x12x8xf32> to vector<12x8x8xf32>
    %245 = arith.addf %243, %244 : vector<12x8x8xf32>
    %246 = vector.extract_strided_slice %238 {offsets = [0, 4, 0], sizes = [12, 8, 8], strides = [1, 1, 1]} : vector<12x12x8xf32> to vector<12x8x8xf32>
    %247 = arith.addf %245, %246 : vector<12x8x8xf32>
    %248 = vector.extract_strided_slice %247 {offsets = [0, 0, 0], sizes = [8, 8, 8], strides = [1, 1, 1]} : vector<12x8x8xf32> to vector<8x8x8xf32>
    %249 = vector.extract_strided_slice %247 {offsets = [1, 0, 0], sizes = [8, 8, 8], strides = [1, 1, 1]} : vector<12x8x8xf32> to vector<8x8x8xf32>
    %250 = arith.addf %248, %249 : vector<8x8x8xf32>
    %251 = vector.extract_strided_slice %247 {offsets = [2, 0, 0], sizes = [8, 8, 8], strides = [1, 1, 1]} : vector<12x8x8xf32> to vector<8x8x8xf32>
    %252 = arith.addf %250, %251 : vector<8x8x8xf32>
    %253 = vector.extract_strided_slice %247 {offsets = [3, 0, 0], sizes = [8, 8, 8], strides = [1, 1, 1]} : vector<12x8x8xf32> to vector<8x8x8xf32>
    %254 = arith.addf %252, %253 : vector<8x8x8xf32>
    %255 = vector.extract_strided_slice %247 {offsets = [4, 0, 0], sizes = [8, 8, 8], strides = [1, 1, 1]} : vector<12x8x8xf32> to vector<8x8x8xf32>
    %256 = arith.addf %254, %255 : vector<8x8x8xf32>
    %cst_32 = arith.constant 8.000000e-03 : f32
    %257 = vector.broadcast %cst_32 : f32 to vector<8x8x8xf32>
    %258 = arith.mulf %256, %257 : vector<8x8x8xf32>
    %c0_33 = arith.constant 0 : index
    %c5 = arith.constant 5 : index
    %c0_34 = arith.constant 0 : index
    %c0_35 = arith.constant 0 : index
    %c0_36 = arith.constant 0 : index
    %259 = vector.load %arg2[%c0_33, %c5, %c0_34, %c0_35, %c0_36] : memref<1x12x8x8x8xf32, #tpu.memory_space<vmem>>, vector<1x1x8x8x8xf32>
    %260 = vector.shape_cast %259 : vector<1x1x8x8x8xf32> to vector<8x8x8xf32>
    %261 = vector.shape_cast %258 : vector<8x8x8xf32> to vector<1x1x8x8x8xf32>
    tpu.vector_store %arg2[%c0_33, %c5, %c0_34, %c0_35, %c0_36], %261 {strides = array<i32>} : memref<1x12x8x8x8xf32, #tpu.memory_space<vmem>>, vector<1x1x8x8x8xf32>,
    %262 = arith.minimumf %226, %258 : vector<8x8x8xf32>
    %263 = arith.addf %227, %258 : vector<8x8x8xf32>
    %264 = arith.subf %17, %9 : vector<12x12x12xf32>
    %265 = arith.mulf %264, %264 : vector<12x12x12xf32>
    %266 = vector.extract_strided_slice %265 {offsets = [0, 0, 0], sizes = [12, 12, 8], strides = [1, 1, 1]} : vector<12x12x12xf32> to vector<12x12x8xf32>
    %267 = vector.extract_strided_slice %265 {offsets = [0, 0, 1], sizes = [12, 12, 8], strides = [1, 1, 1]} : vector<12x12x12xf32> to vector<12x12x8xf32>
    %268 = arith.addf %266, %267 : vector<12x12x8xf32>
    %269 = vector.extract_strided_slice %265 {offsets = [0, 0, 2], sizes = [12, 12, 8], strides = [1, 1, 1]} : vector<12x12x12xf32> to vector<12x12x8xf32>
    %270 = arith.addf %268, %269 : vector<12x12x8xf32>
    %271 = vector.extract_strided_slice %265 {offsets = [0, 0, 3], sizes = [12, 12, 8], strides = [1, 1, 1]} : vector<12x12x12xf32> to vector<12x12x8xf32>
    %272 = arith.addf %270, %271 : vector<12x12x8xf32>
    %273 = vector.extract_strided_slice %265 {offsets = [0, 0, 4], sizes = [12, 12, 8], strides = [1, 1, 1]} : vector<12x12x12xf32> to vector<12x12x8xf32>
    %274 = arith.addf %272, %273 : vector<12x12x8xf32>
    %275 = vector.extract_strided_slice %274 {offsets = [0, 0, 0], sizes = [12, 8, 8], strides = [1, 1, 1]} : vector<12x12x8xf32> to vector<12x8x8xf32>
    %276 = vector.extract_strided_slice %274 {offsets = [0, 1, 0], sizes = [12, 8, 8], strides = [1, 1, 1]} : vector<12x12x8xf32> to vector<12x8x8xf32>
    %277 = arith.addf %275, %276 : vector<12x8x8xf32>
    %278 = vector.extract_strided_slice %274 {offsets = [0, 2, 0], sizes = [12, 8, 8], strides = [1, 1, 1]} : vector<12x12x8xf32> to vector<12x8x8xf32>
    %279 = arith.addf %277, %278 : vector<12x8x8xf32>
    %280 = vector.extract_strided_slice %274 {offsets = [0, 3, 0], sizes = [12, 8, 8], strides = [1, 1, 1]} : vector<12x12x8xf32> to vector<12x8x8xf32>
    %281 = arith.addf %279, %280 : vector<12x8x8xf32>
    %282 = vector.extract_strided_slice %274 {offsets = [0, 4, 0], sizes = [12, 8, 8], strides = [1, 1, 1]} : vector<12x12x8xf32> to vector<12x8x8xf32>
    %283 = arith.addf %281, %282 : vector<12x8x8xf32>
    %284 = vector.extract_strided_slice %283 {offsets = [0, 0, 0], sizes = [8, 8, 8], strides = [1, 1, 1]} : vector<12x8x8xf32> to vector<8x8x8xf32>
    %285 = vector.extract_strided_slice %283 {offsets = [1, 0, 0], sizes = [8, 8, 8], strides = [1, 1, 1]} : vector<12x8x8xf32> to vector<8x8x8xf32>
    %286 = arith.addf %284, %285 : vector<8x8x8xf32>
    %287 = vector.extract_strided_slice %283 {offsets = [2, 0, 0], sizes = [8, 8, 8], strides = [1, 1, 1]} : vector<12x8x8xf32> to vector<8x8x8xf32>
    %288 = arith.addf %286, %287 : vector<8x8x8xf32>
    %289 = vector.extract_strided_slice %283 {offsets = [3, 0, 0], sizes = [8, 8, 8], strides = [1, 1, 1]} : vector<12x8x8xf32> to vector<8x8x8xf32>
    %290 = arith.addf %288, %289 : vector<8x8x8xf32>
    %291 = vector.extract_strided_slice %283 {offsets = [4, 0, 0], sizes = [8, 8, 8], strides = [1, 1, 1]} : vector<12x8x8xf32> to vector<8x8x8xf32>
    %292 = arith.addf %290, %291 : vector<8x8x8xf32>
    %cst_37 = arith.constant 8.000000e-03 : f32
    %293 = vector.broadcast %cst_37 : f32 to vector<8x8x8xf32>
    %294 = arith.mulf %292, %293 : vector<8x8x8xf32>
    %c0_38 = arith.constant 0 : index
    %c6 = arith.constant 6 : index
    %c0_39 = arith.constant 0 : index
    %c0_40 = arith.constant 0 : index
    %c0_41 = arith.constant 0 : index
    %295 = vector.load %arg2[%c0_38, %c6, %c0_39, %c0_40, %c0_41] : memref<1x12x8x8x8xf32, #tpu.memory_space<vmem>>, vector<1x1x8x8x8xf32>
    %296 = vector.shape_cast %295 : vector<1x1x8x8x8xf32> to vector<8x8x8xf32>
    %297 = vector.shape_cast %294 : vector<8x8x8xf32> to vector<1x1x8x8x8xf32>
    tpu.vector_store %arg2[%c0_38, %c6, %c0_39, %c0_40, %c0_41], %297 {strides = array<i32>} : memref<1x12x8x8x8xf32, #tpu.memory_space<vmem>>, vector<1x1x8x8x8xf32>,
    %298 = arith.minimumf %262, %294 : vector<8x8x8xf32>
    %299 = arith.addf %263, %294 : vector<8x8x8xf32>
    %300 = arith.subf %41, %33 : vector<12x12x12xf32>
    %301 = arith.mulf %300, %300 : vector<12x12x12xf32>
    %302 = vector.extract_strided_slice %301 {offsets = [0, 0, 0], sizes = [12, 12, 8], strides = [1, 1, 1]} : vector<12x12x12xf32> to vector<12x12x8xf32>
    %303 = vector.extract_strided_slice %301 {offsets = [0, 0, 1], sizes = [12, 12, 8], strides = [1, 1, 1]} : vector<12x12x12xf32> to vector<12x12x8xf32>
    %304 = arith.addf %302, %303 : vector<12x12x8xf32>
    %305 = vector.extract_strided_slice %301 {offsets = [0, 0, 2], sizes = [12, 12, 8], strides = [1, 1, 1]} : vector<12x12x12xf32> to vector<12x12x8xf32>
    %306 = arith.addf %304, %305 : vector<12x12x8xf32>
    %307 = vector.extract_strided_slice %301 {offsets = [0, 0, 3], sizes = [12, 12, 8], strides = [1, 1, 1]} : vector<12x12x12xf32> to vector<12x12x8xf32>
    %308 = arith.addf %306, %307 : vector<12x12x8xf32>
    %309 = vector.extract_strided_slice %301 {offsets = [0, 0, 4], sizes = [12, 12, 8], strides = [1, 1, 1]} : vector<12x12x12xf32> to vector<12x12x8xf32>
    %310 = arith.addf %308, %309 : vector<12x12x8xf32>
    %311 = vector.extract_strided_slice %310 {offsets = [0, 0, 0], sizes = [12, 8, 8], strides = [1, 1, 1]} : vector<12x12x8xf32> to vector<12x8x8xf32>
    %312 = vector.extract_strided_slice %310 {offsets = [0, 1, 0], sizes = [12, 8, 8], strides = [1, 1, 1]} : vector<12x12x8xf32> to vector<12x8x8xf32>
    %313 = arith.addf %311, %312 : vector<12x8x8xf32>
    %314 = vector.extract_strided_slice %310 {offsets = [0, 2, 0], sizes = [12, 8, 8], strides = [1, 1, 1]} : vector<12x12x8xf32> to vector<12x8x8xf32>
    %315 = arith.addf %313, %314 : vector<12x8x8xf32>
    %316 = vector.extract_strided_slice %310 {offsets = [0, 3, 0], sizes = [12, 8, 8], strides = [1, 1, 1]} : vector<12x12x8xf32> to vector<12x8x8xf32>
    %317 = arith.addf %315, %316 : vector<12x8x8xf32>
    %318 = vector.extract_strided_slice %310 {offsets = [0, 4, 0], sizes = [12, 8, 8], strides = [1, 1, 1]} : vector<12x12x8xf32> to vector<12x8x8xf32>
    %319 = arith.addf %317, %318 : vector<12x8x8xf32>
    %320 = vector.extract_strided_slice %319 {offsets = [0, 0, 0], sizes = [8, 8, 8], strides = [1, 1, 1]} : vector<12x8x8xf32> to vector<8x8x8xf32>
    %321 = vector.extract_strided_slice %319 {offsets = [1, 0, 0], sizes = [8, 8, 8], strides = [1, 1, 1]} : vector<12x8x8xf32> to vector<8x8x8xf32>
    %322 = arith.addf %320, %321 : vector<8x8x8xf32>
    %323 = vector.extract_strided_slice %319 {offsets = [2, 0, 0], sizes = [8, 8, 8], strides = [1, 1, 1]} : vector<12x8x8xf32> to vector<8x8x8xf32>
    %324 = arith.addf %322, %323 : vector<8x8x8xf32>
    %325 = vector.extract_strided_slice %319 {offsets = [3, 0, 0], sizes = [8, 8, 8], strides = [1, 1, 1]} : vector<12x8x8xf32> to vector<8x8x8xf32>
    %326 = arith.addf %324, %325 : vector<8x8x8xf32>
    %327 = vector.extract_strided_slice %319 {offsets = [4, 0, 0], sizes = [8, 8, 8], strides = [1, 1, 1]} : vector<12x8x8xf32> to vector<8x8x8xf32>
    %328 = arith.addf %326, %327 : vector<8x8x8xf32>
    %cst_42 = arith.constant 8.000000e-03 : f32
    %329 = vector.broadcast %cst_42 : f32 to vector<8x8x8xf32>
    %330 = arith.mulf %328, %329 : vector<8x8x8xf32>
    %c0_43 = arith.constant 0 : index
    %c7 = arith.constant 7 : index
    %c0_44 = arith.constant 0 : index
    %c0_45 = arith.constant 0 : index
    %c0_46 = arith.constant 0 : index
    %331 = vector.load %arg2[%c0_43, %c7, %c0_44, %c0_45, %c0_46] : memref<1x12x8x8x8xf32, #tpu.memory_space<vmem>>, vector<1x1x8x8x8xf32>
    %332 = vector.shape_cast %331 : vector<1x1x8x8x8xf32> to vector<8x8x8xf32>
    %333 = vector.shape_cast %330 : vector<8x8x8xf32> to vector<1x1x8x8x8xf32>
    tpu.vector_store %arg2[%c0_43, %c7, %c0_44, %c0_45, %c0_46], %333 {strides = array<i32>} : memref<1x12x8x8x8xf32, #tpu.memory_space<vmem>>, vector<1x1x8x8x8xf32>,
    %334 = arith.minimumf %298, %330 : vector<8x8x8xf32>
    %335 = arith.addf %299, %330 : vector<8x8x8xf32>
    %336 = arith.subf %49, %17 : vector<12x12x12xf32>
    %337 = arith.mulf %336, %336 : vector<12x12x12xf32>
    %338 = vector.extract_strided_slice %337 {offsets = [0, 0, 0], sizes = [12, 12, 8], strides = [1, 1, 1]} : vector<12x12x12xf32> to vector<12x12x8xf32>
    %339 = vector.extract_strided_slice %337 {offsets = [0, 0, 1], sizes = [12, 12, 8], strides = [1, 1, 1]} : vector<12x12x12xf32> to vector<12x12x8xf32>
    %340 = arith.addf %338, %339 : vector<12x12x8xf32>
    %341 = vector.extract_strided_slice %337 {offsets = [0, 0, 2], sizes = [12, 12, 8], strides = [1, 1, 1]} : vector<12x12x12xf32> to vector<12x12x8xf32>
    %342 = arith.addf %340, %341 : vector<12x12x8xf32>
    %343 = vector.extract_strided_slice %337 {offsets = [0, 0, 3], sizes = [12, 12, 8], strides = [1, 1, 1]} : vector<12x12x12xf32> to vector<12x12x8xf32>
    %344 = arith.addf %342, %343 : vector<12x12x8xf32>
    %345 = vector.extract_strided_slice %337 {offsets = [0, 0, 4], sizes = [12, 12, 8], strides = [1, 1, 1]} : vector<12x12x12xf32> to vector<12x12x8xf32>
    %346 = arith.addf %344, %345 : vector<12x12x8xf32>
    %347 = vector.extract_strided_slice %346 {offsets = [0, 0, 0], sizes = [12, 8, 8], strides = [1, 1, 1]} : vector<12x12x8xf32> to vector<12x8x8xf32>
    %348 = vector.extract_strided_slice %346 {offsets = [0, 1, 0], sizes = [12, 8, 8], strides = [1, 1, 1]} : vector<12x12x8xf32> to vector<12x8x8xf32>
    %349 = arith.addf %347, %348 : vector<12x8x8xf32>
    %350 = vector.extract_strided_slice %346 {offsets = [0, 2, 0], sizes = [12, 8, 8], strides = [1, 1, 1]} : vector<12x12x8xf32> to vector<12x8x8xf32>
    %351 = arith.addf %349, %350 : vector<12x8x8xf32>
    %352 = vector.extract_strided_slice %346 {offsets = [0, 3, 0], sizes = [12, 8, 8], strides = [1, 1, 1]} : vector<12x12x8xf32> to vector<12x8x8xf32>
    %353 = arith.addf %351, %352 : vector<12x8x8xf32>
    %354 = vector.extract_strided_slice %346 {offsets = [0, 4, 0], sizes = [12, 8, 8], strides = [1, 1, 1]} : vector<12x12x8xf32> to vector<12x8x8xf32>
    %355 = arith.addf %353, %354 : vector<12x8x8xf32>
    %356 = vector.extract_strided_slice %355 {offsets = [0, 0, 0], sizes = [8, 8, 8], strides = [1, 1, 1]} : vector<12x8x8xf32> to vector<8x8x8xf32>
    %357 = vector.extract_strided_slice %355 {offsets = [1, 0, 0], sizes = [8, 8, 8], strides = [1, 1, 1]} : vector<12x8x8xf32> to vector<8x8x8xf32>
    %358 = arith.addf %356, %357 : vector<8x8x8xf32>
    %359 = vector.extract_strided_slice %355 {offsets = [2, 0, 0], sizes = [8, 8, 8], strides = [1, 1, 1]} : vector<12x8x8xf32> to vector<8x8x8xf32>
    %360 = arith.addf %358, %359 : vector<8x8x8xf32>
    %361 = vector.extract_strided_slice %355 {offsets = [3, 0, 0], sizes = [8, 8, 8], strides = [1, 1, 1]} : vector<12x8x8xf32> to vector<8x8x8xf32>
    %362 = arith.addf %360, %361 : vector<8x8x8xf32>
    %363 = vector.extract_strided_slice %355 {offsets = [4, 0, 0], sizes = [8, 8, 8], strides = [1, 1, 1]} : vector<12x8x8xf32> to vector<8x8x8xf32>
    %364 = arith.addf %362, %363 : vector<8x8x8xf32>
    %cst_47 = arith.constant 8.000000e-03 : f32
    %365 = vector.broadcast %cst_47 : f32 to vector<8x8x8xf32>
    %366 = arith.mulf %364, %365 : vector<8x8x8xf32>
    %c0_48 = arith.constant 0 : index
    %c8 = arith.constant 8 : index
    %c0_49 = arith.constant 0 : index
    %c0_50 = arith.constant 0 : index
    %c0_51 = arith.constant 0 : index
    %367 = vector.load %arg2[%c0_48, %c8, %c0_49, %c0_50, %c0_51] : memref<1x12x8x8x8xf32, #tpu.memory_space<vmem>>, vector<1x1x8x8x8xf32>
    %368 = vector.shape_cast %367 : vector<1x1x8x8x8xf32> to vector<8x8x8xf32>
    %369 = vector.shape_cast %366 : vector<8x8x8xf32> to vector<1x1x8x8x8xf32>
    tpu.vector_store %arg2[%c0_48, %c8, %c0_49, %c0_50, %c0_51], %369 {strides = array<i32>} : memref<1x12x8x8x8xf32, #tpu.memory_space<vmem>>, vector<1x1x8x8x8xf32>,
    %370 = arith.minimumf %334, %366 : vector<8x8x8xf32>
    %371 = arith.addf %335, %366 : vector<8x8x8xf32>
    %372 = arith.subf %33, %25 : vector<12x12x12xf32>
    %373 = arith.mulf %372, %372 : vector<12x12x12xf32>
    %374 = vector.extract_strided_slice %373 {offsets = [0, 0, 0], sizes = [12, 12, 8], strides = [1, 1, 1]} : vector<12x12x12xf32> to vector<12x12x8xf32>
    %375 = vector.extract_strided_slice %373 {offsets = [0, 0, 1], sizes = [12, 12, 8], strides = [1, 1, 1]} : vector<12x12x12xf32> to vector<12x12x8xf32>
    %376 = arith.addf %374, %375 : vector<12x12x8xf32>
    %377 = vector.extract_strided_slice %373 {offsets = [0, 0, 2], sizes = [12, 12, 8], strides = [1, 1, 1]} : vector<12x12x12xf32> to vector<12x12x8xf32>
    %378 = arith.addf %376, %377 : vector<12x12x8xf32>
    %379 = vector.extract_strided_slice %373 {offsets = [0, 0, 3], sizes = [12, 12, 8], strides = [1, 1, 1]} : vector<12x12x12xf32> to vector<12x12x8xf32>
    %380 = arith.addf %378, %379 : vector<12x12x8xf32>
    %381 = vector.extract_strided_slice %373 {offsets = [0, 0, 4], sizes = [12, 12, 8], strides = [1, 1, 1]} : vector<12x12x12xf32> to vector<12x12x8xf32>
    %382 = arith.addf %380, %381 : vector<12x12x8xf32>
    %383 = vector.extract_strided_slice %382 {offsets = [0, 0, 0], sizes = [12, 8, 8], strides = [1, 1, 1]} : vector<12x12x8xf32> to vector<12x8x8xf32>
    %384 = vector.extract_strided_slice %382 {offsets = [0, 1, 0], sizes = [12, 8, 8], strides = [1, 1, 1]} : vector<12x12x8xf32> to vector<12x8x8xf32>
    %385 = arith.addf %383, %384 : vector<12x8x8xf32>
    %386 = vector.extract_strided_slice %382 {offsets = [0, 2, 0], sizes = [12, 8, 8], strides = [1, 1, 1]} : vector<12x12x8xf32> to vector<12x8x8xf32>
    %387 = arith.addf %385, %386 : vector<12x8x8xf32>
    %388 = vector.extract_strided_slice %382 {offsets = [0, 3, 0], sizes = [12, 8, 8], strides = [1, 1, 1]} : vector<12x12x8xf32> to vector<12x8x8xf32>
    %389 = arith.addf %387, %388 : vector<12x8x8xf32>
    %390 = vector.extract_strided_slice %382 {offsets = [0, 4, 0], sizes = [12, 8, 8], strides = [1, 1, 1]} : vector<12x12x8xf32> to vector<12x8x8xf32>
    %391 = arith.addf %389, %390 : vector<12x8x8xf32>
    %392 = vector.extract_strided_slice %391 {offsets = [0, 0, 0], sizes = [8, 8, 8], strides = [1, 1, 1]} : vector<12x8x8xf32> to vector<8x8x8xf32>
    %393 = vector.extract_strided_slice %391 {offsets = [1, 0, 0], sizes = [8, 8, 8], strides = [1, 1, 1]} : vector<12x8x8xf32> to vector<8x8x8xf32>
    %394 = arith.addf %392, %393 : vector<8x8x8xf32>
    %395 = vector.extract_strided_slice %391 {offsets = [2, 0, 0], sizes = [8, 8, 8], strides = [1, 1, 1]} : vector<12x8x8xf32> to vector<8x8x8xf32>
    %396 = arith.addf %394, %395 : vector<8x8x8xf32>
    %397 = vector.extract_strided_slice %391 {offsets = [3, 0, 0], sizes = [8, 8, 8], strides = [1, 1, 1]} : vector<12x8x8xf32> to vector<8x8x8xf32>
    %398 = arith.addf %396, %397 : vector<8x8x8xf32>
    %399 = vector.extract_strided_slice %391 {offsets = [4, 0, 0], sizes = [8, 8, 8], strides = [1, 1, 1]} : vector<12x8x8xf32> to vector<8x8x8xf32>
    %400 = arith.addf %398, %399 : vector<8x8x8xf32>
    %cst_52 = arith.constant 8.000000e-03 : f32
    %401 = vector.broadcast %cst_52 : f32 to vector<8x8x8xf32>
    %402 = arith.mulf %400, %401 : vector<8x8x8xf32>
    %c0_53 = arith.constant 0 : index
    %c9 = arith.constant 9 : index
    %c0_54 = arith.constant 0 : index
    %c0_55 = arith.constant 0 : index
    %c0_56 = arith.constant 0 : index
    %403 = vector.load %arg2[%c0_53, %c9, %c0_54, %c0_55, %c0_56] : memref<1x12x8x8x8xf32, #tpu.memory_space<vmem>>, vector<1x1x8x8x8xf32>
    %404 = vector.shape_cast %403 : vector<1x1x8x8x8xf32> to vector<8x8x8xf32>
    %405 = vector.shape_cast %402 : vector<8x8x8xf32> to vector<1x1x8x8x8xf32>
    tpu.vector_store %arg2[%c0_53, %c9, %c0_54, %c0_55, %c0_56], %405 {strides = array<i32>} : memref<1x12x8x8x8xf32, #tpu.memory_space<vmem>>, vector<1x1x8x8x8xf32>,
    %406 = arith.minimumf %370, %402 : vector<8x8x8xf32>
    %407 = arith.addf %371, %402 : vector<8x8x8xf32>
    %408 = arith.subf %41, %17 : vector<12x12x12xf32>
    %409 = arith.mulf %408, %408 : vector<12x12x12xf32>
    %410 = vector.extract_strided_slice %409 {offsets = [0, 0, 0], sizes = [12, 12, 8], strides = [1, 1, 1]} : vector<12x12x12xf32> to vector<12x12x8xf32>
    %411 = vector.extract_strided_slice %409 {offsets = [0, 0, 1], sizes = [12, 12, 8], strides = [1, 1, 1]} : vector<12x12x12xf32> to vector<12x12x8xf32>
    %412 = arith.addf %410, %411 : vector<12x12x8xf32>
    %413 = vector.extract_strided_slice %409 {offsets = [0, 0, 2], sizes = [12, 12, 8], strides = [1, 1, 1]} : vector<12x12x12xf32> to vector<12x12x8xf32>
    %414 = arith.addf %412, %413 : vector<12x12x8xf32>
    %415 = vector.extract_strided_slice %409 {offsets = [0, 0, 3], sizes = [12, 12, 8], strides = [1, 1, 1]} : vector<12x12x12xf32> to vector<12x12x8xf32>
    %416 = arith.addf %414, %415 : vector<12x12x8xf32>
    %417 = vector.extract_strided_slice %409 {offsets = [0, 0, 4], sizes = [12, 12, 8], strides = [1, 1, 1]} : vector<12x12x12xf32> to vector<12x12x8xf32>
    %418 = arith.addf %416, %417 : vector<12x12x8xf32>
    %419 = vector.extract_strided_slice %418 {offsets = [0, 0, 0], sizes = [12, 8, 8], strides = [1, 1, 1]} : vector<12x12x8xf32> to vector<12x8x8xf32>
    %420 = vector.extract_strided_slice %418 {offsets = [0, 1, 0], sizes = [12, 8, 8], strides = [1, 1, 1]} : vector<12x12x8xf32> to vector<12x8x8xf32>
    %421 = arith.addf %419, %420 : vector<12x8x8xf32>
    %422 = vector.extract_strided_slice %418 {offsets = [0, 2, 0], sizes = [12, 8, 8], strides = [1, 1, 1]} : vector<12x12x8xf32> to vector<12x8x8xf32>
    %423 = arith.addf %421, %422 : vector<12x8x8xf32>
    %424 = vector.extract_strided_slice %418 {offsets = [0, 3, 0], sizes = [12, 8, 8], strides = [1, 1, 1]} : vector<12x12x8xf32> to vector<12x8x8xf32>
    %425 = arith.addf %423, %424 : vector<12x8x8xf32>
    %426 = vector.extract_strided_slice %418 {offsets = [0, 4, 0], sizes = [12, 8, 8], strides = [1, 1, 1]} : vector<12x12x8xf32> to vector<12x8x8xf32>
    %427 = arith.addf %425, %426 : vector<12x8x8xf32>
    %428 = vector.extract_strided_slice %427 {offsets = [0, 0, 0], sizes = [8, 8, 8], strides = [1, 1, 1]} : vector<12x8x8xf32> to vector<8x8x8xf32>
    %429 = vector.extract_strided_slice %427 {offsets = [1, 0, 0], sizes = [8, 8, 8], strides = [1, 1, 1]} : vector<12x8x8xf32> to vector<8x8x8xf32>
    %430 = arith.addf %428, %429 : vector<8x8x8xf32>
    %431 = vector.extract_strided_slice %427 {offsets = [2, 0, 0], sizes = [8, 8, 8], strides = [1, 1, 1]} : vector<12x8x8xf32> to vector<8x8x8xf32>
    %432 = arith.addf %430, %431 : vector<8x8x8xf32>
    %433 = vector.extract_strided_slice %427 {offsets = [3, 0, 0], sizes = [8, 8, 8], strides = [1, 1, 1]} : vector<12x8x8xf32> to vector<8x8x8xf32>
    %434 = arith.addf %432, %433 : vector<8x8x8xf32>
    %435 = vector.extract_strided_slice %427 {offsets = [4, 0, 0], sizes = [8, 8, 8], strides = [1, 1, 1]} : vector<12x8x8xf32> to vector<8x8x8xf32>
    %436 = arith.addf %434, %435 : vector<8x8x8xf32>
    %cst_57 = arith.constant 8.000000e-03 : f32
    %437 = vector.broadcast %cst_57 : f32 to vector<8x8x8xf32>
    %438 = arith.mulf %436, %437 : vector<8x8x8xf32>
    %c0_58 = arith.constant 0 : index
    %c10 = arith.constant 10 : index
    %c0_59 = arith.constant 0 : index
    %c0_60 = arith.constant 0 : index
    %c0_61 = arith.constant 0 : index
    %439 = vector.load %arg2[%c0_58, %c10, %c0_59, %c0_60, %c0_61] : memref<1x12x8x8x8xf32, #tpu.memory_space<vmem>>, vector<1x1x8x8x8xf32>
    %440 = vector.shape_cast %439 : vector<1x1x8x8x8xf32> to vector<8x8x8xf32>
    %441 = vector.shape_cast %438 : vector<8x8x8xf32> to vector<1x1x8x8x8xf32>
    tpu.vector_store %arg2[%c0_58, %c10, %c0_59, %c0_60, %c0_61], %441 {strides = array<i32>} : memref<1x12x8x8x8xf32, #tpu.memory_space<vmem>>, vector<1x1x8x8x8xf32>,
    %442 = arith.minimumf %406, %438 : vector<8x8x8xf32>
    %443 = arith.addf %407, %438 : vector<8x8x8xf32>
    %444 = arith.subf %33, %9 : vector<12x12x12xf32>
    %445 = arith.mulf %444, %444 : vector<12x12x12xf32>
    %446 = vector.extract_strided_slice %445 {offsets = [0, 0, 0], sizes = [12, 12, 8], strides = [1, 1, 1]} : vector<12x12x12xf32> to vector<12x12x8xf32>
    %447 = vector.extract_strided_slice %445 {offsets = [0, 0, 1], sizes = [12, 12, 8], strides = [1, 1, 1]} : vector<12x12x12xf32> to vector<12x12x8xf32>
    %448 = arith.addf %446, %447 : vector<12x12x8xf32>
    %449 = vector.extract_strided_slice %445 {offsets = [0, 0, 2], sizes = [12, 12, 8], strides = [1, 1, 1]} : vector<12x12x12xf32> to vector<12x12x8xf32>
    %450 = arith.addf %448, %449 : vector<12x12x8xf32>
    %451 = vector.extract_strided_slice %445 {offsets = [0, 0, 3], sizes = [12, 12, 8], strides = [1, 1, 1]} : vector<12x12x12xf32> to vector<12x12x8xf32>
    %452 = arith.addf %450, %451 : vector<12x12x8xf32>
    %453 = vector.extract_strided_slice %445 {offsets = [0, 0, 4], sizes = [12, 12, 8], strides = [1, 1, 1]} : vector<12x12x12xf32> to vector<12x12x8xf32>
    %454 = arith.addf %452, %453 : vector<12x12x8xf32>
    %455 = vector.extract_strided_slice %454 {offsets = [0, 0, 0], sizes = [12, 8, 8], strides = [1, 1, 1]} : vector<12x12x8xf32> to vector<12x8x8xf32>
    %456 = vector.extract_strided_slice %454 {offsets = [0, 1, 0], sizes = [12, 8, 8], strides = [1, 1, 1]} : vector<12x12x8xf32> to vector<12x8x8xf32>
    %457 = arith.addf %455, %456 : vector<12x8x8xf32>
    %458 = vector.extract_strided_slice %454 {offsets = [0, 2, 0], sizes = [12, 8, 8], strides = [1, 1, 1]} : vector<12x12x8xf32> to vector<12x8x8xf32>
    %459 = arith.addf %457, %458 : vector<12x8x8xf32>
    %460 = vector.extract_strided_slice %454 {offsets = [0, 3, 0], sizes = [12, 8, 8], strides = [1, 1, 1]} : vector<12x12x8xf32> to vector<12x8x8xf32>
    %461 = arith.addf %459, %460 : vector<12x8x8xf32>
    %462 = vector.extract_strided_slice %454 {offsets = [0, 4, 0], sizes = [12, 8, 8], strides = [1, 1, 1]} : vector<12x12x8xf32> to vector<12x8x8xf32>
    %463 = arith.addf %461, %462 : vector<12x8x8xf32>
    %464 = vector.extract_strided_slice %463 {offsets = [0, 0, 0], sizes = [8, 8, 8], strides = [1, 1, 1]} : vector<12x8x8xf32> to vector<8x8x8xf32>
    %465 = vector.extract_strided_slice %463 {offsets = [1, 0, 0], sizes = [8, 8, 8], strides = [1, 1, 1]} : vector<12x8x8xf32> to vector<8x8x8xf32>
    %466 = arith.addf %464, %465 : vector<8x8x8xf32>
    %467 = vector.extract_strided_slice %463 {offsets = [2, 0, 0], sizes = [8, 8, 8], strides = [1, 1, 1]} : vector<12x8x8xf32> to vector<8x8x8xf32>
    %468 = arith.addf %466, %467 : vector<8x8x8xf32>
    %469 = vector.extract_strided_slice %463 {offsets = [3, 0, 0], sizes = [8, 8, 8], strides = [1, 1, 1]} : vector<12x8x8xf32> to vector<8x8x8xf32>
    %470 = arith.addf %468, %469 : vector<8x8x8xf32>
    %471 = vector.extract_strided_slice %463 {offsets = [4, 0, 0], sizes = [8, 8, 8], strides = [1, 1, 1]} : vector<12x8x8xf32> to vector<8x8x8xf32>
    %472 = arith.addf %470, %471 : vector<8x8x8xf32>
    %cst_62 = arith.constant 8.000000e-03 : f32
    %473 = vector.broadcast %cst_62 : f32 to vector<8x8x8xf32>
    %474 = arith.mulf %472, %473 : vector<8x8x8xf32>
    %c0_63 = arith.constant 0 : index
    %c11 = arith.constant 11 : index
    %c0_64 = arith.constant 0 : index
    %c0_65 = arith.constant 0 : index
    %c0_66 = arith.constant 0 : index
    %475 = vector.load %arg2[%c0_63, %c11, %c0_64, %c0_65, %c0_66] : memref<1x12x8x8x8xf32, #tpu.memory_space<vmem>>, vector<1x1x8x8x8xf32>
    %476 = vector.shape_cast %475 : vector<1x1x8x8x8xf32> to vector<8x8x8xf32>
    %477 = vector.shape_cast %474 : vector<8x8x8xf32> to vector<1x1x8x8x8xf32>
    tpu.vector_store %arg2[%c0_63, %c11, %c0_64, %c0_65, %c0_66], %477 {strides = array<i32>} : memref<1x12x8x8x8xf32, #tpu.memory_space<vmem>>, vector<1x1x8x8x8xf32>,
    %478 = arith.minimumf %442, %474 : vector<8x8x8xf32>
    %479 = arith.addf %443, %474 : vector<8x8x8xf32>
    %cst_67 = arith.constant 0.0833333358 : f32
    %480 = vector.broadcast %cst_67 : f32 to vector<8x8x8xf32>
    %481 = arith.mulf %479, %480 : vector<8x8x8xf32>
    %482 = arith.subf %481, %478 : vector<8x8x8xf32>
    %483 = vector.shape_cast %482 : vector<8x8x8xf32> to vector<1x8x8x8xf32>
    %cst_68 = arith.constant dense<0.000000e+00> : vector<1xf32>
    %484 = vector.multi_reduction <add>, %483, %cst_68 [1, 2, 3] : vector<1x8x8x8xf32> to vector<1xf32>
    %485 = vector.shape_cast %484 : vector<1xf32> to vector<1x1x1x1xf32>
    %486 = vector.extract %485[0, 0, 0, 0] : f32 from vector<1x1x1x1xf32>
    %487 = vector.broadcast %486 : f32 to vector<8x128xf32>
    %c0_69 = arith.constant 0 : index
    %c0_70 = arith.constant 0 : index
    %c0_71 = arith.constant 0 : index
    %488 = vector.load %arg3[%c0_69, %c0_70, %c0_71] : memref<1x8x128xf32, #tpu.memory_space<vmem>>, vector<1x8x128xf32>
    %489 = vector.shape_cast %488 : vector<1x8x128xf32> to vector<8x128xf32>
    %490 = vector.shape_cast %487 : vector<8x128xf32> to vector<1x8x128xf32>
    tpu.vector_store %arg3[%c0_69, %c0_70, %c0_71], %490 {strides = array<i32>} : memref<1x8x128xf32, #tpu.memory_space<vmem>>, vector<1x8x128xf32>,
    return
  }
  func.func @transform_0(%arg0: i32) -> (i32, i32, i32, i32) {
    %c0_i32 = arith.constant 0 : i32
    %c0_i32_0 = arith.constant 0 : i32
    %c0_i32_1 = arith.constant 0 : i32
    %c0_i32_2 = arith.constant 0 : i32
    return %arg0, %c0_i32, %c0_i32_0, %c0_i32_1 : i32, i32, i32, i32
  }
  func.func @transform_1(%arg0: i32) -> (i32, i32, i32, i32, i32) {
    %c0_i32 = arith.constant 0 : i32
    %c0_i32_0 = arith.constant 0 : i32
    %c0_i32_1 = arith.constant 0 : i32
    %c0_i32_2 = arith.constant 0 : i32
    %c0_i32_3 = arith.constant 0 : i32
    return %arg0, %c0_i32, %c0_i32_0, %c0_i32_1, %c0_i32_2 : i32, i32, i32, i32, i32
  }
  func.func @transform_2(%arg0: i32) -> (i32, i32, i32) {
    %c0_i32 = arith.constant 0 : i32
    %c0_i32_0 = arith.constant 0 : i32
    %c0_i32_1 = arith.constant 0 : i32
    return %arg0, %c0_i32, %c0_i32_0 : i32, i32, i32
  }
}

module attributes {stable_mosaic.version = 11 : i64} {
  func.func @_mind_err_kernel(%arg0: i32, %arg1: i32, %arg2: memref<2x2xf32, #tpu.memory_space<smem>>, %arg3: memref<1x12x512xf32, #tpu.memory_space<vmem>>, %arg4: memref<1x12x512xf32, #tpu.memory_space<vmem>>, %arg5: memref<1x12x512xf32, #tpu.memory_space<vmem>>, %arg6: memref<1x1x8x128xf32, #tpu.memory_space<vmem>>) attributes {dimension_semantics = [#tpu.dimension_semantics<parallel>, #tpu.dimension_semantics<parallel>], iteration_bounds = array<i64: 2, 1>, scalar_prefetch = 0 : i64, scratch_operands = 0 : i64, tpu.core_type = #tpu.core_type<tc>, window_params = [{transform_indices = @transform_0, window_bounds = array<i64: 2, 2>}, {transform_indices = @transform_1, window_bounds = array<i64: 1, 12, 512>}, {transform_indices = @transform_2, window_bounds = array<i64: 1, 12, 512>}, {transform_indices = @transform_3, window_bounds = array<i64: 1, 12, 512>}, {transform_indices = @transform_4, window_bounds = array<i64: 1, 1, 8, 128>}]} {
    %c0 = arith.constant 0 : index
    %c0_0 = arith.constant 0 : index
    %c0_1 = arith.constant 0 : index
    %0 = vector.load %arg3[%c0, %c0_0, %c0_1] : memref<1x12x512xf32, #tpu.memory_space<vmem>>, vector<1x12x512xf32>
    %1 = vector.shape_cast %0 : vector<1x12x512xf32> to vector<12x512xf32>
    %c0_2 = arith.constant 0 : index
    %c0_3 = arith.constant 0 : index
    %c0_4 = arith.constant 0 : index
    %2 = vector.load %arg4[%c0_2, %c0_3, %c0_4] : memref<1x12x512xf32, #tpu.memory_space<vmem>>, vector<1x12x512xf32>
    %3 = vector.shape_cast %2 : vector<1x12x512xf32> to vector<12x512xf32>
    %cst = arith.constant dense<0x7F800000> : vector<512xf32>
    %4 = vector.multi_reduction <minimumf>, %1, %cst [0] : vector<12x512xf32> to vector<512xf32>
    %5 = vector.shape_cast %4 : vector<512xf32> to vector<1x512xf32>
    %cst_5 = arith.constant dense<0.000000e+00> : vector<512xf32>
    %6 = vector.multi_reduction <add>, %1, %cst_5 [0] : vector<12x512xf32> to vector<512xf32>
    %7 = vector.shape_cast %6 : vector<512xf32> to vector<1x512xf32>
    %cst_6 = arith.constant 1.200000e+01 : f32
    %8 = vector.broadcast %cst_6 : f32 to vector<1x512xf32>
    %9 = arith.divf %7, %8 : vector<1x512xf32>
    %10 = arith.subf %9, %5 : vector<1x512xf32>
    %c0_7 = arith.constant 0 : index
    %c0_8 = arith.constant 0 : index
    %11 = memref.load %arg2[%c0_7, %c0_8] : memref<2x2xf32, #tpu.memory_space<smem>>
    %c0_9 = arith.constant 0 : index
    %c1 = arith.constant 1 : index
    %12 = memref.load %arg2[%c0_9, %c1] : memref<2x2xf32, #tpu.memory_space<smem>>
    %13 = vector.broadcast %11 : f32 to vector<1x512xf32>
    %14 = arith.maximumf %13, %10 : vector<1x512xf32>
    %15 = vector.broadcast %12 : f32 to vector<1x512xf32>
    %16 = arith.minimumf %15, %14 : vector<1x512xf32>
    %17 = vector.broadcast %5 : vector<1x512xf32> to vector<12x512xf32>
    %18 = arith.subf %1, %17 : vector<12x512xf32>
    %cst_10 = arith.constant 0.000000e+00 : f32
    %19 = vector.broadcast %cst_10 : f32 to vector<12x512xf32>
    %20 = arith.subf %19, %18 : vector<12x512xf32>
    %21 = vector.broadcast %16 : vector<1x512xf32> to vector<12x512xf32>
    %22 = arith.divf %20, %21 : vector<12x512xf32>
    %23 = math.exp %22 : vector<12x512xf32>
    %cst_11 = arith.constant dense<0x7F800000> : vector<512xf32>
    %24 = vector.multi_reduction <minimumf>, %3, %cst_11 [0] : vector<12x512xf32> to vector<512xf32>
    %25 = vector.shape_cast %24 : vector<512xf32> to vector<1x512xf32>
    %cst_12 = arith.constant dense<0.000000e+00> : vector<512xf32>
    %26 = vector.multi_reduction <add>, %3, %cst_12 [0] : vector<12x512xf32> to vector<512xf32>
    %27 = vector.shape_cast %26 : vector<512xf32> to vector<1x512xf32>
    %cst_13 = arith.constant 1.200000e+01 : f32
    %28 = vector.broadcast %cst_13 : f32 to vector<1x512xf32>
    %29 = arith.divf %27, %28 : vector<1x512xf32>
    %30 = arith.subf %29, %25 : vector<1x512xf32>
    %c1_14 = arith.constant 1 : index
    %c0_15 = arith.constant 0 : index
    %31 = memref.load %arg2[%c1_14, %c0_15] : memref<2x2xf32, #tpu.memory_space<smem>>
    %c1_16 = arith.constant 1 : index
    %c1_17 = arith.constant 1 : index
    %32 = memref.load %arg2[%c1_16, %c1_17] : memref<2x2xf32, #tpu.memory_space<smem>>
    %33 = vector.broadcast %31 : f32 to vector<1x512xf32>
    %34 = arith.maximumf %33, %30 : vector<1x512xf32>
    %35 = vector.broadcast %32 : f32 to vector<1x512xf32>
    %36 = arith.minimumf %35, %34 : vector<1x512xf32>
    %37 = vector.broadcast %25 : vector<1x512xf32> to vector<12x512xf32>
    %38 = arith.subf %3, %37 : vector<12x512xf32>
    %cst_18 = arith.constant 0.000000e+00 : f32
    %39 = vector.broadcast %cst_18 : f32 to vector<12x512xf32>
    %40 = arith.subf %39, %38 : vector<12x512xf32>
    %41 = vector.broadcast %36 : vector<1x512xf32> to vector<12x512xf32>
    %42 = arith.divf %40, %41 : vector<12x512xf32>
    %43 = math.exp %42 : vector<12x512xf32>
    %44 = arith.subf %23, %43 : vector<12x512xf32>
    %45 = arith.mulf %44, %44 : vector<12x512xf32>
    %c0_19 = arith.constant 0 : index
    %c0_20 = arith.constant 0 : index
    %c0_21 = arith.constant 0 : index
    %46 = vector.load %arg5[%c0_19, %c0_20, %c0_21] : memref<1x12x512xf32, #tpu.memory_space<vmem>>, vector<1x12x512xf32>
    %47 = vector.shape_cast %46 : vector<1x12x512xf32> to vector<12x512xf32>
    %48 = vector.shape_cast %45 : vector<12x512xf32> to vector<1x12x512xf32>
    tpu.vector_store %arg5[%c0_19, %c0_20, %c0_21], %48 {strides = array<i32>} : memref<1x12x512xf32, #tpu.memory_space<vmem>>, vector<1x12x512xf32>,
    %49 = vector.shape_cast %45 : vector<12x512xf32> to vector<1x12x512xf32>
    %cst_22 = arith.constant dense<0.000000e+00> : vector<1xf32>
    %50 = vector.multi_reduction <add>, %49, %cst_22 [1, 2] : vector<1x12x512xf32> to vector<1xf32>
    %51 = vector.shape_cast %50 : vector<1xf32> to vector<1x1x1xf32>
    %52 = vector.extract %51[0, 0, 0] : f32 from vector<1x1x1xf32>
    %53 = vector.broadcast %52 : f32 to vector<8x128xf32>
    %c0_23 = arith.constant 0 : index
    %c0_24 = arith.constant 0 : index
    %c0_25 = arith.constant 0 : index
    %c0_26 = arith.constant 0 : index
    %54 = vector.load %arg6[%c0_23, %c0_24, %c0_25, %c0_26] : memref<1x1x8x128xf32, #tpu.memory_space<vmem>>, vector<1x1x8x128xf32>
    %55 = vector.shape_cast %54 : vector<1x1x8x128xf32> to vector<8x128xf32>
    %56 = vector.shape_cast %53 : vector<8x128xf32> to vector<1x1x8x128xf32>
    tpu.vector_store %arg6[%c0_23, %c0_24, %c0_25, %c0_26], %56 {strides = array<i32>} : memref<1x1x8x128xf32, #tpu.memory_space<vmem>>, vector<1x1x8x128xf32>,
    return
  }
  func.func @transform_0(%arg0: i32, %arg1: i32) -> (i32, i32) {
    %c0_i32 = arith.constant 0 : i32
    %c0_i32_0 = arith.constant 0 : i32
    %c0_i32_1 = arith.constant 0 : i32
    return %c0_i32, %c0_i32_0 : i32, i32
  }
  func.func @transform_1(%arg0: i32, %arg1: i32) -> (i32, i32, i32) {
    %c0_i32 = arith.constant 0 : i32
    %c0_i32_0 = arith.constant 0 : i32
    return %arg0, %c0_i32, %arg1 : i32, i32, i32
  }
  func.func @transform_2(%arg0: i32, %arg1: i32) -> (i32, i32, i32) {
    %c0_i32 = arith.constant 0 : i32
    %c0_i32_0 = arith.constant 0 : i32
    return %arg0, %c0_i32, %arg1 : i32, i32, i32
  }
  func.func @transform_3(%arg0: i32, %arg1: i32) -> (i32, i32, i32) {
    %c0_i32 = arith.constant 0 : i32
    %c0_i32_0 = arith.constant 0 : i32
    return %arg0, %c0_i32, %arg1 : i32, i32, i32
  }
  func.func @transform_4(%arg0: i32, %arg1: i32) -> (i32, i32, i32, i32) {
    %c0_i32 = arith.constant 0 : i32
    %c0_i32_0 = arith.constant 0 : i32
    %c0_i32_1 = arith.constant 0 : i32
    return %arg0, %arg1, %c0_i32, %c0_i32_0 : i32, i32, i32, i32
  }
}

</mosaic_0001>

<llo_original>
// kernel: mind_loss.5
$region0: #{mind_loss.5}
  #allocation0 [shape = 'u32[]', space=smem, size = 0x4, offset = 0x4, fixed_abs, tag = 'smem constant byte address 0x4 - core index']
  #allocation1 [shape = 'u32[72,128]{1,0:T(1,128)}', space=vmem, size = 0x9000, scoped, tag = 'internal scratch']
  %s0 = inlined_call_operand.vmem [shape: f32[2,2], index: 0, kind: input, shape index: {}]
  %s1 = inlined_call_operand.vmem [shape: f32[2,12,512], index: 1, kind: input, shape index: {}]
  %s2 = inlined_call_operand.vmem [shape: f32[2,12,512], index: 2, kind: input, shape index: {}]
  %s3 = inlined_call_operand.vmem [shape: f32[2,12,512], index: 3, kind: output, shape index: {0}]
  %s4 = inlined_call_operand.vmem [shape: f32[2,1,8,128], index: 4, kind: output, shape index: {1}]
  %5 = xla_tuple %s3, %s4
  %s6 = sld [smem:[#allocation0]]
  $region57: #{mind_loss.5} parent=0
    _
  %s8 = ssub.s32 1, %s6
  %s9 = scalar_select 0, %s8, %s6
  $region1: #{mind_loss.5} parent=0
    #allocation2 [shape = 'u8[1024]{0}', space=smem, size = 0x400, scoped, tag = 'input window, operand 0, single buffered']
    #allocation3 [shape = 's32[2]{0}', space=sflag, size = 0x8, scoped, tag = 'scoped memory for mind_loss.5']
    %10 = vsyncpa [#allocation3], 0
    loop: start=0, step=1, limit=4
    $region2: #{mind_loss.5} parent=1 // loop_pre_header
      _
    $region3: #{mind_loss.5} parent=1 // loop_header
      %s12 = sphi 0, %s16
      %p13 = scmp.ge.s32.totalorder %s12, 4
      %s19 = sphi 0, %s31
      %s20 = sphi 0, %s27
      %s21 = sphi 0, %s19
      %s22 = sphi 0, %s20
      %s23 = sphi 0, %s21
      %s24 = sphi 0, %s22
      %s32 = sphi 0, %s32
      %s34 = sphi 0, %s32
      %s35 = sphi 0, %s34
      %s49 = sphi 0, %s35
      %s57 = sphi 0, %s59
      %s60 = sphi 0, %s57
      %s61 = sphi 0, %s60
      %s77 = sphi 0, %s61
      %s85 = sphi 0, %s87
      %s88 = sphi 0, %s85
      %s89 = sphi 0, %s88
      %s105 = sphi 0, %s89
      %s113 = sphi 0, %s115
      %s116 = sphi 0, %s113
      %s117 = sphi 0, %s116
      %s133 = sphi 0, %s117
      %s141 = sphi 0, %s143
      %s144 = sphi 0, %s141
      %s145 = sphi 0, %s144
      %s161 = sphi 0, %s145
    $region4: #{mind_loss.5} parent=1 // loop_header_branch
      %15 = sbr.rel (%p13) target = $region8
    $region5: #{mind_loss.5} parent=1 // loop_body
      %s17 = ssub.s32 %s12, 1
      %s18 = ssub.s32 %s12, 2
      %s25 = sadd.s32 1, %s20
      %p26 = scmp.ge.s32.totalorder %s25, 1
      %s27 = scalar_select %p26, 0, %s25
      %s28 = sadd.s32 1, %s19
      %s29 = scalar_select %p26, %s28, %s19
      %p30 = scmp.ge.s32.totalorder %s29, 2
      %s31 = scalar_select %p30, 0, %s29
      %s33 = sadd.s32 %s32, 1
      %p36 = scmp.eq.s32.totalorder %s12, 1
      %p37 = scmp.ne.s32.totalorder %s32, %s34
      %p38 = scmp.eq.s32.totalorder %s12, 0
      %p39 = por %p37, %p38
      %p40 = scmp.ne.s32.totalorder %s32, %s34
      %p41 = scmp.eq.s32.totalorder %s17, 1
      %p42 = por %p40, %p41
      %p43 = scmp.ne.s32.totalorder %s34, %s35
      %p44 = scmp.eq.s32.totalorder %s17, 0
      %p45 = por %p43, %p44
      %p46 = scmp.ne.s32.totalorder %s34, %s35
      %p47 = scmp.eq.s32.totalorder %s18, 1
      %p48 = por %p46, %p47
      %p50 = scmp.ne.s32.totalorder %s35, %s49
      %p51 = scmp.eq.s32.totalorder %s18, 0
      %p52 = por %p50, %p51
      %s53 = ssub.s32 %s19, %s31
      %s54 = ssub.s32 %s20, %s27
      %s55 = sor.u32 %s53, %s54
      %p56 = scmp.eq.s32.totalorder %s55, 0
      %s58 = sadd.s32 %s57, 1
      %s59 = scalar_select %p56, %s57, %s58
      %p62 = pneg %p56
      %p63 = scmp.eq.s32.totalorder %s12, 1
      %p64 = por %p62, %p63
      %p65 = scmp.ne.s32.totalorder %s57, %s60
      %p66 = scmp.eq.s32.totalorder %s12, 0
      %p67 = por %p65, %p66
      %p68 = scmp.ne.s32.totalorder %s57, %s60
      %p69 = scmp.eq.s32.totalorder %s17, 1
      %p70 = por %p68, %p69
      %p71 = scmp.ne.s32.totalorder %s60, %s61
      %p72 = scmp.eq.s32.totalorder %s17, 0
      %p73 = por %p71, %p72
      %p74 = scmp.ne.s32.totalorder %s60, %s61
      %p75 = scmp.eq.s32.totalorder %s18, 1
      %p76 = por %p74, %p75
      %p78 = scmp.ne.s32.totalorder %s61, %s77
      %p79 = scmp.eq.s32.totalorder %s18, 0
      %p80 = por %p78, %p79
      %s81 = ssub.s32 %s19, %s31
      %s82 = ssub.s32 %s20, %s27
      %s83 = sor.u32 %s81, %s82
      %p84 = scmp.eq.s32.totalorder %s83, 0
      %s86 = sadd.s32 %s85, 1
      %s87 = scalar_select %p84, %s85, %s86
      %p90 = pneg %p84
      %p91 = scmp.eq.s32.totalorder %s12, 1
      %p92 = por %p90, %p91
      %p93 = scmp.ne.s32.totalorder %s85, %s88
      %p94 = scmp.eq.s32.totalorder %s12, 0
      %p95 = por %p93, %p94
      %p96 = scmp.ne.s32.totalorder %s85, %s88
      %p97 = scmp.eq.s32.totalorder %s17, 1
      %p98 = por %p96, %p97
      %p99 = scmp.ne.s32.totalorder %s88, %s89
      %p100 = scmp.eq.s32.totalorder %s17, 0
      %p101 = por %p99, %p100
      %p102 = scmp.ne.s32.totalorder %s88, %s89
      %p103 = scmp.eq.s32.totalorder %s18, 1
      %p104 = por %p102, %p103
      %p106 = scmp.ne.s32.totalorder %s89, %s105
      %p107 = scmp.eq.s32.totalorder %s18, 0
      %p108 = por %p106, %p107
      %s109 = ssub.s32 %s19, %s31
      %s110 = ssub.s32 %s20, %s27
      %s111 = sor.u32 %s109, %s110
      %p112 = scmp.eq.s32.totalorder %s111, 0
      %s114 = sadd.s32 %s113, 1
      %s115 = scalar_select %p112, %s113, %s114
      %p118 = pneg %p112
      %p119 = scmp.eq.s32.totalorder %s12, 1
      %p120 = por %p118, %p119
      %p121 = scmp.ne.s32.totalorder %s113, %s116
      %p122 = scmp.eq.s32.totalorder %s12, 0
      %p123 = por %p121, %p122
      %p124 = scmp.ne.s32.totalorder %s113, %s116
      %p125 = scmp.eq.s32.totalorder %s17, 1
      %p126 = por %p124, %p125
      %p127 = scmp.ne.s32.totalorder %s116, %s117
      %p128 = scmp.eq.s32.totalorder %s17, 0
      %p129 = por %p127, %p128
      %p130 = scmp.ne.s32.totalorder %s116, %s117
      %p131 = scmp.eq.s32.totalorder %s18, 1
      %p132 = por %p130, %p131
      %p134 = scmp.ne.s32.totalorder %s117, %s133
      %p135 = scmp.eq.s32.totalorder %s18, 0
      %p136 = por %p134, %p135
      %s137 = ssub.s32 %s19, %s31
      %s138 = ssub.s32 %s20, %s27
      %s139 = sor.u32 %s137, %s138
      %p140 = scmp.eq.s32.totalorder %s139, 0
      %s142 = sadd.s32 %s141, 1
      %s143 = scalar_select %p140, %s141, %s142
      %p146 = pneg %p140
      %p147 = scmp.eq.s32.totalorder %s12, 1
      %p148 = por %p146, %p147
      %p149 = scmp.ne.s32.totalorder %s141, %s144
      %p150 = scmp.eq.s32.totalorder %s12, 0
      %p151 = por %p149, %p150
      %p152 = scmp.ne.s32.totalorder %s141, %s144
      %p153 = scmp.eq.s32.totalorder %s17, 1
      %p154 = por %p152, %p153
      %p155 = scmp.ne.s32.totalorder %s144, %s145
      %p156 = scmp.eq.s32.totalorder %s17, 0
      %p157 = por %p155, %p156
      %p158 = scmp.ne.s32.totalorder %s144, %s145
      %p159 = scmp.eq.s32.totalorder %s18, 1
      %p160 = por %p158, %p159
      %p162 = scmp.ne.s32.totalorder %s145, %s161
      %p163 = scmp.eq.s32.totalorder %s18, 0
      %p164 = por %p162, %p163
      %p165 = scmp.le.s32.totalorder 1, %s12
      %p166 = scmp.lt.s32.totalorder %s12, 3
      %p167 = pnand %p165, %p166
      %p168 = pneg %p167
      // Predicated region
      $region9: #{mind_loss.5} parent=5 // pred_check
        _
      $region10: #{mind_loss.5} parent=5 // pred_check_branch
        %170 = sbr.rel (%p167) target = $region12
      $region11: #{mind_loss.5} parent=5 // pred_region
        %s171 = ssub.s32 %s12, 1
        // Predicated region
        $region13: #{mind_loss.5} parent=11 // pred_check
          %p172 = pneg %p45
        $region14: #{mind_loss.5} parent=11 // pred_check_branch
          %174 = sbr.rel (%p172) target = $region16
        $region15: #{mind_loss.5} parent=11 // pred_region
          %176 = vsyncadd [#allocation3], 0
          %s178 = sshll.u32 %s0, 4
          %s179 = int_to_ptr.vmem [resolvable:$true] %s178
          %181 = dma.vmem_to_smem %s179, 32, [#allocation2], [#allocation3]
        $region16: #{mind_loss.5} parent=11 // pred_fallthru
          _
      $region12: #{mind_loss.5} parent=5 // pred_fallthru
        _
      %p182 = scmp.lt.s32.totalorder %s12, 2
      // Predicated region
      $region17: #{mind_loss.5} parent=5 // pred_check
        %p183 = pneg %p182
      $region18: #{mind_loss.5} parent=5 // pred_check_branch
        %185 = sbr.rel (%p183) target = $region20
      $region19: #{mind_loss.5} parent=5 // pred_region
        // Predicated region
        $region21: #{mind_loss.5} parent=19 // pred_check
          %p186 = pneg %p67
        $region22: #{mind_loss.5} parent=19 // pred_check_branch
          %188 = sbr.rel (%p186) target = $region24
        $region23: #{mind_loss.5} parent=19 // pred_region
          %s189 = smul.u32 4, %s20
          %p190 = scmp.lt.s32.totalorder %s19, 1
          %s191 = scalar_select %p190, %s19, 1
          %p192 = scmp.lt.s32.totalorder %s189, 3
          %s193 = scalar_select %p192, %s189, 3
          %s194 = smul.addr %s191, 8
          %s195 = sadd.s32 %s193, %s194
          %s196 = smul.addr %s195, 8
          %s197 = scalar_lea.vmem %s1, %s196
          %s198 = smul.u32 4, %s20
        $region24: #{mind_loss.5} parent=19 // pred_fallthru
          _
        // Predicated region
        $region25: #{mind_loss.5} parent=19 // pred_check
          %p199 = pneg %p95
        $region26: #{mind_loss.5} parent=19 // pred_check_branch
          %201 = sbr.rel (%p199) target = $region28
        $region27: #{mind_loss.5} parent=19 // pred_region
          %s202 = smul.u32 4, %s20
          %p203 = scmp.lt.s32.totalorder %s19, 1
          %s204 = scalar_select %p203, %s19, 1
          %p205 = scmp.lt.s32.totalorder %s202, 3
          %s206 = scalar_select %p205, %s202, 3
          %s207 = smul.addr %s204, 8
          %s208 = sadd.s32 %s206, %s207
          %s209 = smul.addr %s208, 8
          %s210 = scalar_lea.vmem %s2, %s209
          %s211 = smul.u32 4, %s20
        $region28: #{mind_loss.5} parent=19 // pred_fallthru
          _
      $region20: #{mind_loss.5} parent=5 // pred_fallthru
        _
      %p212 = scmp.le.s32.totalorder 1, %s12
      %p213 = scmp.lt.s32.totalorder %s12, 3
      %p214 = pnand %p212, %p213
      %p215 = pneg %p214
      // Predicated region
      $region29: #{mind_loss.5} parent=5 // pred_check
        _
      $region30: #{mind_loss.5} parent=5 // pred_check_branch
        %217 = sbr.rel (%p214) target = $region32
      $region31: #{mind_loss.5} parent=5 // pred_region
        %s218 = ssub.s32 %s12, 1
        // Predicated region
        $region33: #{mind_loss.5} parent=31 // pred_check
          %p219 = pneg %p45
        $region34: #{mind_loss.5} parent=31 // pred_check_branch
          %221 = sbr.rel (%p219) target = $region36
        $region35: #{mind_loss.5} parent=31 // pred_region
          %223 = dma.done [#allocation3], 32
        $region36: #{mind_loss.5} parent=31 // pred_fallthru
          _
        %224 = sfence
        %p225 = pneg %p45
        %p226 = pneg %p42
        %s227 = smul.u32 4, %s22
        %p228 = scmp.lt.s32.totalorder %s21, 1
        %s229 = scalar_select %p228, %s21, 1
        %p230 = scmp.lt.s32.totalorder %s227, 3
        %s231 = scalar_select %p230, %s227, 3
        %s232 = smul.addr %s229, 8
        %s233 = sadd.s32 %s231, %s232
        %s234 = smul.addr %s233, 8
        %s235 = scalar_lea.vmem %s1, %s234
        %p236 = pneg %p73
        %p237 = pneg %p70
        %s238 = smul.u32 4, %s22
        %p239 = scmp.lt.s32.totalorder %s21, 1
        %s240 = scalar_select %p239, %s21, 1
        %p241 = scmp.lt.s32.totalorder %s238, 3
        %s242 = scalar_select %p241, %s238, 3
        %s243 = smul.addr %s240, 8
        %s244 = sadd.s32 %s242, %s243
        %s245 = smul.addr %s244, 8
        %s246 = scalar_lea.vmem %s2, %s245
        %p247 = pneg %p101
        %p248 = pneg %p98
        %p249 = pneg %p129
        %p250 = pneg %p126
        %s251 = smul.u32 4, %s22
        %p252 = scmp.lt.s32.totalorder %s21, 1
        %s253 = scalar_select %p252, %s21, 1
        %p254 = scmp.lt.s32.totalorder %s251, 3
        %s255 = scalar_select %p254, %s251, 3
        %s256 = smul.addr %s253, 8
        %s257 = sadd.s32 %s255, %s256
        %s258 = smul.addr %s257, 8
        %s259 = scalar_lea.vmem %s3, %s258
        %p260 = pneg %p157
        %p261 = pneg %p154
        %p262 = scmp.lt.s32.totalorder %s21, 1
        %s263 = scalar_select %p262, %s21, 1
        %p264 = scmp.lt.s32.totalorder %s22, 0
        %s265 = scalar_select %p264, %s22, 0
        %s266 = sadd.s32 %s265, %s263
        %s267 = smul.addr %s266, 8
        %s268 = scalar_lea.vmem %s4, %s267
        %s269 = smul.u32 4, %s22
        %p270 = scmp.lt.s32.totalorder %s21, 1
        %s271 = scalar_select %p270, %s21, 1
        %p272 = scmp.lt.s32.totalorder %s269, 3
        %s273 = scalar_select %p272, %s269, 3
        %s274 = smul.addr %s271, 8
        %s275 = sadd.s32 %s273, %s274
        %s276 = smul.addr %s275, 8
        %s277 = scalar_lea.vmem %s1, %s276
        %s278 = smul.u32 4, %s22
        %s279 = smul.u32 4, %s22
        %p280 = scmp.lt.s32.totalorder %s21, 1
        %s281 = scalar_select %p280, %s21, 1
        %p282 = scmp.lt.s32.totalorder %s279, 3
        %s283 = scalar_select %p282, %s279, 3
        %s284 = smul.addr %s281, 8
        %s285 = sadd.s32 %s283, %s284
        %s286 = smul.addr %s285, 8
        %s287 = scalar_lea.vmem %s2, %s286
        %s288 = smul.u32 4, %s22
        %s289 = smul.u32 4, %s22
        %p290 = scmp.lt.s32.totalorder %s21, 1
        %s291 = scalar_select %p290, %s21, 1
        %p292 = scmp.lt.s32.totalorder %s289, 3
        %s293 = scalar_select %p292, %s289, 3
        %s294 = smul.addr %s291, 8
        %s295 = sadd.s32 %s293, %s294
        %s296 = smul.addr %s295, 8
        %s297 = scalar_lea.vmem %s3, %s296
        %s298 = smul.u32 4, %s22
        %p299 = scmp.lt.s32.totalorder %s21, 1
        %s300 = scalar_select %p299, %s21, 1
        %p301 = scmp.lt.s32.totalorder %s22, 0
        %s302 = scalar_select %p301, %s22, 0
        %s303 = sadd.s32 %s302, %s300
        %s304 = smul.addr %s303, 8
        %s305 = scalar_lea.vmem %s4, %s304
        %v306 = vld [vmem:[%s277] sm:$0xff]
        %v307 = vld [vmem:[%s277 + $0x8] sm:$0xff]
        %v308 = vld [vmem:[%s277 + $0x10] sm:$0xff]
        %v309 = vld [vmem:[%s277 + $0x18] sm:$0xff]
        %v310 = vld [vmem:[%s277 + $0x20] sm:$0xf]
        %v311 = vld [vmem:[%s277 + $0x28] sm:$0xf]
        %v312 = vld [vmem:[%s277 + $0x30] sm:$0xf]
        %v313 = vld [vmem:[%s277 + $0x38] sm:$0xf]
        %v314 = vld [vmem:[%s287] sm:$0xff]
        %v315 = vld [vmem:[%s287 + $0x8] sm:$0xff]
        %v316 = vld [vmem:[%s287 + $0x10] sm:$0xff]
        %v317 = vld [vmem:[%s287 + $0x18] sm:$0xff]
        %v318 = vld [vmem:[%s287 + $0x20] sm:$0xf]
        %v319 = vld [vmem:[%s287 + $0x28] sm:$0xf]
        %v320 = vld [vmem:[%s287 + $0x30] sm:$0xf]
        %v321 = vld [vmem:[%s287 + $0x38] sm:$0xf]
        %vm322 = vcmask 1043456
        %v323 = vsel %vm322, %v310, inf
        %v324 = vmin.f32 %v306, %v323
        %v325 = vrot.slane %v324, 4
        %v326 = vmin.f32 %v324, %v325
        %v327 = vrot.slane %v326, 2
        %v328 = vmin.f32 %v326, %v327
        %v329 = vrot.slane %v328, 1
        %v330 = vmin.f32 %v328, %v329
        %v331 = vsel %vm322, %v311, inf
        %v332 = vmin.f32 %v307, %v331
        %v333 = vrot.slane %v332, 4
        %v334 = vmin.f32 %v332, %v333
        %v335 = vrot.slane %v334, 2
        %v336 = vmin.f32 %v334, %v335
        %v337 = vrot.slane %v336, 1
        %v338 = vmin.f32 %v336, %v337
        %v339 = vsel %vm322, %v312, inf
        %v340 = vmin.f32 %v308, %v339
        %v341 = vrot.slane %v340, 4
        %v342 = vmin.f32 %v340, %v341
        %v343 = vrot.slane %v342, 2
        %v344 = vmin.f32 %v342, %v343
        %v345 = vrot.slane %v344, 1
        %v346 = vmin.f32 %v344, %v345
        %v347 = vsel %vm322, %v313, inf
        %v348 = vmin.f32 %v309, %v347
        %v349 = vrot.slane %v348, 4
        %v350 = vmin.f32 %v348, %v349
        %v351 = vrot.slane %v350, 2
        %v352 = vmin.f32 %v350, %v351
        %v353 = vrot.slane %v352, 1
        %v354 = vmin.f32 %v352, %v353
        %v355 = vsel %vm322, %v310, 0.0
        %v356 = vadd.f32 %v306, %v355
        %v357 = vrot.slane %v356, 4
        %v358 = vadd.f32 %v356, %v357
        %v359 = vrot.slane %v358, 2
        %v360 = vadd.f32 %v358, %v359
        %v361 = vrot.slane %v360, 1
        %v362 = vadd.f32 %v360, %v361
        %v363 = vsel %vm322, %v311, 0.0
        %v364 = vadd.f32 %v307, %v363
        %v365 = vrot.slane %v364, 4
        %v366 = vadd.f32 %v364, %v365
        %v367 = vrot.slane %v366, 2
        %v368 = vadd.f32 %v366, %v367
        %v369 = vrot.slane %v368, 1
        %v370 = vadd.f32 %v368, %v369
        %v371 = vsel %vm322, %v312, 0.0
        %v372 = vadd.f32 %v308, %v371
        %v373 = vrot.slane %v372, 4
        %v374 = vadd.f32 %v372, %v373
        %v375 = vrot.slane %v374, 2
        %v376 = vadd.f32 %v374, %v375
        %v377 = vrot.slane %v376, 1
        %v378 = vadd.f32 %v376, %v377
        %v379 = vsel %vm322, %v313, 0.0
        %v380 = vadd.f32 %v309, %v379
        %v381 = vrot.slane %v380, 4
        %v382 = vadd.f32 %v380, %v381
        %v383 = vrot.slane %v382, 2
        %v384 = vadd.f32 %v382, %v383
        %v385 = vrot.slane %v384, 1
        %v386 = vadd.f32 %v384, %v385
        %v387 = vrcp.pop 12.0
        %v388 = vmul.f32 12.0, %v387
        %v389 = vsub.f32 1.0, %v388
        %v390 = vmul.f32 %v387, %v389
        %v391 = vadd.f32 %v387, %v390
        %vm392 = vweird.f32 %v387
        %v393 = vsel %vm392, %v387, %v391
        %v394 = vmul.f32 %v362, %v393
        %v395 = vmul.f32 %v370, %v393
        %v396 = vmul.f32 %v378, %v393
        %v397 = vmul.f32 %v386, %v393
        %v398 = vsub.f32 %v394, %v330
        %v399 = vsub.f32 %v395, %v338
        %v400 = vsub.f32 %v396, %v346
        %v401 = vsub.f32 %v397, %v354
        %s402 = sld [smem:[#allocation2]]
        %s403 = sld [smem:[#allocation2 + $0x1]]
        %v404 = vstv %s402
        %v405 = vmax.f32 %v404, %v398
        %v406 = vmax.f32 %v404, %v399
        %v407 = vmax.f32 %v404, %v400
        %v408 = vmax.f32 %v404, %v401
        %v409 = vstv %s403
        %v410 = vmin.f32 %v409, %v405
        %v411 = vmin.f32 %v409, %v406
        %v412 = vmin.f32 %v409, %v407
        %v413 = vmin.f32 %v409, %v408
        %v414 = vsub.f32 %v306, %v330
        %v415 = vsub.f32 %v307, %v338
        %v416 = vsub.f32 %v308, %v346
        %v417 = vsub.f32 %v309, %v354
        %v418 = vsub.f32 %v310, %v330
        %v419 = vsub.f32 %v311, %v338
        %v420 = vsub.f32 %v312, %v346
        %v421 = vsub.f32 %v313, %v354
        %v422 = vsub.f32 0.0, %v414
        %v423 = vsub.f32 0.0, %v415
        %v424 = vsub.f32 0.0, %v416
        %v425 = vsub.f32 0.0, %v417
        %v426 = vsub.f32 0.0, %v418
        %v427 = vsub.f32 0.0, %v419
        %v428 = vsub.f32 0.0, %v420
        %v429 = vsub.f32 0.0, %v421
        %v430 = vrcp.pop %v410
        %v431 = vmul.f32 %v410, %v430
        %v432 = vsub.f32 1.0, %v431
        %v433 = vmul.f32 %v430, %v432
        %v434 = vadd.f32 %v430, %v433
        %vm435 = vweird.f32 %v410
        %vm436 = vweird.f32 %v430
        %vm437 = vmor %vm435, %vm436
        %v438 = vsel %vm437, %v430, %v434
        %v439 = vand.u32 2147483647, %v410
        %vm440 = vcmp.eq.f32.partialorder %v439, 8.507059e+37
        %v441 = vand.u32 %v410, 2147483648
        %v442 = vor.u32 1.1754944e-38, %v441
        %v443 = vsel %vm440, %v442, %v438
        %v444 = vmul.f32 %v422, %v443
        %v445 = vrcp.pop %v411
        %v446 = vmul.f32 %v411, %v445
        %v447 = vsub.f32 1.0, %v446
        %v448 = vmul.f32 %v445, %v447
        %v449 = vadd.f32 %v445, %v448
        %vm450 = vweird.f32 %v411
        %vm451 = vweird.f32 %v445
        %vm452 = vmor %vm450, %vm451
        %v453 = vsel %vm452, %v445, %v449
        %v454 = vand.u32 2147483647, %v411
        %vm455 = vcmp.eq.f32.partialorder %v454, 8.507059e+37
        %v456 = vand.u32 %v411, 2147483648
        %v457 = vor.u32 1.1754944e-38, %v456
        %v458 = vsel %vm455, %v457, %v453
        %v459 = vmul.f32 %v423, %v458
        %v460 = vrcp.pop %v412
        %v461 = vmul.f32 %v412, %v460
        %v462 = vsub.f32 1.0, %v461
        %v463 = vmul.f32 %v460, %v462
        %v464 = vadd.f32 %v460, %v463
        %vm465 = vweird.f32 %v412
        %vm466 = vweird.f32 %v460
        %vm467 = vmor %vm465, %vm466
        %v468 = vsel %vm467, %v460, %v464
        %v469 = vand.u32 2147483647, %v412
        %vm470 = vcmp.eq.f32.partialorder %v469, 8.507059e+37
        %v471 = vand.u32 %v412, 2147483648
        %v472 = vor.u32 1.1754944e-38, %v471
        %v473 = vsel %vm470, %v472, %v468
        %v474 = vmul.f32 %v424, %v473
        %v475 = vrcp.pop %v413
        %v476 = vmul.f32 %v413, %v475
        %v477 = vsub.f32 1.0, %v476
        %v478 = vmul.f32 %v475, %v477
        %v479 = vadd.f32 %v475, %v478
        %vm480 = vweird.f32 %v413
        %vm481 = vweird.f32 %v475
        %vm482 = vmor %vm480, %vm481
        %v483 = vsel %vm482, %v475, %v479
        %v484 = vand.u32 2147483647, %v413
        %vm485 = vcmp.eq.f32.partialorder %v484, 8.507059e+37
        %v486 = vand.u32 %v413, 2147483648
        %v487 = vor.u32 1.1754944e-38, %v486
        %v488 = vsel %vm485, %v487, %v483
        %v489 = vmul.f32 %v425, %v488
        %v490 = vmul.f32 %v426, %v443
        %v491 = vmul.f32 %v427, %v458
        %v492 = vmul.f32 %v428, %v473
        %v493 = vmul.f32 %v429, %v488
        %v494 = vmul.f32 %v444, 1.442695
        %v495 = vpow.pop %v494
        %v496 = vmul.f32 %v459, 1.442695
        %v497 = vpow.pop %v496
        %v498 = vmul.f32 %v474, 1.442695
        %v499 = vpow.pop %v498
        %v500 = vmul.f32 %v489, 1.442695
        %v501 = vpow.pop %v500
        %v502 = vmul.f32 %v490, 1.442695
        %v503 = vpow.pop %v502
        %v504 = vmul.f32 %v491, 1.442695
        %v505 = vpow.pop %v504
        %v506 = vmul.f32 %v492, 1.442695
        %v507 = vpow.pop %v506
        %v508 = vmul.f32 %v493, 1.442695
        %v509 = vpow.pop %v508
        %v510 = vsel %vm322, %v318, inf
        %v511 = vmin.f32 %v314, %v510
        %v512 = vrot.slane %v511, 4
        %v513 = vmin.f32 %v511, %v512
        %v514 = vrot.slane %v513, 2
        %v515 = vmin.f32 %v513, %v514
        %v516 = vrot.slane %v515, 1
        %v517 = vmin.f32 %v515, %v516
        %v518 = vsel %vm322, %v319, inf
        %v519 = vmin.f32 %v315, %v518
        %v520 = vrot.slane %v519, 4
        %v521 = vmin.f32 %v519, %v520
        %v522 = vrot.slane %v521, 2
        %v523 = vmin.f32 %v521, %v522
        %v524 = vrot.slane %v523, 1
        %v525 = vmin.f32 %v523, %v524
        %v526 = vsel %vm322, %v320, inf
        %v527 = vmin.f32 %v316, %v526
        %v528 = vrot.slane %v527, 4
        %v529 = vmin.f32 %v527, %v528
        %v530 = vrot.slane %v529, 2
        %v531 = vmin.f32 %v529, %v530
        %v532 = vrot.slane %v531, 1
        %v533 = vmin.f32 %v531, %v532
        %v534 = vsel %vm322, %v321, inf
        %v535 = vmin.f32 %v317, %v534
        %v536 = vrot.slane %v535, 4
        %v537 = vmin.f32 %v535, %v536
        %v538 = vrot.slane %v537, 2
        %v539 = vmin.f32 %v537, %v538
        %v540 = vrot.slane %v539, 1
        %v541 = vmin.f32 %v539, %v540
        %v542 = vsel %vm322, %v318, 0.0
        %v543 = vadd.f32 %v314, %v542
        %v544 = vrot.slane %v543, 4
        %v545 = vadd.f32 %v543, %v544
        %v546 = vrot.slane %v545, 2
        %v547 = vadd.f32 %v545, %v546
        %v548 = vrot.slane %v547, 1
        %v549 = vadd.f32 %v547, %v548
        %v550 = vsel %vm322, %v319, 0.0
        %v551 = vadd.f32 %v315, %v550
        %v552 = vrot.slane %v551, 4
        %v553 = vadd.f32 %v551, %v552
        %v554 = vrot.slane %v553, 2
        %v555 = vadd.f32 %v553, %v554
        %v556 = vrot.slane %v555, 1
        %v557 = vadd.f32 %v555, %v556
        %v558 = vsel %vm322, %v320, 0.0
        %v559 = vadd.f32 %v316, %v558
        %v560 = vrot.slane %v559, 4
        %v561 = vadd.f32 %v559, %v560
        %v562 = vrot.slane %v561, 2
        %v563 = vadd.f32 %v561, %v562
        %v564 = vrot.slane %v563, 1
        %v565 = vadd.f32 %v563, %v564
        %v566 = vsel %vm322, %v321, 0.0
        %v567 = vadd.f32 %v317, %v566
        %v568 = vrot.slane %v567, 4
        %v569 = vadd.f32 %v567, %v568
        %v570 = vrot.slane %v569, 2
        %v571 = vadd.f32 %v569, %v570
        %v572 = vrot.slane %v571, 1
        %v573 = vadd.f32 %v571, %v572
        %v574 = vmul.f32 %v549, %v393
        %v575 = vmul.f32 %v557, %v393
        %v576 = vmul.f32 %v565, %v393
        %v577 = vmul.f32 %v573, %v393
        %v578 = vsub.f32 %v574, %v517
        %v579 = vsub.f32 %v575, %v525
        %v580 = vsub.f32 %v576, %v533
        %v581 = vsub.f32 %v577, %v541
        %s582 = sld [smem:[#allocation2 + $0x80]]
        %s583 = sld [smem:[#allocation2 + $0x81]]
        %v584 = vstv %s582
        %v585 = vmax.f32 %v584, %v578
        %v586 = vmax.f32 %v584, %v579
        %v587 = vmax.f32 %v584, %v580
        %v588 = vmax.f32 %v584, %v581
        %v589 = vstv %s583
        %v590 = vmin.f32 %v589, %v585
        %v591 = vmin.f32 %v589, %v586
        %v592 = vmin.f32 %v589, %v587
        %v593 = vmin.f32 %v589, %v588
        %v594 = vsub.f32 %v314, %v517
        %v595 = vsub.f32 %v315, %v525
        %v596 = vsub.f32 %v316, %v533
        %v597 = vsub.f32 %v317, %v541
        %v598 = vsub.f32 %v318, %v517
        %v599 = vsub.f32 %v319, %v525
        %v600 = vsub.f32 %v320, %v533
        %v601 = vsub.f32 %v321, %v541
        %v602 = vsub.f32 0.0, %v594
        %v603 = vsub.f32 0.0, %v595
        %v604 = vsub.f32 0.0, %v596
        %v605 = vsub.f32 0.0, %v597
        %v606 = vsub.f32 0.0, %v598
        %v607 = vsub.f32 0.0, %v599
        %v608 = vsub.f32 0.0, %v600
        %v609 = vsub.f32 0.0, %v601
        %v610 = vrcp.pop %v590
        %v611 = vmul.f32 %v590, %v610
        %v612 = vsub.f32 1.0, %v611
        %v613 = vmul.f32 %v610, %v612
        %v614 = vadd.f32 %v610, %v613
        %vm615 = vweird.f32 %v590
        %vm616 = vweird.f32 %v610
        %vm617 = vmor %vm615, %vm616
        %v618 = vsel %vm617, %v610, %v614
        %v619 = vand.u32 2147483647, %v590
        %vm620 = vcmp.eq.f32.partialorder %v619, 8.507059e+37
        %v621 = vand.u32 %v590, 2147483648
        %v622 = vor.u32 1.1754944e-38, %v621
        %v623 = vsel %vm620, %v622, %v618
        %v624 = vmul.f32 %v602, %v623
        %v625 = vrcp.pop %v591
        %v626 = vmul.f32 %v591, %v625
        %v627 = vsub.f32 1.0, %v626
        %v628 = vmul.f32 %v625, %v627
        %v629 = vadd.f32 %v625, %v628
        %vm630 = vweird.f32 %v591
        %vm631 = vweird.f32 %v625
        %vm632 = vmor %vm630, %vm631
        %v633 = vsel %vm632, %v625, %v629
        %v634 = vand.u32 2147483647, %v591
        %vm635 = vcmp.eq.f32.partialorder %v634, 8.507059e+37
        %v636 = vand.u32 %v591, 2147483648
        %v637 = vor.u32 1.1754944e-38, %v636
        %v638 = vsel %vm635, %v637, %v633
        %v639 = vmul.f32 %v603, %v638
        %v640 = vrcp.pop %v592
        %v641 = vmul.f32 %v592, %v640
        %v642 = vsub.f32 1.0, %v641
        %v643 = vmul.f32 %v640, %v642
        %v644 = vadd.f32 %v640, %v643
        %vm645 = vweird.f32 %v592
        %vm646 = vweird.f32 %v640
        %vm647 = vmor %vm645, %vm646
        %v648 = vsel %vm647, %v640, %v644
        %v649 = vand.u32 2147483647, %v592
        %vm650 = vcmp.eq.f32.partialorder %v649, 8.507059e+37
        %v651 = vand.u32 %v592, 2147483648
        %v652 = vor.u32 1.1754944e-38, %v651
        %v653 = vsel %vm650, %v652, %v648
        %v654 = vmul.f32 %v604, %v653
        %v655 = vrcp.pop %v593
        %v656 = vmul.f32 %v593, %v655
        %v657 = vsub.f32 1.0, %v656
        %v658 = vmul.f32 %v655, %v657
        %v659 = vadd.f32 %v655, %v658
        %vm660 = vweird.f32 %v593
        %vm661 = vweird.f32 %v655
        %vm662 = vmor %vm660, %vm661
        %v663 = vsel %vm662, %v655, %v659
        %v664 = vand.u32 2147483647, %v593
        %vm665 = vcmp.eq.f32.partialorder %v664, 8.507059e+37
        %v666 = vand.u32 %v593, 2147483648
        %v667 = vor.u32 1.1754944e-38, %v666
        %v668 = vsel %vm665, %v667, %v663
        %v669 = vmul.f32 %v605, %v668
        %v670 = vmul.f32 %v606, %v623
        %v671 = vmul.f32 %v607, %v638
        %v672 = vmul.f32 %v608, %v653
        %v673 = vmul.f32 %v609, %v668
        %v674 = vmul.f32 %v624, 1.442695
        %v675 = vpow.pop %v674
        %v676 = vmul.f32 %v639, 1.442695
        %v677 = vpow.pop %v676
        %v678 = vmul.f32 %v654, 1.442695
        %v679 = vpow.pop %v678
        %v680 = vmul.f32 %v669, 1.442695
        %v681 = vpow.pop %v680
        %v682 = vmul.f32 %v670, 1.442695
        %v683 = vpow.pop %v682
        %v684 = vmul.f32 %v671, 1.442695
        %v685 = vpow.pop %v684
        %v686 = vmul.f32 %v672, 1.442695
        %v687 = vpow.pop %v686
        %v688 = vmul.f32 %v673, 1.442695
        %v689 = vpow.pop %v688
        %v690 = vsub.f32 %v495, %v675
        %v691 = vsub.f32 %v497, %v677
        %v692 = vsub.f32 %v499, %v679
        %v693 = vsub.f32 %v501, %v681
        %v694 = vsub.f32 %v503, %v683
        %v695 = vsub.f32 %v505, %v685
        %v696 = vsub.f32 %v507, %v687
        %v697 = vsub.f32 %v509, %v689
        %v698 = vmul.f32 %v690, %v690
        %v699 = vmul.f32 %v691, %v691
        %v700 = vmul.f32 %v692, %v692
        %v701 = vmul.f32 %v693, %v693
        %v702 = vmul.f32 %v694, %v694
        %v703 = vmul.f32 %v695, %v695
        %v704 = vmul.f32 %v696, %v696
        %v705 = vmul.f32 %v697, %v697
        %706 = vst [vmem:[%s297] sm:$0xff] %v698
        %707 = vst [vmem:[%s297 + $0x8] sm:$0xff] %v699
        %708 = vst [vmem:[%s297 + $0x10] sm:$0xff] %v700
        %709 = vst [vmem:[%s297 + $0x18] sm:$0xff] %v701
        %710 = vst [vmem:[%s297 + $0x20] sm:$0xf] %v702
        %711 = vst [vmem:[%s297 + $0x28] sm:$0xf] %v703
        %712 = vst [vmem:[%s297 + $0x30] sm:$0xf] %v704
        %713 = vst [vmem:[%s297 + $0x38] sm:$0xf] %v705
        %v714 = vadd.f32 %v698, %v699
        %v715 = vadd.f32 %v714, %v700
        %v716 = vadd.f32 %v715, %v701
        %v717 = vsel %vm322, %v702, 0.0
        %v718 = vadd.f32 %v716, %v717
        %v719 = vsel %vm322, %v703, 0.0
        %v720 = vadd.f32 %v718, %v719
        %v721 = vsel %vm322, %v704, 0.0
        %v722 = vadd.f32 %v720, %v721
        %v723 = vsel %vm322, %v705, 0.0
        %v724 = vadd.f32 %v722, %v723
        %725 = vadd.xlane.f32.xlu0 %v724
        %v726 = vpop.xlane.xlu0 %725
        %v727 = vrot.slane %v726, 4
        %v728 = vadd.f32 %v726, %v727
        %v729 = vrot.slane %v728, 2
        %v730 = vadd.f32 %v728, %v729
        %v731 = vrot.slane %v730, 1
        %v732 = vadd.f32 %v730, %v731
        %s733 = vtos %v732
        %v734 = vstv %s733
        %735 = vst [vmem:[%s305] sm:$0xff] %v734
        %s736 = smul.u32 4, %s22
        %p737 = scmp.lt.s32.totalorder %s21, 1
        %s738 = scalar_select %p737, %s21, 1
        %p739 = scmp.lt.s32.totalorder %s736, 3
        %s740 = scalar_select %p739, %s736, 3
        %s741 = smul.addr %s738, 8
        %s742 = sadd.s32 %s740, %s741
        %s743 = smul.addr %s742, 8
        %s744 = scalar_lea.vmem %s3, %s743
        %p745 = scmp.lt.s32.totalorder %s21, 1
        %s746 = scalar_select %p745, %s21, 1
        %p747 = scmp.lt.s32.totalorder %s22, 0
        %s748 = scalar_select %p747, %s22, 0
        %s749 = sadd.s32 %s748, %s746
        %s750 = smul.addr %s749, 8
        %s751 = scalar_lea.vmem %s4, %s750
        // Predicated region
        $region37: #{mind_loss.5} parent=31 // pred_check
          %p752 = pneg %p126
        $region38: #{mind_loss.5} parent=31 // pred_check_branch
          %754 = sbr.rel (%p752) target = $region40
        $region39: #{mind_loss.5} parent=31 // pred_region
          %s755 = smul.u32 4, %s22
        $region40: #{mind_loss.5} parent=31 // pred_fallthru
          _
        // Predicated region
        $region41: #{mind_loss.5} parent=31 // pred_check
          %p756 = pneg %p154
        $region42: #{mind_loss.5} parent=31 // pred_check_branch
          %758 = sbr.rel (%p756) target = $region44
        $region43: #{mind_loss.5} parent=31 // pred_region
          _
        $region44: #{mind_loss.5} parent=31 // pred_fallthru
          _
      $region32: #{mind_loss.5} parent=5 // pred_fallthru
        _
      %p759 = scmp.le.s32.totalorder 2, %s12
      // Predicated region
      $region45: #{mind_loss.5} parent=5 // pred_check
        %p760 = pneg %p759
      $region46: #{mind_loss.5} parent=5 // pred_check_branch
        %762 = sbr.rel (%p760) target = $region48
      $region47: #{mind_loss.5} parent=5 // pred_region
        %s763 = ssub.s32 %s12, 2
        // Predicated region
        $region49: #{mind_loss.5} parent=47 // pred_check
          %p764 = pneg %p132
        $region50: #{mind_loss.5} parent=47 // pred_check_branch
          %766 = sbr.rel (%p764) target = $region52
        $region51: #{mind_loss.5} parent=47 // pred_region
          %s767 = smul.u32 4, %s24
          %p768 = scmp.lt.s32.totalorder %s23, 1
          %s769 = scalar_select %p768, %s23, 1
          %p770 = scmp.lt.s32.totalorder %s767, 3
          %s771 = scalar_select %p770, %s767, 3
          %s772 = smul.addr %s769, 8
          %s773 = sadd.s32 %s771, %s772
          %s774 = smul.addr %s773, 8
          %s775 = scalar_lea.vmem %s3, %s774
        $region52: #{mind_loss.5} parent=47 // pred_fallthru
          _
        // Predicated region
        $region53: #{mind_loss.5} parent=47 // pred_check
          %p776 = pneg %p160
        $region54: #{mind_loss.5} parent=47 // pred_check_branch
          %778 = sbr.rel (%p776) target = $region56
        $region55: #{mind_loss.5} parent=47 // pred_region
          %p779 = scmp.lt.s32.totalorder %s23, 1
          %s780 = scalar_select %p779, %s23, 1
          %p781 = scmp.lt.s32.totalorder %s24, 0
          %s782 = scalar_select %p781, %s24, 0
          %s783 = sadd.s32 %s782, %s780
          %s784 = smul.addr %s783, 8
          %s785 = scalar_lea.vmem %s4, %s784
        $region56: #{mind_loss.5} parent=47 // pred_fallthru
          _
      $region48: #{mind_loss.5} parent=5 // pred_fallthru
        _
    $region6: #{mind_loss.5} parent=1 // loop_footer
      %s16 = sadd.s32 1, %s12
    $region7: #{mind_loss.5} parent=1 // loop_footer_branch
      %11 = sbr.rel target = $region3
    $region8: #{mind_loss.5} parent=1 // loop_exit
      _
    %786 = vsyncpa [#allocation3], 1
    %s787 = scalar_lea.sflag [#allocation3], 1
    %788 = vsyncpa %s787, 1

// kernel: mind_loss.4
$region0: #{mind_loss.4}
  #allocation0 [shape = 'u32[]', space=smem, size = 0x4, offset = 0x4, fixed_abs, tag = 'smem constant byte address 0x4 - core index']
  #allocation1 [shape = 'u32[72,128]{1,0:T(1,128)}', space=vmem, size = 0x9000, scoped, tag = 'internal scratch']
  %s0 = inlined_call_operand.vmem [shape: f32[2,16,16,16], index: 0, kind: input, shape index: {}]
  %s1 = inlined_call_operand.vmem [shape: f32[2,12,8,8,8], index: 1, kind: output, shape index: {0}]
  %s2 = inlined_call_operand.vmem [shape: f32[2,8,128], index: 2, kind: output, shape index: {1}]
  %3 = xla_tuple %s1, %s2
  %s4 = sld [smem:[#allocation0]]
  $region45: #{mind_loss.4} parent=0
    _
  %s6 = ssub.s32 1, %s4
  %s7 = scalar_select 0, %s6, %s4
  loop: start=0, step=1, limit=4
  $region2: #{mind_loss.4} parent=0 // loop_pre_header
    _
  $region3: #{mind_loss.4} parent=0 // loop_header
    %s9 = sphi 0, %s13
    %p10 = scmp.ge.s32.totalorder %s9, 4
    %s19 = sphi 0, %s21
    %s22 = sphi 0, %s19
    %s23 = sphi 0, %s22
    %s39 = sphi 0, %s23
    %s45 = sphi 0, %s47
    %s48 = sphi 0, %s45
    %s49 = sphi 0, %s48
    %s65 = sphi 0, %s49
    %s71 = sphi 0, %s73
    %s74 = sphi 0, %s71
    %s75 = sphi 0, %s74
    %s91 = sphi 0, %s75
  $region4: #{mind_loss.4} parent=0 // loop_header_branch
    %12 = sbr.rel (%p10) target = $region8
  $region5: #{mind_loss.4} parent=0 // loop_body
    %s14 = ssub.s32 %s9, 1
    %s15 = ssub.s32 %s9, 2
    %s16 = sadd.s32 %s9, 1
    %s17 = ssub.s32 %s9, %s16
    %p18 = scmp.eq.s32.totalorder %s17, 0
    %s20 = sadd.s32 %s19, 1
    %s21 = scalar_select %p18, %s19, %s20
    %p24 = pneg %p18
    %p25 = scmp.eq.s32.totalorder %s9, 1
    %p26 = por %p24, %p25
    %p27 = scmp.ne.s32.totalorder %s19, %s22
    %p28 = scmp.eq.s32.totalorder %s9, 0
    %p29 = por %p27, %p28
    %p30 = scmp.ne.s32.totalorder %s19, %s22
    %p31 = scmp.eq.s32.totalorder %s14, 1
    %p32 = por %p30, %p31
    %p33 = scmp.ne.s32.totalorder %s22, %s23
    %p34 = scmp.eq.s32.totalorder %s14, 0
    %p35 = por %p33, %p34
    %p36 = scmp.ne.s32.totalorder %s22, %s23
    %p37 = scmp.eq.s32.totalorder %s15, 1
    %p38 = por %p36, %p37
    %p40 = scmp.ne.s32.totalorder %s23, %s39
    %p41 = scmp.eq.s32.totalorder %s15, 0
    %p42 = por %p40, %p41
    %s43 = ssub.s32 %s9, %s16
    %p44 = scmp.eq.s32.totalorder %s43, 0
    %s46 = sadd.s32 %s45, 1
    %s47 = scalar_select %p44, %s45, %s46
    %p50 = pneg %p44
    %p51 = scmp.eq.s32.totalorder %s9, 1
    %p52 = por %p50, %p51
    %p53 = scmp.ne.s32.totalorder %s45, %s48
    %p54 = scmp.eq.s32.totalorder %s9, 0
    %p55 = por %p53, %p54
    %p56 = scmp.ne.s32.totalorder %s45, %s48
    %p57 = scmp.eq.s32.totalorder %s14, 1
    %p58 = por %p56, %p57
    %p59 = scmp.ne.s32.totalorder %s48, %s49
    %p60 = scmp.eq.s32.totalorder %s14, 0
    %p61 = por %p59, %p60
    %p62 = scmp.ne.s32.totalorder %s48, %s49
    %p63 = scmp.eq.s32.totalorder %s15, 1
    %p64 = por %p62, %p63
    %p66 = scmp.ne.s32.totalorder %s49, %s65
    %p67 = scmp.eq.s32.totalorder %s15, 0
    %p68 = por %p66, %p67
    %s69 = ssub.s32 %s9, %s16
    %p70 = scmp.eq.s32.totalorder %s69, 0
    %s72 = sadd.s32 %s71, 1
    %s73 = scalar_select %p70, %s71, %s72
    %p76 = pneg %p70
    %p77 = scmp.eq.s32.totalorder %s9, 1
    %p78 = por %p76, %p77
    %p79 = scmp.ne.s32.totalorder %s71, %s74
    %p80 = scmp.eq.s32.totalorder %s9, 0
    %p81 = por %p79, %p80
    %p82 = scmp.ne.s32.totalorder %s71, %s74
    %p83 = scmp.eq.s32.totalorder %s14, 1
    %p84 = por %p82, %p83
    %p85 = scmp.ne.s32.totalorder %s74, %s75
    %p86 = scmp.eq.s32.totalorder %s14, 0
    %p87 = por %p85, %p86
    %p88 = scmp.ne.s32.totalorder %s74, %s75
    %p89 = scmp.eq.s32.totalorder %s15, 1
    %p90 = por %p88, %p89
    %p92 = scmp.ne.s32.totalorder %s75, %s91
    %p93 = scmp.eq.s32.totalorder %s15, 0
    %p94 = por %p92, %p93
    %p95 = scmp.le.s32.totalorder 1, %s9
    %p96 = scmp.lt.s32.totalorder %s9, 3
    %p97 = pnand %p95, %p96
    %p98 = pneg %p97
    // Predicated region
    $region9: #{mind_loss.4} parent=5 // pred_check
      _
    $region10: #{mind_loss.4} parent=5 // pred_check_branch
      %100 = sbr.rel (%p97) target = $region12
    $region11: #{mind_loss.4} parent=5 // pred_region
      %s101 = ssub.s32 %s9, 1
    $region12: #{mind_loss.4} parent=5 // pred_fallthru
      _
    %p102 = scmp.lt.s32.totalorder %s9, 2
    // Predicated region
    $region13: #{mind_loss.4} parent=5 // pred_check
      %p103 = pneg %p102
    $region14: #{mind_loss.4} parent=5 // pred_check_branch
      %105 = sbr.rel (%p103) target = $region16
    $region15: #{mind_loss.4} parent=5 // pred_region
      // Predicated region
      $region17: #{mind_loss.4} parent=15 // pred_check
        %p106 = pneg %p29
      $region18: #{mind_loss.4} parent=15 // pred_check_branch
        %108 = sbr.rel (%p106) target = $region20
      $region19: #{mind_loss.4} parent=15 // pred_region
        %p109 = scmp.lt.s32.totalorder %s9, 1
        %s110 = scalar_select %p109, %s9, 1
        %s111 = smul.addr %s110, 32
        %s112 = smul.addr %s111, 8
        %s113 = scalar_lea.vmem %s0, %s112
      $region20: #{mind_loss.4} parent=15 // pred_fallthru
        _
    $region16: #{mind_loss.4} parent=5 // pred_fallthru
      _
    %p114 = scmp.le.s32.totalorder 1, %s9
    %p115 = scmp.lt.s32.totalorder %s9, 3
    %p116 = pnand %p114, %p115
    %p117 = pneg %p116
    // Predicated region
    $region21: #{mind_loss.4} parent=5 // pred_check
      _
    $region22: #{mind_loss.4} parent=5 // pred_check_branch
      %119 = sbr.rel (%p116) target = $region24
    $region23: #{mind_loss.4} parent=5 // pred_region
      %s120 = ssub.s32 %s9, 1
      %p121 = scmp.lt.s32.totalorder %s14, 1
      %s122 = scalar_select %p121, %s14, 1
      %s123 = smul.addr %s122, 32
      %s124 = smul.addr %s123, 8
      %s125 = scalar_lea.vmem %s0, %s124
      %p126 = pneg %p35
      %p127 = pneg %p32
      %p128 = pneg %p61
      %p129 = pneg %p58
      %p130 = scmp.lt.s32.totalorder %s14, 1
      %s131 = scalar_select %p130, %s14, 1
      %s132 = smul.addr %s131, 96
      %s133 = smul.addr %s132, 8
      %s134 = scalar_lea.vmem %s1, %s133
      %p135 = pneg %p87
      %p136 = pneg %p84
      %p137 = scmp.lt.s32.totalorder %s14, 1
      %s138 = scalar_select %p137, %s14, 1
      %s139 = smul.addr %s138, 8
      %s140 = scalar_lea.vmem %s2, %s139
      %p141 = scmp.lt.s32.totalorder %s14, 1
      %s142 = scalar_select %p141, %s14, 1
      %s143 = smul.addr %s142, 32
      %s144 = smul.addr %s143, 8
      %s145 = scalar_lea.vmem %s0, %s144
      %p146 = scmp.lt.s32.totalorder %s14, 1
      %s147 = scalar_select %p146, %s14, 1
      %s148 = smul.addr %s147, 96
      %s149 = smul.addr %s148, 8
      %s150 = scalar_lea.vmem %s1, %s149
      %p151 = scmp.lt.s32.totalorder %s14, 1
      %s152 = scalar_select %p151, %s14, 1
      %s153 = smul.addr %s152, 8
      %s154 = scalar_lea.vmem %s2, %s153
      %v155 = vld [vmem:[%s145] sm:$0xff]
      %v156 = vld [vmem:[%s145 + $0x8] sm:$0xff]
      %v157 = vld [vmem:[%s145 + $0x10] sm:$0xff]
      %v158 = vld [vmem:[%s145 + $0x18] sm:$0xff]
      %v159 = vld [vmem:[%s145 + $0x20] sm:$0xff]
      %v160 = vld [vmem:[%s145 + $0x28] sm:$0xff]
      %v161 = vld [vmem:[%s145 + $0x30] sm:$0xff]
      %v162 = vld [vmem:[%s145 + $0x38] sm:$0xff]
      %v163 = vld [vmem:[%s145 + $0x40] sm:$0xff]
      %v164 = vld [vmem:[%s145 + $0x48] sm:$0xff]
      %v165 = vld [vmem:[%s145 + $0x50] sm:$0xff]
      %v166 = vld [vmem:[%s145 + $0x58] sm:$0xff]
      %v167 = vld [vmem:[%s145 + $0x60] sm:$0xff]
      %v168 = vld [vmem:[%s145 + $0x68] sm:$0xff]
      %v169 = vld [vmem:[%s145 + $0x70] sm:$0xff]
      %v170 = vld [vmem:[%s145 + $0x78] sm:$0xff]
      %v171 = vld [vmem:[%s145 + $0x80] sm:$0xff]
      %v172 = vld [vmem:[%s145 + $0x88] sm:$0xff]
      %v173 = vld [vmem:[%s145 + $0x90] sm:$0xff]
      %v174 = vld [vmem:[%s145 + $0x98] sm:$0xff]
      %v175 = vld [vmem:[%s145 + $0xa0] sm:$0xff]
      %v176 = vld [vmem:[%s145 + $0xa8] sm:$0xff]
      %v177 = vld [vmem:[%s145 + $0xb0] sm:$0xff]
      %v178 = vld [vmem:[%s145 + $0xb8] sm:$0xff]
      %v179 = vld [vmem:[%s145 + $0xc0] sm:$0xff]
      %v180 = vld [vmem:[%s145 + $0xc8] sm:$0xff]
      %v181 = vld [vmem:[%s145 + $0xd0] sm:$0xff]
      %v182 = vld [vmem:[%s145 + $0xd8] sm:$0xff]
      %v183 = vld [vmem:[%s145 + $0xe0] sm:$0xff]
      %v184 = vld [vmem:[%s145 + $0xe8] sm:$0xff]
      %v185 = vld [vmem:[%s145 + $0xf0] sm:$0xff]
      %v186 = vld [vmem:[%s145 + $0xf8] sm:$0xff]
      %v187 = vsel 0, %v173, %v155
      %v188 = vsel 0, %v174, %v156
      %v189 = vsel 0, %v173, %v157
      %v190 = vsel 0, %v174, %v158
      %v191 = vsel 0, %v173, %v159
      %v192 = vsel 0, %v174, %v160
      %v193 = vsel 0, %v173, %v161
      %v194 = vsel 0, %v174, %v162
      %v195 = vsel 0, %v173, %v163
      %v196 = vsel 0, %v174, %v164
      %v197 = vsel 0, %v173, %v165
      %v198 = vsel 0, %v174, %v166
      %v199 = vsel 0, %v173, %v167
      %v200 = vsel 0, %v174, %v168
      %v201 = vsel 0, %v173, %v169
      %v202 = vsel 0, %v174, %v170
      %v203 = vsel 0, %v173, %v171
      %v204 = vsel 0, %v174, %v172
      %v205 = vsel 1, %v173, %v175
      %v206 = vsel 1, %v174, %v176
      %v207 = vsel 1, %v173, %v177
      %v208 = vsel 1, %v174, %v178
      %v209 = vlaneseq
      %v210 = vand.u32 %v209, 127
      %vm211 = vcmp.ge.s32.totalorder %v210, 10
      %213 = vset.pattern.permute.xlu0 9
      %214 = vperm.xlu0 %213, %v159
      %v215 = vpop.permute.xlu0 %214
      %218 = vset.pattern.permute.xlu0 9
      %219 = vperm.xlu0 %218, %v160
      %v220 = vpop.permute.xlu0 %219
      %223 = vset.pattern.permute.xlu0 9
      %224 = vperm.xlu0 %223, %v161
      %v225 = vpop.permute.xlu0 %224
      %228 = vset.pattern.permute.xlu0 9
      %229 = vperm.xlu0 %228, %v162
      %v230 = vpop.permute.xlu0 %229
      %233 = vset.pattern.permute.xlu0 9
      %234 = vperm.xlu0 %233, %v163
      %v235 = vpop.permute.xlu0 %234
      %238 = vset.pattern.permute.xlu0 9
      %239 = vperm.xlu0 %238, %v164
      %v240 = vpop.permute.xlu0 %239
      %243 = vset.pattern.permute.xlu0 9
      %244 = vperm.xlu0 %243, %v165
      %v245 = vpop.permute.xlu0 %244
      %248 = vset.pattern.permute.xlu0 9
      %249 = vperm.xlu0 %248, %v166
      %v250 = vpop.permute.xlu0 %249
      %253 = vset.pattern.permute.xlu0 9
      %254 = vperm.xlu0 %253, %v167
      %v255 = vpop.permute.xlu0 %254
      %258 = vset.pattern.permute.xlu0 9
      %259 = vperm.xlu0 %258, %v168
      %v260 = vpop.permute.xlu0 %259
      %263 = vset.pattern.permute.xlu0 9
      %264 = vperm.xlu0 %263, %v169
      %v265 = vpop.permute.xlu0 %264
      %268 = vset.pattern.permute.xlu0 9
      %269 = vperm.xlu0 %268, %v170
      %v270 = vpop.permute.xlu0 %269
      %273 = vset.pattern.permute.xlu0 9
      %274 = vperm.xlu0 %273, %v171
      %v275 = vpop.permute.xlu0 %274
      %278 = vset.pattern.permute.xlu0 9
      %279 = vperm.xlu0 %278, %v172
      %v280 = vpop.permute.xlu0 %279
      %283 = vset.pattern.permute.xlu0 9
      %284 = vperm.xlu0 %283, %v173
      %v285 = vpop.permute.xlu0 %284
      %288 = vset.pattern.permute.xlu0 9
      %289 = vperm.xlu0 %288, %v174
      %v290 = vpop.permute.xlu0 %289
      %293 = vset.pattern.permute.xlu0 9
      %294 = vperm.xlu0 %293, %v175
      %v295 = vpop.permute.xlu0 %294
      %298 = vset.pattern.permute.xlu0 9
      %299 = vperm.xlu0 %298, %v176
      %v300 = vpop.permute.xlu0 %299
      %303 = vset.pattern.permute.xlu0 9
      %304 = vperm.xlu0 %303, %v177
      %v305 = vpop.permute.xlu0 %304
      %308 = vset.pattern.permute.xlu0 9
      %309 = vperm.xlu0 %308, %v178
      %v310 = vpop.permute.xlu0 %309
      %313 = vset.pattern.permute.xlu0 9
      %314 = vperm.xlu0 %313, %v179
      %v315 = vpop.permute.xlu0 %314
      %318 = vset.pattern.permute.xlu0 9
      %319 = vperm.xlu0 %318, %v180
      %v320 = vpop.permute.xlu0 %319
      %323 = vset.pattern.permute.xlu0 9
      %324 = vperm.xlu0 %323, %v181
      %v325 = vpop.permute.xlu0 %324
      %328 = vset.pattern.permute.xlu0 9
      %329 = vperm.xlu0 %328, %v182
      %v330 = vpop.permute.xlu0 %329
      %v332 = vsel %vm211, %v215, %v159
      %v333 = vsel %vm211, %v220, %v160
      %v334 = vsel %vm211, %v225, %v161
      %v335 = vsel %vm211, %v230, %v162
      %v336 = vsel %vm211, %v235, %v163
      %v337 = vsel %vm211, %v240, %v164
      %v338 = vsel %vm211, %v245, %v165
      %v339 = vsel %vm211, %v250, %v166
      %v340 = vsel %vm211, %v255, %v167
      %v341 = vsel %vm211, %v260, %v168
      %v342 = vsel %vm211, %v265, %v169
      %v343 = vsel %vm211, %v270, %v170
      %v344 = vsel %vm211, %v275, %v171
      %v345 = vsel %vm211, %v280, %v172
      %v346 = vsel %vm211, %v285, %v173
      %v347 = vsel %vm211, %v290, %v174
      %v348 = vsel %vm211, %v295, %v175
      %v349 = vsel %vm211, %v300, %v176
      %v350 = vsel %vm211, %v305, %v177
      %v351 = vsel %vm211, %v310, %v178
      %v352 = vsel %vm211, %v315, %v179
      %v353 = vsel %vm211, %v320, %v180
      %v354 = vsel %vm211, %v325, %v181
      %v355 = vsel %vm211, %v330, %v182
      %v356 = vlaneseq
      %v357 = vshrl.u32 %v356, 7
      %v358 = vadd.s32 %v357, 8
      %vm359 = vcmp.ge.s32.totalorder %v357, 10
      %vm360 = vcmp.ge.s32.totalorder %v358, 10
      %v361 = vperm.slane %v160, 1
      %v362 = vperm.slane %v162, 1
      %v363 = vperm.slane %v164, 1
      %v364 = vperm.slane %v166, 1
      %v365 = vperm.slane %v168, 1
      %v366 = vperm.slane %v170, 1
      %v367 = vperm.slane %v172, 1
      %v368 = vperm.slane %v174, 1
      %v369 = vperm.slane %v176, 1
      %v370 = vperm.slane %v178, 1
      %v371 = vperm.slane %v180, 1
      %v372 = vperm.slane %v182, 1
      %v373 = vsel %vm359, %v361, %v159
      %v374 = vsel %vm360, %v361, %v160
      %v375 = vsel %vm359, %v362, %v161
      %v376 = vsel %vm360, %v362, %v162
      %v377 = vsel %vm359, %v363, %v163
      %v378 = vsel %vm360, %v363, %v164
      %v379 = vsel %vm359, %v364, %v165
      %v380 = vsel %vm360, %v364, %v166
      %v381 = vsel %vm359, %v365, %v167
      %v382 = vsel %vm360, %v365, %v168
      %v383 = vsel %vm359, %v366, %v169
      %v384 = vsel %vm360, %v366, %v170
      %v385 = vsel %vm359, %v367, %v171
      %v386 = vsel %vm360, %v367, %v172
      %v387 = vsel %vm359, %v368, %v173
      %v388 = vsel %vm360, %v368, %v174
      %v389 = vsel %vm359, %v369, %v175
      %v390 = vsel %vm360, %v369, %v176
      %v391 = vsel %vm359, %v370, %v177
      %v392 = vsel %vm360, %v370, %v178
      %v393 = vsel %vm359, %v371, %v179
      %v394 = vsel %vm360, %v371, %v180
      %v395 = vsel %vm359, %v372, %v181
      %v396 = vsel %vm360, %v372, %v182
      %vm397 = vcmp.lt.s32.totalorder %v210, 2
      %398 = vset.pattern.permute.xlu0 6
      %399 = vperm.xlu0 %398, %v159
      %v400 = vpop.permute.xlu0 %399
      %402 = vset.pattern.permute.xlu0 6
      %403 = vperm.xlu0 %402, %v160
      %v404 = vpop.permute.xlu0 %403
      %406 = vset.pattern.permute.xlu0 6
      %407 = vperm.xlu0 %406, %v161
      %v408 = vpop.permute.xlu0 %407
      %410 = vset.pattern.permute.xlu0 6
      %411 = vperm.xlu0 %410, %v162
      %v412 = vpop.permute.xlu0 %411
      %414 = vset.pattern.permute.xlu0 6
      %415 = vperm.xlu0 %414, %v163
      %v416 = vpop.permute.xlu0 %415
      %418 = vset.pattern.permute.xlu0 6
      %419 = vperm.xlu0 %418, %v164
      %v420 = vpop.permute.xlu0 %419
      %422 = vset.pattern.permute.xlu0 6
      %423 = vperm.xlu0 %422, %v165
      %v424 = vpop.permute.xlu0 %423
      %426 = vset.pattern.permute.xlu0 6
      %427 = vperm.xlu0 %426, %v166
      %v428 = vpop.permute.xlu0 %427
      %430 = vset.pattern.permute.xlu0 6
      %431 = vperm.xlu0 %430, %v167
      %v432 = vpop.permute.xlu0 %431
      %434 = vset.pattern.permute.xlu0 6
      %435 = vperm.xlu0 %434, %v168
      %v436 = vpop.permute.xlu0 %435
      %438 = vset.pattern.permute.xlu0 6
      %439 = vperm.xlu0 %438, %v169
      %v440 = vpop.permute.xlu0 %439
      %442 = vset.pattern.permute.xlu0 6
      %443 = vperm.xlu0 %442, %v170
      %v444 = vpop.permute.xlu0 %443
      %446 = vset.pattern.permute.xlu0 6
      %447 = vperm.xlu0 %446, %v171
      %v448 = vpop.permute.xlu0 %447
      %450 = vset.pattern.permute.xlu0 6
      %451 = vperm.xlu0 %450, %v172
      %v452 = vpop.permute.xlu0 %451
      %454 = vset.pattern.permute.xlu0 6
      %455 = vperm.xlu0 %454, %v173
      %v456 = vpop.permute.xlu0 %455
      %458 = vset.pattern.permute.xlu0 6
      %459 = vperm.xlu0 %458, %v174
      %v460 = vpop.permute.xlu0 %459
      %462 = vset.pattern.permute.xlu0 6
      %463 = vperm.xlu0 %462, %v175
      %v464 = vpop.permute.xlu0 %463
      %466 = vset.pattern.permute.xlu0 6
      %467 = vperm.xlu0 %466, %v176
      %v468 = vpop.permute.xlu0 %467
      %470 = vset.pattern.permute.xlu0 6
      %471 = vperm.xlu0 %470, %v177
      %v472 = vpop.permute.xlu0 %471
      %474 = vset.pattern.permute.xlu0 6
      %475 = vperm.xlu0 %474, %v178
      %v476 = vpop.permute.xlu0 %475
      %478 = vset.pattern.permute.xlu0 6
      %479 = vperm.xlu0 %478, %v179
      %v480 = vpop.permute.xlu0 %479
      %482 = vset.pattern.permute.xlu0 6
      %483 = vperm.xlu0 %482, %v180
      %v484 = vpop.permute.xlu0 %483
      %486 = vset.pattern.permute.xlu0 6
      %487 = vperm.xlu0 %486, %v181
      %v488 = vpop.permute.xlu0 %487
      %490 = vset.pattern.permute.xlu0 6
      %491 = vperm.xlu0 %490, %v182
      %v492 = vpop.permute.xlu0 %491
      %494 = vrot.lane.b32.xlu0 %v159, 124
      %v495 = vpop.permute.xlu0 %494
      %496 = vrot.lane.b32.xlu0 %v160, 124
      %v497 = vpop.permute.xlu0 %496
      %498 = vrot.lane.b32.xlu0 %v161, 124
      %v499 = vpop.permute.xlu0 %498
      %500 = vrot.lane.b32.xlu0 %v162, 124
      %v501 = vpop.permute.xlu0 %500
      %502 = vrot.lane.b32.xlu0 %v163, 124
      %v503 = vpop.permute.xlu0 %502
      %504 = vrot.lane.b32.xlu0 %v164, 124
      %v505 = vpop.permute.xlu0 %504
      %506 = vrot.lane.b32.xlu0 %v165, 124
      %v507 = vpop.permute.xlu0 %506
      %508 = vrot.lane.b32.xlu0 %v166, 124
      %v509 = vpop.permute.xlu0 %508
      %510 = vrot.lane.b32.xlu0 %v167, 124
      %v511 = vpop.permute.xlu0 %510
      %512 = vrot.lane.b32.xlu0 %v168, 124
      %v513 = vpop.permute.xlu0 %512
      %514 = vrot.lane.b32.xlu0 %v169, 124
      %v515 = vpop.permute.xlu0 %514
      %516 = vrot.lane.b32.xlu0 %v170, 124
      %v517 = vpop.permute.xlu0 %516
      %518 = vrot.lane.b32.xlu0 %v171, 124
      %v519 = vpop.permute.xlu0 %518
      %520 = vrot.lane.b32.xlu0 %v172, 124
      %v521 = vpop.permute.xlu0 %520
      %522 = vrot.lane.b32.xlu0 %v173, 124
      %v523 = vpop.permute.xlu0 %522
      %524 = vrot.lane.b32.xlu0 %v174, 124
      %v525 = vpop.permute.xlu0 %524
      %526 = vrot.lane.b32.xlu0 %v175, 124
      %v527 = vpop.permute.xlu0 %526
      %528 = vrot.lane.b32.xlu0 %v176, 124
      %v529 = vpop.permute.xlu0 %528
      %530 = vrot.lane.b32.xlu0 %v177, 124
      %v531 = vpop.permute.xlu0 %530
      %532 = vrot.lane.b32.xlu0 %v178, 124
      %v533 = vpop.permute.xlu0 %532
      %534 = vrot.lane.b32.xlu0 %v179, 124
      %v535 = vpop.permute.xlu0 %534
      %536 = vrot.lane.b32.xlu0 %v180, 124
      %v537 = vpop.permute.xlu0 %536
      %538 = vrot.lane.b32.xlu0 %v181, 124
      %v539 = vpop.permute.xlu0 %538
      %540 = vrot.lane.b32.xlu0 %v182, 124
      %v541 = vpop.permute.xlu0 %540
      %v566 = vsel %vm397, %v400, %v495
      %v567 = vsel %vm397, %v404, %v497
      %v568 = vsel %vm397, %v408, %v499
      %v569 = vsel %vm397, %v412, %v501
      %v570 = vsel %vm397, %v416, %v503
      %v571 = vsel %vm397, %v420, %v505
      %v572 = vsel %vm397, %v424, %v507
      %v573 = vsel %vm397, %v428, %v509
      %v574 = vsel %vm397, %v432, %v511
      %v575 = vsel %vm397, %v436, %v513
      %v576 = vsel %vm397, %v440, %v515
      %v577 = vsel %vm397, %v444, %v517
      %v578 = vsel %vm397, %v448, %v519
      %v579 = vsel %vm397, %v452, %v521
      %v580 = vsel %vm397, %v456, %v523
      %v581 = vsel %vm397, %v460, %v525
      %v582 = vsel %vm397, %v464, %v527
      %v583 = vsel %vm397, %v468, %v529
      %v584 = vsel %vm397, %v472, %v531
      %v585 = vsel %vm397, %v476, %v533
      %v586 = vsel %vm397, %v480, %v535
      %v587 = vsel %vm397, %v484, %v537
      %v588 = vsel %vm397, %v488, %v539
      %v589 = vsel %vm397, %v492, %v541
      %v590 = vsel 1, %v167, %v163
      %v591 = vsel 1, %v168, %v164
      %v592 = vsel 1, %v167, %v165
      %v593 = vsel 1, %v168, %v166
      %v594 = vsel 0, %v167, %v169
      %v595 = vsel 0, %v168, %v170
      %v596 = vsel 0, %v167, %v171
      %v597 = vsel 0, %v168, %v172
      %v598 = vsel 0, %v167, %v173
      %v599 = vsel 0, %v168, %v174
      %v600 = vsel 0, %v167, %v175
      %v601 = vsel 0, %v168, %v176
      %v602 = vsel 0, %v167, %v177
      %v603 = vsel 0, %v168, %v178
      %v604 = vsel 0, %v167, %v179
      %v605 = vsel 0, %v168, %v180
      %v606 = vsel 0, %v167, %v181
      %v607 = vsel 0, %v168, %v182
      %v608 = vsel 0, %v167, %v183
      %v609 = vsel 0, %v168, %v184
      %v610 = vsel 0, %v167, %v185
      %v611 = vsel 0, %v168, %v186
      %vm612 = vcmp.lt.s32.totalorder %v357, 2
      %vm613 = vcmp.lt.s32.totalorder %v358, 2
      %v614 = vperm.slane %v159, 6
      %v615 = vperm.slane %v161, 6
      %v616 = vperm.slane %v163, 6
      %v617 = vperm.slane %v165, 6
      %v618 = vperm.slane %v167, 6
      %v619 = vperm.slane %v169, 6
      %v620 = vperm.slane %v171, 6
      %v621 = vperm.slane %v173, 6
      %v622 = vperm.slane %v175, 6
      %v623 = vperm.slane %v177, 6
      %v624 = vperm.slane %v179, 6
      %v625 = vperm.slane %v181, 6
      %vm626 = vcmask 1043456
      %v627 = vrot.slane %v159, 4
      %v628 = vrot.slane %v160, 4
      %v629 = vsel %vm626, %v627, %v628
      %v630 = vrot.slane %v161, 4
      %v631 = vrot.slane %v162, 4
      %v632 = vsel %vm626, %v630, %v631
      %v633 = vrot.slane %v163, 4
      %v634 = vrot.slane %v164, 4
      %v635 = vsel %vm626, %v633, %v634
      %v636 = vrot.slane %v165, 4
      %v637 = vrot.slane %v166, 4
      %v638 = vsel %vm626, %v636, %v637
      %v639 = vrot.slane %v167, 4
      %v640 = vrot.slane %v168, 4
      %v641 = vsel %vm626, %v639, %v640
      %v642 = vrot.slane %v169, 4
      %v643 = vrot.slane %v170, 4
      %v644 = vsel %vm626, %v642, %v643
      %v645 = vrot.slane %v171, 4
      %v646 = vrot.slane %v172, 4
      %v647 = vsel %vm626, %v645, %v646
      %v648 = vrot.slane %v173, 4
      %v649 = vrot.slane %v174, 4
      %v650 = vsel %vm626, %v648, %v649
      %v651 = vrot.slane %v175, 4
      %v652 = vrot.slane %v176, 4
      %v653 = vsel %vm626, %v651, %v652
      %v654 = vrot.slane %v177, 4
      %v655 = vrot.slane %v178, 4
      %v656 = vsel %vm626, %v654, %v655
      %v657 = vrot.slane %v179, 4
      %v658 = vrot.slane %v180, 4
      %v659 = vsel %vm626, %v657, %v658
      %v660 = vrot.slane %v181, 4
      %v661 = vrot.slane %v182, 4
      %v662 = vsel %vm626, %v660, %v661
      %v687 = vsel %vm612, %v614, %v629
      %v688 = vsel %vm613, %v614, %v628
      %v689 = vsel %vm612, %v615, %v632
      %v690 = vsel %vm613, %v615, %v631
      %v691 = vsel %vm612, %v616, %v635
      %v692 = vsel %vm613, %v616, %v634
      %v693 = vsel %vm612, %v617, %v638
      %v694 = vsel %vm613, %v617, %v637
      %v695 = vsel %vm612, %v618, %v641
      %v696 = vsel %vm613, %v618, %v640
      %v697 = vsel %vm612, %v619, %v644
      %v698 = vsel %vm613, %v619, %v643
      %v699 = vsel %vm612, %v620, %v647
      %v700 = vsel %vm613, %v620, %v646
      %v701 = vsel %vm612, %v621, %v650
      %v702 = vsel %vm613, %v621, %v649
      %v703 = vsel %vm612, %v622, %v653
      %v704 = vsel %vm613, %v622, %v652
      %v705 = vsel %vm612, %v623, %v656
      %v706 = vsel %vm613, %v623, %v655
      %v707 = vsel %vm612, %v624, %v659
      %v708 = vsel %vm613, %v624, %v658
      %v709 = vsel %vm612, %v625, %v662
      %v710 = vsel %vm613, %v625, %v661
      %vm735 = vcmask 1041408
      %v736 = vrot.slane %v373, 6
      %v737 = vrot.slane %v374, 6
      %v738 = vsel %vm735, %v736, %v737
      %v739 = vrot.slane %v375, 6
      %v740 = vrot.slane %v376, 6
      %v741 = vsel %vm735, %v739, %v740
      %v742 = vrot.slane %v377, 6
      %v743 = vrot.slane %v378, 6
      %v744 = vsel %vm735, %v742, %v743
      %v745 = vrot.slane %v379, 6
      %v746 = vrot.slane %v380, 6
      %v747 = vsel %vm735, %v745, %v746
      %v748 = vrot.slane %v381, 6
      %v749 = vrot.slane %v382, 6
      %v750 = vsel %vm735, %v748, %v749
      %v751 = vrot.slane %v383, 6
      %v752 = vrot.slane %v384, 6
      %v753 = vsel %vm735, %v751, %v752
      %v754 = vrot.slane %v385, 6
      %v755 = vrot.slane %v386, 6
      %v756 = vsel %vm735, %v754, %v755
      %v757 = vrot.slane %v387, 6
      %v758 = vrot.slane %v388, 6
      %v759 = vsel %vm735, %v757, %v758
      %v760 = vrot.slane %v389, 6
      %v761 = vrot.slane %v390, 6
      %v762 = vsel %vm735, %v760, %v761
      %v763 = vrot.slane %v391, 6
      %v764 = vrot.slane %v392, 6
      %v765 = vsel %vm735, %v763, %v764
      %v766 = vrot.slane %v393, 6
      %v767 = vrot.slane %v394, 6
      %v768 = vsel %vm735, %v766, %v767
      %v769 = vrot.slane %v395, 6
      %v770 = vrot.slane %v396, 6
      %v771 = vsel %vm735, %v769, %v770
      %v796 = vsub.f32 %v590, %v736
      %v797 = vsub.f32 %v591, %v738
      %v798 = vsub.f32 %v592, %v739
      %v799 = vsub.f32 %v593, %v741
      %v800 = vsub.f32 %v167, %v742
      %v801 = vsub.f32 %v168, %v744
      %v802 = vsub.f32 %v594, %v745
      %v803 = vsub.f32 %v595, %v747
      %v804 = vsub.f32 %v596, %v748
      %v805 = vsub.f32 %v597, %v750
      %v806 = vsub.f32 %v598, %v751
      %v807 = vsub.f32 %v599, %v753
      %v808 = vsub.f32 %v600, %v754
      %v809 = vsub.f32 %v601, %v756
      %v810 = vsub.f32 %v602, %v757
      %v811 = vsub.f32 %v603, %v759
      %v812 = vsub.f32 %v604, %v760
      %v813 = vsub.f32 %v605, %v762
      %v814 = vsub.f32 %v606, %v763
      %v815 = vsub.f32 %v607, %v765
      %v816 = vsub.f32 %v608, %v766
      %v817 = vsub.f32 %v609, %v768
      %v818 = vsub.f32 %v610, %v769
      %v819 = vsub.f32 %v611, %v771
      %v820 = vmul.f32 %v796, %v796
      %v821 = vmul.f32 %v797, %v797
      %v822 = vmul.f32 %v798, %v798
      %v823 = vmul.f32 %v799, %v799
      %v824 = vmul.f32 %v800, %v800
      %v825 = vmul.f32 %v801, %v801
      %v826 = vmul.f32 %v802, %v802
      %v827 = vmul.f32 %v803, %v803
      %v828 = vmul.f32 %v804, %v804
      %v829 = vmul.f32 %v805, %v805
      %v830 = vmul.f32 %v806, %v806
      %v831 = vmul.f32 %v807, %v807
      %v832 = vmul.f32 %v808, %v808
      %v833 = vmul.f32 %v809, %v809
      %v834 = vmul.f32 %v810, %v810
      %v835 = vmul.f32 %v811, %v811
      %v836 = vmul.f32 %v812, %v812
      %v837 = vmul.f32 %v813, %v813
      %v838 = vmul.f32 %v814, %v814
      %v839 = vmul.f32 %v815, %v815
      %v840 = vmul.f32 %v816, %v816
      %v841 = vmul.f32 %v817, %v817
      %v842 = vmul.f32 %v818, %v818
      %v843 = vmul.f32 %v819, %v819
      %868 = vrot.lane.b32.xlu0 %v820, 127
      %v869 = vpop.permute.xlu0 %868
      %870 = vrot.lane.b32.xlu0 %v821, 127
      %v871 = vpop.permute.xlu0 %870
      %872 = vrot.lane.b32.xlu0 %v822, 127
      %v873 = vpop.permute.xlu0 %872
      %874 = vrot.lane.b32.xlu0 %v823, 127
      %v875 = vpop.permute.xlu0 %874
      %876 = vrot.lane.b32.xlu0 %v824, 127
      %v877 = vpop.permute.xlu0 %876
      %878 = vrot.lane.b32.xlu0 %v825, 127
      %v879 = vpop.permute.xlu0 %878
      %880 = vrot.lane.b32.xlu0 %v826, 127
      %v881 = vpop.permute.xlu0 %880
      %882 = vrot.lane.b32.xlu0 %v827, 127
      %v883 = vpop.permute.xlu0 %882
      %884 = vrot.lane.b32.xlu0 %v828, 127
      %v885 = vpop.permute.xlu0 %884
      %886 = vrot.lane.b32.xlu0 %v829, 127
      %v887 = vpop.permute.xlu0 %886
      %888 = vrot.lane.b32.xlu0 %v830, 127
      %v889 = vpop.permute.xlu0 %888
      %890 = vrot.lane.b32.xlu0 %v831, 127
      %v891 = vpop.permute.xlu0 %890
      %892 = vrot.lane.b32.xlu0 %v832, 127
      %v893 = vpop.permute.xlu0 %892
      %894 = vrot.lane.b32.xlu0 %v833, 127
      %v895 = vpop.permute.xlu0 %894
      %896 = vrot.lane.b32.xlu0 %v834, 127
      %v897 = vpop.permute.xlu0 %896
      %898 = vrot.lane.b32.xlu0 %v835, 127
      %v899 = vpop.permute.xlu0 %898
      %900 = vrot.lane.b32.xlu0 %v836, 127
      %v901 = vpop.permute.xlu0 %900
      %902 = vrot.lane.b32.xlu0 %v837, 127
      %v903 = vpop.permute.xlu0 %902
      %904 = vrot.lane.b32.xlu0 %v838, 127
      %v905 = vpop.permute.xlu0 %904
      %906 = vrot.lane.b32.xlu0 %v839, 127
      %v907 = vpop.permute.xlu0 %906
      %908 = vrot.lane.b32.xlu0 %v840, 127
      %v909 = vpop.permute.xlu0 %908
      %910 = vrot.lane.b32.xlu0 %v841, 127
      %v911 = vpop.permute.xlu0 %910
      %912 = vrot.lane.b32.xlu0 %v842, 127
      %v913 = vpop.permute.xlu0 %912
      %914 = vrot.lane.b32.xlu0 %v843, 127
      %v915 = vpop.permute.xlu0 %914
      %v940 = vadd.f32 %v820, %v869
      %v941 = vadd.f32 %v821, %v871
      %v942 = vadd.f32 %v822, %v873
      %v943 = vadd.f32 %v823, %v875
      %v944 = vadd.f32 %v824, %v877
      %v945 = vadd.f32 %v825, %v879
      %v946 = vadd.f32 %v826, %v881
      %v947 = vadd.f32 %v827, %v883
      %v948 = vadd.f32 %v828, %v885
      %v949 = vadd.f32 %v829, %v887
      %v950 = vadd.f32 %v830, %v889
      %v951 = vadd.f32 %v831, %v891
      %v952 = vadd.f32 %v832, %v893
      %v953 = vadd.f32 %v833, %v895
      %v954 = vadd.f32 %v834, %v897
      %v955 = vadd.f32 %v835, %v899
      %v956 = vadd.f32 %v836, %v901
      %v957 = vadd.f32 %v837, %v903
      %v958 = vadd.f32 %v838, %v905
      %v959 = vadd.f32 %v839, %v907
      %v960 = vadd.f32 %v840, %v909
      %v961 = vadd.f32 %v841, %v911
      %v962 = vadd.f32 %v842, %v913
      %v963 = vadd.f32 %v843, %v915
      %964 = vrot.lane.b32.xlu0 %v820, 126
      %v965 = vpop.permute.xlu0 %964
      %966 = vrot.lane.b32.xlu0 %v821, 126
      %v967 = vpop.permute.xlu0 %966
      %968 = vrot.lane.b32.xlu0 %v822, 126
      %v969 = vpop.permute.xlu0 %968
      %970 = vrot.lane.b32.xlu0 %v823, 126
      %v971 = vpop.permute.xlu0 %970
      %972 = vrot.lane.b32.xlu0 %v824, 126
      %v973 = vpop.permute.xlu0 %972
      %974 = vrot.lane.b32.xlu0 %v825, 126
      %v975 = vpop.permute.xlu0 %974
      %976 = vrot.lane.b32.xlu0 %v826, 126
      %v977 = vpop.permute.xlu0 %976
      %978 = vrot.lane.b32.xlu0 %v827, 126
      %v979 = vpop.permute.xlu0 %978
      %980 = vrot.lane.b32.xlu0 %v828, 126
      %v981 = vpop.permute.xlu0 %980
      %982 = vrot.lane.b32.xlu0 %v829, 126
      %v983 = vpop.permute.xlu0 %982
      %984 = vrot.lane.b32.xlu0 %v830, 126
      %v985 = vpop.permute.xlu0 %984
      %986 = vrot.lane.b32.xlu0 %v831, 126
      %v987 = vpop.permute.xlu0 %986
      %988 = vrot.lane.b32.xlu0 %v832, 126
      %v989 = vpop.permute.xlu0 %988
      %990 = vrot.lane.b32.xlu0 %v833, 126
      %v991 = vpop.permute.xlu0 %990
      %992 = vrot.lane.b32.xlu0 %v834, 126
      %v993 = vpop.permute.xlu0 %992
      %994 = vrot.lane.b32.xlu0 %v835, 126
      %v995 = vpop.permute.xlu0 %994
      %996 = vrot.lane.b32.xlu0 %v836, 126
      %v997 = vpop.permute.xlu0 %996
      %998 = vrot.lane.b32.xlu0 %v837, 126
      %v999 = vpop.permute.xlu0 %998
      %1000 = vrot.lane.b32.xlu0 %v838, 126
      %v1001 = vpop.permute.xlu0 %1000
      %1002 = vrot.lane.b32.xlu0 %v839, 126
      %v1003 = vpop.permute.xlu0 %1002
      %1004 = vrot.lane.b32.xlu0 %v840, 126
      %v1005 = vpop.permute.xlu0 %1004
      %1006 = vrot.lane.b32.xlu0 %v841, 126
      %v1007 = vpop.permute.xlu0 %1006
      %1008 = vrot.lane.b32.xlu0 %v842, 126
      %v1009 = vpop.permute.xlu0 %1008
      %1010 = vrot.lane.b32.xlu0 %v843, 126
      %v1011 = vpop.permute.xlu0 %1010
      %v1036 = vadd.f32 %v940, %v965
      %v1037 = vadd.f32 %v941, %v967
      %v1038 = vadd.f32 %v942, %v969
      %v1039 = vadd.f32 %v943, %v971
      %v1040 = vadd.f32 %v944, %v973
      %v1041 = vadd.f32 %v945, %v975
      %v1042 = vadd.f32 %v946, %v977
      %v1043 = vadd.f32 %v947, %v979
      %v1044 = vadd.f32 %v948, %v981
      %v1045 = vadd.f32 %v949, %v983
      %v1046 = vadd.f32 %v950, %v985
      %v1047 = vadd.f32 %v951, %v987
      %v1048 = vadd.f32 %v952, %v989
      %v1049 = vadd.f32 %v953, %v991
      %v1050 = vadd.f32 %v954, %v993
      %v1051 = vadd.f32 %v955, %v995
      %v1052 = vadd.f32 %v956, %v997
      %v1053 = vadd.f32 %v957, %v999
      %v1054 = vadd.f32 %v958, %v1001
      %v1055 = vadd.f32 %v959, %v1003
      %v1056 = vadd.f32 %v960, %v1005
      %v1057 = vadd.f32 %v961, %v1007
      %v1058 = vadd.f32 %v962, %v1009
      %v1059 = vadd.f32 %v963, %v1011
      %1060 = vrot.lane.b32.xlu0 %v820, 125
      %v1061 = vpop.permute.xlu0 %1060
      %1062 = vrot.lane.b32.xlu0 %v821, 125
      %v1063 = vpop.permute.xlu0 %1062
      %1064 = vrot.lane.b32.xlu0 %v822, 125
      %v1065 = vpop.permute.xlu0 %1064
      %1066 = vrot.lane.b32.xlu0 %v823, 125
      %v1067 = vpop.permute.xlu0 %1066
      %1068 = vrot.lane.b32.xlu0 %v824, 125
      %v1069 = vpop.permute.xlu0 %1068
      %1070 = vrot.lane.b32.xlu0 %v825, 125
      %v1071 = vpop.permute.xlu0 %1070
      %1072 = vrot.lane.b32.xlu0 %v826, 125
      %v1073 = vpop.permute.xlu0 %1072
      %1074 = vrot.lane.b32.xlu0 %v827, 125
      %v1075 = vpop.permute.xlu0 %1074
      %1076 = vrot.lane.b32.xlu0 %v828, 125
      %v1077 = vpop.permute.xlu0 %1076
      %1078 = vrot.lane.b32.xlu0 %v829, 125
      %v1079 = vpop.permute.xlu0 %1078
      %1080 = vrot.lane.b32.xlu0 %v830, 125
      %v1081 = vpop.permute.xlu0 %1080
      %1082 = vrot.lane.b32.xlu0 %v831, 125
      %v1083 = vpop.permute.xlu0 %1082
      %1084 = vrot.lane.b32.xlu0 %v832, 125
      %v1085 = vpop.permute.xlu0 %1084
      %1086 = vrot.lane.b32.xlu0 %v833, 125
      %v1087 = vpop.permute.xlu0 %1086
      %1088 = vrot.lane.b32.xlu0 %v834, 125
      %v1089 = vpop.permute.xlu0 %1088
      %1090 = vrot.lane.b32.xlu0 %v835, 125
      %v1091 = vpop.permute.xlu0 %1090
      %1092 = vrot.lane.b32.xlu0 %v836, 125
      %v1093 = vpop.permute.xlu0 %1092
      %1094 = vrot.lane.b32.xlu0 %v837, 125
      %v1095 = vpop.permute.xlu0 %1094
      %1096 = vrot.lane.b32.xlu0 %v838, 125
      %v1097 = vpop.permute.xlu0 %1096
      %1098 = vrot.lane.b32.xlu0 %v839, 125
      %v1099 = vpop.permute.xlu0 %1098
      %1100 = vrot.lane.b32.xlu0 %v840, 125
      %v1101 = vpop.permute.xlu0 %1100
      %1102 = vrot.lane.b32.xlu0 %v841, 125
      %v1103 = vpop.permute.xlu0 %1102
      %1104 = vrot.lane.b32.xlu0 %v842, 125
      %v1105 = vpop.permute.xlu0 %1104
      %1106 = vrot.lane.b32.xlu0 %v843, 125
      %v1107 = vpop.permute.xlu0 %1106
      %v1132 = vadd.f32 %v1036, %v1061
      %v1133 = vadd.f32 %v1037, %v1063
      %v1134 = vadd.f32 %v1038, %v1065
      %v1135 = vadd.f32 %v1039, %v1067
      %v1136 = vadd.f32 %v1040, %v1069
      %v1137 = vadd.f32 %v1041, %v1071
      %v1138 = vadd.f32 %v1042, %v1073
      %v1139 = vadd.f32 %v1043, %v1075
      %v1140 = vadd.f32 %v1044, %v1077
      %v1141 = vadd.f32 %v1045, %v1079
      %v1142 = vadd.f32 %v1046, %v1081
      %v1143 = vadd.f32 %v1047, %v1083
      %v1144 = vadd.f32 %v1048, %v1085
      %v1145 = vadd.f32 %v1049, %v1087
      %v1146 = vadd.f32 %v1050, %v1089
      %v1147 = vadd.f32 %v1051, %v1091
      %v1148 = vadd.f32 %v1052, %v1093
      %v1149 = vadd.f32 %v1053, %v1095
      %v1150 = vadd.f32 %v1054, %v1097
      %v1151 = vadd.f32 %v1055, %v1099
      %v1152 = vadd.f32 %v1056, %v1101
      %v1153 = vadd.f32 %v1057, %v1103
      %v1154 = vadd.f32 %v1058, %v1105
      %v1155 = vadd.f32 %v1059, %v1107
      %1156 = vrot.lane.b32.xlu0 %v820, 124
      %v1157 = vpop.permute.xlu0 %1156
      %1158 = vrot.lane.b32.xlu0 %v821, 124
      %v1159 = vpop.permute.xlu0 %1158
      %1160 = vrot.lane.b32.xlu0 %v822, 124
      %v1161 = vpop.permute.xlu0 %1160
      %1162 = vrot.lane.b32.xlu0 %v823, 124
      %v1163 = vpop.permute.xlu0 %1162
      %1164 = vrot.lane.b32.xlu0 %v824, 124
      %v1165 = vpop.permute.xlu0 %1164
      %1166 = vrot.lane.b32.xlu0 %v825, 124
      %v1167 = vpop.permute.xlu0 %1166
      %1168 = vrot.lane.b32.xlu0 %v826, 124
      %v1169 = vpop.permute.xlu0 %1168
      %1170 = vrot.lane.b32.xlu0 %v827, 124
      %v1171 = vpop.permute.xlu0 %1170
      %1172 = vrot.lane.b32.xlu0 %v828, 124
      %v1173 = vpop.permute.xlu0 %1172
      %1174 = vrot.lane.b32.xlu0 %v829, 124
      %v1175 = vpop.permute.xlu0 %1174
      %1176 = vrot.lane.b32.xlu0 %v830, 124
      %v1177 = vpop.permute.xlu0 %1176
      %1178 = vrot.lane.b32.xlu0 %v831, 124
      %v1179 = vpop.permute.xlu0 %1178
      %1180 = vrot.lane.b32.xlu0 %v832, 124
      %v1181 = vpop.permute.xlu0 %1180
      %1182 = vrot.lane.b32.xlu0 %v833, 124
      %v1183 = vpop.permute.xlu0 %1182
      %1184 = vrot.lane.b32.xlu0 %v834, 124
      %v1185 = vpop.permute.xlu0 %1184
      %1186 = vrot.lane.b32.xlu0 %v835, 124
      %v1187 = vpop.permute.xlu0 %1186
      %1188 = vrot.lane.b32.xlu0 %v836, 124
      %v1189 = vpop.permute.xlu0 %1188
      %1190 = vrot.lane.b32.xlu0 %v837, 124
      %v1191 = vpop.permute.xlu0 %1190
      %1192 = vrot.lane.b32.xlu0 %v838, 124
      %v1193 = vpop.permute.xlu0 %1192
      %1194 = vrot.lane.b32.xlu0 %v839, 124
      %v1195 = vpop.permute.xlu0 %1194
      %1196 = vrot.lane.b32.xlu0 %v840, 124
      %v1197 = vpop.permute.xlu0 %1196
      %1198 = vrot.lane.b32.xlu0 %v841, 124
      %v1199 = vpop.permute.xlu0 %1198
      %1200 = vrot.lane.b32.xlu0 %v842, 124
      %v1201 = vpop.permute.xlu0 %1200
      %1202 = vrot.lane.b32.xlu0 %v843, 124
      %v1203 = vpop.permute.xlu0 %1202
      %v1228 = vadd.f32 %v1132, %v1157
      %v1229 = vadd.f32 %v1133, %v1159
      %v1230 = vadd.f32 %v1134, %v1161
      %v1231 = vadd.f32 %v1135, %v1163
      %v1232 = vadd.f32 %v1136, %v1165
      %v1233 = vadd.f32 %v1137, %v1167
      %v1234 = vadd.f32 %v1138, %v1169
      %v1235 = vadd.f32 %v1139, %v1171
      %v1236 = vadd.f32 %v1140, %v1173
      %v1237 = vadd.f32 %v1141, %v1175
      %v1238 = vadd.f32 %v1142, %v1177
      %v1239 = vadd.f32 %v1143, %v1179
      %v1240 = vadd.f32 %v1144, %v1181
      %v1241 = vadd.f32 %v1145, %v1183
      %v1242 = vadd.f32 %v1146, %v1185
      %v1243 = vadd.f32 %v1147, %v1187
      %v1244 = vadd.f32 %v1148, %v1189
      %v1245 = vadd.f32 %v1149, %v1191
      %v1246 = vadd.f32 %v1150, %v1193
      %v1247 = vadd.f32 %v1151, %v1195
      %v1248 = vadd.f32 %v1152, %v1197
      %v1249 = vadd.f32 %v1153, %v1199
      %v1250 = vadd.f32 %v1154, %v1201
      %v1251 = vadd.f32 %v1155, %v1203
      %vm1276 = vcmask 1046528
      %v1277 = vrot.slane %v1228, 1
      %v1278 = vrot.slane %v1229, 1
      %v1279 = vsel %vm1276, %v1277, %v1278
      %v1280 = vrot.slane %v1230, 1
      %v1281 = vrot.slane %v1231, 1
      %v1282 = vsel %vm1276, %v1280, %v1281
      %v1283 = vrot.slane %v1232, 1
      %v1284 = vrot.slane %v1233, 1
      %v1285 = vsel %vm1276, %v1283, %v1284
      %v1286 = vrot.slane %v1234, 1
      %v1287 = vrot.slane %v1235, 1
      %v1288 = vsel %vm1276, %v1286, %v1287
      %v1289 = vrot.slane %v1236, 1
      %v1290 = vrot.slane %v1237, 1
      %v1291 = vsel %vm1276, %v1289, %v1290
      %v1292 = vrot.slane %v1238, 1
      %v1293 = vrot.slane %v1239, 1
      %v1294 = vsel %vm1276, %v1292, %v1293
      %v1295 = vrot.slane %v1240, 1
      %v1296 = vrot.slane %v1241, 1
      %v1297 = vsel %vm1276, %v1295, %v1296
      %v1298 = vrot.slane %v1242, 1
      %v1299 = vrot.slane %v1243, 1
      %v1300 = vsel %vm1276, %v1298, %v1299
      %v1301 = vrot.slane %v1244, 1
      %v1302 = vrot.slane %v1245, 1
      %v1303 = vsel %vm1276, %v1301, %v1302
      %v1304 = vrot.slane %v1246, 1
      %v1305 = vrot.slane %v1247, 1
      %v1306 = vsel %vm1276, %v1304, %v1305
      %v1307 = vrot.slane %v1248, 1
      %v1308 = vrot.slane %v1249, 1
      %v1309 = vsel %vm1276, %v1307, %v1308
      %v1310 = vrot.slane %v1250, 1
      %v1311 = vrot.slane %v1251, 1
      %v1312 = vsel %vm1276, %v1310, %v1311
      %v1337 = vadd.f32 %v1228, %v1279
      %v1338 = vadd.f32 %v1229, %v1278
      %v1339 = vadd.f32 %v1230, %v1282
      %v1340 = vadd.f32 %v1231, %v1281
      %v1341 = vadd.f32 %v1232, %v1285
      %v1342 = vadd.f32 %v1233, %v1284
      %v1343 = vadd.f32 %v1234, %v1288
      %v1344 = vadd.f32 %v1235, %v1287
      %v1345 = vadd.f32 %v1236, %v1291
      %v1346 = vadd.f32 %v1237, %v1290
      %v1347 = vadd.f32 %v1238, %v1294
      %v1348 = vadd.f32 %v1239, %v1293
      %v1349 = vadd.f32 %v1240, %v1297
      %v1350 = vadd.f32 %v1241, %v1296
      %v1351 = vadd.f32 %v1242, %v1300
      %v1352 = vadd.f32 %v1243, %v1299
      %v1353 = vadd.f32 %v1244, %v1303
      %v1354 = vadd.f32 %v1245, %v1302
      %v1355 = vadd.f32 %v1246, %v1306
      %v1356 = vadd.f32 %v1247, %v1305
      %v1357 = vadd.f32 %v1248, %v1309
      %v1358 = vadd.f32 %v1249, %v1308
      %v1359 = vadd.f32 %v1250, %v1312
      %v1360 = vadd.f32 %v1251, %v1311
      %vm1361 = vcmask 1045504
      %v1362 = vrot.slane %v1228, 2
      %v1363 = vrot.slane %v1229, 2
      %v1364 = vsel %vm1361, %v1362, %v1363
      %v1365 = vrot.slane %v1230, 2
      %v1366 = vrot.slane %v1231, 2
      %v1367 = vsel %vm1361, %v1365, %v1366
      %v1368 = vrot.slane %v1232, 2
      %v1369 = vrot.slane %v1233, 2
      %v1370 = vsel %vm1361, %v1368, %v1369
      %v1371 = vrot.slane %v1234, 2
      %v1372 = vrot.slane %v1235, 2
      %v1373 = vsel %vm1361, %v1371, %v1372
      %v1374 = vrot.slane %v1236, 2
      %v1375 = vrot.slane %v1237, 2
      %v1376 = vsel %vm1361, %v1374, %v1375
      %v1377 = vrot.slane %v1238, 2
      %v1378 = vrot.slane %v1239, 2
      %v1379 = vsel %vm1361, %v1377, %v1378
      %v1380 = vrot.slane %v1240, 2
      %v1381 = vrot.slane %v1241, 2
      %v1382 = vsel %vm1361, %v1380, %v1381
      %v1383 = vrot.slane %v1242, 2
      %v1384 = vrot.slane %v1243, 2
      %v1385 = vsel %vm1361, %v1383, %v1384
      %v1386 = vrot.slane %v1244, 2
      %v1387 = vrot.slane %v1245, 2
      %v1388 = vsel %vm1361, %v1386, %v1387
      %v1389 = vrot.slane %v1246, 2
      %v1390 = vrot.slane %v1247, 2
      %v1391 = vsel %vm1361, %v1389, %v1390
      %v1392 = vrot.slane %v1248, 2
      %v1393 = vrot.slane %v1249, 2
      %v1394 = vsel %vm1361, %v1392, %v1393
      %v1395 = vrot.slane %v1250, 2
      %v1396 = vrot.slane %v1251, 2
      %v1397 = vsel %vm1361, %v1395, %v1396
      %v1422 = vadd.f32 %v1337, %v1364
      %v1423 = vadd.f32 %v1338, %v1363
      %v1424 = vadd.f32 %v1339, %v1367
      %v1425 = vadd.f32 %v1340, %v1366
      %v1426 = vadd.f32 %v1341, %v1370
      %v1427 = vadd.f32 %v1342, %v1369
      %v1428 = vadd.f32 %v1343, %v1373
      %v1429 = vadd.f32 %v1344, %v1372
      %v1430 = vadd.f32 %v1345, %v1376
      %v1431 = vadd.f32 %v1346, %v1375
      %v1432 = vadd.f32 %v1347, %v1379
      %v1433 = vadd.f32 %v1348, %v1378
      %v1434 = vadd.f32 %v1349, %v1382
      %v1435 = vadd.f32 %v1350, %v1381
      %v1436 = vadd.f32 %v1351, %v1385
      %v1437 = vadd.f32 %v1352, %v1384
      %v1438 = vadd.f32 %v1353, %v1388
      %v1439 = vadd.f32 %v1354, %v1387
      %v1440 = vadd.f32 %v1355, %v1391
      %v1441 = vadd.f32 %v1356, %v1390
      %v1442 = vadd.f32 %v1357, %v1394
      %v1443 = vadd.f32 %v1358, %v1393
      %v1444 = vadd.f32 %v1359, %v1397
      %v1445 = vadd.f32 %v1360, %v1396
      %vm1446 = vcmask 1044480
      %v1447 = vrot.slane %v1228, 3
      %v1448 = vrot.slane %v1229, 3
      %v1449 = vsel %vm1446, %v1447, %v1448
      %v1450 = vrot.slane %v1230, 3
      %v1451 = vrot.slane %v1231, 3
      %v1452 = vsel %vm1446, %v1450, %v1451
      %v1453 = vrot.slane %v1232, 3
      %v1454 = vrot.slane %v1233, 3
      %v1455 = vsel %vm1446, %v1453, %v1454
      %v1456 = vrot.slane %v1234, 3
      %v1457 = vrot.slane %v1235, 3
      %v1458 = vsel %vm1446, %v1456, %v1457
      %v1459 = vrot.slane %v1236, 3
      %v1460 = vrot.slane %v1237, 3
      %v1461 = vsel %vm1446, %v1459, %v1460
      %v1462 = vrot.slane %v1238, 3
      %v1463 = vrot.slane %v1239, 3
      %v1464 = vsel %vm1446, %v1462, %v1463
      %v1465 = vrot.slane %v1240, 3
      %v1466 = vrot.slane %v1241, 3
      %v1467 = vsel %vm1446, %v1465, %v1466
      %v1468 = vrot.slane %v1242, 3
      %v1469 = vrot.slane %v1243, 3
      %v1470 = vsel %vm1446, %v1468, %v1469
      %v1471 = vrot.slane %v1244, 3
      %v1472 = vrot.slane %v1245, 3
      %v1473 = vsel %vm1446, %v1471, %v1472
      %v1474 = vrot.slane %v1246, 3
      %v1475 = vrot.slane %v1247, 3
      %v1476 = vsel %vm1446, %v1474, %v1475
      %v1477 = vrot.slane %v1248, 3
      %v1478 = vrot.slane %v1249, 3
      %v1479 = vsel %vm1446, %v1477, %v1478
      %v1480 = vrot.slane %v1250, 3
      %v1481 = vrot.slane %v1251, 3
      %v1482 = vsel %vm1446, %v1480, %v1481
      %v1507 = vadd.f32 %v1422, %v1449
      %v1508 = vadd.f32 %v1423, %v1448
      %v1509 = vadd.f32 %v1424, %v1452
      %v1510 = vadd.f32 %v1425, %v1451
      %v1511 = vadd.f32 %v1426, %v1455
      %v1512 = vadd.f32 %v1427, %v1454
      %v1513 = vadd.f32 %v1428, %v1458
      %v1514 = vadd.f32 %v1429, %v1457
      %v1515 = vadd.f32 %v1430, %v1461
      %v1516 = vadd.f32 %v1431, %v1460
      %v1517 = vadd.f32 %v1432, %v1464
      %v1518 = vadd.f32 %v1433, %v1463
      %v1519 = vadd.f32 %v1434, %v1467
      %v1520 = vadd.f32 %v1435, %v1466
      %v1521 = vadd.f32 %v1436, %v1470
      %v1522 = vadd.f32 %v1437, %v1469
      %v1523 = vadd.f32 %v1438, %v1473
      %v1524 = vadd.f32 %v1439, %v1472
      %v1525 = vadd.f32 %v1440, %v1476
      %v1526 = vadd.f32 %v1441, %v1475
      %v1527 = vadd.f32 %v1442, %v1479
      %v1528 = vadd.f32 %v1443, %v1478
      %v1529 = vadd.f32 %v1444, %v1482
      %v1530 = vadd.f32 %v1445, %v1481
      %v1531 = vrot.slane %v1228, 4
      %v1532 = vrot.slane %v1229, 4
      %v1533 = vsel %vm626, %v1531, %v1532
      %v1534 = vrot.slane %v1230, 4
      %v1535 = vrot.slane %v1231, 4
      %v1536 = vsel %vm626, %v1534, %v1535
      %v1537 = vrot.slane %v1232, 4
      %v1538 = vrot.slane %v1233, 4
      %v1539 = vsel %vm626, %v1537, %v1538
      %v1540 = vrot.slane %v1234, 4
      %v1541 = vrot.slane %v1235, 4
      %v1542 = vsel %vm626, %v1540, %v1541
      %v1543 = vrot.slane %v1236, 4
      %v1544 = vrot.slane %v1237, 4
      %v1545 = vsel %vm626, %v1543, %v1544
      %v1546 = vrot.slane %v1238, 4
      %v1547 = vrot.slane %v1239, 4
      %v1548 = vsel %vm626, %v1546, %v1547
      %v1549 = vrot.slane %v1240, 4
      %v1550 = vrot.slane %v1241, 4
      %v1551 = vsel %vm626, %v1549, %v1550
      %v1552 = vrot.slane %v1242, 4
      %v1553 = vrot.slane %v1243, 4
      %v1554 = vsel %vm626, %v1552, %v1553
      %v1555 = vrot.slane %v1244, 4
      %v1556 = vrot.slane %v1245, 4
      %v1557 = vsel %vm626, %v1555, %v1556
      %v1558 = vrot.slane %v1246, 4
      %v1559 = vrot.slane %v1247, 4
      %v1560 = vsel %vm626, %v1558, %v1559
      %v1561 = vrot.slane %v1248, 4
      %v1562 = vrot.slane %v1249, 4
      %v1563 = vsel %vm626, %v1561, %v1562
      %v1564 = vrot.slane %v1250, 4
      %v1565 = vrot.slane %v1251, 4
      %v1566 = vsel %vm626, %v1564, %v1565
      %v1591 = vadd.f32 %v1507, %v1533
      %v1592 = vadd.f32 %v1508, %v1532
      %v1593 = vadd.f32 %v1509, %v1536
      %v1594 = vadd.f32 %v1510, %v1535
      %v1595 = vadd.f32 %v1511, %v1539
      %v1596 = vadd.f32 %v1512, %v1538
      %v1597 = vadd.f32 %v1513, %v1542
      %v1598 = vadd.f32 %v1514, %v1541
      %v1599 = vadd.f32 %v1515, %v1545
      %v1600 = vadd.f32 %v1516, %v1544
      %v1601 = vadd.f32 %v1517, %v1548
      %v1602 = vadd.f32 %v1518, %v1547
      %v1603 = vadd.f32 %v1519, %v1551
      %v1604 = vadd.f32 %v1520, %v1550
      %v1605 = vadd.f32 %v1521, %v1554
      %v1606 = vadd.f32 %v1522, %v1553
      %v1607 = vadd.f32 %v1523, %v1557
      %v1608 = vadd.f32 %v1524, %v1556
      %v1609 = vadd.f32 %v1525, %v1560
      %v1610 = vadd.f32 %v1526, %v1559
      %v1611 = vadd.f32 %v1527, %v1563
      %v1612 = vadd.f32 %v1528, %v1562
      %v1613 = vadd.f32 %v1529, %v1566
      %v1614 = vadd.f32 %v1530, %v1565
      %v1615 = vadd.f32 %v1591, %v1593
      %v1616 = vadd.f32 %v1592, %v1594
      %v1617 = vadd.f32 %v1593, %v1595
      %v1618 = vadd.f32 %v1594, %v1596
      %v1619 = vadd.f32 %v1595, %v1597
      %v1620 = vadd.f32 %v1596, %v1598
      %v1621 = vadd.f32 %v1597, %v1599
      %v1622 = vadd.f32 %v1598, %v1600
      %v1623 = vadd.f32 %v1599, %v1601
      %v1624 = vadd.f32 %v1600, %v1602
      %v1625 = vadd.f32 %v1601, %v1603
      %v1626 = vadd.f32 %v1602, %v1604
      %v1627 = vadd.f32 %v1603, %v1605
      %v1628 = vadd.f32 %v1604, %v1606
      %v1629 = vadd.f32 %v1605, %v1607
      %v1630 = vadd.f32 %v1606, %v1608
      %v1631 = vadd.f32 %v1615, %v1595
      %v1632 = vadd.f32 %v1616, %v1596
      %v1633 = vadd.f32 %v1617, %v1597
      %v1634 = vadd.f32 %v1618, %v1598
      %v1635 = vadd.f32 %v1619, %v1599
      %v1636 = vadd.f32 %v1620, %v1600
      %v1637 = vadd.f32 %v1621, %v1601
      %v1638 = vadd.f32 %v1622, %v1602
      %v1639 = vadd.f32 %v1623, %v1603
      %v1640 = vadd.f32 %v1624, %v1604
      %v1641 = vadd.f32 %v1625, %v1605
      %v1642 = vadd.f32 %v1626, %v1606
      %v1643 = vadd.f32 %v1627, %v1607
      %v1644 = vadd.f32 %v1628, %v1608
      %v1645 = vadd.f32 %v1629, %v1609
      %v1646 = vadd.f32 %v1630, %v1610
      %v1647 = vadd.f32 %v1631, %v1597
      %v1648 = vadd.f32 %v1632, %v1598
      %v1649 = vadd.f32 %v1633, %v1599
      %v1650 = vadd.f32 %v1634, %v1600
      %v1651 = vadd.f32 %v1635, %v1601
      %v1652 = vadd.f32 %v1636, %v1602
      %v1653 = vadd.f32 %v1637, %v1603
      %v1654 = vadd.f32 %v1638, %v1604
      %v1655 = vadd.f32 %v1639, %v1605
      %v1656 = vadd.f32 %v1640, %v1606
      %v1657 = vadd.f32 %v1641, %v1607
      %v1658 = vadd.f32 %v1642, %v1608
      %v1659 = vadd.f32 %v1643, %v1609
      %v1660 = vadd.f32 %v1644, %v1610
      %v1661 = vadd.f32 %v1645, %v1611
      %v1662 = vadd.f32 %v1646, %v1612
      %v1663 = vadd.f32 %v1647, %v1599
      %v1664 = vadd.f32 %v1648, %v1600
      %v1665 = vadd.f32 %v1649, %v1601
      %v1666 = vadd.f32 %v1650, %v1602
      %v1667 = vadd.f32 %v1651, %v1603
      %v1668 = vadd.f32 %v1652, %v1604
      %v1669 = vadd.f32 %v1653, %v1605
      %v1670 = vadd.f32 %v1654, %v1606
      %v1671 = vadd.f32 %v1655, %v1607
      %v1672 = vadd.f32 %v1656, %v1608
      %v1673 = vadd.f32 %v1657, %v1609
      %v1674 = vadd.f32 %v1658, %v1610
      %v1675 = vadd.f32 %v1659, %v1611
      %v1676 = vadd.f32 %v1660, %v1612
      %v1677 = vadd.f32 %v1661, %v1613
      %v1678 = vadd.f32 %v1662, %v1614
      %v1679 = vmul.f32 %v1663, 0.008
      %v1680 = vmul.f32 %v1664, 0.008
      %v1681 = vmul.f32 %v1665, 0.008
      %v1682 = vmul.f32 %v1666, 0.008
      %v1683 = vmul.f32 %v1667, 0.008
      %v1684 = vmul.f32 %v1668, 0.008
      %v1685 = vmul.f32 %v1669, 0.008
      %v1686 = vmul.f32 %v1670, 0.008
      %v1687 = vmul.f32 %v1671, 0.008
      %v1688 = vmul.f32 %v1672, 0.008
      %v1689 = vmul.f32 %v1673, 0.008
      %v1690 = vmul.f32 %v1674, 0.008
      %v1691 = vmul.f32 %v1675, 0.008
      %v1692 = vmul.f32 %v1676, 0.008
      %v1693 = vmul.f32 %v1677, 0.008
      %v1694 = vmul.f32 %v1678, 0.008
      %1711 = vrot.lane.b32.xlu0 %v1679, 126
      %v1712 = vpop.permute.xlu0 %1711
      %1713 = vrot.lane.b32.xlu0 %v1680, 126
      %v1714 = vpop.permute.xlu0 %1713
      %1715 = vrot.lane.b32.xlu0 %v1681, 126
      %v1716 = vpop.permute.xlu0 %1715
      %1717 = vrot.lane.b32.xlu0 %v1682, 126
      %v1718 = vpop.permute.xlu0 %1717
      %1719 = vrot.lane.b32.xlu0 %v1683, 126
      %v1720 = vpop.permute.xlu0 %1719
      %1721 = vrot.lane.b32.xlu0 %v1684, 126
      %v1722 = vpop.permute.xlu0 %1721
      %1723 = vrot.lane.b32.xlu0 %v1685, 126
      %v1724 = vpop.permute.xlu0 %1723
      %1725 = vrot.lane.b32.xlu0 %v1686, 126
      %v1726 = vpop.permute.xlu0 %1725
      %1727 = vrot.lane.b32.xlu0 %v1687, 126
      %v1728 = vpop.permute.xlu0 %1727
      %1729 = vrot.lane.b32.xlu0 %v1688, 126
      %v1730 = vpop.permute.xlu0 %1729
      %1731 = vrot.lane.b32.xlu0 %v1689, 126
      %v1732 = vpop.permute.xlu0 %1731
      %1733 = vrot.lane.b32.xlu0 %v1690, 126
      %v1734 = vpop.permute.xlu0 %1733
      %1735 = vrot.lane.b32.xlu0 %v1691, 126
      %v1736 = vpop.permute.xlu0 %1735
      %1737 = vrot.lane.b32.xlu0 %v1692, 126
      %v1738 = vpop.permute.xlu0 %1737
      %1739 = vrot.lane.b32.xlu0 %v1693, 126
      %v1740 = vpop.permute.xlu0 %1739
      %1741 = vrot.lane.b32.xlu0 %v1694, 126
      %v1742 = vpop.permute.xlu0 %1741
      %vm1759 = vcmask 64514
      %1760 = vst.msk [vmem:[%s150 - $0x2] sm:$0xfc] %vm1759, %v1712
      %vm1761 = vcmask 58368
      %1762 = vst.msk [vmem:[%s150 + $0x6] sm:$0x3] %vm1761, %v1714
      %1763 = vst.msk [vmem:[%s150 + $0x6] sm:$0xfc] %vm1759, %v1716
      %1764 = vst.msk [vmem:[%s150 + $0xe] sm:$0x3] %vm1761, %v1718
      %1765 = vst.msk [vmem:[%s150 + $0xe] sm:$0xfc] %vm1759, %v1720
      %1766 = vst.msk [vmem:[%s150 + $0x16] sm:$0x3] %vm1761, %v1722
      %1767 = vst.msk [vmem:[%s150 + $0x16] sm:$0xfc] %vm1759, %v1724
      %1768 = vst.msk [vmem:[%s150 + $0x1e] sm:$0x3] %vm1761, %v1726
      %1769 = vst.msk [vmem:[%s150 + $0x1e] sm:$0xfc] %vm1759, %v1728
      %1770 = vst.msk [vmem:[%s150 + $0x26] sm:$0x3] %vm1761, %v1730
      %1771 = vst.msk [vmem:[%s150 + $0x26] sm:$0xfc] %vm1759, %v1732
      %1772 = vst.msk [vmem:[%s150 + $0x2e] sm:$0x3] %vm1761, %v1734
      %1773 = vst.msk [vmem:[%s150 + $0x2e] sm:$0xfc] %vm1759, %v1736
      %1774 = vst.msk [vmem:[%s150 + $0x36] sm:$0x3] %vm1761, %v1738
      %1775 = vst.msk [vmem:[%s150 + $0x36] sm:$0xfc] %vm1759, %v1740
      %1776 = vst.msk [vmem:[%s150 + $0x3e] sm:$0x3] %vm1761, %v1742
      %v1799 = vrot.slane %v187, 2
      %v1800 = vrot.slane %v188, 2
      %v1801 = vsel %vm1361, %v1799, %v1800
      %v1802 = vrot.slane %v189, 2
      %v1803 = vrot.slane %v190, 2
      %v1804 = vsel %vm1361, %v1802, %v1803
      %v1805 = vrot.slane %v191, 2
      %v1806 = vrot.slane %v192, 2
      %v1807 = vsel %vm1361, %v1805, %v1806
      %v1808 = vrot.slane %v193, 2
      %v1809 = vrot.slane %v194, 2
      %v1810 = vsel %vm1361, %v1808, %v1809
      %v1811 = vrot.slane %v195, 2
      %v1812 = vrot.slane %v196, 2
      %v1813 = vsel %vm1361, %v1811, %v1812
      %v1814 = vrot.slane %v197, 2
      %v1815 = vrot.slane %v198, 2
      %v1816 = vsel %vm1361, %v1814, %v1815
      %v1817 = vrot.slane %v199, 2
      %v1818 = vrot.slane %v200, 2
      %v1819 = vsel %vm1361, %v1817, %v1818
      %v1820 = vrot.slane %v201, 2
      %v1821 = vrot.slane %v202, 2
      %v1822 = vsel %vm1361, %v1820, %v1821
      %v1823 = vrot.slane %v203, 2
      %v1824 = vrot.slane %v204, 2
      %v1825 = vsel %vm1361, %v1823, %v1824
      %v1826 = vrot.slane %v173, 2
      %v1827 = vrot.slane %v174, 2
      %v1828 = vsel %vm1361, %v1826, %v1827
      %v1829 = vrot.slane %v205, 2
      %v1830 = vrot.slane %v206, 2
      %v1831 = vsel %vm1361, %v1829, %v1830
      %v1832 = vrot.slane %v207, 2
      %v1833 = vrot.slane %v208, 2
      %v1834 = vsel %vm1361, %v1832, %v1833
      %v1859 = vsub.f32 %v687, %v1801
      %v1860 = vsub.f32 %v688, %v1800
      %v1861 = vsub.f32 %v689, %v1804
      %v1862 = vsub.f32 %v690, %v1803
      %v1863 = vsub.f32 %v691, %v1807
      %v1864 = vsub.f32 %v692, %v1806
      %v1865 = vsub.f32 %v693, %v1810
      %v1866 = vsub.f32 %v694, %v1809
      %v1867 = vsub.f32 %v695, %v1813
      %v1868 = vsub.f32 %v696, %v1812
      %v1869 = vsub.f32 %v697, %v1816
      %v1870 = vsub.f32 %v698, %v1815
      %v1871 = vsub.f32 %v699, %v1819
      %v1872 = vsub.f32 %v700, %v1818
      %v1873 = vsub.f32 %v701, %v1822
      %v1874 = vsub.f32 %v702, %v1821
      %v1875 = vsub.f32 %v703, %v1825
      %v1876 = vsub.f32 %v704, %v1824
      %v1877 = vsub.f32 %v705, %v1828
      %v1878 = vsub.f32 %v706, %v1827
      %v1879 = vsub.f32 %v707, %v1831
      %v1880 = vsub.f32 %v708, %v1830
      %v1881 = vsub.f32 %v709, %v1834
      %v1882 = vsub.f32 %v710, %v1833
      %v1883 = vmul.f32 %v1859, %v1859
      %v1884 = vmul.f32 %v1860, %v1860
      %v1885 = vmul.f32 %v1861, %v1861
      %v1886 = vmul.f32 %v1862, %v1862
      %v1887 = vmul.f32 %v1863, %v1863
      %v1888 = vmul.f32 %v1864, %v1864
      %v1889 = vmul.f32 %v1865, %v1865
      %v1890 = vmul.f32 %v1866, %v1866
      %v1891 = vmul.f32 %v1867, %v1867
      %v1892 = vmul.f32 %v1868, %v1868
      %v1893 = vmul.f32 %v1869, %v1869
      %v1894 = vmul.f32 %v1870, %v1870
      %v1895 = vmul.f32 %v1871, %v1871
      %v1896 = vmul.f32 %v1872, %v1872
      %v1897 = vmul.f32 %v1873, %v1873
      %v1898 = vmul.f32 %v1874, %v1874
      %v1899 = vmul.f32 %v1875, %v1875
      %v1900 = vmul.f32 %v1876, %v1876
      %v1901 = vmul.f32 %v1877, %v1877
      %v1902 = vmul.f32 %v1878, %v1878
      %v1903 = vmul.f32 %v1879, %v1879
      %v1904 = vmul.f32 %v1880, %v1880
      %v1905 = vmul.f32 %v1881, %v1881
      %v1906 = vmul.f32 %v1882, %v1882
      %1931 = vrot.lane.b32.xlu0 %v1883, 127
      %v1932 = vpop.permute.xlu0 %1931
      %1933 = vrot.lane.b32.xlu0 %v1884, 127
      %v1934 = vpop.permute.xlu0 %1933
      %1935 = vrot.lane.b32.xlu0 %v1885, 127
      %v1936 = vpop.permute.xlu0 %1935
      %1937 = vrot.lane.b32.xlu0 %v1886, 127
      %v1938 = vpop.permute.xlu0 %1937
      %1939 = vrot.lane.b32.xlu0 %v1887, 127
      %v1940 = vpop.permute.xlu0 %1939
      %1941 = vrot.lane.b32.xlu0 %v1888, 127
      %v1942 = vpop.permute.xlu0 %1941
      %1943 = vrot.lane.b32.xlu0 %v1889, 127
      %v1944 = vpop.permute.xlu0 %1943
      %1945 = vrot.lane.b32.xlu0 %v1890, 127
      %v1946 = vpop.permute.xlu0 %1945
      %1947 = vrot.lane.b32.xlu0 %v1891, 127
      %v1948 = vpop.permute.xlu0 %1947
      %1949 = vrot.lane.b32.xlu0 %v1892, 127
      %v1950 = vpop.permute.xlu0 %1949
      %1951 = vrot.lane.b32.xlu0 %v1893, 127
      %v1952 = vpop.permute.xlu0 %1951
      %1953 = vrot.lane.b32.xlu0 %v1894, 127
      %v1954 = vpop.permute.xlu0 %1953
      %1955 = vrot.lane.b32.xlu0 %v1895, 127
      %v1956 = vpop.permute.xlu0 %1955
      %1957 = vrot.lane.b32.xlu0 %v1896, 127
      %v1958 = vpop.permute.xlu0 %1957
      %1959 = vrot.lane.b32.xlu0 %v1897, 127
      %v1960 = vpop.permute.xlu0 %1959
      %1961 = vrot.lane.b32.xlu0 %v1898, 127
      %v1962 = vpop.permute.xlu0 %1961
      %1963 = vrot.lane.b32.xlu0 %v1899, 127
      %v1964 = vpop.permute.xlu0 %1963
      %1965 = vrot.lane.b32.xlu0 %v1900, 127
      %v1966 = vpop.permute.xlu0 %1965
      %1967 = vrot.lane.b32.xlu0 %v1901, 127
      %v1968 = vpop.permute.xlu0 %1967
      %1969 = vrot.lane.b32.xlu0 %v1902, 127
      %v1970 = vpop.permute.xlu0 %1969
      %1971 = vrot.lane.b32.xlu0 %v1903, 127
      %v1972 = vpop.permute.xlu0 %1971
      %1973 = vrot.lane.b32.xlu0 %v1904, 127
      %v1974 = vpop.permute.xlu0 %1973
      %1975 = vrot.lane.b32.xlu0 %v1905, 127
      %v1976 = vpop.permute.xlu0 %1975
      %1977 = vrot.lane.b32.xlu0 %v1906, 127
      %v1978 = vpop.permute.xlu0 %1977
      %v2003 = vadd.f32 %v1883, %v1932
      %v2004 = vadd.f32 %v1884, %v1934
      %v2005 = vadd.f32 %v1885, %v1936
      %v2006 = vadd.f32 %v1886, %v1938
      %v2007 = vadd.f32 %v1887, %v1940
      %v2008 = vadd.f32 %v1888, %v1942
      %v2009 = vadd.f32 %v1889, %v1944
      %v2010 = vadd.f32 %v1890, %v1946
      %v2011 = vadd.f32 %v1891, %v1948
      %v2012 = vadd.f32 %v1892, %v1950
      %v2013 = vadd.f32 %v1893, %v1952
      %v2014 = vadd.f32 %v1894, %v1954
      %v2015 = vadd.f32 %v1895, %v1956
      %v2016 = vadd.f32 %v1896, %v1958
      %v2017 = vadd.f32 %v1897, %v1960
      %v2018 = vadd.f32 %v1898, %v1962
      %v2019 = vadd.f32 %v1899, %v1964
      %v2020 = vadd.f32 %v1900, %v1966
      %v2021 = vadd.f32 %v1901, %v1968
      %v2022 = vadd.f32 %v1902, %v1970
      %v2023 = vadd.f32 %v1903, %v1972
      %v2024 = vadd.f32 %v1904, %v1974
      %v2025 = vadd.f32 %v1905, %v1976
      %v2026 = vadd.f32 %v1906, %v1978
      %2027 = vrot.lane.b32.xlu0 %v1883, 126
      %v2028 = vpop.permute.xlu0 %2027
      %2029 = vrot.lane.b32.xlu0 %v1884, 126
      %v2030 = vpop.permute.xlu0 %2029
      %2031 = vrot.lane.b32.xlu0 %v1885, 126
      %v2032 = vpop.permute.xlu0 %2031
      %2033 = vrot.lane.b32.xlu0 %v1886, 126
      %v2034 = vpop.permute.xlu0 %2033
      %2035 = vrot.lane.b32.xlu0 %v1887, 126
      %v2036 = vpop.permute.xlu0 %2035
      %2037 = vrot.lane.b32.xlu0 %v1888, 126
      %v2038 = vpop.permute.xlu0 %2037
      %2039 = vrot.lane.b32.xlu0 %v1889, 126
      %v2040 = vpop.permute.xlu0 %2039
      %2041 = vrot.lane.b32.xlu0 %v1890, 126
      %v2042 = vpop.permute.xlu0 %2041
      %2043 = vrot.lane.b32.xlu0 %v1891, 126
      %v2044 = vpop.permute.xlu0 %2043
      %2045 = vrot.lane.b32.xlu0 %v1892, 126
      %v2046 = vpop.permute.xlu0 %2045
      %2047 = vrot.lane.b32.xlu0 %v1893, 126
      %v2048 = vpop.permute.xlu0 %2047
      %2049 = vrot.lane.b32.xlu0 %v1894, 126
      %v2050 = vpop.permute.xlu0 %2049
      %2051 = vrot.lane.b32.xlu0 %v1895, 126
      %v2052 = vpop.permute.xlu0 %2051
      %2053 = vrot.lane.b32.xlu0 %v1896, 126
      %v2054 = vpop.permute.xlu0 %2053
      %2055 = vrot.lane.b32.xlu0 %v1897, 126
      %v2056 = vpop.permute.xlu0 %2055
      %2057 = vrot.lane.b32.xlu0 %v1898, 126
      %v2058 = vpop.permute.xlu0 %2057
      %2059 = vrot.lane.b32.xlu0 %v1899, 126
      %v2060 = vpop.permute.xlu0 %2059
      %2061 = vrot.lane.b32.xlu0 %v1900, 126
      %v2062 = vpop.permute.xlu0 %2061
      %2063 = vrot.lane.b32.xlu0 %v1901, 126
      %v2064 = vpop.permute.xlu0 %2063
      %2065 = vrot.lane.b32.xlu0 %v1902, 126
      %v2066 = vpop.permute.xlu0 %2065
      %2067 = vrot.lane.b32.xlu0 %v1903, 126
      %v2068 = vpop.permute.xlu0 %2067
      %2069 = vrot.lane.b32.xlu0 %v1904, 126
      %v2070 = vpop.permute.xlu0 %2069
      %2071 = vrot.lane.b32.xlu0 %v1905, 126
      %v2072 = vpop.permute.xlu0 %2071
      %2073 = vrot.lane.b32.xlu0 %v1906, 126
      %v2074 = vpop.permute.xlu0 %2073
      %v2099 = vadd.f32 %v2003, %v2028
      %v2100 = vadd.f32 %v2004, %v2030
      %v2101 = vadd.f32 %v2005, %v2032
      %v2102 = vadd.f32 %v2006, %v2034
      %v2103 = vadd.f32 %v2007, %v2036
      %v2104 = vadd.f32 %v2008, %v2038
      %v2105 = vadd.f32 %v2009, %v2040
      %v2106 = vadd.f32 %v2010, %v2042
      %v2107 = vadd.f32 %v2011, %v2044
      %v2108 = vadd.f32 %v2012, %v2046
      %v2109 = vadd.f32 %v2013, %v2048
      %v2110 = vadd.f32 %v2014, %v2050
      %v2111 = vadd.f32 %v2015, %v2052
      %v2112 = vadd.f32 %v2016, %v2054
      %v2113 = vadd.f32 %v2017, %v2056
      %v2114 = vadd.f32 %v2018, %v2058
      %v2115 = vadd.f32 %v2019, %v2060
      %v2116 = vadd.f32 %v2020, %v2062
      %v2117 = vadd.f32 %v2021, %v2064
      %v2118 = vadd.f32 %v2022, %v2066
      %v2119 = vadd.f32 %v2023, %v2068
      %v2120 = vadd.f32 %v2024, %v2070
      %v2121 = vadd.f32 %v2025, %v2072
      %v2122 = vadd.f32 %v2026, %v2074
      %2123 = vrot.lane.b32.xlu0 %v1883, 125
      %v2124 = vpop.permute.xlu0 %2123
      %2125 = vrot.lane.b32.xlu0 %v1884, 125
      %v2126 = vpop.permute.xlu0 %2125
      %2127 = vrot.lane.b32.xlu0 %v1885, 125
      %v2128 = vpop.permute.xlu0 %2127
      %2129 = vrot.lane.b32.xlu0 %v1886, 125
      %v2130 = vpop.permute.xlu0 %2129
      %2131 = vrot.lane.b32.xlu0 %v1887, 125
      %v2132 = vpop.permute.xlu0 %2131
      %2133 = vrot.lane.b32.xlu0 %v1888, 125
      %v2134 = vpop.permute.xlu0 %2133
      %2135 = vrot.lane.b32.xlu0 %v1889, 125
      %v2136 = vpop.permute.xlu0 %2135
      %2137 = vrot.lane.b32.xlu0 %v1890, 125
      %v2138 = vpop.permute.xlu0 %2137
      %2139 = vrot.lane.b32.xlu0 %v1891, 125
      %v2140 = vpop.permute.xlu0 %2139
      %2141 = vrot.lane.b32.xlu0 %v1892, 125
      %v2142 = vpop.permute.xlu0 %2141
      %2143 = vrot.lane.b32.xlu0 %v1893, 125
      %v2144 = vpop.permute.xlu0 %2143
      %2145 = vrot.lane.b32.xlu0 %v1894, 125
      %v2146 = vpop.permute.xlu0 %2145
      %2147 = vrot.lane.b32.xlu0 %v1895, 125
      %v2148 = vpop.permute.xlu0 %2147
      %2149 = vrot.lane.b32.xlu0 %v1896, 125
      %v2150 = vpop.permute.xlu0 %2149
      %2151 = vrot.lane.b32.xlu0 %v1897, 125
      %v2152 = vpop.permute.xlu0 %2151
      %2153 = vrot.lane.b32.xlu0 %v1898, 125
      %v2154 = vpop.permute.xlu0 %2153
      %2155 = vrot.lane.b32.xlu0 %v1899, 125
      %v2156 = vpop.permute.xlu0 %2155
      %2157 = vrot.lane.b32.xlu0 %v1900, 125
      %v2158 = vpop.permute.xlu0 %2157
      %2159 = vrot.lane.b32.xlu0 %v1901, 125
      %v2160 = vpop.permute.xlu0 %2159
      %2161 = vrot.lane.b32.xlu0 %v1902, 125
      %v2162 = vpop.permute.xlu0 %2161
      %2163 = vrot.lane.b32.xlu0 %v1903, 125
      %v2164 = vpop.permute.xlu0 %2163
      %2165 = vrot.lane.b32.xlu0 %v1904, 125
      %v2166 = vpop.permute.xlu0 %2165
      %2167 = vrot.lane.b32.xlu0 %v1905, 125
      %v2168 = vpop.permute.xlu0 %2167
      %2169 = vrot.lane.b32.xlu0 %v1906, 125
      %v2170 = vpop.permute.xlu0 %2169
      %v2195 = vadd.f32 %v2099, %v2124
      %v2196 = vadd.f32 %v2100, %v2126
      %v2197 = vadd.f32 %v2101, %v2128
      %v2198 = vadd.f32 %v2102, %v2130
      %v2199 = vadd.f32 %v2103, %v2132
      %v2200 = vadd.f32 %v2104, %v2134
      %v2201 = vadd.f32 %v2105, %v2136
      %v2202 = vadd.f32 %v2106, %v2138
      %v2203 = vadd.f32 %v2107, %v2140
      %v2204 = vadd.f32 %v2108, %v2142
      %v2205 = vadd.f32 %v2109, %v2144
      %v2206 = vadd.f32 %v2110, %v2146
      %v2207 = vadd.f32 %v2111, %v2148
      %v2208 = vadd.f32 %v2112, %v2150
      %v2209 = vadd.f32 %v2113, %v2152
      %v2210 = vadd.f32 %v2114, %v2154
      %v2211 = vadd.f32 %v2115, %v2156
      %v2212 = vadd.f32 %v2116, %v2158
      %v2213 = vadd.f32 %v2117, %v2160
      %v2214 = vadd.f32 %v2118, %v2162
      %v2215 = vadd.f32 %v2119, %v2164
      %v2216 = vadd.f32 %v2120, %v2166
      %v2217 = vadd.f32 %v2121, %v2168
      %v2218 = vadd.f32 %v2122, %v2170
      %2219 = vrot.lane.b32.xlu0 %v1883, 124
      %v2220 = vpop.permute.xlu0 %2219
      %2221 = vrot.lane.b32.xlu0 %v1884, 124
      %v2222 = vpop.permute.xlu0 %2221
      %2223 = vrot.lane.b32.xlu0 %v1885, 124
      %v2224 = vpop.permute.xlu0 %2223
      %2225 = vrot.lane.b32.xlu0 %v1886, 124
      %v2226 = vpop.permute.xlu0 %2225
      %2227 = vrot.lane.b32.xlu0 %v1887, 124
      %v2228 = vpop.permute.xlu0 %2227
      %2229 = vrot.lane.b32.xlu0 %v1888, 124
      %v2230 = vpop.permute.xlu0 %2229
      %2231 = vrot.lane.b32.xlu0 %v1889, 124
      %v2232 = vpop.permute.xlu0 %2231
      %2233 = vrot.lane.b32.xlu0 %v1890, 124
      %v2234 = vpop.permute.xlu0 %2233
      %2235 = vrot.lane.b32.xlu0 %v1891, 124
      %v2236 = vpop.permute.xlu0 %2235
      %2237 = vrot.lane.b32.xlu0 %v1892, 124
      %v2238 = vpop.permute.xlu0 %2237
      %2239 = vrot.lane.b32.xlu0 %v1893, 124
      %v2240 = vpop.permute.xlu0 %2239
      %2241 = vrot.lane.b32.xlu0 %v1894, 124
      %v2242 = vpop.permute.xlu0 %2241
      %2243 = vrot.lane.b32.xlu0 %v1895, 124
      %v2244 = vpop.permute.xlu0 %2243
      %2245 = vrot.lane.b32.xlu0 %v1896, 124
      %v2246 = vpop.permute.xlu0 %2245
      %2247 = vrot.lane.b32.xlu0 %v1897, 124
      %v2248 = vpop.permute.xlu0 %2247
      %2249 = vrot.lane.b32.xlu0 %v1898, 124
      %v2250 = vpop.permute.xlu0 %2249
      %2251 = vrot.lane.b32.xlu0 %v1899, 124
      %v2252 = vpop.permute.xlu0 %2251
      %2253 = vrot.lane.b32.xlu0 %v1900, 124
      %v2254 = vpop.permute.xlu0 %2253
      %2255 = vrot.lane.b32.xlu0 %v1901, 124
      %v2256 = vpop.permute.xlu0 %2255
      %2257 = vrot.lane.b32.xlu0 %v1902, 124
      %v2258 = vpop.permute.xlu0 %2257
      %2259 = vrot.lane.b32.xlu0 %v1903, 124
      %v2260 = vpop.permute.xlu0 %2259
      %2261 = vrot.lane.b32.xlu0 %v1904, 124
      %v2262 = vpop.permute.xlu0 %2261
      %2263 = vrot.lane.b32.xlu0 %v1905, 124
      %v2264 = vpop.permute.xlu0 %2263
      %2265 = vrot.lane.b32.xlu0 %v1906, 124
      %v2266 = vpop.permute.xlu0 %2265
      %v2291 = vadd.f32 %v2195, %v2220
      %v2292 = vadd.f32 %v2196, %v2222
      %v2293 = vadd.f32 %v2197, %v2224
      %v2294 = vadd.f32 %v2198, %v2226
      %v2295 = vadd.f32 %v2199, %v2228
      %v2296 = vadd.f32 %v2200, %v2230
      %v2297 = vadd.f32 %v2201, %v2232
      %v2298 = vadd.f32 %v2202, %v2234
      %v2299 = vadd.f32 %v2203, %v2236
      %v2300 = vadd.f32 %v2204, %v2238
      %v2301 = vadd.f32 %v2205, %v2240
      %v2302 = vadd.f32 %v2206, %v2242
      %v2303 = vadd.f32 %v2207, %v2244
      %v2304 = vadd.f32 %v2208, %v2246
      %v2305 = vadd.f32 %v2209, %v2248
      %v2306 = vadd.f32 %v2210, %v2250
      %v2307 = vadd.f32 %v2211, %v2252
      %v2308 = vadd.f32 %v2212, %v2254
      %v2309 = vadd.f32 %v2213, %v2256
      %v2310 = vadd.f32 %v2214, %v2258
      %v2311 = vadd.f32 %v2215, %v2260
      %v2312 = vadd.f32 %v2216, %v2262
      %v2313 = vadd.f32 %v2217, %v2264
      %v2314 = vadd.f32 %v2218, %v2266
      %v2339 = vrot.slane %v2291, 1
      %v2340 = vrot.slane %v2292, 1
      %v2341 = vsel %vm1276, %v2339, %v2340
      %v2342 = vrot.slane %v2293, 1
      %v2343 = vrot.slane %v2294, 1
      %v2344 = vsel %vm1276, %v2342, %v2343
      %v2345 = vrot.slane %v2295, 1
      %v2346 = vrot.slane %v2296, 1
      %v2347 = vsel %vm1276, %v2345, %v2346
      %v2348 = vrot.slane %v2297, 1
      %v2349 = vrot.slane %v2298, 1
      %v2350 = vsel %vm1276, %v2348, %v2349
      %v2351 = vrot.slane %v2299, 1
      %v2352 = vrot.slane %v2300, 1
      %v2353 = vsel %vm1276, %v2351, %v2352
      %v2354 = vrot.slane %v2301, 1
      %v2355 = vrot.slane %v2302, 1
      %v2356 = vsel %vm1276, %v2354, %v2355
      %v2357 = vrot.slane %v2303, 1
      %v2358 = vrot.slane %v2304, 1
      %v2359 = vsel %vm1276, %v2357, %v2358
      %v2360 = vrot.slane %v2305, 1
      %v2361 = vrot.slane %v2306, 1
      %v2362 = vsel %vm1276, %v2360, %v2361
      %v2363 = vrot.slane %v2307, 1
      %v2364 = vrot.slane %v2308, 1
      %v2365 = vsel %vm1276, %v2363, %v2364
      %v2366 = vrot.slane %v2309, 1
      %v2367 = vrot.slane %v2310, 1
      %v2368 = vsel %vm1276, %v2366, %v2367
      %v2369 = vrot.slane %v2311, 1
      %v2370 = vrot.slane %v2312, 1
      %v2371 = vsel %vm1276, %v2369, %v2370
      %v2372 = vrot.slane %v2313, 1
      %v2373 = vrot.slane %v2314, 1
      %v2374 = vsel %vm1276, %v2372, %v2373
      %v2387 = vadd.f32 %v2291, %v2341
      %v2388 = vadd.f32 %v2293, %v2344
      %v2389 = vadd.f32 %v2295, %v2347
      %v2390 = vadd.f32 %v2297, %v2350
      %v2391 = vadd.f32 %v2299, %v2353
      %v2392 = vadd.f32 %v2301, %v2356
      %v2393 = vadd.f32 %v2303, %v2359
      %v2394 = vadd.f32 %v2305, %v2362
      %v2395 = vadd.f32 %v2307, %v2365
      %v2396 = vadd.f32 %v2309, %v2368
      %v2397 = vadd.f32 %v2311, %v2371
      %v2398 = vadd.f32 %v2313, %v2374
      %v2399 = vrot.slane %v2291, 2
      %v2400 = vrot.slane %v2292, 2
      %v2401 = vsel %vm1361, %v2399, %v2400
      %v2402 = vrot.slane %v2293, 2
      %v2403 = vrot.slane %v2294, 2
      %v2404 = vsel %vm1361, %v2402, %v2403
      %v2405 = vrot.slane %v2295, 2
      %v2406 = vrot.slane %v2296, 2
      %v2407 = vsel %vm1361, %v2405, %v2406
      %v2408 = vrot.slane %v2297, 2
      %v2409 = vrot.slane %v2298, 2
      %v2410 = vsel %vm1361, %v2408, %v2409
      %v2411 = vrot.slane %v2299, 2
      %v2412 = vrot.slane %v2300, 2
      %v2413 = vsel %vm1361, %v2411, %v2412
      %v2414 = vrot.slane %v2301, 2
      %v2415 = vrot.slane %v2302, 2
      %v2416 = vsel %vm1361, %v2414, %v2415
      %v2417 = vrot.slane %v2303, 2
      %v2418 = vrot.slane %v2304, 2
      %v2419 = vsel %vm1361, %v2417, %v2418
      %v2420 = vrot.slane %v2305, 2
      %v2421 = vrot.slane %v2306, 2
      %v2422 = vsel %vm1361, %v2420, %v2421
      %v2423 = vrot.slane %v2307, 2
      %v2424 = vrot.slane %v2308, 2
      %v2425 = vsel %vm1361, %v2423, %v2424
      %v2426 = vrot.slane %v2309, 2
      %v2427 = vrot.slane %v2310, 2
      %v2428 = vsel %vm1361, %v2426, %v2427
      %v2429 = vrot.slane %v2311, 2
      %v2430 = vrot.slane %v2312, 2
      %v2431 = vsel %vm1361, %v2429, %v2430
      %v2432 = vrot.slane %v2313, 2
      %v2433 = vrot.slane %v2314, 2
      %v2434 = vsel %vm1361, %v2432, %v2433
      %v2447 = vadd.f32 %v2387, %v2401
      %v2448 = vadd.f32 %v2388, %v2404
      %v2449 = vadd.f32 %v2389, %v2407
      %v2450 = vadd.f32 %v2390, %v2410
      %v2451 = vadd.f32 %v2391, %v2413
      %v2452 = vadd.f32 %v2392, %v2416
      %v2453 = vadd.f32 %v2393, %v2419
      %v2454 = vadd.f32 %v2394, %v2422
      %v2455 = vadd.f32 %v2395, %v2425
      %v2456 = vadd.f32 %v2396, %v2428
      %v2457 = vadd.f32 %v2397, %v2431
      %v2458 = vadd.f32 %v2398, %v2434
      %v2459 = vrot.slane %v2291, 3
      %v2460 = vrot.slane %v2292, 3
      %v2461 = vsel %vm1446, %v2459, %v2460
      %v2462 = vrot.slane %v2293, 3
      %v2463 = vrot.slane %v2294, 3
      %v2464 = vsel %vm1446, %v2462, %v2463
      %v2465 = vrot.slane %v2295, 3
      %v2466 = vrot.slane %v2296, 3
      %v2467 = vsel %vm1446, %v2465, %v2466
      %v2468 = vrot.slane %v2297, 3
      %v2469 = vrot.slane %v2298, 3
      %v2470 = vsel %vm1446, %v2468, %v2469
      %v2471 = vrot.slane %v2299, 3
      %v2472 = vrot.slane %v2300, 3
      %v2473 = vsel %vm1446, %v2471, %v2472
      %v2474 = vrot.slane %v2301, 3
      %v2475 = vrot.slane %v2302, 3
      %v2476 = vsel %vm1446, %v2474, %v2475
      %v2477 = vrot.slane %v2303, 3
      %v2478 = vrot.slane %v2304, 3
      %v2479 = vsel %vm1446, %v2477, %v2478
      %v2480 = vrot.slane %v2305, 3
      %v2481 = vrot.slane %v2306, 3
      %v2482 = vsel %vm1446, %v2480, %v2481
      %v2483 = vrot.slane %v2307, 3
      %v2484 = vrot.slane %v2308, 3
      %v2485 = vsel %vm1446, %v2483, %v2484
      %v2486 = vrot.slane %v2309, 3
      %v2487 = vrot.slane %v2310, 3
      %v2488 = vsel %vm1446, %v2486, %v2487
      %v2489 = vrot.slane %v2311, 3
      %v2490 = vrot.slane %v2312, 3
      %v2491 = vsel %vm1446, %v2489, %v2490
      %v2492 = vrot.slane %v2313, 3
      %v2493 = vrot.slane %v2314, 3
      %v2494 = vsel %vm1446, %v2492, %v2493
      %v2507 = vadd.f32 %v2447, %v2461
      %v2508 = vadd.f32 %v2448, %v2464
      %v2509 = vadd.f32 %v2449, %v2467
      %v2510 = vadd.f32 %v2450, %v2470
      %v2511 = vadd.f32 %v2451, %v2473
      %v2512 = vadd.f32 %v2452, %v2476
      %v2513 = vadd.f32 %v2453, %v2479
      %v2514 = vadd.f32 %v2454, %v2482
      %v2515 = vadd.f32 %v2455, %v2485
      %v2516 = vadd.f32 %v2456, %v2488
      %v2517 = vadd.f32 %v2457, %v2491
      %v2518 = vadd.f32 %v2458, %v2494
      %v2519 = vrot.slane %v2291, 4
      %v2520 = vrot.slane %v2292, 4
      %v2521 = vsel %vm626, %v2519, %v2520
      %v2522 = vrot.slane %v2293, 4
      %v2523 = vrot.slane %v2294, 4
      %v2524 = vsel %vm626, %v2522, %v2523
      %v2525 = vrot.slane %v2295, 4
      %v2526 = vrot.slane %v2296, 4
      %v2527 = vsel %vm626, %v2525, %v2526
      %v2528 = vrot.slane %v2297, 4
      %v2529 = vrot.slane %v2298, 4
      %v2530 = vsel %vm626, %v2528, %v2529
      %v2531 = vrot.slane %v2299, 4
      %v2532 = vrot.slane %v2300, 4
      %v2533 = vsel %vm626, %v2531, %v2532
      %v2534 = vrot.slane %v2301, 4
      %v2535 = vrot.slane %v2302, 4
      %v2536 = vsel %vm626, %v2534, %v2535
      %v2537 = vrot.slane %v2303, 4
      %v2538 = vrot.slane %v2304, 4
      %v2539 = vsel %vm626, %v2537, %v2538
      %v2540 = vrot.slane %v2305, 4
      %v2541 = vrot.slane %v2306, 4
      %v2542 = vsel %vm626, %v2540, %v2541
      %v2543 = vrot.slane %v2307, 4
      %v2544 = vrot.slane %v2308, 4
      %v2545 = vsel %vm626, %v2543, %v2544
      %v2546 = vrot.slane %v2309, 4
      %v2547 = vrot.slane %v2310, 4
      %v2548 = vsel %vm626, %v2546, %v2547
      %v2549 = vrot.slane %v2311, 4
      %v2550 = vrot.slane %v2312, 4
      %v2551 = vsel %vm626, %v2549, %v2550
      %v2552 = vrot.slane %v2313, 4
      %v2553 = vrot.slane %v2314, 4
      %v2554 = vsel %vm626, %v2552, %v2553
      %v2567 = vadd.f32 %v2507, %v2521
      %v2568 = vadd.f32 %v2508, %v2524
      %v2569 = vadd.f32 %v2509, %v2527
      %v2570 = vadd.f32 %v2510, %v2530
      %v2571 = vadd.f32 %v2511, %v2533
      %v2572 = vadd.f32 %v2512, %v2536
      %v2573 = vadd.f32 %v2513, %v2539
      %v2574 = vadd.f32 %v2514, %v2542
      %v2575 = vadd.f32 %v2515, %v2545
      %v2576 = vadd.f32 %v2516, %v2548
      %v2577 = vadd.f32 %v2517, %v2551
      %v2578 = vadd.f32 %v2518, %v2554
      %v2579 = vadd.f32 %v2567, %v2568
      %v2580 = vadd.f32 %v2568, %v2569
      %v2581 = vadd.f32 %v2569, %v2570
      %v2582 = vadd.f32 %v2570, %v2571
      %v2583 = vadd.f32 %v2571, %v2572
      %v2584 = vadd.f32 %v2572, %v2573
      %v2585 = vadd.f32 %v2573, %v2574
      %v2586 = vadd.f32 %v2574, %v2575
      %v2587 = vadd.f32 %v2579, %v2569
      %v2588 = vadd.f32 %v2580, %v2570
      %v2589 = vadd.f32 %v2581, %v2571
      %v2590 = vadd.f32 %v2582, %v2572
      %v2591 = vadd.f32 %v2583, %v2573
      %v2592 = vadd.f32 %v2584, %v2574
      %v2593 = vadd.f32 %v2585, %v2575
      %v2594 = vadd.f32 %v2586, %v2576
      %v2595 = vadd.f32 %v2587, %v2570
      %v2596 = vadd.f32 %v2588, %v2571
      %v2597 = vadd.f32 %v2589, %v2572
      %v2598 = vadd.f32 %v2590, %v2573
      %v2599 = vadd.f32 %v2591, %v2574
      %v2600 = vadd.f32 %v2592, %v2575
      %v2601 = vadd.f32 %v2593, %v2576
      %v2602 = vadd.f32 %v2594, %v2577
      %v2603 = vadd.f32 %v2595, %v2571
      %v2604 = vadd.f32 %v2596, %v2572
      %v2605 = vadd.f32 %v2597, %v2573
      %v2606 = vadd.f32 %v2598, %v2574
      %v2607 = vadd.f32 %v2599, %v2575
      %v2608 = vadd.f32 %v2600, %v2576
      %v2609 = vadd.f32 %v2601, %v2577
      %v2610 = vadd.f32 %v2602, %v2578
      %v2611 = vmul.f32 %v2603, 0.008
      %v2612 = vmul.f32 %v2604, 0.008
      %v2613 = vmul.f32 %v2605, 0.008
      %v2614 = vmul.f32 %v2606, 0.008
      %v2615 = vmul.f32 %v2607, 0.008
      %v2616 = vmul.f32 %v2608, 0.008
      %v2617 = vmul.f32 %v2609, 0.008
      %v2618 = vmul.f32 %v2610, 0.008
      %2627 = vrot.lane.b32.xlu0 %v2611, 126
      %v2628 = vpop.permute.xlu0 %2627
      %2629 = vrot.lane.b32.xlu0 %v2612, 126
      %v2630 = vpop.permute.xlu0 %2629
      %2631 = vrot.lane.b32.xlu0 %v2613, 126
      %v2632 = vpop.permute.xlu0 %2631
      %2633 = vrot.lane.b32.xlu0 %v2614, 126
      %v2634 = vpop.permute.xlu0 %2633
      %2635 = vrot.lane.b32.xlu0 %v2615, 126
      %v2636 = vpop.permute.xlu0 %2635
      %2637 = vrot.lane.b32.xlu0 %v2616, 126
      %v2638 = vpop.permute.xlu0 %2637
      %2639 = vrot.lane.b32.xlu0 %v2617, 126
      %v2640 = vpop.permute.xlu0 %2639
      %2641 = vrot.lane.b32.xlu0 %v2618, 126
      %v2642 = vpop.permute.xlu0 %2641
      %s2651 = scalar_lea.vmem %s150, 64
      %vm2652 = vcmask 64512
      %2653 = vst.msk [vmem:[%s2651] sm:$0xff] %vm2652, %v2628
      %2654 = vst.msk [vmem:[%s2651 + $0x8] sm:$0xff] %vm2652, %v2630
      %2655 = vst.msk [vmem:[%s2651 + $0x10] sm:$0xff] %vm2652, %v2632
      %2656 = vst.msk [vmem:[%s2651 + $0x18] sm:$0xff] %vm2652, %v2634
      %2657 = vst.msk [vmem:[%s2651 + $0x20] sm:$0xff] %vm2652, %v2636
      %2658 = vst.msk [vmem:[%s2651 + $0x28] sm:$0xff] %vm2652, %v2638
      %2659 = vst.msk [vmem:[%s2651 + $0x30] sm:$0xff] %vm2652, %v2640
      %2660 = vst.msk [vmem:[%s2651 + $0x38] sm:$0xff] %vm2652, %v2642
      %v2661 = vrot.slane %v2611, 6
      %v2662 = vrot.slane %v2612, 6
      %v2663 = vrot.slane %v2613, 6
      %v2664 = vrot.slane %v2614, 6
      %v2665 = vrot.slane %v2615, 6
      %v2666 = vrot.slane %v2616, 6
      %v2667 = vrot.slane %v2617, 6
      %v2668 = vrot.slane %v2618, 6
      %v2677 = vmin.f32 %v1679, %v2661
      %v2678 = vmin.f32 %v1680, %v2661
      %v2679 = vmin.f32 %v1681, %v2662
      %v2680 = vmin.f32 %v1682, %v2662
      %v2681 = vmin.f32 %v1683, %v2663
      %v2682 = vmin.f32 %v1684, %v2663
      %v2683 = vmin.f32 %v1685, %v2664
      %v2684 = vmin.f32 %v1686, %v2664
      %v2685 = vmin.f32 %v1687, %v2665
      %v2686 = vmin.f32 %v1688, %v2665
      %v2687 = vmin.f32 %v1689, %v2666
      %v2688 = vmin.f32 %v1690, %v2666
      %v2689 = vmin.f32 %v1691, %v2667
      %v2690 = vmin.f32 %v1692, %v2667
      %v2691 = vmin.f32 %v1693, %v2668
      %v2692 = vmin.f32 %v1694, %v2668
      %v2693 = vadd.f32 %v1679, %v2661
      %v2694 = vadd.f32 %v1680, %v2661
      %v2695 = vadd.f32 %v1681, %v2662
      %v2696 = vadd.f32 %v1682, %v2662
      %v2697 = vadd.f32 %v1683, %v2663
      %v2698 = vadd.f32 %v1684, %v2663
      %v2699 = vadd.f32 %v1685, %v2664
      %v2700 = vadd.f32 %v1686, %v2664
      %v2701 = vadd.f32 %v1687, %v2665
      %v2702 = vadd.f32 %v1688, %v2665
      %v2703 = vadd.f32 %v1689, %v2666
      %v2704 = vadd.f32 %v1690, %v2666
      %v2705 = vadd.f32 %v1691, %v2667
      %v2706 = vadd.f32 %v1692, %v2667
      %v2707 = vadd.f32 %v1693, %v2668
      %v2708 = vadd.f32 %v1694, %v2668
      %v2709 = vsub.f32 %v373, %v1801
      %v2710 = vsub.f32 %v374, %v1800
      %v2711 = vsub.f32 %v375, %v1804
      %v2712 = vsub.f32 %v376, %v1803
      %v2713 = vsub.f32 %v377, %v1807
      %v2714 = vsub.f32 %v378, %v1806
      %v2715 = vsub.f32 %v379, %v1810
      %v2716 = vsub.f32 %v380, %v1809
      %v2717 = vsub.f32 %v381, %v1813
      %v2718 = vsub.f32 %v382, %v1812
      %v2719 = vsub.f32 %v383, %v1816
      %v2720 = vsub.f32 %v384, %v1815
      %v2721 = vsub.f32 %v385, %v1819
      %v2722 = vsub.f32 %v386, %v1818
      %v2723 = vsub.f32 %v387, %v1822
      %v2724 = vsub.f32 %v388, %v1821
      %v2725 = vsub.f32 %v389, %v1825
      %v2726 = vsub.f32 %v390, %v1824
      %v2727 = vsub.f32 %v391, %v1828
      %v2728 = vsub.f32 %v392, %v1827
      %v2729 = vsub.f32 %v393, %v1831
      %v2730 = vsub.f32 %v394, %v1830
      %v2731 = vsub.f32 %v395, %v1834
      %v2732 = vsub.f32 %v396, %v1833
      %v2733 = vmul.f32 %v2709, %v2709
      %v2734 = vmul.f32 %v2710, %v2710
      %v2735 = vmul.f32 %v2711, %v2711
      %v2736 = vmul.f32 %v2712, %v2712
      %v2737 = vmul.f32 %v2713, %v2713
      %v2738 = vmul.f32 %v2714, %v2714
      %v2739 = vmul.f32 %v2715, %v2715
      %v2740 = vmul.f32 %v2716, %v2716
      %v2741 = vmul.f32 %v2717, %v2717
      %v2742 = vmul.f32 %v2718, %v2718
      %v2743 = vmul.f32 %v2719, %v2719
      %v2744 = vmul.f32 %v2720, %v2720
      %v2745 = vmul.f32 %v2721, %v2721
      %v2746 = vmul.f32 %v2722, %v2722
      %v2747 = vmul.f32 %v2723, %v2723
      %v2748 = vmul.f32 %v2724, %v2724
      %v2749 = vmul.f32 %v2725, %v2725
      %v2750 = vmul.f32 %v2726, %v2726
      %v2751 = vmul.f32 %v2727, %v2727
      %v2752 = vmul.f32 %v2728, %v2728
      %v2753 = vmul.f32 %v2729, %v2729
      %v2754 = vmul.f32 %v2730, %v2730
      %v2755 = vmul.f32 %v2731, %v2731
      %v2756 = vmul.f32 %v2732, %v2732
      %2781 = vrot.lane.b32.xlu0 %v2733, 127
      %v2782 = vpop.permute.xlu0 %2781
      %2783 = vrot.lane.b32.xlu0 %v2734, 127
      %v2784 = vpop.permute.xlu0 %2783
      %2785 = vrot.lane.b32.xlu0 %v2735, 127
      %v2786 = vpop.permute.xlu0 %2785
      %2787 = vrot.lane.b32.xlu0 %v2736, 127
      %v2788 = vpop.permute.xlu0 %2787
      %2789 = vrot.lane.b32.xlu0 %v2737, 127
      %v2790 = vpop.permute.xlu0 %2789
      %2791 = vrot.lane.b32.xlu0 %v2738, 127
      %v2792 = vpop.permute.xlu0 %2791
      %2793 = vrot.lane.b32.xlu0 %v2739, 127
      %v2794 = vpop.permute.xlu0 %2793
      %2795 = vrot.lane.b32.xlu0 %v2740, 127
      %v2796 = vpop.permute.xlu0 %2795
      %2797 = vrot.lane.b32.xlu0 %v2741, 127
      %v2798 = vpop.permute.xlu0 %2797
      %2799 = vrot.lane.b32.xlu0 %v2742, 127
      %v2800 = vpop.permute.xlu0 %2799
      %2801 = vrot.lane.b32.xlu0 %v2743, 127
      %v2802 = vpop.permute.xlu0 %2801
      %2803 = vrot.lane.b32.xlu0 %v2744, 127
      %v2804 = vpop.permute.xlu0 %2803
      %2805 = vrot.lane.b32.xlu0 %v2745, 127
      %v2806 = vpop.permute.xlu0 %2805
      %2807 = vrot.lane.b32.xlu0 %v2746, 127
      %v2808 = vpop.permute.xlu0 %2807
      %2809 = vrot.lane.b32.xlu0 %v2747, 127
      %v2810 = vpop.permute.xlu0 %2809
      %2811 = vrot.lane.b32.xlu0 %v2748, 127
      %v2812 = vpop.permute.xlu0 %2811
      %2813 = vrot.lane.b32.xlu0 %v2749, 127
      %v2814 = vpop.permute.xlu0 %2813
      %2815 = vrot.lane.b32.xlu0 %v2750, 127
      %v2816 = vpop.permute.xlu0 %2815
      %2817 = vrot.lane.b32.xlu0 %v2751, 127
      %v2818 = vpop.permute.xlu0 %2817
      %2819 = vrot.lane.b32.xlu0 %v2752, 127
      %v2820 = vpop.permute.xlu0 %2819
      %2821 = vrot.lane.b32.xlu0 %v2753, 127
      %v2822 = vpop.permute.xlu0 %2821
      %2823 = vrot.lane.b32.xlu0 %v2754, 127
      %v2824 = vpop.permute.xlu0 %2823
      %2825 = vrot.lane.b32.xlu0 %v2755, 127
      %v2826 = vpop.permute.xlu0 %2825
      %2827 = vrot.lane.b32.xlu0 %v2756, 127
      %v2828 = vpop.permute.xlu0 %2827
      %v2853 = vadd.f32 %v2733, %v2782
      %v2854 = vadd.f32 %v2734, %v2784
      %v2855 = vadd.f32 %v2735, %v2786
      %v2856 = vadd.f32 %v2736, %v2788
      %v2857 = vadd.f32 %v2737, %v2790
      %v2858 = vadd.f32 %v2738, %v2792
      %v2859 = vadd.f32 %v2739, %v2794
      %v2860 = vadd.f32 %v2740, %v2796
      %v2861 = vadd.f32 %v2741, %v2798
      %v2862 = vadd.f32 %v2742, %v2800
      %v2863 = vadd.f32 %v2743, %v2802
      %v2864 = vadd.f32 %v2744, %v2804
      %v2865 = vadd.f32 %v2745, %v2806
      %v2866 = vadd.f32 %v2746, %v2808
      %v2867 = vadd.f32 %v2747, %v2810
      %v2868 = vadd.f32 %v2748, %v2812
      %v2869 = vadd.f32 %v2749, %v2814
      %v2870 = vadd.f32 %v2750, %v2816
      %v2871 = vadd.f32 %v2751, %v2818
      %v2872 = vadd.f32 %v2752, %v2820
      %v2873 = vadd.f32 %v2753, %v2822
      %v2874 = vadd.f32 %v2754, %v2824
      %v2875 = vadd.f32 %v2755, %v2826
      %v2876 = vadd.f32 %v2756, %v2828
      %2877 = vrot.lane.b32.xlu0 %v2733, 126
      %v2878 = vpop.permute.xlu0 %2877
      %2879 = vrot.lane.b32.xlu0 %v2734, 126
      %v2880 = vpop.permute.xlu0 %2879
      %2881 = vrot.lane.b32.xlu0 %v2735, 126
      %v2882 = vpop.permute.xlu0 %2881
      %2883 = vrot.lane.b32.xlu0 %v2736, 126
      %v2884 = vpop.permute.xlu0 %2883
      %2885 = vrot.lane.b32.xlu0 %v2737, 126
      %v2886 = vpop.permute.xlu0 %2885
      %2887 = vrot.lane.b32.xlu0 %v2738, 126
      %v2888 = vpop.permute.xlu0 %2887
      %2889 = vrot.lane.b32.xlu0 %v2739, 126
      %v2890 = vpop.permute.xlu0 %2889
      %2891 = vrot.lane.b32.xlu0 %v2740, 126
      %v2892 = vpop.permute.xlu0 %2891
      %2893 = vrot.lane.b32.xlu0 %v2741, 126
      %v2894 = vpop.permute.xlu0 %2893
      %2895 = vrot.lane.b32.xlu0 %v2742, 126
      %v2896 = vpop.permute.xlu0 %2895
      %2897 = vrot.lane.b32.xlu0 %v2743, 126
      %v2898 = vpop.permute.xlu0 %2897
      %2899 = vrot.lane.b32.xlu0 %v2744, 126
      %v2900 = vpop.permute.xlu0 %2899
      %2901 = vrot.lane.b32.xlu0 %v2745, 126
      %v2902 = vpop.permute.xlu0 %2901
      %2903 = vrot.lane.b32.xlu0 %v2746, 126
      %v2904 = vpop.permute.xlu0 %2903
      %2905 = vrot.lane.b32.xlu0 %v2747, 126
      %v2906 = vpop.permute.xlu0 %2905
      %2907 = vrot.lane.b32.xlu0 %v2748, 126
      %v2908 = vpop.permute.xlu0 %2907
      %2909 = vrot.lane.b32.xlu0 %v2749, 126
      %v2910 = vpop.permute.xlu0 %2909
      %2911 = vrot.lane.b32.xlu0 %v2750, 126
      %v2912 = vpop.permute.xlu0 %2911
      %2913 = vrot.lane.b32.xlu0 %v2751, 126
      %v2914 = vpop.permute.xlu0 %2913
      %2915 = vrot.lane.b32.xlu0 %v2752, 126
      %v2916 = vpop.permute.xlu0 %2915
      %2917 = vrot.lane.b32.xlu0 %v2753, 126
      %v2918 = vpop.permute.xlu0 %2917
      %2919 = vrot.lane.b32.xlu0 %v2754, 126
      %v2920 = vpop.permute.xlu0 %2919
      %2921 = vrot.lane.b32.xlu0 %v2755, 126
      %v2922 = vpop.permute.xlu0 %2921
      %2923 = vrot.lane.b32.xlu0 %v2756, 126
      %v2924 = vpop.permute.xlu0 %2923
      %v2949 = vadd.f32 %v2853, %v2878
      %v2950 = vadd.f32 %v2854, %v2880
      %v2951 = vadd.f32 %v2855, %v2882
      %v2952 = vadd.f32 %v2856, %v2884
      %v2953 = vadd.f32 %v2857, %v2886
      %v2954 = vadd.f32 %v2858, %v2888
      %v2955 = vadd.f32 %v2859, %v2890
      %v2956 = vadd.f32 %v2860, %v2892
      %v2957 = vadd.f32 %v2861, %v2894
      %v2958 = vadd.f32 %v2862, %v2896
      %v2959 = vadd.f32 %v2863, %v2898
      %v2960 = vadd.f32 %v2864, %v2900
      %v2961 = vadd.f32 %v2865, %v2902
      %v2962 = vadd.f32 %v2866, %v2904
      %v2963 = vadd.f32 %v2867, %v2906
      %v2964 = vadd.f32 %v2868, %v2908
      %v2965 = vadd.f32 %v2869, %v2910
      %v2966 = vadd.f32 %v2870, %v2912
      %v2967 = vadd.f32 %v2871, %v2914
      %v2968 = vadd.f32 %v2872, %v2916
      %v2969 = vadd.f32 %v2873, %v2918
      %v2970 = vadd.f32 %v2874, %v2920
      %v2971 = vadd.f32 %v2875, %v2922
      %v2972 = vadd.f32 %v2876, %v2924
      %2973 = vrot.lane.b32.xlu0 %v2733, 125
      %v2974 = vpop.permute.xlu0 %2973
      %2975 = vrot.lane.b32.xlu0 %v2734, 125
      %v2976 = vpop.permute.xlu0 %2975
      %2977 = vrot.lane.b32.xlu0 %v2735, 125
      %v2978 = vpop.permute.xlu0 %2977
      %2979 = vrot.lane.b32.xlu0 %v2736, 125
      %v2980 = vpop.permute.xlu0 %2979
      %2981 = vrot.lane.b32.xlu0 %v2737, 125
      %v2982 = vpop.permute.xlu0 %2981
      %2983 = vrot.lane.b32.xlu0 %v2738, 125
      %v2984 = vpop.permute.xlu0 %2983
      %2985 = vrot.lane.b32.xlu0 %v2739, 125
      %v2986 = vpop.permute.xlu0 %2985
      %2987 = vrot.lane.b32.xlu0 %v2740, 125
      %v2988 = vpop.permute.xlu0 %2987
      %2989 = vrot.lane.b32.xlu0 %v2741, 125
      %v2990 = vpop.permute.xlu0 %2989
      %2991 = vrot.lane.b32.xlu0 %v2742, 125
      %v2992 = vpop.permute.xlu0 %2991
      %2993 = vrot.lane.b32.xlu0 %v2743, 125
      %v2994 = vpop.permute.xlu0 %2993
      %2995 = vrot.lane.b32.xlu0 %v2744, 125
      %v2996 = vpop.permute.xlu0 %2995
      %2997 = vrot.lane.b32.xlu0 %v2745, 125
      %v2998 = vpop.permute.xlu0 %2997
      %2999 = vrot.lane.b32.xlu0 %v2746, 125
      %v3000 = vpop.permute.xlu0 %2999
      %3001 = vrot.lane.b32.xlu0 %v2747, 125
      %v3002 = vpop.permute.xlu0 %3001
      %3003 = vrot.lane.b32.xlu0 %v2748, 125
      %v3004 = vpop.permute.xlu0 %3003
      %3005 = vrot.lane.b32.xlu0 %v2749, 125
      %v3006 = vpop.permute.xlu0 %3005
      %3007 = vrot.lane.b32.xlu0 %v2750, 125
      %v3008 = vpop.permute.xlu0 %3007
      %3009 = vrot.lane.b32.xlu0 %v2751, 125
      %v3010 = vpop.permute.xlu0 %3009
      %3011 = vrot.lane.b32.xlu0 %v2752, 125
      %v3012 = vpop.permute.xlu0 %3011
      %3013 = vrot.lane.b32.xlu0 %v2753, 125
      %v3014 = vpop.permute.xlu0 %3013
      %3015 = vrot.lane.b32.xlu0 %v2754, 125
      %v3016 = vpop.permute.xlu0 %3015
      %3017 = vrot.lane.b32.xlu0 %v2755, 125
      %v3018 = vpop.permute.xlu0 %3017
      %3019 = vrot.lane.b32.xlu0 %v2756, 125
      %v3020 = vpop.permute.xlu0 %3019
      %v3045 = vadd.f32 %v2949, %v2974
      %v3046 = vadd.f32 %v2950, %v2976
      %v3047 = vadd.f32 %v2951, %v2978
      %v3048 = vadd.f32 %v2952, %v2980
      %v3049 = vadd.f32 %v2953, %v2982
      %v3050 = vadd.f32 %v2954, %v2984
      %v3051 = vadd.f32 %v2955, %v2986
      %v3052 = vadd.f32 %v2956, %v2988
      %v3053 = vadd.f32 %v2957, %v2990
      %v3054 = vadd.f32 %v2958, %v2992
      %v3055 = vadd.f32 %v2959, %v2994
      %v3056 = vadd.f32 %v2960, %v2996
      %v3057 = vadd.f32 %v2961, %v2998
      %v3058 = vadd.f32 %v2962, %v3000
      %v3059 = vadd.f32 %v2963, %v3002
      %v3060 = vadd.f32 %v2964, %v3004
      %v3061 = vadd.f32 %v2965, %v3006
      %v3062 = vadd.f32 %v2966, %v3008
      %v3063 = vadd.f32 %v2967, %v3010
      %v3064 = vadd.f32 %v2968, %v3012
      %v3065 = vadd.f32 %v2969, %v3014
      %v3066 = vadd.f32 %v2970, %v3016
      %v3067 = vadd.f32 %v2971, %v3018
      %v3068 = vadd.f32 %v2972, %v3020
      %3069 = vrot.lane.b32.xlu0 %v2733, 124
      %v3070 = vpop.permute.xlu0 %3069
      %3071 = vrot.lane.b32.xlu0 %v2734, 124
      %v3072 = vpop.permute.xlu0 %3071
      %3073 = vrot.lane.b32.xlu0 %v2735, 124
      %v3074 = vpop.permute.xlu0 %3073
      %3075 = vrot.lane.b32.xlu0 %v2736, 124
      %v3076 = vpop.permute.xlu0 %3075
      %3077 = vrot.lane.b32.xlu0 %v2737, 124
      %v3078 = vpop.permute.xlu0 %3077
      %3079 = vrot.lane.b32.xlu0 %v2738, 124
      %v3080 = vpop.permute.xlu0 %3079
      %3081 = vrot.lane.b32.xlu0 %v2739, 124
      %v3082 = vpop.permute.xlu0 %3081
      %3083 = vrot.lane.b32.xlu0 %v2740, 124
      %v3084 = vpop.permute.xlu0 %3083
      %3085 = vrot.lane.b32.xlu0 %v2741, 124
      %v3086 = vpop.permute.xlu0 %3085
      %3087 = vrot.lane.b32.xlu0 %v2742, 124
      %v3088 = vpop.permute.xlu0 %3087
      %3089 = vrot.lane.b32.xlu0 %v2743, 124
      %v3090 = vpop.permute.xlu0 %3089
      %3091 = vrot.lane.b32.xlu0 %v2744, 124
      %v3092 = vpop.permute.xlu0 %3091
      %3093 = vrot.lane.b32.xlu0 %v2745, 124
      %v3094 = vpop.permute.xlu0 %3093
      %3095 = vrot.lane.b32.xlu0 %v2746, 124
      %v3096 = vpop.permute.xlu0 %3095
      %3097 = vrot.lane.b32.xlu0 %v2747, 124
      %v3098 = vpop.permute.xlu0 %3097
      %3099 = vrot.lane.b32.xlu0 %v2748, 124
      %v3100 = vpop.permute.xlu0 %3099
      %3101 = vrot.lane.b32.xlu0 %v2749, 124
      %v3102 = vpop.permute.xlu0 %3101
      %3103 = vrot.lane.b32.xlu0 %v2750, 124
      %v3104 = vpop.permute.xlu0 %3103
      %3105 = vrot.lane.b32.xlu0 %v2751, 124
      %v3106 = vpop.permute.xlu0 %3105
      %3107 = vrot.lane.b32.xlu0 %v2752, 124
      %v3108 = vpop.permute.xlu0 %3107
      %3109 = vrot.lane.b32.xlu0 %v2753, 124
      %v3110 = vpop.permute.xlu0 %3109
      %3111 = vrot.lane.b32.xlu0 %v2754, 124
      %v3112 = vpop.permute.xlu0 %3111
      %3113 = vrot.lane.b32.xlu0 %v2755, 124
      %v3114 = vpop.permute.xlu0 %3113
      %3115 = vrot.lane.b32.xlu0 %v2756, 124
      %v3116 = vpop.permute.xlu0 %3115
      %v3141 = vadd.f32 %v3045, %v3070
      %v3142 = vadd.f32 %v3046, %v3072
      %v3143 = vadd.f32 %v3047, %v3074
      %v3144 = vadd.f32 %v3048, %v3076
      %v3145 = vadd.f32 %v3049, %v3078
      %v3146 = vadd.f32 %v3050, %v3080
      %v3147 = vadd.f32 %v3051, %v3082
      %v3148 = vadd.f32 %v3052, %v3084
      %v3149 = vadd.f32 %v3053, %v3086
      %v3150 = vadd.f32 %v3054, %v3088
      %v3151 = vadd.f32 %v3055, %v3090
      %v3152 = vadd.f32 %v3056, %v3092
      %v3153 = vadd.f32 %v3057, %v3094
      %v3154 = vadd.f32 %v3058, %v3096
      %v3155 = vadd.f32 %v3059, %v3098
      %v3156 = vadd.f32 %v3060, %v3100
      %v3157 = vadd.f32 %v3061, %v3102
      %v3158 = vadd.f32 %v3062, %v3104
      %v3159 = vadd.f32 %v3063, %v3106
      %v3160 = vadd.f32 %v3064, %v3108
      %v3161 = vadd.f32 %v3065, %v3110
      %v3162 = vadd.f32 %v3066, %v3112
      %v3163 = vadd.f32 %v3067, %v3114
      %v3164 = vadd.f32 %v3068, %v3116
      %v3189 = vrot.slane %v3141, 1
      %v3190 = vrot.slane %v3142, 1
      %v3191 = vsel %vm1276, %v3189, %v3190
      %v3192 = vrot.slane %v3143, 1
      %v3193 = vrot.slane %v3144, 1
      %v3194 = vsel %vm1276, %v3192, %v3193
      %v3195 = vrot.slane %v3145, 1
      %v3196 = vrot.slane %v3146, 1
      %v3197 = vsel %vm1276, %v3195, %v3196
      %v3198 = vrot.slane %v3147, 1
      %v3199 = vrot.slane %v3148, 1
      %v3200 = vsel %vm1276, %v3198, %v3199
      %v3201 = vrot.slane %v3149, 1
      %v3202 = vrot.slane %v3150, 1
      %v3203 = vsel %vm1276, %v3201, %v3202
      %v3204 = vrot.slane %v3151, 1
      %v3205 = vrot.slane %v3152, 1
      %v3206 = vsel %vm1276, %v3204, %v3205
      %v3207 = vrot.slane %v3153, 1
      %v3208 = vrot.slane %v3154, 1
      %v3209 = vsel %vm1276, %v3207, %v3208
      %v3210 = vrot.slane %v3155, 1
      %v3211 = vrot.slane %v3156, 1
      %v3212 = vsel %vm1276, %v3210, %v3211
      %v3213 = vrot.slane %v3157, 1
      %v3214 = vrot.slane %v3158, 1
      %v3215 = vsel %vm1276, %v3213, %v3214
      %v3216 = vrot.slane %v3159, 1
      %v3217 = vrot.slane %v3160, 1
      %v3218 = vsel %vm1276, %v3216, %v3217
      %v3219 = vrot.slane %v3161, 1
      %v3220 = vrot.slane %v3162, 1
      %v3221 = vsel %vm1276, %v3219, %v3220
      %v3222 = vrot.slane %v3163, 1
      %v3223 = vrot.slane %v3164, 1
      %v3224 = vsel %vm1276, %v3222, %v3223
      %v3237 = vadd.f32 %v3141, %v3191
      %v3238 = vadd.f32 %v3143, %v3194
      %v3239 = vadd.f32 %v3145, %v3197
      %v3240 = vadd.f32 %v3147, %v3200
      %v3241 = vadd.f32 %v3149, %v3203
      %v3242 = vadd.f32 %v3151, %v3206
      %v3243 = vadd.f32 %v3153, %v3209
      %v3244 = vadd.f32 %v3155, %v3212
      %v3245 = vadd.f32 %v3157, %v3215
      %v3246 = vadd.f32 %v3159, %v3218
      %v3247 = vadd.f32 %v3161, %v3221
      %v3248 = vadd.f32 %v3163, %v3224
      %v3249 = vrot.slane %v3141, 2
      %v3250 = vrot.slane %v3142, 2
      %v3251 = vsel %vm1361, %v3249, %v3250
      %v3252 = vrot.slane %v3143, 2
      %v3253 = vrot.slane %v3144, 2
      %v3254 = vsel %vm1361, %v3252, %v3253
      %v3255 = vrot.slane %v3145, 2
      %v3256 = vrot.slane %v3146, 2
      %v3257 = vsel %vm1361, %v3255, %v3256
      %v3258 = vrot.slane %v3147, 2
      %v3259 = vrot.slane %v3148, 2
      %v3260 = vsel %vm1361, %v3258, %v3259
      %v3261 = vrot.slane %v3149, 2
      %v3262 = vrot.slane %v3150, 2
      %v3263 = vsel %vm1361, %v3261, %v3262
      %v3264 = vrot.slane %v3151, 2
      %v3265 = vrot.slane %v3152, 2
      %v3266 = vsel %vm1361, %v3264, %v3265
      %v3267 = vrot.slane %v3153, 2
      %v3268 = vrot.slane %v3154, 2
      %v3269 = vsel %vm1361, %v3267, %v3268
      %v3270 = vrot.slane %v3155, 2
      %v3271 = vrot.slane %v3156, 2
      %v3272 = vsel %vm1361, %v3270, %v3271
      %v3273 = vrot.slane %v3157, 2
      %v3274 = vrot.slane %v3158, 2
      %v3275 = vsel %vm1361, %v3273, %v3274
      %v3276 = vrot.slane %v3159, 2
      %v3277 = vrot.slane %v3160, 2
      %v3278 = vsel %vm1361, %v3276, %v3277
      %v3279 = vrot.slane %v3161, 2
      %v3280 = vrot.slane %v3162, 2
      %v3281 = vsel %vm1361, %v3279, %v3280
      %v3282 = vrot.slane %v3163, 2
      %v3283 = vrot.slane %v3164, 2
      %v3284 = vsel %vm1361, %v3282, %v3283
      %v3297 = vadd.f32 %v3237, %v3251
      %v3298 = vadd.f32 %v3238, %v3254
      %v3299 = vadd.f32 %v3239, %v3257
      %v3300 = vadd.f32 %v3240, %v3260
      %v3301 = vadd.f32 %v3241, %v3263
      %v3302 = vadd.f32 %v3242, %v3266
      %v3303 = vadd.f32 %v3243, %v3269
      %v3304 = vadd.f32 %v3244, %v3272
      %v3305 = vadd.f32 %v3245, %v3275
      %v3306 = vadd.f32 %v3246, %v3278
      %v3307 = vadd.f32 %v3247, %v3281
      %v3308 = vadd.f32 %v3248, %v3284
      %v3309 = vrot.slane %v3141, 3
      %v3310 = vrot.slane %v3142, 3
      %v3311 = vsel %vm1446, %v3309, %v3310
      %v3312 = vrot.slane %v3143, 3
      %v3313 = vrot.slane %v3144, 3
      %v3314 = vsel %vm1446, %v3312, %v3313
      %v3315 = vrot.slane %v3145, 3
      %v3316 = vrot.slane %v3146, 3
      %v3317 = vsel %vm1446, %v3315, %v3316
      %v3318 = vrot.slane %v3147, 3
      %v3319 = vrot.slane %v3148, 3
      %v3320 = vsel %vm1446, %v3318, %v3319
      %v3321 = vrot.slane %v3149, 3
      %v3322 = vrot.slane %v3150, 3
      %v3323 = vsel %vm1446, %v3321, %v3322
      %v3324 = vrot.slane %v3151, 3
      %v3325 = vrot.slane %v3152, 3
      %v3326 = vsel %vm1446, %v3324, %v3325
      %v3327 = vrot.slane %v3153, 3
      %v3328 = vrot.slane %v3154, 3
      %v3329 = vsel %vm1446, %v3327, %v3328
      %v3330 = vrot.slane %v3155, 3
      %v3331 = vrot.slane %v3156, 3
      %v3332 = vsel %vm1446, %v3330, %v3331
      %v3333 = vrot.slane %v3157, 3
      %v3334 = vrot.slane %v3158, 3
      %v3335 = vsel %vm1446, %v3333, %v3334
      %v3336 = vrot.slane %v3159, 3
      %v3337 = vrot.slane %v3160, 3
      %v3338 = vsel %vm1446, %v3336, %v3337
      %v3339 = vrot.slane %v3161, 3
      %v3340 = vrot.slane %v3162, 3
      %v3341 = vsel %vm1446, %v3339, %v3340
      %v3342 = vrot.slane %v3163, 3
      %v3343 = vrot.slane %v3164, 3
      %v3344 = vsel %vm1446, %v3342, %v3343
      %v3357 = vadd.f32 %v3297, %v3311
      %v3358 = vadd.f32 %v3298, %v3314
      %v3359 = vadd.f32 %v3299, %v3317
      %v3360 = vadd.f32 %v3300, %v3320
      %v3361 = vadd.f32 %v3301, %v3323
      %v3362 = vadd.f32 %v3302, %v3326
      %v3363 = vadd.f32 %v3303, %v3329
      %v3364 = vadd.f32 %v3304, %v3332
      %v3365 = vadd.f32 %v3305, %v3335
      %v3366 = vadd.f32 %v3306, %v3338
      %v3367 = vadd.f32 %v3307, %v3341
      %v3368 = vadd.f32 %v3308, %v3344
      %v3369 = vrot.slane %v3141, 4
      %v3370 = vrot.slane %v3142, 4
      %v3371 = vsel %vm626, %v3369, %v3370
      %v3372 = vrot.slane %v3143, 4
      %v3373 = vrot.slane %v3144, 4
      %v3374 = vsel %vm626, %v3372, %v3373
      %v3375 = vrot.slane %v3145, 4
      %v3376 = vrot.slane %v3146, 4
      %v3377 = vsel %vm626, %v3375, %v3376
      %v3378 = vrot.slane %v3147, 4
      %v3379 = vrot.slane %v3148, 4
      %v3380 = vsel %vm626, %v3378, %v3379
      %v3381 = vrot.slane %v3149, 4
      %v3382 = vrot.slane %v3150, 4
      %v3383 = vsel %vm626, %v3381, %v3382
      %v3384 = vrot.slane %v3151, 4
      %v3385 = vrot.slane %v3152, 4
      %v3386 = vsel %vm626, %v3384, %v3385
      %v3387 = vrot.slane %v3153, 4
      %v3388 = vrot.slane %v3154, 4
      %v3389 = vsel %vm626, %v3387, %v3388
      %v3390 = vrot.slane %v3155, 4
      %v3391 = vrot.slane %v3156, 4
      %v3392 = vsel %vm626, %v3390, %v3391
      %v3393 = vrot.slane %v3157, 4
      %v3394 = vrot.slane %v3158, 4
      %v3395 = vsel %vm626, %v3393, %v3394
      %v3396 = vrot.slane %v3159, 4
      %v3397 = vrot.slane %v3160, 4
      %v3398 = vsel %vm626, %v3396, %v3397
      %v3399 = vrot.slane %v3161, 4
      %v3400 = vrot.slane %v3162, 4
      %v3401 = vsel %vm626, %v3399, %v3400
      %v3402 = vrot.slane %v3163, 4
      %v3403 = vrot.slane %v3164, 4
      %v3404 = vsel %vm626, %v3402, %v3403
      %v3417 = vadd.f32 %v3357, %v3371
      %v3418 = vadd.f32 %v3358, %v3374
      %v3419 = vadd.f32 %v3359, %v3377
      %v3420 = vadd.f32 %v3360, %v3380
      %v3421 = vadd.f32 %v3361, %v3383
      %v3422 = vadd.f32 %v3362, %v3386
      %v3423 = vadd.f32 %v3363, %v3389
      %v3424 = vadd.f32 %v3364, %v3392
      %v3425 = vadd.f32 %v3365, %v3395
      %v3426 = vadd.f32 %v3366, %v3398
      %v3427 = vadd.f32 %v3367, %v3401
      %v3428 = vadd.f32 %v3368, %v3404
      %v3429 = vadd.f32 %v3417, %v3418
      %v3430 = vadd.f32 %v3418, %v3419
      %v3431 = vadd.f32 %v3419, %v3420
      %v3432 = vadd.f32 %v3420, %v3421
      %v3433 = vadd.f32 %v3421, %v3422
      %v3434 = vadd.f32 %v3422, %v3423
      %v3435 = vadd.f32 %v3423, %v3424
      %v3436 = vadd.f32 %v3424, %v3425
      %v3437 = vadd.f32 %v3429, %v3419
      %v3438 = vadd.f32 %v3430, %v3420
      %v3439 = vadd.f32 %v3431, %v3421
      %v3440 = vadd.f32 %v3432, %v3422
      %v3441 = vadd.f32 %v3433, %v3423
      %v3442 = vadd.f32 %v3434, %v3424
      %v3443 = vadd.f32 %v3435, %v3425
      %v3444 = vadd.f32 %v3436, %v3426
      %v3445 = vadd.f32 %v3437, %v3420
      %v3446 = vadd.f32 %v3438, %v3421
      %v3447 = vadd.f32 %v3439, %v3422
      %v3448 = vadd.f32 %v3440, %v3423
      %v3449 = vadd.f32 %v3441, %v3424
      %v3450 = vadd.f32 %v3442, %v3425
      %v3451 = vadd.f32 %v3443, %v3426
      %v3452 = vadd.f32 %v3444, %v3427
      %v3453 = vadd.f32 %v3445, %v3421
      %v3454 = vadd.f32 %v3446, %v3422
      %v3455 = vadd.f32 %v3447, %v3423
      %v3456 = vadd.f32 %v3448, %v3424
      %v3457 = vadd.f32 %v3449, %v3425
      %v3458 = vadd.f32 %v3450, %v3426
      %v3459 = vadd.f32 %v3451, %v3427
      %v3460 = vadd.f32 %v3452, %v3428
      %v3461 = vmul.f32 %v3453, 0.008
      %v3462 = vmul.f32 %v3454, 0.008
      %v3463 = vmul.f32 %v3455, 0.008
      %v3464 = vmul.f32 %v3456, 0.008
      %v3465 = vmul.f32 %v3457, 0.008
      %v3466 = vmul.f32 %v3458, 0.008
      %v3467 = vmul.f32 %v3459, 0.008
      %v3468 = vmul.f32 %v3460, 0.008
      %3477 = vrot.lane.b32.xlu0 %v3461, 126
      %v3478 = vpop.permute.xlu0 %3477
      %3479 = vrot.lane.b32.xlu0 %v3462, 126
      %v3480 = vpop.permute.xlu0 %3479
      %3481 = vrot.lane.b32.xlu0 %v3463, 126
      %v3482 = vpop.permute.xlu0 %3481
      %3483 = vrot.lane.b32.xlu0 %v3464, 126
      %v3484 = vpop.permute.xlu0 %3483
      %3485 = vrot.lane.b32.xlu0 %v3465, 126
      %v3486 = vpop.permute.xlu0 %3485
      %3487 = vrot.lane.b32.xlu0 %v3466, 126
      %v3488 = vpop.permute.xlu0 %3487
      %3489 = vrot.lane.b32.xlu0 %v3467, 126
      %v3490 = vpop.permute.xlu0 %3489
      %3491 = vrot.lane.b32.xlu0 %v3468, 126
      %v3492 = vpop.permute.xlu0 %3491
      %s3501 = scalar_lea.vmem %s150, 128
      %3502 = vst.msk [vmem:[%s3501] sm:$0xff] %vm2652, %v3478
      %3503 = vst.msk [vmem:[%s3501 + $0x8] sm:$0xff] %vm2652, %v3480
      %3504 = vst.msk [vmem:[%s3501 + $0x10] sm:$0xff] %vm2652, %v3482
      %3505 = vst.msk [vmem:[%s3501 + $0x18] sm:$0xff] %vm2652, %v3484
      %3506 = vst.msk [vmem:[%s3501 + $0x20] sm:$0xff] %vm2652, %v3486
      %3507 = vst.msk [vmem:[%s3501 + $0x28] sm:$0xff] %vm2652, %v3488
      %3508 = vst.msk [vmem:[%s3501 + $0x30] sm:$0xff] %vm2652, %v3490
      %3509 = vst.msk [vmem:[%s3501 + $0x38] sm:$0xff] %vm2652, %v3492
      %v3510 = vrot.slane %v3461, 6
      %v3511 = vrot.slane %v3462, 6
      %v3512 = vrot.slane %v3463, 6
      %v3513 = vrot.slane %v3464, 6
      %v3514 = vrot.slane %v3465, 6
      %v3515 = vrot.slane %v3466, 6
      %v3516 = vrot.slane %v3467, 6
      %v3517 = vrot.slane %v3468, 6
      %v3526 = vmin.f32 %v2677, %v3510
      %v3527 = vmin.f32 %v2678, %v3510
      %v3528 = vmin.f32 %v2679, %v3511
      %v3529 = vmin.f32 %v2680, %v3511
      %v3530 = vmin.f32 %v2681, %v3512
      %v3531 = vmin.f32 %v2682, %v3512
      %v3532 = vmin.f32 %v2683, %v3513
      %v3533 = vmin.f32 %v2684, %v3513
      %v3534 = vmin.f32 %v2685, %v3514
      %v3535 = vmin.f32 %v2686, %v3514
      %v3536 = vmin.f32 %v2687, %v3515
      %v3537 = vmin.f32 %v2688, %v3515
      %v3538 = vmin.f32 %v2689, %v3516
      %v3539 = vmin.f32 %v2690, %v3516
      %v3540 = vmin.f32 %v2691, %v3517
      %v3541 = vmin.f32 %v2692, %v3517
      %v3542 = vadd.f32 %v2693, %v3510
      %v3543 = vadd.f32 %v2694, %v3510
      %v3544 = vadd.f32 %v2695, %v3511
      %v3545 = vadd.f32 %v2696, %v3511
      %v3546 = vadd.f32 %v2697, %v3512
      %v3547 = vadd.f32 %v2698, %v3512
      %v3548 = vadd.f32 %v2699, %v3513
      %v3549 = vadd.f32 %v2700, %v3513
      %v3550 = vadd.f32 %v2701, %v3514
      %v3551 = vadd.f32 %v2702, %v3514
      %v3552 = vadd.f32 %v2703, %v3515
      %v3553 = vadd.f32 %v2704, %v3515
      %v3554 = vadd.f32 %v2705, %v3516
      %v3555 = vadd.f32 %v2706, %v3516
      %v3556 = vadd.f32 %v2707, %v3517
      %v3557 = vadd.f32 %v2708, %v3517
      %v3580 = vrot.slane %v590, 2
      %v3581 = vrot.slane %v591, 2
      %v3582 = vsel %vm1361, %v3580, %v3581
      %v3583 = vrot.slane %v592, 2
      %v3584 = vrot.slane %v593, 2
      %v3585 = vsel %vm1361, %v3583, %v3584
      %v3586 = vrot.slane %v167, 2
      %v3587 = vrot.slane %v168, 2
      %v3588 = vsel %vm1361, %v3586, %v3587
      %v3589 = vrot.slane %v594, 2
      %v3590 = vrot.slane %v595, 2
      %v3591 = vsel %vm1361, %v3589, %v3590
      %v3592 = vrot.slane %v596, 2
      %v3593 = vrot.slane %v597, 2
      %v3594 = vsel %vm1361, %v3592, %v3593
      %v3595 = vrot.slane %v598, 2
      %v3596 = vrot.slane %v599, 2
      %v3597 = vsel %vm1361, %v3595, %v3596
      %v3598 = vrot.slane %v600, 2
      %v3599 = vrot.slane %v601, 2
      %v3600 = vsel %vm1361, %v3598, %v3599
      %v3601 = vrot.slane %v602, 2
      %v3602 = vrot.slane %v603, 2
      %v3603 = vsel %vm1361, %v3601, %v3602
      %v3604 = vrot.slane %v604, 2
      %v3605 = vrot.slane %v605, 2
      %v3606 = vsel %vm1361, %v3604, %v3605
      %v3607 = vrot.slane %v606, 2
      %v3608 = vrot.slane %v607, 2
      %v3609 = vsel %vm1361, %v3607, %v3608
      %v3610 = vrot.slane %v608, 2
      %v3611 = vrot.slane %v609, 2
      %v3612 = vsel %vm1361, %v3610, %v3611
      %v3613 = vrot.slane %v610, 2
      %v3614 = vrot.slane %v611, 2
      %v3615 = vsel %vm1361, %v3613, %v3614
      %v3640 = vsub.f32 %v687, %v3582
      %v3641 = vsub.f32 %v688, %v3581
      %v3642 = vsub.f32 %v689, %v3585
      %v3643 = vsub.f32 %v690, %v3584
      %v3644 = vsub.f32 %v691, %v3588
      %v3645 = vsub.f32 %v692, %v3587
      %v3646 = vsub.f32 %v693, %v3591
      %v3647 = vsub.f32 %v694, %v3590
      %v3648 = vsub.f32 %v695, %v3594
      %v3649 = vsub.f32 %v696, %v3593
      %v3650 = vsub.f32 %v697, %v3597
      %v3651 = vsub.f32 %v698, %v3596
      %v3652 = vsub.f32 %v699, %v3600
      %v3653 = vsub.f32 %v700, %v3599
      %v3654 = vsub.f32 %v701, %v3603
      %v3655 = vsub.f32 %v702, %v3602
      %v3656 = vsub.f32 %v703, %v3606
      %v3657 = vsub.f32 %v704, %v3605
      %v3658 = vsub.f32 %v705, %v3609
      %v3659 = vsub.f32 %v706, %v3608
      %v3660 = vsub.f32 %v707, %v3612
      %v3661 = vsub.f32 %v708, %v3611
      %v3662 = vsub.f32 %v709, %v3615
      %v3663 = vsub.f32 %v710, %v3614
      %v3664 = vmul.f32 %v3640, %v3640
      %v3665 = vmul.f32 %v3641, %v3641
      %v3666 = vmul.f32 %v3642, %v3642
      %v3667 = vmul.f32 %v3643, %v3643
      %v3668 = vmul.f32 %v3644, %v3644
      %v3669 = vmul.f32 %v3645, %v3645
      %v3670 = vmul.f32 %v3646, %v3646
      %v3671 = vmul.f32 %v3647, %v3647
      %v3672 = vmul.f32 %v3648, %v3648
      %v3673 = vmul.f32 %v3649, %v3649
      %v3674 = vmul.f32 %v3650, %v3650
      %v3675 = vmul.f32 %v3651, %v3651
      %v3676 = vmul.f32 %v3652, %v3652
      %v3677 = vmul.f32 %v3653, %v3653
      %v3678 = vmul.f32 %v3654, %v3654
      %v3679 = vmul.f32 %v3655, %v3655
      %v3680 = vmul.f32 %v3656, %v3656
      %v3681 = vmul.f32 %v3657, %v3657
      %v3682 = vmul.f32 %v3658, %v3658
      %v3683 = vmul.f32 %v3659, %v3659
      %v3684 = vmul.f32 %v3660, %v3660
      %v3685 = vmul.f32 %v3661, %v3661
      %v3686 = vmul.f32 %v3662, %v3662
      %v3687 = vmul.f32 %v3663, %v3663
      %3712 = vrot.lane.b32.xlu0 %v3664, 127
      %v3713 = vpop.permute.xlu0 %3712
      %3714 = vrot.lane.b32.xlu0 %v3665, 127
      %v3715 = vpop.permute.xlu0 %3714
      %3716 = vrot.lane.b32.xlu0 %v3666, 127
      %v3717 = vpop.permute.xlu0 %3716
      %3718 = vrot.lane.b32.xlu0 %v3667, 127
      %v3719 = vpop.permute.xlu0 %3718
      %3720 = vrot.lane.b32.xlu0 %v3668, 127
      %v3721 = vpop.permute.xlu0 %3720
      %3722 = vrot.lane.b32.xlu0 %v3669, 127
      %v3723 = vpop.permute.xlu0 %3722
      %3724 = vrot.lane.b32.xlu0 %v3670, 127
      %v3725 = vpop.permute.xlu0 %3724
      %3726 = vrot.lane.b32.xlu0 %v3671, 127
      %v3727 = vpop.permute.xlu0 %3726
      %3728 = vrot.lane.b32.xlu0 %v3672, 127
      %v3729 = vpop.permute.xlu0 %3728
      %3730 = vrot.lane.b32.xlu0 %v3673, 127
      %v3731 = vpop.permute.xlu0 %3730
      %3732 = vrot.lane.b32.xlu0 %v3674, 127
      %v3733 = vpop.permute.xlu0 %3732
      %3734 = vrot.lane.b32.xlu0 %v3675, 127
      %v3735 = vpop.permute.xlu0 %3734
      %3736 = vrot.lane.b32.xlu0 %v3676, 127
      %v3737 = vpop.permute.xlu0 %3736
      %3738 = vrot.lane.b32.xlu0 %v3677, 127
      %v3739 = vpop.permute.xlu0 %3738
      %3740 = vrot.lane.b32.xlu0 %v3678, 127
      %v3741 = vpop.permute.xlu0 %3740
      %3742 = vrot.lane.b32.xlu0 %v3679, 127
      %v3743 = vpop.permute.xlu0 %3742
      %3744 = vrot.lane.b32.xlu0 %v3680, 127
      %v3745 = vpop.permute.xlu0 %3744
      %3746 = vrot.lane.b32.xlu0 %v3681, 127
      %v3747 = vpop.permute.xlu0 %3746
      %3748 = vrot.lane.b32.xlu0 %v3682, 127
      %v3749 = vpop.permute.xlu0 %3748
      %3750 = vrot.lane.b32.xlu0 %v3683, 127
      %v3751 = vpop.permute.xlu0 %3750
      %3752 = vrot.lane.b32.xlu0 %v3684, 127
      %v3753 = vpop.permute.xlu0 %3752
      %3754 = vrot.lane.b32.xlu0 %v3685, 127
      %v3755 = vpop.permute.xlu0 %3754
      %3756 = vrot.lane.b32.xlu0 %v3686, 127
      %v3757 = vpop.permute.xlu0 %3756
      %3758 = vrot.lane.b32.xlu0 %v3687, 127
      %v3759 = vpop.permute.xlu0 %3758
      %v3784 = vadd.f32 %v3664, %v3713
      %v3785 = vadd.f32 %v3665, %v3715
      %v3786 = vadd.f32 %v3666, %v3717
      %v3787 = vadd.f32 %v3667, %v3719
      %v3788 = vadd.f32 %v3668, %v3721
      %v3789 = vadd.f32 %v3669, %v3723
      %v3790 = vadd.f32 %v3670, %v3725
      %v3791 = vadd.f32 %v3671, %v3727
      %v3792 = vadd.f32 %v3672, %v3729
      %v3793 = vadd.f32 %v3673, %v3731
      %v3794 = vadd.f32 %v3674, %v3733
      %v3795 = vadd.f32 %v3675, %v3735
      %v3796 = vadd.f32 %v3676, %v3737
      %v3797 = vadd.f32 %v3677, %v3739
      %v3798 = vadd.f32 %v3678, %v3741
      %v3799 = vadd.f32 %v3679, %v3743
      %v3800 = vadd.f32 %v3680, %v3745
      %v3801 = vadd.f32 %v3681, %v3747
      %v3802 = vadd.f32 %v3682, %v3749
      %v3803 = vadd.f32 %v3683, %v3751
      %v3804 = vadd.f32 %v3684, %v3753
      %v3805 = vadd.f32 %v3685, %v3755
      %v3806 = vadd.f32 %v3686, %v3757
      %v3807 = vadd.f32 %v3687, %v3759
      %3808 = vrot.lane.b32.xlu0 %v3664, 126
      %v3809 = vpop.permute.xlu0 %3808
      %3810 = vrot.lane.b32.xlu0 %v3665, 126
      %v3811 = vpop.permute.xlu0 %3810
      %3812 = vrot.lane.b32.xlu0 %v3666, 126
      %v3813 = vpop.permute.xlu0 %3812
      %3814 = vrot.lane.b32.xlu0 %v3667, 126
      %v3815 = vpop.permute.xlu0 %3814
      %3816 = vrot.lane.b32.xlu0 %v3668, 126
      %v3817 = vpop.permute.xlu0 %3816
      %3818 = vrot.lane.b32.xlu0 %v3669, 126
      %v3819 = vpop.permute.xlu0 %3818
      %3820 = vrot.lane.b32.xlu0 %v3670, 126
      %v3821 = vpop.permute.xlu0 %3820
      %3822 = vrot.lane.b32.xlu0 %v3671, 126
      %v3823 = vpop.permute.xlu0 %3822
      %3824 = vrot.lane.b32.xlu0 %v3672, 126
      %v3825 = vpop.permute.xlu0 %3824
      %3826 = vrot.lane.b32.xlu0 %v3673, 126
      %v3827 = vpop.permute.xlu0 %3826
      %3828 = vrot.lane.b32.xlu0 %v3674, 126
      %v3829 = vpop.permute.xlu0 %3828
      %3830 = vrot.lane.b32.xlu0 %v3675, 126
      %v3831 = vpop.permute.xlu0 %3830
      %3832 = vrot.lane.b32.xlu0 %v3676, 126
      %v3833 = vpop.permute.xlu0 %3832
      %3834 = vrot.lane.b32.xlu0 %v3677, 126
      %v3835 = vpop.permute.xlu0 %3834
      %3836 = vrot.lane.b32.xlu0 %v3678, 126
      %v3837 = vpop.permute.xlu0 %3836
      %3838 = vrot.lane.b32.xlu0 %v3679, 126
      %v3839 = vpop.permute.xlu0 %3838
      %3840 = vrot.lane.b32.xlu0 %v3680, 126
      %v3841 = vpop.permute.xlu0 %3840
      %3842 = vrot.lane.b32.xlu0 %v3681, 126
      %v3843 = vpop.permute.xlu0 %3842
      %3844 = vrot.lane.b32.xlu0 %v3682, 126
      %v3845 = vpop.permute.xlu0 %3844
      %3846 = vrot.lane.b32.xlu0 %v3683, 126
      %v3847 = vpop.permute.xlu0 %3846
      %3848 = vrot.lane.b32.xlu0 %v3684, 126
      %v3849 = vpop.permute.xlu0 %3848
      %3850 = vrot.lane.b32.xlu0 %v3685, 126
      %v3851 = vpop.permute.xlu0 %3850
      %3852 = vrot.lane.b32.xlu0 %v3686, 126
      %v3853 = vpop.permute.xlu0 %3852
      %3854 = vrot.lane.b32.xlu0 %v3687, 126
      %v3855 = vpop.permute.xlu0 %3854
      %v3880 = vadd.f32 %v3784, %v3809
      %v3881 = vadd.f32 %v3785, %v3811
      %v3882 = vadd.f32 %v3786, %v3813
      %v3883 = vadd.f32 %v3787, %v3815
      %v3884 = vadd.f32 %v3788, %v3817
      %v3885 = vadd.f32 %v3789, %v3819
      %v3886 = vadd.f32 %v3790, %v3821
      %v3887 = vadd.f32 %v3791, %v3823
      %v3888 = vadd.f32 %v3792, %v3825
      %v3889 = vadd.f32 %v3793, %v3827
      %v3890 = vadd.f32 %v3794, %v3829
      %v3891 = vadd.f32 %v3795, %v3831
      %v3892 = vadd.f32 %v3796, %v3833
      %v3893 = vadd.f32 %v3797, %v3835
      %v3894 = vadd.f32 %v3798, %v3837
      %v3895 = vadd.f32 %v3799, %v3839
      %v3896 = vadd.f32 %v3800, %v3841
      %v3897 = vadd.f32 %v3801, %v3843
      %v3898 = vadd.f32 %v3802, %v3845
      %v3899 = vadd.f32 %v3803, %v3847
      %v3900 = vadd.f32 %v3804, %v3849
      %v3901 = vadd.f32 %v3805, %v3851
      %v3902 = vadd.f32 %v3806, %v3853
      %v3903 = vadd.f32 %v3807, %v3855
      %3904 = vrot.lane.b32.xlu0 %v3664, 125
      %v3905 = vpop.permute.xlu0 %3904
      %3906 = vrot.lane.b32.xlu0 %v3665, 125
      %v3907 = vpop.permute.xlu0 %3906
      %3908 = vrot.lane.b32.xlu0 %v3666, 125
      %v3909 = vpop.permute.xlu0 %3908
      %3910 = vrot.lane.b32.xlu0 %v3667, 125
      %v3911 = vpop.permute.xlu0 %3910
      %3912 = vrot.lane.b32.xlu0 %v3668, 125
      %v3913 = vpop.permute.xlu0 %3912
      %3914 = vrot.lane.b32.xlu0 %v3669, 125
      %v3915 = vpop.permute.xlu0 %3914
      %3916 = vrot.lane.b32.xlu0 %v3670, 125
      %v3917 = vpop.permute.xlu0 %3916
      %3918 = vrot.lane.b32.xlu0 %v3671, 125
      %v3919 = vpop.permute.xlu0 %3918
      %3920 = vrot.lane.b32.xlu0 %v3672, 125
      %v3921 = vpop.permute.xlu0 %3920
      %3922 = vrot.lane.b32.xlu0 %v3673, 125
      %v3923 = vpop.permute.xlu0 %3922
      %3924 = vrot.lane.b32.xlu0 %v3674, 125
      %v3925 = vpop.permute.xlu0 %3924
      %3926 = vrot.lane.b32.xlu0 %v3675, 125
      %v3927 = vpop.permute.xlu0 %3926
      %3928 = vrot.lane.b32.xlu0 %v3676, 125
      %v3929 = vpop.permute.xlu0 %3928
      %3930 = vrot.lane.b32.xlu0 %v3677, 125
      %v3931 = vpop.permute.xlu0 %3930
      %3932 = vrot.lane.b32.xlu0 %v3678, 125
      %v3933 = vpop.permute.xlu0 %3932
      %3934 = vrot.lane.b32.xlu0 %v3679, 125
      %v3935 = vpop.permute.xlu0 %3934
      %3936 = vrot.lane.b32.xlu0 %v3680, 125
      %v3937 = vpop.permute.xlu0 %3936
      %3938 = vrot.lane.b32.xlu0 %v3681, 125
      %v3939 = vpop.permute.xlu0 %3938
      %3940 = vrot.lane.b32.xlu0 %v3682, 125
      %v3941 = vpop.permute.xlu0 %3940
      %3942 = vrot.lane.b32.xlu0 %v3683, 125
      %v3943 = vpop.permute.xlu0 %3942
      %3944 = vrot.lane.b32.xlu0 %v3684, 125
      %v3945 = vpop.permute.xlu0 %3944
      %3946 = vrot.lane.b32.xlu0 %v3685, 125
      %v3947 = vpop.permute.xlu0 %3946
      %3948 = vrot.lane.b32.xlu0 %v3686, 125
      %v3949 = vpop.permute.xlu0 %3948
      %3950 = vrot.lane.b32.xlu0 %v3687, 125
      %v3951 = vpop.permute.xlu0 %3950
      %v3976 = vadd.f32 %v3880, %v3905
      %v3977 = vadd.f32 %v3881, %v3907
      %v3978 = vadd.f32 %v3882, %v3909
      %v3979 = vadd.f32 %v3883, %v3911
      %v3980 = vadd.f32 %v3884, %v3913
      %v3981 = vadd.f32 %v3885, %v3915
      %v3982 = vadd.f32 %v3886, %v3917
      %v3983 = vadd.f32 %v3887, %v3919
      %v3984 = vadd.f32 %v3888, %v3921
      %v3985 = vadd.f32 %v3889, %v3923
      %v3986 = vadd.f32 %v3890, %v3925
      %v3987 = vadd.f32 %v3891, %v3927
      %v3988 = vadd.f32 %v3892, %v3929
      %v3989 = vadd.f32 %v3893, %v3931
      %v3990 = vadd.f32 %v3894, %v3933
      %v3991 = vadd.f32 %v3895, %v3935
      %v3992 = vadd.f32 %v3896, %v3937
      %v3993 = vadd.f32 %v3897, %v3939
      %v3994 = vadd.f32 %v3898, %v3941
      %v3995 = vadd.f32 %v3899, %v3943
      %v3996 = vadd.f32 %v3900, %v3945
      %v3997 = vadd.f32 %v3901, %v3947
      %v3998 = vadd.f32 %v3902, %v3949
      %v3999 = vadd.f32 %v3903, %v3951
      %4000 = vrot.lane.b32.xlu0 %v3664, 124
      %v4001 = vpop.permute.xlu0 %4000
      %4002 = vrot.lane.b32.xlu0 %v3665, 124
      %v4003 = vpop.permute.xlu0 %4002
      %4004 = vrot.lane.b32.xlu0 %v3666, 124
      %v4005 = vpop.permute.xlu0 %4004
      %4006 = vrot.lane.b32.xlu0 %v3667, 124
      %v4007 = vpop.permute.xlu0 %4006
      %4008 = vrot.lane.b32.xlu0 %v3668, 124
      %v4009 = vpop.permute.xlu0 %4008
      %4010 = vrot.lane.b32.xlu0 %v3669, 124
      %v4011 = vpop.permute.xlu0 %4010
      %4012 = vrot.lane.b32.xlu0 %v3670, 124
      %v4013 = vpop.permute.xlu0 %4012
      %4014 = vrot.lane.b32.xlu0 %v3671, 124
      %v4015 = vpop.permute.xlu0 %4014
      %4016 = vrot.lane.b32.xlu0 %v3672, 124
      %v4017 = vpop.permute.xlu0 %4016
      %4018 = vrot.lane.b32.xlu0 %v3673, 124
      %v4019 = vpop.permute.xlu0 %4018
      %4020 = vrot.lane.b32.xlu0 %v3674, 124
      %v4021 = vpop.permute.xlu0 %4020
      %4022 = vrot.lane.b32.xlu0 %v3675, 124
      %v4023 = vpop.permute.xlu0 %4022
      %4024 = vrot.lane.b32.xlu0 %v3676, 124
      %v4025 = vpop.permute.xlu0 %4024
      %4026 = vrot.lane.b32.xlu0 %v3677, 124
      %v4027 = vpop.permute.xlu0 %4026
      %4028 = vrot.lane.b32.xlu0 %v3678, 124
      %v4029 = vpop.permute.xlu0 %4028
      %4030 = vrot.lane.b32.xlu0 %v3679, 124
      %v4031 = vpop.permute.xlu0 %4030
      %4032 = vrot.lane.b32.xlu0 %v3680, 124
      %v4033 = vpop.permute.xlu0 %4032
      %4034 = vrot.lane.b32.xlu0 %v3681, 124
      %v4035 = vpop.permute.xlu0 %4034
      %4036 = vrot.lane.b32.xlu0 %v3682, 124
      %v4037 = vpop.permute.xlu0 %4036
      %4038 = vrot.lane.b32.xlu0 %v3683, 124
      %v4039 = vpop.permute.xlu0 %4038
      %4040 = vrot.lane.b32.xlu0 %v3684, 124
      %v4041 = vpop.permute.xlu0 %4040
      %4042 = vrot.lane.b32.xlu0 %v3685, 124
      %v4043 = vpop.permute.xlu0 %4042
      %4044 = vrot.lane.b32.xlu0 %v3686, 124
      %v4045 = vpop.permute.xlu0 %4044
      %4046 = vrot.lane.b32.xlu0 %v3687, 124
      %v4047 = vpop.permute.xlu0 %4046
      %v4072 = vadd.f32 %v3976, %v4001
      %v4073 = vadd.f32 %v3977, %v4003
      %v4074 = vadd.f32 %v3978, %v4005
      %v4075 = vadd.f32 %v3979, %v4007
      %v4076 = vadd.f32 %v3980, %v4009
      %v4077 = vadd.f32 %v3981, %v4011
      %v4078 = vadd.f32 %v3982, %v4013
      %v4079 = vadd.f32 %v3983, %v4015
      %v4080 = vadd.f32 %v3984, %v4017
      %v4081 = vadd.f32 %v3985, %v4019
      %v4082 = vadd.f32 %v3986, %v4021
      %v4083 = vadd.f32 %v3987, %v4023
      %v4084 = vadd.f32 %v3988, %v4025
      %v4085 = vadd.f32 %v3989, %v4027
      %v4086 = vadd.f32 %v3990, %v4029
      %v4087 = vadd.f32 %v3991, %v4031
      %v4088 = vadd.f32 %v3992, %v4033
      %v4089 = vadd.f32 %v3993, %v4035
      %v4090 = vadd.f32 %v3994, %v4037
      %v4091 = vadd.f32 %v3995, %v4039
      %v4092 = vadd.f32 %v3996, %v4041
      %v4093 = vadd.f32 %v3997, %v4043
      %v4094 = vadd.f32 %v3998, %v4045
      %v4095 = vadd.f32 %v3999, %v4047
      %v4120 = vrot.slane %v4072, 1
      %v4121 = vrot.slane %v4073, 1
      %v4122 = vsel %vm1276, %v4120, %v4121
      %v4123 = vrot.slane %v4074, 1
      %v4124 = vrot.slane %v4075, 1
      %v4125 = vsel %vm1276, %v4123, %v4124
      %v4126 = vrot.slane %v4076, 1
      %v4127 = vrot.slane %v4077, 1
      %v4128 = vsel %vm1276, %v4126, %v4127
      %v4129 = vrot.slane %v4078, 1
      %v4130 = vrot.slane %v4079, 1
      %v4131 = vsel %vm1276, %v4129, %v4130
      %v4132 = vrot.slane %v4080, 1
      %v4133 = vrot.slane %v4081, 1
      %v4134 = vsel %vm1276, %v4132, %v4133
      %v4135 = vrot.slane %v4082, 1
      %v4136 = vrot.slane %v4083, 1
      %v4137 = vsel %vm1276, %v4135, %v4136
      %v4138 = vrot.slane %v4084, 1
      %v4139 = vrot.slane %v4085, 1
      %v4140 = vsel %vm1276, %v4138, %v4139
      %v4141 = vrot.slane %v4086, 1
      %v4142 = vrot.slane %v4087, 1
      %v4143 = vsel %vm1276, %v4141, %v4142
      %v4144 = vrot.slane %v4088, 1
      %v4145 = vrot.slane %v4089, 1
      %v4146 = vsel %vm1276, %v4144, %v4145
      %v4147 = vrot.slane %v4090, 1
      %v4148 = vrot.slane %v4091, 1
      %v4149 = vsel %vm1276, %v4147, %v4148
      %v4150 = vrot.slane %v4092, 1
      %v4151 = vrot.slane %v4093, 1
      %v4152 = vsel %vm1276, %v4150, %v4151
      %v4153 = vrot.slane %v4094, 1
      %v4154 = vrot.slane %v4095, 1
      %v4155 = vsel %vm1276, %v4153, %v4154
      %v4168 = vadd.f32 %v4072, %v4122
      %v4169 = vadd.f32 %v4074, %v4125
      %v4170 = vadd.f32 %v4076, %v4128
      %v4171 = vadd.f32 %v4078, %v4131
      %v4172 = vadd.f32 %v4080, %v4134
      %v4173 = vadd.f32 %v4082, %v4137
      %v4174 = vadd.f32 %v4084, %v4140
      %v4175 = vadd.f32 %v4086, %v4143
      %v4176 = vadd.f32 %v4088, %v4146
      %v4177 = vadd.f32 %v4090, %v4149
      %v4178 = vadd.f32 %v4092, %v4152
      %v4179 = vadd.f32 %v4094, %v4155
      %v4180 = vrot.slane %v4072, 2
      %v4181 = vrot.slane %v4073, 2
      %v4182 = vsel %vm1361, %v4180, %v4181
      %v4183 = vrot.slane %v4074, 2
      %v4184 = vrot.slane %v4075, 2
      %v4185 = vsel %vm1361, %v4183, %v4184
      %v4186 = vrot.slane %v4076, 2
      %v4187 = vrot.slane %v4077, 2
      %v4188 = vsel %vm1361, %v4186, %v4187
      %v4189 = vrot.slane %v4078, 2
      %v4190 = vrot.slane %v4079, 2
      %v4191 = vsel %vm1361, %v4189, %v4190
      %v4192 = vrot.slane %v4080, 2
      %v4193 = vrot.slane %v4081, 2
      %v4194 = vsel %vm1361, %v4192, %v4193
      %v4195 = vrot.slane %v4082, 2
      %v4196 = vrot.slane %v4083, 2
      %v4197 = vsel %vm1361, %v4195, %v4196
      %v4198 = vrot.slane %v4084, 2
      %v4199 = vrot.slane %v4085, 2
      %v4200 = vsel %vm1361, %v4198, %v4199
      %v4201 = vrot.slane %v4086, 2
      %v4202 = vrot.slane %v4087, 2
      %v4203 = vsel %vm1361, %v4201, %v4202
      %v4204 = vrot.slane %v4088, 2
      %v4205 = vrot.slane %v4089, 2
      %v4206 = vsel %vm1361, %v4204, %v4205
      %v4207 = vrot.slane %v4090, 2
      %v4208 = vrot.slane %v4091, 2
      %v4209 = vsel %vm1361, %v4207, %v4208
      %v4210 = vrot.slane %v4092, 2
      %v4211 = vrot.slane %v4093, 2
      %v4212 = vsel %vm1361, %v4210, %v4211
      %v4213 = vrot.slane %v4094, 2
      %v4214 = vrot.slane %v4095, 2
      %v4215 = vsel %vm1361, %v4213, %v4214
      %v4228 = vadd.f32 %v4168, %v4182
      %v4229 = vadd.f32 %v4169, %v4185
      %v4230 = vadd.f32 %v4170, %v4188
      %v4231 = vadd.f32 %v4171, %v4191
      %v4232 = vadd.f32 %v4172, %v4194
      %v4233 = vadd.f32 %v4173, %v4197
      %v4234 = vadd.f32 %v4174, %v4200
      %v4235 = vadd.f32 %v4175, %v4203
      %v4236 = vadd.f32 %v4176, %v4206
      %v4237 = vadd.f32 %v4177, %v4209
      %v4238 = vadd.f32 %v4178, %v4212
      %v4239 = vadd.f32 %v4179, %v4215
      %v4240 = vrot.slane %v4072, 3
      %v4241 = vrot.slane %v4073, 3
      %v4242 = vsel %vm1446, %v4240, %v4241
      %v4243 = vrot.slane %v4074, 3
      %v4244 = vrot.slane %v4075, 3
      %v4245 = vsel %vm1446, %v4243, %v4244
      %v4246 = vrot.slane %v4076, 3
      %v4247 = vrot.slane %v4077, 3
      %v4248 = vsel %vm1446, %v4246, %v4247
      %v4249 = vrot.slane %v4078, 3
      %v4250 = vrot.slane %v4079, 3
      %v4251 = vsel %vm1446, %v4249, %v4250
      %v4252 = vrot.slane %v4080, 3
      %v4253 = vrot.slane %v4081, 3
      %v4254 = vsel %vm1446, %v4252, %v4253
      %v4255 = vrot.slane %v4082, 3
      %v4256 = vrot.slane %v4083, 3
      %v4257 = vsel %vm1446, %v4255, %v4256
      %v4258 = vrot.slane %v4084, 3
      %v4259 = vrot.slane %v4085, 3
      %v4260 = vsel %vm1446, %v4258, %v4259
      %v4261 = vrot.slane %v4086, 3
      %v4262 = vrot.slane %v4087, 3
      %v4263 = vsel %vm1446, %v4261, %v4262
      %v4264 = vrot.slane %v4088, 3
      %v4265 = vrot.slane %v4089, 3
      %v4266 = vsel %vm1446, %v4264, %v4265
      %v4267 = vrot.slane %v4090, 3
      %v4268 = vrot.slane %v4091, 3
      %v4269 = vsel %vm1446, %v4267, %v4268
      %v4270 = vrot.slane %v4092, 3
      %v4271 = vrot.slane %v4093, 3
      %v4272 = vsel %vm1446, %v4270, %v4271
      %v4273 = vrot.slane %v4094, 3
      %v4274 = vrot.slane %v4095, 3
      %v4275 = vsel %vm1446, %v4273, %v4274
      %v4288 = vadd.f32 %v4228, %v4242
      %v4289 = vadd.f32 %v4229, %v4245
      %v4290 = vadd.f32 %v4230, %v4248
      %v4291 = vadd.f32 %v4231, %v4251
      %v4292 = vadd.f32 %v4232, %v4254
      %v4293 = vadd.f32 %v4233, %v4257
      %v4294 = vadd.f32 %v4234, %v4260
      %v4295 = vadd.f32 %v4235, %v4263
      %v4296 = vadd.f32 %v4236, %v4266
      %v4297 = vadd.f32 %v4237, %v4269
      %v4298 = vadd.f32 %v4238, %v4272
      %v4299 = vadd.f32 %v4239, %v4275
      %v4300 = vrot.slane %v4072, 4
      %v4301 = vrot.slane %v4073, 4
      %v4302 = vsel %vm626, %v4300, %v4301
      %v4303 = vrot.slane %v4074, 4
      %v4304 = vrot.slane %v4075, 4
      %v4305 = vsel %vm626, %v4303, %v4304
      %v4306 = vrot.slane %v4076, 4
      %v4307 = vrot.slane %v4077, 4
      %v4308 = vsel %vm626, %v4306, %v4307
      %v4309 = vrot.slane %v4078, 4
      %v4310 = vrot.slane %v4079, 4
      %v4311 = vsel %vm626, %v4309, %v4310
      %v4312 = vrot.slane %v4080, 4
      %v4313 = vrot.slane %v4081, 4
      %v4314 = vsel %vm626, %v4312, %v4313
      %v4315 = vrot.slane %v4082, 4
      %v4316 = vrot.slane %v4083, 4
      %v4317 = vsel %vm626, %v4315, %v4316
      %v4318 = vrot.slane %v4084, 4
      %v4319 = vrot.slane %v4085, 4
      %v4320 = vsel %vm626, %v4318, %v4319
      %v4321 = vrot.slane %v4086, 4
      %v4322 = vrot.slane %v4087, 4
      %v4323 = vsel %vm626, %v4321, %v4322
      %v4324 = vrot.slane %v4088, 4
      %v4325 = vrot.slane %v4089, 4
      %v4326 = vsel %vm626, %v4324, %v4325
      %v4327 = vrot.slane %v4090, 4
      %v4328 = vrot.slane %v4091, 4
      %v4329 = vsel %vm626, %v4327, %v4328
      %v4330 = vrot.slane %v4092, 4
      %v4331 = vrot.slane %v4093, 4
      %v4332 = vsel %vm626, %v4330, %v4331
      %v4333 = vrot.slane %v4094, 4
      %v4334 = vrot.slane %v4095, 4
      %v4335 = vsel %vm626, %v4333, %v4334
      %v4348 = vadd.f32 %v4288, %v4302
      %v4349 = vadd.f32 %v4289, %v4305
      %v4350 = vadd.f32 %v4290, %v4308
      %v4351 = vadd.f32 %v4291, %v4311
      %v4352 = vadd.f32 %v4292, %v4314
      %v4353 = vadd.f32 %v4293, %v4317
      %v4354 = vadd.f32 %v4294, %v4320
      %v4355 = vadd.f32 %v4295, %v4323
      %v4356 = vadd.f32 %v4296, %v4326
      %v4357 = vadd.f32 %v4297, %v4329
      %v4358 = vadd.f32 %v4298, %v4332
      %v4359 = vadd.f32 %v4299, %v4335
      %v4360 = vadd.f32 %v4348, %v4349
      %v4361 = vadd.f32 %v4349, %v4350
      %v4362 = vadd.f32 %v4350, %v4351
      %v4363 = vadd.f32 %v4351, %v4352
      %v4364 = vadd.f32 %v4352, %v4353
      %v4365 = vadd.f32 %v4353, %v4354
      %v4366 = vadd.f32 %v4354, %v4355
      %v4367 = vadd.f32 %v4355, %v4356
      %v4368 = vadd.f32 %v4360, %v4350
      %v4369 = vadd.f32 %v4361, %v4351
      %v4370 = vadd.f32 %v4362, %v4352
      %v4371 = vadd.f32 %v4363, %v4353
      %v4372 = vadd.f32 %v4364, %v4354
      %v4373 = vadd.f32 %v4365, %v4355
      %v4374 = vadd.f32 %v4366, %v4356
      %v4375 = vadd.f32 %v4367, %v4357
      %v4376 = vadd.f32 %v4368, %v4351
      %v4377 = vadd.f32 %v4369, %v4352
      %v4378 = vadd.f32 %v4370, %v4353
      %v4379 = vadd.f32 %v4371, %v4354
      %v4380 = vadd.f32 %v4372, %v4355
      %v4381 = vadd.f32 %v4373, %v4356
      %v4382 = vadd.f32 %v4374, %v4357
      %v4383 = vadd.f32 %v4375, %v4358
      %v4384 = vadd.f32 %v4376, %v4352
      %v4385 = vadd.f32 %v4377, %v4353
      %v4386 = vadd.f32 %v4378, %v4354
      %v4387 = vadd.f32 %v4379, %v4355
      %v4388 = vadd.f32 %v4380, %v4356
      %v4389 = vadd.f32 %v4381, %v4357
      %v4390 = vadd.f32 %v4382, %v4358
      %v4391 = vadd.f32 %v4383, %v4359
      %v4392 = vmul.f32 %v4384, 0.008
      %v4393 = vmul.f32 %v4385, 0.008
      %v4394 = vmul.f32 %v4386, 0.008
      %v4395 = vmul.f32 %v4387, 0.008
      %v4396 = vmul.f32 %v4388, 0.008
      %v4397 = vmul.f32 %v4389, 0.008
      %v4398 = vmul.f32 %v4390, 0.008
      %v4399 = vmul.f32 %v4391, 0.008
      %4408 = vrot.lane.b32.xlu0 %v4392, 126
      %v4409 = vpop.permute.xlu0 %4408
      %4410 = vrot.lane.b32.xlu0 %v4393, 126
      %v4411 = vpop.permute.xlu0 %4410
      %4412 = vrot.lane.b32.xlu0 %v4394, 126
      %v4413 = vpop.permute.xlu0 %4412
      %4414 = vrot.lane.b32.xlu0 %v4395, 126
      %v4415 = vpop.permute.xlu0 %4414
      %4416 = vrot.lane.b32.xlu0 %v4396, 126
      %v4417 = vpop.permute.xlu0 %4416
      %4418 = vrot.lane.b32.xlu0 %v4397, 126
      %v4419 = vpop.permute.xlu0 %4418
      %4420 = vrot.lane.b32.xlu0 %v4398, 126
      %v4421 = vpop.permute.xlu0 %4420
      %4422 = vrot.lane.b32.xlu0 %v4399, 126
      %v4423 = vpop.permute.xlu0 %4422
      %s4432 = scalar_lea.vmem %s150, 192
      %4433 = vst.msk [vmem:[%s4432] sm:$0xff] %vm2652, %v4409
      %4434 = vst.msk [vmem:[%s4432 + $0x8] sm:$0xff] %vm2652, %v4411
      %4435 = vst.msk [vmem:[%s4432 + $0x10] sm:$0xff] %vm2652, %v4413
      %4436 = vst.msk [vmem:[%s4432 + $0x18] sm:$0xff] %vm2652, %v4415
      %4437 = vst.msk [vmem:[%s4432 + $0x20] sm:$0xff] %vm2652, %v4417
      %4438 = vst.msk [vmem:[%s4432 + $0x28] sm:$0xff] %vm2652, %v4419
      %4439 = vst.msk [vmem:[%s4432 + $0x30] sm:$0xff] %vm2652, %v4421
      %4440 = vst.msk [vmem:[%s4432 + $0x38] sm:$0xff] %vm2652, %v4423
      %v4441 = vrot.slane %v4392, 6
      %v4442 = vrot.slane %v4393, 6
      %v4443 = vrot.slane %v4394, 6
      %v4444 = vrot.slane %v4395, 6
      %v4445 = vrot.slane %v4396, 6
      %v4446 = vrot.slane %v4397, 6
      %v4447 = vrot.slane %v4398, 6
      %v4448 = vrot.slane %v4399, 6
      %v4457 = vmin.f32 %v3526, %v4441
      %v4458 = vmin.f32 %v3527, %v4441
      %v4459 = vmin.f32 %v3528, %v4442
      %v4460 = vmin.f32 %v3529, %v4442
      %v4461 = vmin.f32 %v3530, %v4443
      %v4462 = vmin.f32 %v3531, %v4443
      %v4463 = vmin.f32 %v3532, %v4444
      %v4464 = vmin.f32 %v3533, %v4444
      %v4465 = vmin.f32 %v3534, %v4445
      %v4466 = vmin.f32 %v3535, %v4445
      %v4467 = vmin.f32 %v3536, %v4446
      %v4468 = vmin.f32 %v3537, %v4446
      %v4469 = vmin.f32 %v3538, %v4447
      %v4470 = vmin.f32 %v3539, %v4447
      %v4471 = vmin.f32 %v3540, %v4448
      %v4472 = vmin.f32 %v3541, %v4448
      %v4473 = vadd.f32 %v3542, %v4441
      %v4474 = vadd.f32 %v3543, %v4441
      %v4475 = vadd.f32 %v3544, %v4442
      %v4476 = vadd.f32 %v3545, %v4442
      %v4477 = vadd.f32 %v3546, %v4443
      %v4478 = vadd.f32 %v3547, %v4443
      %v4479 = vadd.f32 %v3548, %v4444
      %v4480 = vadd.f32 %v3549, %v4444
      %v4481 = vadd.f32 %v3550, %v4445
      %v4482 = vadd.f32 %v3551, %v4445
      %v4483 = vadd.f32 %v3552, %v4446
      %v4484 = vadd.f32 %v3553, %v4446
      %v4485 = vadd.f32 %v3554, %v4447
      %v4486 = vadd.f32 %v3555, %v4447
      %v4487 = vadd.f32 %v3556, %v4448
      %v4488 = vadd.f32 %v3557, %v4448
      %v4513 = vrot.slane %v332, 2
      %v4514 = vrot.slane %v333, 2
      %v4515 = vsel %vm1361, %v4513, %v4514
      %v4516 = vrot.slane %v334, 2
      %v4517 = vrot.slane %v335, 2
      %v4518 = vsel %vm1361, %v4516, %v4517
      %v4519 = vrot.slane %v336, 2
      %v4520 = vrot.slane %v337, 2
      %v4521 = vsel %vm1361, %v4519, %v4520
      %v4522 = vrot.slane %v338, 2
      %v4523 = vrot.slane %v339, 2
      %v4524 = vsel %vm1361, %v4522, %v4523
      %v4525 = vrot.slane %v340, 2
      %v4526 = vrot.slane %v341, 2
      %v4527 = vsel %vm1361, %v4525, %v4526
      %v4528 = vrot.slane %v342, 2
      %v4529 = vrot.slane %v343, 2
      %v4530 = vsel %vm1361, %v4528, %v4529
      %v4531 = vrot.slane %v344, 2
      %v4532 = vrot.slane %v345, 2
      %v4533 = vsel %vm1361, %v4531, %v4532
      %v4534 = vrot.slane %v346, 2
      %v4535 = vrot.slane %v347, 2
      %v4536 = vsel %vm1361, %v4534, %v4535
      %v4537 = vrot.slane %v348, 2
      %v4538 = vrot.slane %v349, 2
      %v4539 = vsel %vm1361, %v4537, %v4538
      %v4540 = vrot.slane %v350, 2
      %v4541 = vrot.slane %v351, 2
      %v4542 = vsel %vm1361, %v4540, %v4541
      %v4543 = vrot.slane %v352, 2
      %v4544 = vrot.slane %v353, 2
      %v4545 = vsel %vm1361, %v4543, %v4544
      %v4546 = vrot.slane %v354, 2
      %v4547 = vrot.slane %v355, 2
      %v4548 = vsel %vm1361, %v4546, %v4547
      %4549 = vrot.lane.b32.xlu0 %v4515, 2
      %v4550 = vpop.permute.xlu0 %4549
      %4551 = vrot.lane.b32.xlu0 %v4514, 2
      %v4552 = vpop.permute.xlu0 %4551
      %4553 = vrot.lane.b32.xlu0 %v4518, 2
      %v4554 = vpop.permute.xlu0 %4553
      %4555 = vrot.lane.b32.xlu0 %v4517, 2
      %v4556 = vpop.permute.xlu0 %4555
      %4557 = vrot.lane.b32.xlu0 %v4521, 2
      %v4558 = vpop.permute.xlu0 %4557
      %4559 = vrot.lane.b32.xlu0 %v4520, 2
      %v4560 = vpop.permute.xlu0 %4559
      %4561 = vrot.lane.b32.xlu0 %v4524, 2
      %v4562 = vpop.permute.xlu0 %4561
      %4563 = vrot.lane.b32.xlu0 %v4523, 2
      %v4564 = vpop.permute.xlu0 %4563
      %4565 = vrot.lane.b32.xlu0 %v4527, 2
      %v4566 = vpop.permute.xlu0 %4565
      %4567 = vrot.lane.b32.xlu0 %v4526, 2
      %v4568 = vpop.permute.xlu0 %4567
      %4569 = vrot.lane.b32.xlu0 %v4530, 2
      %v4570 = vpop.permute.xlu0 %4569
      %4571 = vrot.lane.b32.xlu0 %v4529, 2
      %v4572 = vpop.permute.xlu0 %4571
      %4573 = vrot.lane.b32.xlu0 %v4533, 2
      %v4574 = vpop.permute.xlu0 %4573
      %4575 = vrot.lane.b32.xlu0 %v4532, 2
      %v4576 = vpop.permute.xlu0 %4575
      %4577 = vrot.lane.b32.xlu0 %v4536, 2
      %v4578 = vpop.permute.xlu0 %4577
      %4579 = vrot.lane.b32.xlu0 %v4535, 2
      %v4580 = vpop.permute.xlu0 %4579
      %4581 = vrot.lane.b32.xlu0 %v4539, 2
      %v4582 = vpop.permute.xlu0 %4581
      %4583 = vrot.lane.b32.xlu0 %v4538, 2
      %v4584 = vpop.permute.xlu0 %4583
      %4585 = vrot.lane.b32.xlu0 %v4542, 2
      %v4586 = vpop.permute.xlu0 %4585
      %4587 = vrot.lane.b32.xlu0 %v4541, 2
      %v4588 = vpop.permute.xlu0 %4587
      %4589 = vrot.lane.b32.xlu0 %v4545, 2
      %v4590 = vpop.permute.xlu0 %4589
      %4591 = vrot.lane.b32.xlu0 %v4544, 2
      %v4592 = vpop.permute.xlu0 %4591
      %4593 = vrot.lane.b32.xlu0 %v4548, 2
      %v4594 = vpop.permute.xlu0 %4593
      %4595 = vrot.lane.b32.xlu0 %v4547, 2
      %v4596 = vpop.permute.xlu0 %4595
      %v4621 = vsub.f32 %v373, %v4550
      %v4622 = vsub.f32 %v374, %v4552
      %v4623 = vsub.f32 %v375, %v4554
      %v4624 = vsub.f32 %v376, %v4556
      %v4625 = vsub.f32 %v377, %v4558
      %v4626 = vsub.f32 %v378, %v4560
      %v4627 = vsub.f32 %v379, %v4562
      %v4628 = vsub.f32 %v380, %v4564
      %v4629 = vsub.f32 %v381, %v4566
      %v4630 = vsub.f32 %v382, %v4568
      %v4631 = vsub.f32 %v383, %v4570
      %v4632 = vsub.f32 %v384, %v4572
      %v4633 = vsub.f32 %v385, %v4574
      %v4634 = vsub.f32 %v386, %v4576
      %v4635 = vsub.f32 %v387, %v4578
      %v4636 = vsub.f32 %v388, %v4580
      %v4637 = vsub.f32 %v389, %v4582
      %v4638 = vsub.f32 %v390, %v4584
      %v4639 = vsub.f32 %v391, %v4586
      %v4640 = vsub.f32 %v392, %v4588
      %v4641 = vsub.f32 %v393, %v4590
      %v4642 = vsub.f32 %v394, %v4592
      %v4643 = vsub.f32 %v395, %v4594
      %v4644 = vsub.f32 %v396, %v4596
      %v4645 = vmul.f32 %v4621, %v4621
      %v4646 = vmul.f32 %v4622, %v4622
      %v4647 = vmul.f32 %v4623, %v4623
      %v4648 = vmul.f32 %v4624, %v4624
      %v4649 = vmul.f32 %v4625, %v4625
      %v4650 = vmul.f32 %v4626, %v4626
      %v4651 = vmul.f32 %v4627, %v4627
      %v4652 = vmul.f32 %v4628, %v4628
      %v4653 = vmul.f32 %v4629, %v4629
      %v4654 = vmul.f32 %v4630, %v4630
      %v4655 = vmul.f32 %v4631, %v4631
      %v4656 = vmul.f32 %v4632, %v4632
      %v4657 = vmul.f32 %v4633, %v4633
      %v4658 = vmul.f32 %v4634, %v4634
      %v4659 = vmul.f32 %v4635, %v4635
      %v4660 = vmul.f32 %v4636, %v4636
      %v4661 = vmul.f32 %v4637, %v4637
      %v4662 = vmul.f32 %v4638, %v4638
      %v4663 = vmul.f32 %v4639, %v4639
      %v4664 = vmul.f32 %v4640, %v4640
      %v4665 = vmul.f32 %v4641, %v4641
      %v4666 = vmul.f32 %v4642, %v4642
      %v4667 = vmul.f32 %v4643, %v4643
      %v4668 = vmul.f32 %v4644, %v4644
      %4693 = vrot.lane.b32.xlu0 %v4645, 127
      %v4694 = vpop.permute.xlu0 %4693
      %4695 = vrot.lane.b32.xlu0 %v4646, 127
      %v4696 = vpop.permute.xlu0 %4695
      %4697 = vrot.lane.b32.xlu0 %v4647, 127
      %v4698 = vpop.permute.xlu0 %4697
      %4699 = vrot.lane.b32.xlu0 %v4648, 127
      %v4700 = vpop.permute.xlu0 %4699
      %4701 = vrot.lane.b32.xlu0 %v4649, 127
      %v4702 = vpop.permute.xlu0 %4701
      %4703 = vrot.lane.b32.xlu0 %v4650, 127
      %v4704 = vpop.permute.xlu0 %4703
      %4705 = vrot.lane.b32.xlu0 %v4651, 127
      %v4706 = vpop.permute.xlu0 %4705
      %4707 = vrot.lane.b32.xlu0 %v4652, 127
      %v4708 = vpop.permute.xlu0 %4707
      %4709 = vrot.lane.b32.xlu0 %v4653, 127
      %v4710 = vpop.permute.xlu0 %4709
      %4711 = vrot.lane.b32.xlu0 %v4654, 127
      %v4712 = vpop.permute.xlu0 %4711
      %4713 = vrot.lane.b32.xlu0 %v4655, 127
      %v4714 = vpop.permute.xlu0 %4713
      %4715 = vrot.lane.b32.xlu0 %v4656, 127
      %v4716 = vpop.permute.xlu0 %4715
      %4717 = vrot.lane.b32.xlu0 %v4657, 127
      %v4718 = vpop.permute.xlu0 %4717
      %4719 = vrot.lane.b32.xlu0 %v4658, 127
      %v4720 = vpop.permute.xlu0 %4719
      %4721 = vrot.lane.b32.xlu0 %v4659, 127
      %v4722 = vpop.permute.xlu0 %4721
      %4723 = vrot.lane.b32.xlu0 %v4660, 127
      %v4724 = vpop.permute.xlu0 %4723
      %4725 = vrot.lane.b32.xlu0 %v4661, 127
      %v4726 = vpop.permute.xlu0 %4725
      %4727 = vrot.lane.b32.xlu0 %v4662, 127
      %v4728 = vpop.permute.xlu0 %4727
      %4729 = vrot.lane.b32.xlu0 %v4663, 127
      %v4730 = vpop.permute.xlu0 %4729
      %4731 = vrot.lane.b32.xlu0 %v4664, 127
      %v4732 = vpop.permute.xlu0 %4731
      %4733 = vrot.lane.b32.xlu0 %v4665, 127
      %v4734 = vpop.permute.xlu0 %4733
      %4735 = vrot.lane.b32.xlu0 %v4666, 127
      %v4736 = vpop.permute.xlu0 %4735
      %4737 = vrot.lane.b32.xlu0 %v4667, 127
      %v4738 = vpop.permute.xlu0 %4737
      %4739 = vrot.lane.b32.xlu0 %v4668, 127
      %v4740 = vpop.permute.xlu0 %4739
      %v4765 = vadd.f32 %v4645, %v4694
      %v4766 = vadd.f32 %v4646, %v4696
      %v4767 = vadd.f32 %v4647, %v4698
      %v4768 = vadd.f32 %v4648, %v4700
      %v4769 = vadd.f32 %v4649, %v4702
      %v4770 = vadd.f32 %v4650, %v4704
      %v4771 = vadd.f32 %v4651, %v4706
      %v4772 = vadd.f32 %v4652, %v4708
      %v4773 = vadd.f32 %v4653, %v4710
      %v4774 = vadd.f32 %v4654, %v4712
      %v4775 = vadd.f32 %v4655, %v4714
      %v4776 = vadd.f32 %v4656, %v4716
      %v4777 = vadd.f32 %v4657, %v4718
      %v4778 = vadd.f32 %v4658, %v4720
      %v4779 = vadd.f32 %v4659, %v4722
      %v4780 = vadd.f32 %v4660, %v4724
      %v4781 = vadd.f32 %v4661, %v4726
      %v4782 = vadd.f32 %v4662, %v4728
      %v4783 = vadd.f32 %v4663, %v4730
      %v4784 = vadd.f32 %v4664, %v4732
      %v4785 = vadd.f32 %v4665, %v4734
      %v4786 = vadd.f32 %v4666, %v4736
      %v4787 = vadd.f32 %v4667, %v4738
      %v4788 = vadd.f32 %v4668, %v4740
      %4789 = vrot.lane.b32.xlu0 %v4645, 126
      %v4790 = vpop.permute.xlu0 %4789
      %4791 = vrot.lane.b32.xlu0 %v4646, 126
      %v4792 = vpop.permute.xlu0 %4791
      %4793 = vrot.lane.b32.xlu0 %v4647, 126
      %v4794 = vpop.permute.xlu0 %4793
      %4795 = vrot.lane.b32.xlu0 %v4648, 126
      %v4796 = vpop.permute.xlu0 %4795
      %4797 = vrot.lane.b32.xlu0 %v4649, 126
      %v4798 = vpop.permute.xlu0 %4797
      %4799 = vrot.lane.b32.xlu0 %v4650, 126
      %v4800 = vpop.permute.xlu0 %4799
      %4801 = vrot.lane.b32.xlu0 %v4651, 126
      %v4802 = vpop.permute.xlu0 %4801
      %4803 = vrot.lane.b32.xlu0 %v4652, 126
      %v4804 = vpop.permute.xlu0 %4803
      %4805 = vrot.lane.b32.xlu0 %v4653, 126
      %v4806 = vpop.permute.xlu0 %4805
      %4807 = vrot.lane.b32.xlu0 %v4654, 126
      %v4808 = vpop.permute.xlu0 %4807
      %4809 = vrot.lane.b32.xlu0 %v4655, 126
      %v4810 = vpop.permute.xlu0 %4809
      %4811 = vrot.lane.b32.xlu0 %v4656, 126
      %v4812 = vpop.permute.xlu0 %4811
      %4813 = vrot.lane.b32.xlu0 %v4657, 126
      %v4814 = vpop.permute.xlu0 %4813
      %4815 = vrot.lane.b32.xlu0 %v4658, 126
      %v4816 = vpop.permute.xlu0 %4815
      %4817 = vrot.lane.b32.xlu0 %v4659, 126
      %v4818 = vpop.permute.xlu0 %4817
      %4819 = vrot.lane.b32.xlu0 %v4660, 126
      %v4820 = vpop.permute.xlu0 %4819
      %4821 = vrot.lane.b32.xlu0 %v4661, 126
      %v4822 = vpop.permute.xlu0 %4821
      %4823 = vrot.lane.b32.xlu0 %v4662, 126
      %v4824 = vpop.permute.xlu0 %4823
      %4825 = vrot.lane.b32.xlu0 %v4663, 126
      %v4826 = vpop.permute.xlu0 %4825
      %4827 = vrot.lane.b32.xlu0 %v4664, 126
      %v4828 = vpop.permute.xlu0 %4827
      %4829 = vrot.lane.b32.xlu0 %v4665, 126
      %v4830 = vpop.permute.xlu0 %4829
      %4831 = vrot.lane.b32.xlu0 %v4666, 126
      %v4832 = vpop.permute.xlu0 %4831
      %4833 = vrot.lane.b32.xlu0 %v4667, 126
      %v4834 = vpop.permute.xlu0 %4833
      %4835 = vrot.lane.b32.xlu0 %v4668, 126
      %v4836 = vpop.permute.xlu0 %4835
      %v4861 = vadd.f32 %v4765, %v4790
      %v4862 = vadd.f32 %v4766, %v4792
      %v4863 = vadd.f32 %v4767, %v4794
      %v4864 = vadd.f32 %v4768, %v4796
      %v4865 = vadd.f32 %v4769, %v4798
      %v4866 = vadd.f32 %v4770, %v4800
      %v4867 = vadd.f32 %v4771, %v4802
      %v4868 = vadd.f32 %v4772, %v4804
      %v4869 = vadd.f32 %v4773, %v4806
      %v4870 = vadd.f32 %v4774, %v4808
      %v4871 = vadd.f32 %v4775, %v4810
      %v4872 = vadd.f32 %v4776, %v4812
      %v4873 = vadd.f32 %v4777, %v4814
      %v4874 = vadd.f32 %v4778, %v4816
      %v4875 = vadd.f32 %v4779, %v4818
      %v4876 = vadd.f32 %v4780, %v4820
      %v4877 = vadd.f32 %v4781, %v4822
      %v4878 = vadd.f32 %v4782, %v4824
      %v4879 = vadd.f32 %v4783, %v4826
      %v4880 = vadd.f32 %v4784, %v4828
      %v4881 = vadd.f32 %v4785, %v4830
      %v4882 = vadd.f32 %v4786, %v4832
      %v4883 = vadd.f32 %v4787, %v4834
      %v4884 = vadd.f32 %v4788, %v4836
      %4885 = vrot.lane.b32.xlu0 %v4645, 125
      %v4886 = vpop.permute.xlu0 %4885
      %4887 = vrot.lane.b32.xlu0 %v4646, 125
      %v4888 = vpop.permute.xlu0 %4887
      %4889 = vrot.lane.b32.xlu0 %v4647, 125
      %v4890 = vpop.permute.xlu0 %4889
      %4891 = vrot.lane.b32.xlu0 %v4648, 125
      %v4892 = vpop.permute.xlu0 %4891
      %4893 = vrot.lane.b32.xlu0 %v4649, 125
      %v4894 = vpop.permute.xlu0 %4893
      %4895 = vrot.lane.b32.xlu0 %v4650, 125
      %v4896 = vpop.permute.xlu0 %4895
      %4897 = vrot.lane.b32.xlu0 %v4651, 125
      %v4898 = vpop.permute.xlu0 %4897
      %4899 = vrot.lane.b32.xlu0 %v4652, 125
      %v4900 = vpop.permute.xlu0 %4899
      %4901 = vrot.lane.b32.xlu0 %v4653, 125
      %v4902 = vpop.permute.xlu0 %4901
      %4903 = vrot.lane.b32.xlu0 %v4654, 125
      %v4904 = vpop.permute.xlu0 %4903
      %4905 = vrot.lane.b32.xlu0 %v4655, 125
      %v4906 = vpop.permute.xlu0 %4905
      %4907 = vrot.lane.b32.xlu0 %v4656, 125
      %v4908 = vpop.permute.xlu0 %4907
      %4909 = vrot.lane.b32.xlu0 %v4657, 125
      %v4910 = vpop.permute.xlu0 %4909
      %4911 = vrot.lane.b32.xlu0 %v4658, 125
      %v4912 = vpop.permute.xlu0 %4911
      %4913 = vrot.lane.b32.xlu0 %v4659, 125
      %v4914 = vpop.permute.xlu0 %4913
      %4915 = vrot.lane.b32.xlu0 %v4660, 125
      %v4916 = vpop.permute.xlu0 %4915
      %4917 = vrot.lane.b32.xlu0 %v4661, 125
      %v4918 = vpop.permute.xlu0 %4917
      %4919 = vrot.lane.b32.xlu0 %v4662, 125
      %v4920 = vpop.permute.xlu0 %4919
      %4921 = vrot.lane.b32.xlu0 %v4663, 125
      %v4922 = vpop.permute.xlu0 %4921
      %4923 = vrot.lane.b32.xlu0 %v4664, 125
      %v4924 = vpop.permute.xlu0 %4923
      %4925 = vrot.lane.b32.xlu0 %v4665, 125
      %v4926 = vpop.permute.xlu0 %4925
      %4927 = vrot.lane.b32.xlu0 %v4666, 125
      %v4928 = vpop.permute.xlu0 %4927
      %4929 = vrot.lane.b32.xlu0 %v4667, 125
      %v4930 = vpop.permute.xlu0 %4929
      %4931 = vrot.lane.b32.xlu0 %v4668, 125
      %v4932 = vpop.permute.xlu0 %4931
      %v4957 = vadd.f32 %v4861, %v4886
      %v4958 = vadd.f32 %v4862, %v4888
      %v4959 = vadd.f32 %v4863, %v4890
      %v4960 = vadd.f32 %v4864, %v4892
      %v4961 = vadd.f32 %v4865, %v4894
      %v4962 = vadd.f32 %v4866, %v4896
      %v4963 = vadd.f32 %v4867, %v4898
      %v4964 = vadd.f32 %v4868, %v4900
      %v4965 = vadd.f32 %v4869, %v4902
      %v4966 = vadd.f32 %v4870, %v4904
      %v4967 = vadd.f32 %v4871, %v4906
      %v4968 = vadd.f32 %v4872, %v4908
      %v4969 = vadd.f32 %v4873, %v4910
      %v4970 = vadd.f32 %v4874, %v4912
      %v4971 = vadd.f32 %v4875, %v4914
      %v4972 = vadd.f32 %v4876, %v4916
      %v4973 = vadd.f32 %v4877, %v4918
      %v4974 = vadd.f32 %v4878, %v4920
      %v4975 = vadd.f32 %v4879, %v4922
      %v4976 = vadd.f32 %v4880, %v4924
      %v4977 = vadd.f32 %v4881, %v4926
      %v4978 = vadd.f32 %v4882, %v4928
      %v4979 = vadd.f32 %v4883, %v4930
      %v4980 = vadd.f32 %v4884, %v4932
      %4981 = vrot.lane.b32.xlu0 %v4645, 124
      %v4982 = vpop.permute.xlu0 %4981
      %4983 = vrot.lane.b32.xlu0 %v4646, 124
      %v4984 = vpop.permute.xlu0 %4983
      %4985 = vrot.lane.b32.xlu0 %v4647, 124
      %v4986 = vpop.permute.xlu0 %4985
      %4987 = vrot.lane.b32.xlu0 %v4648, 124
      %v4988 = vpop.permute.xlu0 %4987
      %4989 = vrot.lane.b32.xlu0 %v4649, 124
      %v4990 = vpop.permute.xlu0 %4989
      %4991 = vrot.lane.b32.xlu0 %v4650, 124
      %v4992 = vpop.permute.xlu0 %4991
      %4993 = vrot.lane.b32.xlu0 %v4651, 124
      %v4994 = vpop.permute.xlu0 %4993
      %4995 = vrot.lane.b32.xlu0 %v4652, 124
      %v4996 = vpop.permute.xlu0 %4995
      %4997 = vrot.lane.b32.xlu0 %v4653, 124
      %v4998 = vpop.permute.xlu0 %4997
      %4999 = vrot.lane.b32.xlu0 %v4654, 124
      %v5000 = vpop.permute.xlu0 %4999
      %5001 = vrot.lane.b32.xlu0 %v4655, 124
      %v5002 = vpop.permute.xlu0 %5001
      %5003 = vrot.lane.b32.xlu0 %v4656, 124
      %v5004 = vpop.permute.xlu0 %5003
      %5005 = vrot.lane.b32.xlu0 %v4657, 124
      %v5006 = vpop.permute.xlu0 %5005
      %5007 = vrot.lane.b32.xlu0 %v4658, 124
      %v5008 = vpop.permute.xlu0 %5007
      %5009 = vrot.lane.b32.xlu0 %v4659, 124
      %v5010 = vpop.permute.xlu0 %5009
      %5011 = vrot.lane.b32.xlu0 %v4660, 124
      %v5012 = vpop.permute.xlu0 %5011
      %5013 = vrot.lane.b32.xlu0 %v4661, 124
      %v5014 = vpop.permute.xlu0 %5013
      %5015 = vrot.lane.b32.xlu0 %v4662, 124
      %v5016 = vpop.permute.xlu0 %5015
      %5017 = vrot.lane.b32.xlu0 %v4663, 124
      %v5018 = vpop.permute.xlu0 %5017
      %5019 = vrot.lane.b32.xlu0 %v4664, 124
      %v5020 = vpop.permute.xlu0 %5019
      %5021 = vrot.lane.b32.xlu0 %v4665, 124
      %v5022 = vpop.permute.xlu0 %5021
      %5023 = vrot.lane.b32.xlu0 %v4666, 124
      %v5024 = vpop.permute.xlu0 %5023
      %5025 = vrot.lane.b32.xlu0 %v4667, 124
      %v5026 = vpop.permute.xlu0 %5025
      %5027 = vrot.lane.b32.xlu0 %v4668, 124
      %v5028 = vpop.permute.xlu0 %5027
      %v5053 = vadd.f32 %v4957, %v4982
      %v5054 = vadd.f32 %v4958, %v4984
      %v5055 = vadd.f32 %v4959, %v4986
      %v5056 = vadd.f32 %v4960, %v4988
      %v5057 = vadd.f32 %v4961, %v4990
      %v5058 = vadd.f32 %v4962, %v4992
      %v5059 = vadd.f32 %v4963, %v4994
      %v5060 = vadd.f32 %v4964, %v4996
      %v5061 = vadd.f32 %v4965, %v4998
      %v5062 = vadd.f32 %v4966, %v5000
      %v5063 = vadd.f32 %v4967, %v5002
      %v5064 = vadd.f32 %v4968, %v5004
      %v5065 = vadd.f32 %v4969, %v5006
      %v5066 = vadd.f32 %v4970, %v5008
      %v5067 = vadd.f32 %v4971, %v5010
      %v5068 = vadd.f32 %v4972, %v5012
      %v5069 = vadd.f32 %v4973, %v5014
      %v5070 = vadd.f32 %v4974, %v5016
      %v5071 = vadd.f32 %v4975, %v5018
      %v5072 = vadd.f32 %v4976, %v5020
      %v5073 = vadd.f32 %v4977, %v5022
      %v5074 = vadd.f32 %v4978, %v5024
      %v5075 = vadd.f32 %v4979, %v5026
      %v5076 = vadd.f32 %v4980, %v5028
      %v5101 = vrot.slane %v5053, 1
      %v5102 = vrot.slane %v5054, 1
      %v5103 = vsel %vm1276, %v5101, %v5102
      %v5104 = vrot.slane %v5055, 1
      %v5105 = vrot.slane %v5056, 1
      %v5106 = vsel %vm1276, %v5104, %v5105
      %v5107 = vrot.slane %v5057, 1
      %v5108 = vrot.slane %v5058, 1
      %v5109 = vsel %vm1276, %v5107, %v5108
      %v5110 = vrot.slane %v5059, 1
      %v5111 = vrot.slane %v5060, 1
      %v5112 = vsel %vm1276, %v5110, %v5111
      %v5113 = vrot.slane %v5061, 1
      %v5114 = vrot.slane %v5062, 1
      %v5115 = vsel %vm1276, %v5113, %v5114
      %v5116 = vrot.slane %v5063, 1
      %v5117 = vrot.slane %v5064, 1
      %v5118 = vsel %vm1276, %v5116, %v5117
      %v5119 = vrot.slane %v5065, 1
      %v5120 = vrot.slane %v5066, 1
      %v5121 = vsel %vm1276, %v5119, %v5120
      %v5122 = vrot.slane %v5067, 1
      %v5123 = vrot.slane %v5068, 1
      %v5124 = vsel %vm1276, %v5122, %v5123
      %v5125 = vrot.slane %v5069, 1
      %v5126 = vrot.slane %v5070, 1
      %v5127 = vsel %vm1276, %v5125, %v5126
      %v5128 = vrot.slane %v5071, 1
      %v5129 = vrot.slane %v5072, 1
      %v5130 = vsel %vm1276, %v5128, %v5129
      %v5131 = vrot.slane %v5073, 1
      %v5132 = vrot.slane %v5074, 1
      %v5133 = vsel %vm1276, %v5131, %v5132
      %v5134 = vrot.slane %v5075, 1
      %v5135 = vrot.slane %v5076, 1
      %v5136 = vsel %vm1276, %v5134, %v5135
      %v5149 = vadd.f32 %v5053, %v5103
      %v5150 = vadd.f32 %v5055, %v5106
      %v5151 = vadd.f32 %v5057, %v5109
      %v5152 = vadd.f32 %v5059, %v5112
      %v5153 = vadd.f32 %v5061, %v5115
      %v5154 = vadd.f32 %v5063, %v5118
      %v5155 = vadd.f32 %v5065, %v5121
      %v5156 = vadd.f32 %v5067, %v5124
      %v5157 = vadd.f32 %v5069, %v5127
      %v5158 = vadd.f32 %v5071, %v5130
      %v5159 = vadd.f32 %v5073, %v5133
      %v5160 = vadd.f32 %v5075, %v5136
      %v5161 = vrot.slane %v5053, 2
      %v5162 = vrot.slane %v5054, 2
      %v5163 = vsel %vm1361, %v5161, %v5162
      %v5164 = vrot.slane %v5055, 2
      %v5165 = vrot.slane %v5056, 2
      %v5166 = vsel %vm1361, %v5164, %v5165
      %v5167 = vrot.slane %v5057, 2
      %v5168 = vrot.slane %v5058, 2
      %v5169 = vsel %vm1361, %v5167, %v5168
      %v5170 = vrot.slane %v5059, 2
      %v5171 = vrot.slane %v5060, 2
      %v5172 = vsel %vm1361, %v5170, %v5171
      %v5173 = vrot.slane %v5061, 2
      %v5174 = vrot.slane %v5062, 2
      %v5175 = vsel %vm1361, %v5173, %v5174
      %v5176 = vrot.slane %v5063, 2
      %v5177 = vrot.slane %v5064, 2
      %v5178 = vsel %vm1361, %v5176, %v5177
      %v5179 = vrot.slane %v5065, 2
      %v5180 = vrot.slane %v5066, 2
      %v5181 = vsel %vm1361, %v5179, %v5180
      %v5182 = vrot.slane %v5067, 2
      %v5183 = vrot.slane %v5068, 2
      %v5184 = vsel %vm1361, %v5182, %v5183
      %v5185 = vrot.slane %v5069, 2
      %v5186 = vrot.slane %v5070, 2
      %v5187 = vsel %vm1361, %v5185, %v5186
      %v5188 = vrot.slane %v5071, 2
      %v5189 = vrot.slane %v5072, 2
      %v5190 = vsel %vm1361, %v5188, %v5189
      %v5191 = vrot.slane %v5073, 2
      %v5192 = vrot.slane %v5074, 2
      %v5193 = vsel %vm1361, %v5191, %v5192
      %v5194 = vrot.slane %v5075, 2
      %v5195 = vrot.slane %v5076, 2
      %v5196 = vsel %vm1361, %v5194, %v5195
      %v5209 = vadd.f32 %v5149, %v5163
      %v5210 = vadd.f32 %v5150, %v5166
      %v5211 = vadd.f32 %v5151, %v5169
      %v5212 = vadd.f32 %v5152, %v5172
      %v5213 = vadd.f32 %v5153, %v5175
      %v5214 = vadd.f32 %v5154, %v5178
      %v5215 = vadd.f32 %v5155, %v5181
      %v5216 = vadd.f32 %v5156, %v5184
      %v5217 = vadd.f32 %v5157, %v5187
      %v5218 = vadd.f32 %v5158, %v5190
      %v5219 = vadd.f32 %v5159, %v5193
      %v5220 = vadd.f32 %v5160, %v5196
      %v5221 = vrot.slane %v5053, 3
      %v5222 = vrot.slane %v5054, 3
      %v5223 = vsel %vm1446, %v5221, %v5222
      %v5224 = vrot.slane %v5055, 3
      %v5225 = vrot.slane %v5056, 3
      %v5226 = vsel %vm1446, %v5224, %v5225
      %v5227 = vrot.slane %v5057, 3
      %v5228 = vrot.slane %v5058, 3
      %v5229 = vsel %vm1446, %v5227, %v5228
      %v5230 = vrot.slane %v5059, 3
      %v5231 = vrot.slane %v5060, 3
      %v5232 = vsel %vm1446, %v5230, %v5231
      %v5233 = vrot.slane %v5061, 3
      %v5234 = vrot.slane %v5062, 3
      %v5235 = vsel %vm1446, %v5233, %v5234
      %v5236 = vrot.slane %v5063, 3
      %v5237 = vrot.slane %v5064, 3
      %v5238 = vsel %vm1446, %v5236, %v5237
      %v5239 = vrot.slane %v5065, 3
      %v5240 = vrot.slane %v5066, 3
      %v5241 = vsel %vm1446, %v5239, %v5240
      %v5242 = vrot.slane %v5067, 3
      %v5243 = vrot.slane %v5068, 3
      %v5244 = vsel %vm1446, %v5242, %v5243
      %v5245 = vrot.slane %v5069, 3
      %v5246 = vrot.slane %v5070, 3
      %v5247 = vsel %vm1446, %v5245, %v5246
      %v5248 = vrot.slane %v5071, 3
      %v5249 = vrot.slane %v5072, 3
      %v5250 = vsel %vm1446, %v5248, %v5249
      %v5251 = vrot.slane %v5073, 3
      %v5252 = vrot.slane %v5074, 3
      %v5253 = vsel %vm1446, %v5251, %v5252
      %v5254 = vrot.slane %v5075, 3
      %v5255 = vrot.slane %v5076, 3
      %v5256 = vsel %vm1446, %v5254, %v5255
      %v5269 = vadd.f32 %v5209, %v5223
      %v5270 = vadd.f32 %v5210, %v5226
      %v5271 = vadd.f32 %v5211, %v5229
      %v5272 = vadd.f32 %v5212, %v5232
      %v5273 = vadd.f32 %v5213, %v5235
      %v5274 = vadd.f32 %v5214, %v5238
      %v5275 = vadd.f32 %v5215, %v5241
      %v5276 = vadd.f32 %v5216, %v5244
      %v5277 = vadd.f32 %v5217, %v5247
      %v5278 = vadd.f32 %v5218, %v5250
      %v5279 = vadd.f32 %v5219, %v5253
      %v5280 = vadd.f32 %v5220, %v5256
      %v5281 = vrot.slane %v5053, 4
      %v5282 = vrot.slane %v5054, 4
      %v5283 = vsel %vm626, %v5281, %v5282
      %v5284 = vrot.slane %v5055, 4
      %v5285 = vrot.slane %v5056, 4
      %v5286 = vsel %vm626, %v5284, %v5285
      %v5287 = vrot.slane %v5057, 4
      %v5288 = vrot.slane %v5058, 4
      %v5289 = vsel %vm626, %v5287, %v5288
      %v5290 = vrot.slane %v5059, 4
      %v5291 = vrot.slane %v5060, 4
      %v5292 = vsel %vm626, %v5290, %v5291
      %v5293 = vrot.slane %v5061, 4
      %v5294 = vrot.slane %v5062, 4
      %v5295 = vsel %vm626, %v5293, %v5294
      %v5296 = vrot.slane %v5063, 4
      %v5297 = vrot.slane %v5064, 4
      %v5298 = vsel %vm626, %v5296, %v5297
      %v5299 = vrot.slane %v5065, 4
      %v5300 = vrot.slane %v5066, 4
      %v5301 = vsel %vm626, %v5299, %v5300
      %v5302 = vrot.slane %v5067, 4
      %v5303 = vrot.slane %v5068, 4
      %v5304 = vsel %vm626, %v5302, %v5303
      %v5305 = vrot.slane %v5069, 4
      %v5306 = vrot.slane %v5070, 4
      %v5307 = vsel %vm626, %v5305, %v5306
      %v5308 = vrot.slane %v5071, 4
      %v5309 = vrot.slane %v5072, 4
      %v5310 = vsel %vm626, %v5308, %v5309
      %v5311 = vrot.slane %v5073, 4
      %v5312 = vrot.slane %v5074, 4
      %v5313 = vsel %vm626, %v5311, %v5312
      %v5314 = vrot.slane %v5075, 4
      %v5315 = vrot.slane %v5076, 4
      %v5316 = vsel %vm626, %v5314, %v5315
      %v5329 = vadd.f32 %v5269, %v5283
      %v5330 = vadd.f32 %v5270, %v5286
      %v5331 = vadd.f32 %v5271, %v5289
      %v5332 = vadd.f32 %v5272, %v5292
      %v5333 = vadd.f32 %v5273, %v5295
      %v5334 = vadd.f32 %v5274, %v5298
      %v5335 = vadd.f32 %v5275, %v5301
      %v5336 = vadd.f32 %v5276, %v5304
      %v5337 = vadd.f32 %v5277, %v5307
      %v5338 = vadd.f32 %v5278, %v5310
      %v5339 = vadd.f32 %v5279, %v5313
      %v5340 = vadd.f32 %v5280, %v5316
      %v5341 = vadd.f32 %v5329, %v5330
      %v5342 = vadd.f32 %v5330, %v5331
      %v5343 = vadd.f32 %v5331, %v5332
      %v5344 = vadd.f32 %v5332, %v5333
      %v5345 = vadd.f32 %v5333, %v5334
      %v5346 = vadd.f32 %v5334, %v5335
      %v5347 = vadd.f32 %v5335, %v5336
      %v5348 = vadd.f32 %v5336, %v5337
      %v5349 = vadd.f32 %v5341, %v5331
      %v5350 = vadd.f32 %v5342, %v5332
      %v5351 = vadd.f32 %v5343, %v5333
      %v5352 = vadd.f32 %v5344, %v5334
      %v5353 = vadd.f32 %v5345, %v5335
      %v5354 = vadd.f32 %v5346, %v5336
      %v5355 = vadd.f32 %v5347, %v5337
      %v5356 = vadd.f32 %v5348, %v5338
      %v5357 = vadd.f32 %v5349, %v5332
      %v5358 = vadd.f32 %v5350, %v5333
      %v5359 = vadd.f32 %v5351, %v5334
      %v5360 = vadd.f32 %v5352, %v5335
      %v5361 = vadd.f32 %v5353, %v5336
      %v5362 = vadd.f32 %v5354, %v5337
      %v5363 = vadd.f32 %v5355, %v5338
      %v5364 = vadd.f32 %v5356, %v5339
      %v5365 = vadd.f32 %v5357, %v5333
      %v5366 = vadd.f32 %v5358, %v5334
      %v5367 = vadd.f32 %v5359, %v5335
      %v5368 = vadd.f32 %v5360, %v5336
      %v5369 = vadd.f32 %v5361, %v5337
      %v5370 = vadd.f32 %v5362, %v5338
      %v5371 = vadd.f32 %v5363, %v5339
      %v5372 = vadd.f32 %v5364, %v5340
      %v5373 = vmul.f32 %v5365, 0.008
      %v5374 = vmul.f32 %v5366, 0.008
      %v5375 = vmul.f32 %v5367, 0.008
      %v5376 = vmul.f32 %v5368, 0.008
      %v5377 = vmul.f32 %v5369, 0.008
      %v5378 = vmul.f32 %v5370, 0.008
      %v5379 = vmul.f32 %v5371, 0.008
      %v5380 = vmul.f32 %v5372, 0.008
      %5389 = vrot.lane.b32.xlu0 %v5373, 126
      %v5390 = vpop.permute.xlu0 %5389
      %5391 = vrot.lane.b32.xlu0 %v5374, 126
      %v5392 = vpop.permute.xlu0 %5391
      %5393 = vrot.lane.b32.xlu0 %v5375, 126
      %v5394 = vpop.permute.xlu0 %5393
      %5395 = vrot.lane.b32.xlu0 %v5376, 126
      %v5396 = vpop.permute.xlu0 %5395
      %5397 = vrot.lane.b32.xlu0 %v5377, 126
      %v5398 = vpop.permute.xlu0 %5397
      %5399 = vrot.lane.b32.xlu0 %v5378, 126
      %v5400 = vpop.permute.xlu0 %5399
      %5401 = vrot.lane.b32.xlu0 %v5379, 126
      %v5402 = vpop.permute.xlu0 %5401
      %5403 = vrot.lane.b32.xlu0 %v5380, 126
      %v5404 = vpop.permute.xlu0 %5403
      %s5413 = scalar_lea.vmem %s150, 256
      %5414 = vst.msk [vmem:[%s5413] sm:$0xff] %vm2652, %v5390
      %5415 = vst.msk [vmem:[%s5413 + $0x8] sm:$0xff] %vm2652, %v5392
      %5416 = vst.msk [vmem:[%s5413 + $0x10] sm:$0xff] %vm2652, %v5394
      %5417 = vst.msk [vmem:[%s5413 + $0x18] sm:$0xff] %vm2652, %v5396
      %5418 = vst.msk [vmem:[%s5413 + $0x20] sm:$0xff] %vm2652, %v5398
      %5419 = vst.msk [vmem:[%s5413 + $0x28] sm:$0xff] %vm2652, %v5400
      %5420 = vst.msk [vmem:[%s5413 + $0x30] sm:$0xff] %vm2652, %v5402
      %5421 = vst.msk [vmem:[%s5413 + $0x38] sm:$0xff] %vm2652, %v5404
      %v5422 = vrot.slane %v5373, 6
      %v5423 = vrot.slane %v5374, 6
      %v5424 = vrot.slane %v5375, 6
      %v5425 = vrot.slane %v5376, 6
      %v5426 = vrot.slane %v5377, 6
      %v5427 = vrot.slane %v5378, 6
      %v5428 = vrot.slane %v5379, 6
      %v5429 = vrot.slane %v5380, 6
      %v5438 = vmin.f32 %v4457, %v5422
      %v5439 = vmin.f32 %v4458, %v5422
      %v5440 = vmin.f32 %v4459, %v5423
      %v5441 = vmin.f32 %v4460, %v5423
      %v5442 = vmin.f32 %v4461, %v5424
      %v5443 = vmin.f32 %v4462, %v5424
      %v5444 = vmin.f32 %v4463, %v5425
      %v5445 = vmin.f32 %v4464, %v5425
      %v5446 = vmin.f32 %v4465, %v5426
      %v5447 = vmin.f32 %v4466, %v5426
      %v5448 = vmin.f32 %v4467, %v5427
      %v5449 = vmin.f32 %v4468, %v5427
      %v5450 = vmin.f32 %v4469, %v5428
      %v5451 = vmin.f32 %v4470, %v5428
      %v5452 = vmin.f32 %v4471, %v5429
      %v5453 = vmin.f32 %v4472, %v5429
      %v5454 = vadd.f32 %v4473, %v5422
      %v5455 = vadd.f32 %v4474, %v5422
      %v5456 = vadd.f32 %v4475, %v5423
      %v5457 = vadd.f32 %v4476, %v5423
      %v5458 = vadd.f32 %v4477, %v5424
      %v5459 = vadd.f32 %v4478, %v5424
      %v5460 = vadd.f32 %v4479, %v5425
      %v5461 = vadd.f32 %v4480, %v5425
      %v5462 = vadd.f32 %v4481, %v5426
      %v5463 = vadd.f32 %v4482, %v5426
      %v5464 = vadd.f32 %v4483, %v5427
      %v5465 = vadd.f32 %v4484, %v5427
      %v5466 = vadd.f32 %v4485, %v5428
      %v5467 = vadd.f32 %v4486, %v5428
      %v5468 = vadd.f32 %v4487, %v5429
      %v5469 = vadd.f32 %v4488, %v5429
      %v5494 = vrot.slane %v566, 2
      %v5495 = vrot.slane %v567, 2
      %v5496 = vsel %vm1361, %v5494, %v5495
      %v5497 = vrot.slane %v568, 2
      %v5498 = vrot.slane %v569, 2
      %v5499 = vsel %vm1361, %v5497, %v5498
      %v5500 = vrot.slane %v570, 2
      %v5501 = vrot.slane %v571, 2
      %v5502 = vsel %vm1361, %v5500, %v5501
      %v5503 = vrot.slane %v572, 2
      %v5504 = vrot.slane %v573, 2
      %v5505 = vsel %vm1361, %v5503, %v5504
      %v5506 = vrot.slane %v574, 2
      %v5507 = vrot.slane %v575, 2
      %v5508 = vsel %vm1361, %v5506, %v5507
      %v5509 = vrot.slane %v576, 2
      %v5510 = vrot.slane %v577, 2
      %v5511 = vsel %vm1361, %v5509, %v5510
      %v5512 = vrot.slane %v578, 2
      %v5513 = vrot.slane %v579, 2
      %v5514 = vsel %vm1361, %v5512, %v5513
      %v5515 = vrot.slane %v580, 2
      %v5516 = vrot.slane %v581, 2
      %v5517 = vsel %vm1361, %v5515, %v5516
      %v5518 = vrot.slane %v582, 2
      %v5519 = vrot.slane %v583, 2
      %v5520 = vsel %vm1361, %v5518, %v5519
      %v5521 = vrot.slane %v584, 2
      %v5522 = vrot.slane %v585, 2
      %v5523 = vsel %vm1361, %v5521, %v5522
      %v5524 = vrot.slane %v586, 2
      %v5525 = vrot.slane %v587, 2
      %v5526 = vsel %vm1361, %v5524, %v5525
      %v5527 = vrot.slane %v588, 2
      %v5528 = vrot.slane %v589, 2
      %v5529 = vsel %vm1361, %v5527, %v5528
      %5530 = vrot.lane.b32.xlu0 %v5496, 2
      %v5531 = vpop.permute.xlu0 %5530
      %5532 = vrot.lane.b32.xlu0 %v5495, 2
      %v5533 = vpop.permute.xlu0 %5532
      %5534 = vrot.lane.b32.xlu0 %v5499, 2
      %v5535 = vpop.permute.xlu0 %5534
      %5536 = vrot.lane.b32.xlu0 %v5498, 2
      %v5537 = vpop.permute.xlu0 %5536
      %5538 = vrot.lane.b32.xlu0 %v5502, 2
      %v5539 = vpop.permute.xlu0 %5538
      %5540 = vrot.lane.b32.xlu0 %v5501, 2
      %v5541 = vpop.permute.xlu0 %5540
      %5542 = vrot.lane.b32.xlu0 %v5505, 2
      %v5543 = vpop.permute.xlu0 %5542
      %5544 = vrot.lane.b32.xlu0 %v5504, 2
      %v5545 = vpop.permute.xlu0 %5544
      %5546 = vrot.lane.b32.xlu0 %v5508, 2
      %v5547 = vpop.permute.xlu0 %5546
      %5548 = vrot.lane.b32.xlu0 %v5507, 2
      %v5549 = vpop.permute.xlu0 %5548
      %5550 = vrot.lane.b32.xlu0 %v5511, 2
      %v5551 = vpop.permute.xlu0 %5550
      %5552 = vrot.lane.b32.xlu0 %v5510, 2
      %v5553 = vpop.permute.xlu0 %5552
      %5554 = vrot.lane.b32.xlu0 %v5514, 2
      %v5555 = vpop.permute.xlu0 %5554
      %5556 = vrot.lane.b32.xlu0 %v5513, 2
      %v5557 = vpop.permute.xlu0 %5556
      %5558 = vrot.lane.b32.xlu0 %v5517, 2
      %v5559 = vpop.permute.xlu0 %5558
      %5560 = vrot.lane.b32.xlu0 %v5516, 2
      %v5561 = vpop.permute.xlu0 %5560
      %5562 = vrot.lane.b32.xlu0 %v5520, 2
      %v5563 = vpop.permute.xlu0 %5562
      %5564 = vrot.lane.b32.xlu0 %v5519, 2
      %v5565 = vpop.permute.xlu0 %5564
      %5566 = vrot.lane.b32.xlu0 %v5523, 2
      %v5567 = vpop.permute.xlu0 %5566
      %5568 = vrot.lane.b32.xlu0 %v5522, 2
      %v5569 = vpop.permute.xlu0 %5568
      %5570 = vrot.lane.b32.xlu0 %v5526, 2
      %v5571 = vpop.permute.xlu0 %5570
      %5572 = vrot.lane.b32.xlu0 %v5525, 2
      %v5573 = vpop.permute.xlu0 %5572
      %5574 = vrot.lane.b32.xlu0 %v5529, 2
      %v5575 = vpop.permute.xlu0 %5574
      %5576 = vrot.lane.b32.xlu0 %v5528, 2
      %v5577 = vpop.permute.xlu0 %5576
      %v5602 = vsub.f32 %v687, %v5531
      %v5603 = vsub.f32 %v688, %v5533
      %v5604 = vsub.f32 %v689, %v5535
      %v5605 = vsub.f32 %v690, %v5537
      %v5606 = vsub.f32 %v691, %v5539
      %v5607 = vsub.f32 %v692, %v5541
      %v5608 = vsub.f32 %v693, %v5543
      %v5609 = vsub.f32 %v694, %v5545
      %v5610 = vsub.f32 %v695, %v5547
      %v5611 = vsub.f32 %v696, %v5549
      %v5612 = vsub.f32 %v697, %v5551
      %v5613 = vsub.f32 %v698, %v5553
      %v5614 = vsub.f32 %v699, %v5555
      %v5615 = vsub.f32 %v700, %v5557
      %v5616 = vsub.f32 %v701, %v5559
      %v5617 = vsub.f32 %v702, %v5561
      %v5618 = vsub.f32 %v703, %v5563
      %v5619 = vsub.f32 %v704, %v5565
      %v5620 = vsub.f32 %v705, %v5567
      %v5621 = vsub.f32 %v706, %v5569
      %v5622 = vsub.f32 %v707, %v5571
      %v5623 = vsub.f32 %v708, %v5573
      %v5624 = vsub.f32 %v709, %v5575
      %v5625 = vsub.f32 %v710, %v5577
      %v5626 = vmul.f32 %v5602, %v5602
      %v5627 = vmul.f32 %v5603, %v5603
      %v5628 = vmul.f32 %v5604, %v5604
      %v5629 = vmul.f32 %v5605, %v5605
      %v5630 = vmul.f32 %v5606, %v5606
      %v5631 = vmul.f32 %v5607, %v5607
      %v5632 = vmul.f32 %v5608, %v5608
      %v5633 = vmul.f32 %v5609, %v5609
      %v5634 = vmul.f32 %v5610, %v5610
      %v5635 = vmul.f32 %v5611, %v5611
      %v5636 = vmul.f32 %v5612, %v5612
      %v5637 = vmul.f32 %v5613, %v5613
      %v5638 = vmul.f32 %v5614, %v5614
      %v5639 = vmul.f32 %v5615, %v5615
      %v5640 = vmul.f32 %v5616, %v5616
      %v5641 = vmul.f32 %v5617, %v5617
      %v5642 = vmul.f32 %v5618, %v5618
      %v5643 = vmul.f32 %v5619, %v5619
      %v5644 = vmul.f32 %v5620, %v5620
      %v5645 = vmul.f32 %v5621, %v5621
      %v5646 = vmul.f32 %v5622, %v5622
      %v5647 = vmul.f32 %v5623, %v5623
      %v5648 = vmul.f32 %v5624, %v5624
      %v5649 = vmul.f32 %v5625, %v5625
      %5674 = vrot.lane.b32.xlu0 %v5626, 127
      %v5675 = vpop.permute.xlu0 %5674
      %5676 = vrot.lane.b32.xlu0 %v5627, 127
      %v5677 = vpop.permute.xlu0 %5676
      %5678 = vrot.lane.b32.xlu0 %v5628, 127
      %v5679 = vpop.permute.xlu0 %5678
      %5680 = vrot.lane.b32.xlu0 %v5629, 127
      %v5681 = vpop.permute.xlu0 %5680
      %5682 = vrot.lane.b32.xlu0 %v5630, 127
      %v5683 = vpop.permute.xlu0 %5682
      %5684 = vrot.lane.b32.xlu0 %v5631, 127
      %v5685 = vpop.permute.xlu0 %5684
      %5686 = vrot.lane.b32.xlu0 %v5632, 127
      %v5687 = vpop.permute.xlu0 %5686
      %5688 = vrot.lane.b32.xlu0 %v5633, 127
      %v5689 = vpop.permute.xlu0 %5688
      %5690 = vrot.lane.b32.xlu0 %v5634, 127
      %v5691 = vpop.permute.xlu0 %5690
      %5692 = vrot.lane.b32.xlu0 %v5635, 127
      %v5693 = vpop.permute.xlu0 %5692
      %5694 = vrot.lane.b32.xlu0 %v5636, 127
      %v5695 = vpop.permute.xlu0 %5694
      %5696 = vrot.lane.b32.xlu0 %v5637, 127
      %v5697 = vpop.permute.xlu0 %5696
      %5698 = vrot.lane.b32.xlu0 %v5638, 127
      %v5699 = vpop.permute.xlu0 %5698
      %5700 = vrot.lane.b32.xlu0 %v5639, 127
      %v5701 = vpop.permute.xlu0 %5700
      %5702 = vrot.lane.b32.xlu0 %v5640, 127
      %v5703 = vpop.permute.xlu0 %5702
      %5704 = vrot.lane.b32.xlu0 %v5641, 127
      %v5705 = vpop.permute.xlu0 %5704
      %5706 = vrot.lane.b32.xlu0 %v5642, 127
      %v5707 = vpop.permute.xlu0 %5706
      %5708 = vrot.lane.b32.xlu0 %v5643, 127
      %v5709 = vpop.permute.xlu0 %5708
      %5710 = vrot.lane.b32.xlu0 %v5644, 127
      %v5711 = vpop.permute.xlu0 %5710
      %5712 = vrot.lane.b32.xlu0 %v5645, 127
      %v5713 = vpop.permute.xlu0 %5712
      %5714 = vrot.lane.b32.xlu0 %v5646, 127
      %v5715 = vpop.permute.xlu0 %5714
      %5716 = vrot.lane.b32.xlu0 %v5647, 127
      %v5717 = vpop.permute.xlu0 %5716
      %5718 = vrot.lane.b32.xlu0 %v5648, 127
      %v5719 = vpop.permute.xlu0 %5718
      %5720 = vrot.lane.b32.xlu0 %v5649, 127
      %v5721 = vpop.permute.xlu0 %5720
      %v5746 = vadd.f32 %v5626, %v5675
      %v5747 = vadd.f32 %v5627, %v5677
      %v5748 = vadd.f32 %v5628, %v5679
      %v5749 = vadd.f32 %v5629, %v5681
      %v5750 = vadd.f32 %v5630, %v5683
      %v5751 = vadd.f32 %v5631, %v5685
      %v5752 = vadd.f32 %v5632, %v5687
      %v5753 = vadd.f32 %v5633, %v5689
      %v5754 = vadd.f32 %v5634, %v5691
      %v5755 = vadd.f32 %v5635, %v5693
      %v5756 = vadd.f32 %v5636, %v5695
      %v5757 = vadd.f32 %v5637, %v5697
      %v5758 = vadd.f32 %v5638, %v5699
      %v5759 = vadd.f32 %v5639, %v5701
      %v5760 = vadd.f32 %v5640, %v5703
      %v5761 = vadd.f32 %v5641, %v5705
      %v5762 = vadd.f32 %v5642, %v5707
      %v5763 = vadd.f32 %v5643, %v5709
      %v5764 = vadd.f32 %v5644, %v5711
      %v5765 = vadd.f32 %v5645, %v5713
      %v5766 = vadd.f32 %v5646, %v5715
      %v5767 = vadd.f32 %v5647, %v5717
      %v5768 = vadd.f32 %v5648, %v5719
      %v5769 = vadd.f32 %v5649, %v5721
      %5770 = vrot.lane.b32.xlu0 %v5626, 126
      %v5771 = vpop.permute.xlu0 %5770
      %5772 = vrot.lane.b32.xlu0 %v5627, 126
      %v5773 = vpop.permute.xlu0 %5772
      %5774 = vrot.lane.b32.xlu0 %v5628, 126
      %v5775 = vpop.permute.xlu0 %5774
      %5776 = vrot.lane.b32.xlu0 %v5629, 126
      %v5777 = vpop.permute.xlu0 %5776
      %5778 = vrot.lane.b32.xlu0 %v5630, 126
      %v5779 = vpop.permute.xlu0 %5778
      %5780 = vrot.lane.b32.xlu0 %v5631, 126
      %v5781 = vpop.permute.xlu0 %5780
      %5782 = vrot.lane.b32.xlu0 %v5632, 126
      %v5783 = vpop.permute.xlu0 %5782
      %5784 = vrot.lane.b32.xlu0 %v5633, 126
      %v5785 = vpop.permute.xlu0 %5784
      %5786 = vrot.lane.b32.xlu0 %v5634, 126
      %v5787 = vpop.permute.xlu0 %5786
      %5788 = vrot.lane.b32.xlu0 %v5635, 126
      %v5789 = vpop.permute.xlu0 %5788
      %5790 = vrot.lane.b32.xlu0 %v5636, 126
      %v5791 = vpop.permute.xlu0 %5790
      %5792 = vrot.lane.b32.xlu0 %v5637, 126
      %v5793 = vpop.permute.xlu0 %5792
      %5794 = vrot.lane.b32.xlu0 %v5638, 126
      %v5795 = vpop.permute.xlu0 %5794
      %5796 = vrot.lane.b32.xlu0 %v5639, 126
      %v5797 = vpop.permute.xlu0 %5796
      %5798 = vrot.lane.b32.xlu0 %v5640, 126
      %v5799 = vpop.permute.xlu0 %5798
      %5800 = vrot.lane.b32.xlu0 %v5641, 126
      %v5801 = vpop.permute.xlu0 %5800
      %5802 = vrot.lane.b32.xlu0 %v5642, 126
      %v5803 = vpop.permute.xlu0 %5802
      %5804 = vrot.lane.b32.xlu0 %v5643, 126
      %v5805 = vpop.permute.xlu0 %5804
      %5806 = vrot.lane.b32.xlu0 %v5644, 126
      %v5807 = vpop.permute.xlu0 %5806
      %5808 = vrot.lane.b32.xlu0 %v5645, 126
      %v5809 = vpop.permute.xlu0 %5808
      %5810 = vrot.lane.b32.xlu0 %v5646, 126
      %v5811 = vpop.permute.xlu0 %5810
      %5812 = vrot.lane.b32.xlu0 %v5647, 126
      %v5813 = vpop.permute.xlu0 %5812
      %5814 = vrot.lane.b32.xlu0 %v5648, 126
      %v5815 = vpop.permute.xlu0 %5814
      %5816 = vrot.lane.b32.xlu0 %v5649, 126
      %v5817 = vpop.permute.xlu0 %5816
      %v5842 = vadd.f32 %v5746, %v5771
      %v5843 = vadd.f32 %v5747, %v5773
      %v5844 = vadd.f32 %v5748, %v5775
      %v5845 = vadd.f32 %v5749, %v5777
      %v5846 = vadd.f32 %v5750, %v5779
      %v5847 = vadd.f32 %v5751, %v5781
      %v5848 = vadd.f32 %v5752, %v5783
      %v5849 = vadd.f32 %v5753, %v5785
      %v5850 = vadd.f32 %v5754, %v5787
      %v5851 = vadd.f32 %v5755, %v5789
      %v5852 = vadd.f32 %v5756, %v5791
      %v5853 = vadd.f32 %v5757, %v5793
      %v5854 = vadd.f32 %v5758, %v5795
      %v5855 = vadd.f32 %v5759, %v5797
      %v5856 = vadd.f32 %v5760, %v5799
      %v5857 = vadd.f32 %v5761, %v5801
      %v5858 = vadd.f32 %v5762, %v5803
      %v5859 = vadd.f32 %v5763, %v5805
      %v5860 = vadd.f32 %v5764, %v5807
      %v5861 = vadd.f32 %v5765, %v5809
      %v5862 = vadd.f32 %v5766, %v5811
      %v5863 = vadd.f32 %v5767, %v5813
      %v5864 = vadd.f32 %v5768, %v5815
      %v5865 = vadd.f32 %v5769, %v5817
      %5866 = vrot.lane.b32.xlu0 %v5626, 125
      %v5867 = vpop.permute.xlu0 %5866
      %5868 = vrot.lane.b32.xlu0 %v5627, 125
      %v5869 = vpop.permute.xlu0 %5868
      %5870 = vrot.lane.b32.xlu0 %v5628, 125
      %v5871 = vpop.permute.xlu0 %5870
      %5872 = vrot.lane.b32.xlu0 %v5629, 125
      %v5873 = vpop.permute.xlu0 %5872
      %5874 = vrot.lane.b32.xlu0 %v5630, 125
      %v5875 = vpop.permute.xlu0 %5874
      %5876 = vrot.lane.b32.xlu0 %v5631, 125
      %v5877 = vpop.permute.xlu0 %5876
      %5878 = vrot.lane.b32.xlu0 %v5632, 125
      %v5879 = vpop.permute.xlu0 %5878
      %5880 = vrot.lane.b32.xlu0 %v5633, 125
      %v5881 = vpop.permute.xlu0 %5880
      %5882 = vrot.lane.b32.xlu0 %v5634, 125
      %v5883 = vpop.permute.xlu0 %5882
      %5884 = vrot.lane.b32.xlu0 %v5635, 125
      %v5885 = vpop.permute.xlu0 %5884
      %5886 = vrot.lane.b32.xlu0 %v5636, 125
      %v5887 = vpop.permute.xlu0 %5886
      %5888 = vrot.lane.b32.xlu0 %v5637, 125
      %v5889 = vpop.permute.xlu0 %5888
      %5890 = vrot.lane.b32.xlu0 %v5638, 125
      %v5891 = vpop.permute.xlu0 %5890
      %5892 = vrot.lane.b32.xlu0 %v5639, 125
      %v5893 = vpop.permute.xlu0 %5892
      %5894 = vrot.lane.b32.xlu0 %v5640, 125
      %v5895 = vpop.permute.xlu0 %5894
      %5896 = vrot.lane.b32.xlu0 %v5641, 125
      %v5897 = vpop.permute.xlu0 %5896
      %5898 = vrot.lane.b32.xlu0 %v5642, 125
      %v5899 = vpop.permute.xlu0 %5898
      %5900 = vrot.lane.b32.xlu0 %v5643, 125
      %v5901 = vpop.permute.xlu0 %5900
      %5902 = vrot.lane.b32.xlu0 %v5644, 125
      %v5903 = vpop.permute.xlu0 %5902
      %5904 = vrot.lane.b32.xlu0 %v5645, 125
      %v5905 = vpop.permute.xlu0 %5904
      %5906 = vrot.lane.b32.xlu0 %v5646, 125
      %v5907 = vpop.permute.xlu0 %5906
      %5908 = vrot.lane.b32.xlu0 %v5647, 125
      %v5909 = vpop.permute.xlu0 %5908
      %5910 = vrot.lane.b32.xlu0 %v5648, 125
      %v5911 = vpop.permute.xlu0 %5910
      %5912 = vrot.lane.b32.xlu0 %v5649, 125
      %v5913 = vpop.permute.xlu0 %5912
      %v5938 = vadd.f32 %v5842, %v5867
      %v5939 = vadd.f32 %v5843, %v5869
      %v5940 = vadd.f32 %v5844, %v5871
      %v5941 = vadd.f32 %v5845, %v5873
      %v5942 = vadd.f32 %v5846, %v5875
      %v5943 = vadd.f32 %v5847, %v5877
      %v5944 = vadd.f32 %v5848, %v5879
      %v5945 = vadd.f32 %v5849, %v5881
      %v5946 = vadd.f32 %v5850, %v5883
      %v5947 = vadd.f32 %v5851, %v5885
      %v5948 = vadd.f32 %v5852, %v5887
      %v5949 = vadd.f32 %v5853, %v5889
      %v5950 = vadd.f32 %v5854, %v5891
      %v5951 = vadd.f32 %v5855, %v5893
      %v5952 = vadd.f32 %v5856, %v5895
      %v5953 = vadd.f32 %v5857, %v5897
      %v5954 = vadd.f32 %v5858, %v5899
      %v5955 = vadd.f32 %v5859, %v5901
      %v5956 = vadd.f32 %v5860, %v5903
      %v5957 = vadd.f32 %v5861, %v5905
      %v5958 = vadd.f32 %v5862, %v5907
      %v5959 = vadd.f32 %v5863, %v5909
      %v5960 = vadd.f32 %v5864, %v5911
      %v5961 = vadd.f32 %v5865, %v5913
      %5962 = vrot.lane.b32.xlu0 %v5626, 124
      %v5963 = vpop.permute.xlu0 %5962
      %5964 = vrot.lane.b32.xlu0 %v5627, 124
      %v5965 = vpop.permute.xlu0 %5964
      %5966 = vrot.lane.b32.xlu0 %v5628, 124
      %v5967 = vpop.permute.xlu0 %5966
      %5968 = vrot.lane.b32.xlu0 %v5629, 124
      %v5969 = vpop.permute.xlu0 %5968
      %5970 = vrot.lane.b32.xlu0 %v5630, 124
      %v5971 = vpop.permute.xlu0 %5970
      %5972 = vrot.lane.b32.xlu0 %v5631, 124
      %v5973 = vpop.permute.xlu0 %5972
      %5974 = vrot.lane.b32.xlu0 %v5632, 124
      %v5975 = vpop.permute.xlu0 %5974
      %5976 = vrot.lane.b32.xlu0 %v5633, 124
      %v5977 = vpop.permute.xlu0 %5976
      %5978 = vrot.lane.b32.xlu0 %v5634, 124
      %v5979 = vpop.permute.xlu0 %5978
      %5980 = vrot.lane.b32.xlu0 %v5635, 124
      %v5981 = vpop.permute.xlu0 %5980
      %5982 = vrot.lane.b32.xlu0 %v5636, 124
      %v5983 = vpop.permute.xlu0 %5982
      %5984 = vrot.lane.b32.xlu0 %v5637, 124
      %v5985 = vpop.permute.xlu0 %5984
      %5986 = vrot.lane.b32.xlu0 %v5638, 124
      %v5987 = vpop.permute.xlu0 %5986
      %5988 = vrot.lane.b32.xlu0 %v5639, 124
      %v5989 = vpop.permute.xlu0 %5988
      %5990 = vrot.lane.b32.xlu0 %v5640, 124
      %v5991 = vpop.permute.xlu0 %5990
      %5992 = vrot.lane.b32.xlu0 %v5641, 124
      %v5993 = vpop.permute.xlu0 %5992
      %5994 = vrot.lane.b32.xlu0 %v5642, 124
      %v5995 = vpop.permute.xlu0 %5994
      %5996 = vrot.lane.b32.xlu0 %v5643, 124
      %v5997 = vpop.permute.xlu0 %5996
      %5998 = vrot.lane.b32.xlu0 %v5644, 124
      %v5999 = vpop.permute.xlu0 %5998
      %6000 = vrot.lane.b32.xlu0 %v5645, 124
      %v6001 = vpop.permute.xlu0 %6000
      %6002 = vrot.lane.b32.xlu0 %v5646, 124
      %v6003 = vpop.permute.xlu0 %6002
      %6004 = vrot.lane.b32.xlu0 %v5647, 124
      %v6005 = vpop.permute.xlu0 %6004
      %6006 = vrot.lane.b32.xlu0 %v5648, 124
      %v6007 = vpop.permute.xlu0 %6006
      %6008 = vrot.lane.b32.xlu0 %v5649, 124
      %v6009 = vpop.permute.xlu0 %6008
      %v6034 = vadd.f32 %v5938, %v5963
      %v6035 = vadd.f32 %v5939, %v5965
      %v6036 = vadd.f32 %v5940, %v5967
      %v6037 = vadd.f32 %v5941, %v5969
      %v6038 = vadd.f32 %v5942, %v5971
      %v6039 = vadd.f32 %v5943, %v5973
      %v6040 = vadd.f32 %v5944, %v5975
      %v6041 = vadd.f32 %v5945, %v5977
      %v6042 = vadd.f32 %v5946, %v5979
      %v6043 = vadd.f32 %v5947, %v5981
      %v6044 = vadd.f32 %v5948, %v5983
      %v6045 = vadd.f32 %v5949, %v5985
      %v6046 = vadd.f32 %v5950, %v5987
      %v6047 = vadd.f32 %v5951, %v5989
      %v6048 = vadd.f32 %v5952, %v5991
      %v6049 = vadd.f32 %v5953, %v5993
      %v6050 = vadd.f32 %v5954, %v5995
      %v6051 = vadd.f32 %v5955, %v5997
      %v6052 = vadd.f32 %v5956, %v5999
      %v6053 = vadd.f32 %v5957, %v6001
      %v6054 = vadd.f32 %v5958, %v6003
      %v6055 = vadd.f32 %v5959, %v6005
      %v6056 = vadd.f32 %v5960, %v6007
      %v6057 = vadd.f32 %v5961, %v6009
      %v6082 = vrot.slane %v6034, 1
      %v6083 = vrot.slane %v6035, 1
      %v6084 = vsel %vm1276, %v6082, %v6083
      %v6085 = vrot.slane %v6036, 1
      %v6086 = vrot.slane %v6037, 1
      %v6087 = vsel %vm1276, %v6085, %v6086
      %v6088 = vrot.slane %v6038, 1
      %v6089 = vrot.slane %v6039, 1
      %v6090 = vsel %vm1276, %v6088, %v6089
      %v6091 = vrot.slane %v6040, 1
      %v6092 = vrot.slane %v6041, 1
      %v6093 = vsel %vm1276, %v6091, %v6092
      %v6094 = vrot.slane %v6042, 1
      %v6095 = vrot.slane %v6043, 1
      %v6096 = vsel %vm1276, %v6094, %v6095
      %v6097 = vrot.slane %v6044, 1
      %v6098 = vrot.slane %v6045, 1
      %v6099 = vsel %vm1276, %v6097, %v6098
      %v6100 = vrot.slane %v6046, 1
      %v6101 = vrot.slane %v6047, 1
      %v6102 = vsel %vm1276, %v6100, %v6101
      %v6103 = vrot.slane %v6048, 1
      %v6104 = vrot.slane %v6049, 1
      %v6105 = vsel %vm1276, %v6103, %v6104
      %v6106 = vrot.slane %v6050, 1
      %v6107 = vrot.slane %v6051, 1
      %v6108 = vsel %vm1276, %v6106, %v6107
      %v6109 = vrot.slane %v6052, 1
      %v6110 = vrot.slane %v6053, 1
      %v6111 = vsel %vm1276, %v6109, %v6110
      %v6112 = vrot.slane %v6054, 1
      %v6113 = vrot.slane %v6055, 1
      %v6114 = vsel %vm1276, %v6112, %v6113
      %v6115 = vrot.slane %v6056, 1
      %v6116 = vrot.slane %v6057, 1
      %v6117 = vsel %vm1276, %v6115, %v6116
      %v6130 = vadd.f32 %v6034, %v6084
      %v6131 = vadd.f32 %v6036, %v6087
      %v6132 = vadd.f32 %v6038, %v6090
      %v6133 = vadd.f32 %v6040, %v6093
      %v6134 = vadd.f32 %v6042, %v6096
      %v6135 = vadd.f32 %v6044, %v6099
      %v6136 = vadd.f32 %v6046, %v6102
      %v6137 = vadd.f32 %v6048, %v6105
      %v6138 = vadd.f32 %v6050, %v6108
      %v6139 = vadd.f32 %v6052, %v6111
      %v6140 = vadd.f32 %v6054, %v6114
      %v6141 = vadd.f32 %v6056, %v6117
      %v6142 = vrot.slane %v6034, 2
      %v6143 = vrot.slane %v6035, 2
      %v6144 = vsel %vm1361, %v6142, %v6143
      %v6145 = vrot.slane %v6036, 2
      %v6146 = vrot.slane %v6037, 2
      %v6147 = vsel %vm1361, %v6145, %v6146
      %v6148 = vrot.slane %v6038, 2
      %v6149 = vrot.slane %v6039, 2
      %v6150 = vsel %vm1361, %v6148, %v6149
      %v6151 = vrot.slane %v6040, 2
      %v6152 = vrot.slane %v6041, 2
      %v6153 = vsel %vm1361, %v6151, %v6152
      %v6154 = vrot.slane %v6042, 2
      %v6155 = vrot.slane %v6043, 2
      %v6156 = vsel %vm1361, %v6154, %v6155
      %v6157 = vrot.slane %v6044, 2
      %v6158 = vrot.slane %v6045, 2
      %v6159 = vsel %vm1361, %v6157, %v6158
      %v6160 = vrot.slane %v6046, 2
      %v6161 = vrot.slane %v6047, 2
      %v6162 = vsel %vm1361, %v6160, %v6161
      %v6163 = vrot.slane %v6048, 2
      %v6164 = vrot.slane %v6049, 2
      %v6165 = vsel %vm1361, %v6163, %v6164
      %v6166 = vrot.slane %v6050, 2
      %v6167 = vrot.slane %v6051, 2
      %v6168 = vsel %vm1361, %v6166, %v6167
      %v6169 = vrot.slane %v6052, 2
      %v6170 = vrot.slane %v6053, 2
      %v6171 = vsel %vm1361, %v6169, %v6170
      %v6172 = vrot.slane %v6054, 2
      %v6173 = vrot.slane %v6055, 2
      %v6174 = vsel %vm1361, %v6172, %v6173
      %v6175 = vrot.slane %v6056, 2
      %v6176 = vrot.slane %v6057, 2
      %v6177 = vsel %vm1361, %v6175, %v6176
      %v6190 = vadd.f32 %v6130, %v6144
      %v6191 = vadd.f32 %v6131, %v6147
      %v6192 = vadd.f32 %v6132, %v6150
      %v6193 = vadd.f32 %v6133, %v6153
      %v6194 = vadd.f32 %v6134, %v6156
      %v6195 = vadd.f32 %v6135, %v6159
      %v6196 = vadd.f32 %v6136, %v6162
      %v6197 = vadd.f32 %v6137, %v6165
      %v6198 = vadd.f32 %v6138, %v6168
      %v6199 = vadd.f32 %v6139, %v6171
      %v6200 = vadd.f32 %v6140, %v6174
      %v6201 = vadd.f32 %v6141, %v6177
      %v6202 = vrot.slane %v6034, 3
      %v6203 = vrot.slane %v6035, 3
      %v6204 = vsel %vm1446, %v6202, %v6203
      %v6205 = vrot.slane %v6036, 3
      %v6206 = vrot.slane %v6037, 3
      %v6207 = vsel %vm1446, %v6205, %v6206
      %v6208 = vrot.slane %v6038, 3
      %v6209 = vrot.slane %v6039, 3
      %v6210 = vsel %vm1446, %v6208, %v6209
      %v6211 = vrot.slane %v6040, 3
      %v6212 = vrot.slane %v6041, 3
      %v6213 = vsel %vm1446, %v6211, %v6212
      %v6214 = vrot.slane %v6042, 3
      %v6215 = vrot.slane %v6043, 3
      %v6216 = vsel %vm1446, %v6214, %v6215
      %v6217 = vrot.slane %v6044, 3
      %v6218 = vrot.slane %v6045, 3
      %v6219 = vsel %vm1446, %v6217, %v6218
      %v6220 = vrot.slane %v6046, 3
      %v6221 = vrot.slane %v6047, 3
      %v6222 = vsel %vm1446, %v6220, %v6221
      %v6223 = vrot.slane %v6048, 3
      %v6224 = vrot.slane %v6049, 3
      %v6225 = vsel %vm1446, %v6223, %v6224
      %v6226 = vrot.slane %v6050, 3
      %v6227 = vrot.slane %v6051, 3
      %v6228 = vsel %vm1446, %v6226, %v6227
      %v6229 = vrot.slane %v6052, 3
      %v6230 = vrot.slane %v6053, 3
      %v6231 = vsel %vm1446, %v6229, %v6230
      %v6232 = vrot.slane %v6054, 3
      %v6233 = vrot.slane %v6055, 3
      %v6234 = vsel %vm1446, %v6232, %v6233
      %v6235 = vrot.slane %v6056, 3
      %v6236 = vrot.slane %v6057, 3
      %v6237 = vsel %vm1446, %v6235, %v6236
      %v6250 = vadd.f32 %v6190, %v6204
      %v6251 = vadd.f32 %v6191, %v6207
      %v6252 = vadd.f32 %v6192, %v6210
      %v6253 = vadd.f32 %v6193, %v6213
      %v6254 = vadd.f32 %v6194, %v6216
      %v6255 = vadd.f32 %v6195, %v6219
      %v6256 = vadd.f32 %v6196, %v6222
      %v6257 = vadd.f32 %v6197, %v6225
      %v6258 = vadd.f32 %v6198, %v6228
      %v6259 = vadd.f32 %v6199, %v6231
      %v6260 = vadd.f32 %v6200, %v6234
      %v6261 = vadd.f32 %v6201, %v6237
      %v6262 = vrot.slane %v6034, 4
      %v6263 = vrot.slane %v6035, 4
      %v6264 = vsel %vm626, %v6262, %v6263
      %v6265 = vrot.slane %v6036, 4
      %v6266 = vrot.slane %v6037, 4
      %v6267 = vsel %vm626, %v6265, %v6266
      %v6268 = vrot.slane %v6038, 4
      %v6269 = vrot.slane %v6039, 4
      %v6270 = vsel %vm626, %v6268, %v6269
      %v6271 = vrot.slane %v6040, 4
      %v6272 = vrot.slane %v6041, 4
      %v6273 = vsel %vm626, %v6271, %v6272
      %v6274 = vrot.slane %v6042, 4
      %v6275 = vrot.slane %v6043, 4
      %v6276 = vsel %vm626, %v6274, %v6275
      %v6277 = vrot.slane %v6044, 4
      %v6278 = vrot.slane %v6045, 4
      %v6279 = vsel %vm626, %v6277, %v6278
      %v6280 = vrot.slane %v6046, 4
      %v6281 = vrot.slane %v6047, 4
      %v6282 = vsel %vm626, %v6280, %v6281
      %v6283 = vrot.slane %v6048, 4
      %v6284 = vrot.slane %v6049, 4
      %v6285 = vsel %vm626, %v6283, %v6284
      %v6286 = vrot.slane %v6050, 4
      %v6287 = vrot.slane %v6051, 4
      %v6288 = vsel %vm626, %v6286, %v6287
      %v6289 = vrot.slane %v6052, 4
      %v6290 = vrot.slane %v6053, 4
      %v6291 = vsel %vm626, %v6289, %v6290
      %v6292 = vrot.slane %v6054, 4
      %v6293 = vrot.slane %v6055, 4
      %v6294 = vsel %vm626, %v6292, %v6293
      %v6295 = vrot.slane %v6056, 4
      %v6296 = vrot.slane %v6057, 4
      %v6297 = vsel %vm626, %v6295, %v6296
      %v6310 = vadd.f32 %v6250, %v6264
      %v6311 = vadd.f32 %v6251, %v6267
      %v6312 = vadd.f32 %v6252, %v6270
      %v6313 = vadd.f32 %v6253, %v6273
      %v6314 = vadd.f32 %v6254, %v6276
      %v6315 = vadd.f32 %v6255, %v6279
      %v6316 = vadd.f32 %v6256, %v6282
      %v6317 = vadd.f32 %v6257, %v6285
      %v6318 = vadd.f32 %v6258, %v6288
      %v6319 = vadd.f32 %v6259, %v6291
      %v6320 = vadd.f32 %v6260, %v6294
      %v6321 = vadd.f32 %v6261, %v6297
      %v6322 = vadd.f32 %v6310, %v6311
      %v6323 = vadd.f32 %v6311, %v6312
      %v6324 = vadd.f32 %v6312, %v6313
      %v6325 = vadd.f32 %v6313, %v6314
      %v6326 = vadd.f32 %v6314, %v6315
      %v6327 = vadd.f32 %v6315, %v6316
      %v6328 = vadd.f32 %v6316, %v6317
      %v6329 = vadd.f32 %v6317, %v6318
      %v6330 = vadd.f32 %v6322, %v6312
      %v6331 = vadd.f32 %v6323, %v6313
      %v6332 = vadd.f32 %v6324, %v6314
      %v6333 = vadd.f32 %v6325, %v6315
      %v6334 = vadd.f32 %v6326, %v6316
      %v6335 = vadd.f32 %v6327, %v6317
      %v6336 = vadd.f32 %v6328, %v6318
      %v6337 = vadd.f32 %v6329, %v6319
      %v6338 = vadd.f32 %v6330, %v6313
      %v6339 = vadd.f32 %v6331, %v6314
      %v6340 = vadd.f32 %v6332, %v6315
      %v6341 = vadd.f32 %v6333, %v6316
      %v6342 = vadd.f32 %v6334, %v6317
      %v6343 = vadd.f32 %v6335, %v6318
      %v6344 = vadd.f32 %v6336, %v6319
      %v6345 = vadd.f32 %v6337, %v6320
      %v6346 = vadd.f32 %v6338, %v6314
      %v6347 = vadd.f32 %v6339, %v6315
      %v6348 = vadd.f32 %v6340, %v6316
      %v6349 = vadd.f32 %v6341, %v6317
      %v6350 = vadd.f32 %v6342, %v6318
      %v6351 = vadd.f32 %v6343, %v6319
      %v6352 = vadd.f32 %v6344, %v6320
      %v6353 = vadd.f32 %v6345, %v6321
      %v6354 = vmul.f32 %v6346, 0.008
      %v6355 = vmul.f32 %v6347, 0.008
      %v6356 = vmul.f32 %v6348, 0.008
      %v6357 = vmul.f32 %v6349, 0.008
      %v6358 = vmul.f32 %v6350, 0.008
      %v6359 = vmul.f32 %v6351, 0.008
      %v6360 = vmul.f32 %v6352, 0.008
      %v6361 = vmul.f32 %v6353, 0.008
      %6370 = vrot.lane.b32.xlu0 %v6354, 126
      %v6371 = vpop.permute.xlu0 %6370
      %6372 = vrot.lane.b32.xlu0 %v6355, 126
      %v6373 = vpop.permute.xlu0 %6372
      %6374 = vrot.lane.b32.xlu0 %v6356, 126
      %v6375 = vpop.permute.xlu0 %6374
      %6376 = vrot.lane.b32.xlu0 %v6357, 126
      %v6377 = vpop.permute.xlu0 %6376
      %6378 = vrot.lane.b32.xlu0 %v6358, 126
      %v6379 = vpop.permute.xlu0 %6378
      %6380 = vrot.lane.b32.xlu0 %v6359, 126
      %v6381 = vpop.permute.xlu0 %6380
      %6382 = vrot.lane.b32.xlu0 %v6360, 126
      %v6383 = vpop.permute.xlu0 %6382
      %6384 = vrot.lane.b32.xlu0 %v6361, 126
      %v6385 = vpop.permute.xlu0 %6384
      %s6394 = scalar_lea.vmem %s150, 320
      %6395 = vst.msk [vmem:[%s6394] sm:$0xff] %vm2652, %v6371
      %6396 = vst.msk [vmem:[%s6394 + $0x8] sm:$0xff] %vm2652, %v6373
      %6397 = vst.msk [vmem:[%s6394 + $0x10] sm:$0xff] %vm2652, %v6375
      %6398 = vst.msk [vmem:[%s6394 + $0x18] sm:$0xff] %vm2652, %v6377
      %6399 = vst.msk [vmem:[%s6394 + $0x20] sm:$0xff] %vm2652, %v6379
      %6400 = vst.msk [vmem:[%s6394 + $0x28] sm:$0xff] %vm2652, %v6381
      %6401 = vst.msk [vmem:[%s6394 + $0x30] sm:$0xff] %vm2652, %v6383
      %6402 = vst.msk [vmem:[%s6394 + $0x38] sm:$0xff] %vm2652, %v6385
      %v6403 = vrot.slane %v6354, 6
      %v6404 = vrot.slane %v6355, 6
      %v6405 = vrot.slane %v6356, 6
      %v6406 = vrot.slane %v6357, 6
      %v6407 = vrot.slane %v6358, 6
      %v6408 = vrot.slane %v6359, 6
      %v6409 = vrot.slane %v6360, 6
      %v6410 = vrot.slane %v6361, 6
      %v6419 = vmin.f32 %v5438, %v6403
      %v6420 = vmin.f32 %v5439, %v6403
      %v6421 = vmin.f32 %v5440, %v6404
      %v6422 = vmin.f32 %v5441, %v6404
      %v6423 = vmin.f32 %v5442, %v6405
      %v6424 = vmin.f32 %v5443, %v6405
      %v6425 = vmin.f32 %v5444, %v6406
      %v6426 = vmin.f32 %v5445, %v6406
      %v6427 = vmin.f32 %v5446, %v6407
      %v6428 = vmin.f32 %v5447, %v6407
      %v6429 = vmin.f32 %v5448, %v6408
      %v6430 = vmin.f32 %v5449, %v6408
      %v6431 = vmin.f32 %v5450, %v6409
      %v6432 = vmin.f32 %v5451, %v6409
      %v6433 = vmin.f32 %v5452, %v6410
      %v6434 = vmin.f32 %v5453, %v6410
      %v6435 = vadd.f32 %v5454, %v6403
      %v6436 = vadd.f32 %v5455, %v6403
      %v6437 = vadd.f32 %v5456, %v6404
      %v6438 = vadd.f32 %v5457, %v6404
      %v6439 = vadd.f32 %v5458, %v6405
      %v6440 = vadd.f32 %v5459, %v6405
      %v6441 = vadd.f32 %v5460, %v6406
      %v6442 = vadd.f32 %v5461, %v6406
      %v6443 = vadd.f32 %v5462, %v6407
      %v6444 = vadd.f32 %v5463, %v6407
      %v6445 = vadd.f32 %v5464, %v6408
      %v6446 = vadd.f32 %v5465, %v6408
      %v6447 = vadd.f32 %v5466, %v6409
      %v6448 = vadd.f32 %v5467, %v6409
      %v6449 = vadd.f32 %v5468, %v6410
      %v6450 = vadd.f32 %v5469, %v6410
      %6451 = vrot.lane.b32.xlu0 %v187, 126
      %v6452 = vpop.permute.xlu0 %6451
      %6453 = vrot.lane.b32.xlu0 %v188, 126
      %v6454 = vpop.permute.xlu0 %6453
      %6455 = vrot.lane.b32.xlu0 %v189, 126
      %v6456 = vpop.permute.xlu0 %6455
      %6457 = vrot.lane.b32.xlu0 %v190, 126
      %v6458 = vpop.permute.xlu0 %6457
      %6459 = vrot.lane.b32.xlu0 %v191, 126
      %v6460 = vpop.permute.xlu0 %6459
      %6461 = vrot.lane.b32.xlu0 %v192, 126
      %v6462 = vpop.permute.xlu0 %6461
      %6463 = vrot.lane.b32.xlu0 %v193, 126
      %v6464 = vpop.permute.xlu0 %6463
      %6465 = vrot.lane.b32.xlu0 %v194, 126
      %v6466 = vpop.permute.xlu0 %6465
      %6467 = vrot.lane.b32.xlu0 %v195, 126
      %v6468 = vpop.permute.xlu0 %6467
      %6469 = vrot.lane.b32.xlu0 %v196, 126
      %v6470 = vpop.permute.xlu0 %6469
      %6471 = vrot.lane.b32.xlu0 %v197, 126
      %v6472 = vpop.permute.xlu0 %6471
      %6473 = vrot.lane.b32.xlu0 %v198, 126
      %v6474 = vpop.permute.xlu0 %6473
      %6475 = vrot.lane.b32.xlu0 %v199, 126
      %v6476 = vpop.permute.xlu0 %6475
      %6477 = vrot.lane.b32.xlu0 %v200, 126
      %v6478 = vpop.permute.xlu0 %6477
      %6479 = vrot.lane.b32.xlu0 %v201, 126
      %v6480 = vpop.permute.xlu0 %6479
      %6481 = vrot.lane.b32.xlu0 %v202, 126
      %v6482 = vpop.permute.xlu0 %6481
      %6483 = vrot.lane.b32.xlu0 %v203, 126
      %v6484 = vpop.permute.xlu0 %6483
      %6485 = vrot.lane.b32.xlu0 %v204, 126
      %v6486 = vpop.permute.xlu0 %6485
      %6487 = vrot.lane.b32.xlu0 %v173, 126
      %v6488 = vpop.permute.xlu0 %6487
      %6489 = vrot.lane.b32.xlu0 %v174, 126
      %v6490 = vpop.permute.xlu0 %6489
      %6491 = vrot.lane.b32.xlu0 %v205, 126
      %v6492 = vpop.permute.xlu0 %6491
      %6493 = vrot.lane.b32.xlu0 %v206, 126
      %v6494 = vpop.permute.xlu0 %6493
      %6495 = vrot.lane.b32.xlu0 %v207, 126
      %v6496 = vpop.permute.xlu0 %6495
      %6497 = vrot.lane.b32.xlu0 %v208, 126
      %v6498 = vpop.permute.xlu0 %6497
      %v6523 = vsub.f32 %v332, %v6452
      %v6524 = vsub.f32 %v333, %v6454
      %v6525 = vsub.f32 %v334, %v6456
      %v6526 = vsub.f32 %v335, %v6458
      %v6527 = vsub.f32 %v336, %v6460
      %v6528 = vsub.f32 %v337, %v6462
      %v6529 = vsub.f32 %v338, %v6464
      %v6530 = vsub.f32 %v339, %v6466
      %v6531 = vsub.f32 %v340, %v6468
      %v6532 = vsub.f32 %v341, %v6470
      %v6533 = vsub.f32 %v342, %v6472
      %v6534 = vsub.f32 %v343, %v6474
      %v6535 = vsub.f32 %v344, %v6476
      %v6536 = vsub.f32 %v345, %v6478
      %v6537 = vsub.f32 %v346, %v6480
      %v6538 = vsub.f32 %v347, %v6482
      %v6539 = vsub.f32 %v348, %v6484
      %v6540 = vsub.f32 %v349, %v6486
      %v6541 = vsub.f32 %v350, %v6488
      %v6542 = vsub.f32 %v351, %v6490
      %v6543 = vsub.f32 %v352, %v6492
      %v6544 = vsub.f32 %v353, %v6494
      %v6545 = vsub.f32 %v354, %v6496
      %v6546 = vsub.f32 %v355, %v6498
      %v6547 = vmul.f32 %v6523, %v6523
      %v6548 = vmul.f32 %v6524, %v6524
      %v6549 = vmul.f32 %v6525, %v6525
      %v6550 = vmul.f32 %v6526, %v6526
      %v6551 = vmul.f32 %v6527, %v6527
      %v6552 = vmul.f32 %v6528, %v6528
      %v6553 = vmul.f32 %v6529, %v6529
      %v6554 = vmul.f32 %v6530, %v6530
      %v6555 = vmul.f32 %v6531, %v6531
      %v6556 = vmul.f32 %v6532, %v6532
      %v6557 = vmul.f32 %v6533, %v6533
      %v6558 = vmul.f32 %v6534, %v6534
      %v6559 = vmul.f32 %v6535, %v6535
      %v6560 = vmul.f32 %v6536, %v6536
      %v6561 = vmul.f32 %v6537, %v6537
      %v6562 = vmul.f32 %v6538, %v6538
      %v6563 = vmul.f32 %v6539, %v6539
      %v6564 = vmul.f32 %v6540, %v6540
      %v6565 = vmul.f32 %v6541, %v6541
      %v6566 = vmul.f32 %v6542, %v6542
      %v6567 = vmul.f32 %v6543, %v6543
      %v6568 = vmul.f32 %v6544, %v6544
      %v6569 = vmul.f32 %v6545, %v6545
      %v6570 = vmul.f32 %v6546, %v6546
      %6595 = vrot.lane.b32.xlu0 %v6547, 127
      %v6596 = vpop.permute.xlu0 %6595
      %6597 = vrot.lane.b32.xlu0 %v6548, 127
      %v6598 = vpop.permute.xlu0 %6597
      %6599 = vrot.lane.b32.xlu0 %v6549, 127
      %v6600 = vpop.permute.xlu0 %6599
      %6601 = vrot.lane.b32.xlu0 %v6550, 127
      %v6602 = vpop.permute.xlu0 %6601
      %6603 = vrot.lane.b32.xlu0 %v6551, 127
      %v6604 = vpop.permute.xlu0 %6603
      %6605 = vrot.lane.b32.xlu0 %v6552, 127
      %v6606 = vpop.permute.xlu0 %6605
      %6607 = vrot.lane.b32.xlu0 %v6553, 127
      %v6608 = vpop.permute.xlu0 %6607
      %6609 = vrot.lane.b32.xlu0 %v6554, 127
      %v6610 = vpop.permute.xlu0 %6609
      %6611 = vrot.lane.b32.xlu0 %v6555, 127
      %v6612 = vpop.permute.xlu0 %6611
      %6613 = vrot.lane.b32.xlu0 %v6556, 127
      %v6614 = vpop.permute.xlu0 %6613
      %6615 = vrot.lane.b32.xlu0 %v6557, 127
      %v6616 = vpop.permute.xlu0 %6615
      %6617 = vrot.lane.b32.xlu0 %v6558, 127
      %v6618 = vpop.permute.xlu0 %6617
      %6619 = vrot.lane.b32.xlu0 %v6559, 127
      %v6620 = vpop.permute.xlu0 %6619
      %6621 = vrot.lane.b32.xlu0 %v6560, 127
      %v6622 = vpop.permute.xlu0 %6621
      %6623 = vrot.lane.b32.xlu0 %v6561, 127
      %v6624 = vpop.permute.xlu0 %6623
      %6625 = vrot.lane.b32.xlu0 %v6562, 127
      %v6626 = vpop.permute.xlu0 %6625
      %6627 = vrot.lane.b32.xlu0 %v6563, 127
      %v6628 = vpop.permute.xlu0 %6627
      %6629 = vrot.lane.b32.xlu0 %v6564, 127
      %v6630 = vpop.permute.xlu0 %6629
      %6631 = vrot.lane.b32.xlu0 %v6565, 127
      %v6632 = vpop.permute.xlu0 %6631
      %6633 = vrot.lane.b32.xlu0 %v6566, 127
      %v6634 = vpop.permute.xlu0 %6633
      %6635 = vrot.lane.b32.xlu0 %v6567, 127
      %v6636 = vpop.permute.xlu0 %6635
      %6637 = vrot.lane.b32.xlu0 %v6568, 127
      %v6638 = vpop.permute.xlu0 %6637
      %6639 = vrot.lane.b32.xlu0 %v6569, 127
      %v6640 = vpop.permute.xlu0 %6639
      %6641 = vrot.lane.b32.xlu0 %v6570, 127
      %v6642 = vpop.permute.xlu0 %6641
      %v6667 = vadd.f32 %v6547, %v6596
      %v6668 = vadd.f32 %v6548, %v6598
      %v6669 = vadd.f32 %v6549, %v6600
      %v6670 = vadd.f32 %v6550, %v6602
      %v6671 = vadd.f32 %v6551, %v6604
      %v6672 = vadd.f32 %v6552, %v6606
      %v6673 = vadd.f32 %v6553, %v6608
      %v6674 = vadd.f32 %v6554, %v6610
      %v6675 = vadd.f32 %v6555, %v6612
      %v6676 = vadd.f32 %v6556, %v6614
      %v6677 = vadd.f32 %v6557, %v6616
      %v6678 = vadd.f32 %v6558, %v6618
      %v6679 = vadd.f32 %v6559, %v6620
      %v6680 = vadd.f32 %v6560, %v6622
      %v6681 = vadd.f32 %v6561, %v6624
      %v6682 = vadd.f32 %v6562, %v6626
      %v6683 = vadd.f32 %v6563, %v6628
      %v6684 = vadd.f32 %v6564, %v6630
      %v6685 = vadd.f32 %v6565, %v6632
      %v6686 = vadd.f32 %v6566, %v6634
      %v6687 = vadd.f32 %v6567, %v6636
      %v6688 = vadd.f32 %v6568, %v6638
      %v6689 = vadd.f32 %v6569, %v6640
      %v6690 = vadd.f32 %v6570, %v6642
      %6691 = vrot.lane.b32.xlu0 %v6547, 126
      %v6692 = vpop.permute.xlu0 %6691
      %6693 = vrot.lane.b32.xlu0 %v6548, 126
      %v6694 = vpop.permute.xlu0 %6693
      %6695 = vrot.lane.b32.xlu0 %v6549, 126
      %v6696 = vpop.permute.xlu0 %6695
      %6697 = vrot.lane.b32.xlu0 %v6550, 126
      %v6698 = vpop.permute.xlu0 %6697
      %6699 = vrot.lane.b32.xlu0 %v6551, 126
      %v6700 = vpop.permute.xlu0 %6699
      %6701 = vrot.lane.b32.xlu0 %v6552, 126
      %v6702 = vpop.permute.xlu0 %6701
      %6703 = vrot.lane.b32.xlu0 %v6553, 126
      %v6704 = vpop.permute.xlu0 %6703
      %6705 = vrot.lane.b32.xlu0 %v6554, 126
      %v6706 = vpop.permute.xlu0 %6705
      %6707 = vrot.lane.b32.xlu0 %v6555, 126
      %v6708 = vpop.permute.xlu0 %6707
      %6709 = vrot.lane.b32.xlu0 %v6556, 126
      %v6710 = vpop.permute.xlu0 %6709
      %6711 = vrot.lane.b32.xlu0 %v6557, 126
      %v6712 = vpop.permute.xlu0 %6711
      %6713 = vrot.lane.b32.xlu0 %v6558, 126
      %v6714 = vpop.permute.xlu0 %6713
      %6715 = vrot.lane.b32.xlu0 %v6559, 126
      %v6716 = vpop.permute.xlu0 %6715
      %6717 = vrot.lane.b32.xlu0 %v6560, 126
      %v6718 = vpop.permute.xlu0 %6717
      %6719 = vrot.lane.b32.xlu0 %v6561, 126
      %v6720 = vpop.permute.xlu0 %6719
      %6721 = vrot.lane.b32.xlu0 %v6562, 126
      %v6722 = vpop.permute.xlu0 %6721
      %6723 = vrot.lane.b32.xlu0 %v6563, 126
      %v6724 = vpop.permute.xlu0 %6723
      %6725 = vrot.lane.b32.xlu0 %v6564, 126
      %v6726 = vpop.permute.xlu0 %6725
      %6727 = vrot.lane.b32.xlu0 %v6565, 126
      %v6728 = vpop.permute.xlu0 %6727
      %6729 = vrot.lane.b32.xlu0 %v6566, 126
      %v6730 = vpop.permute.xlu0 %6729
      %6731 = vrot.lane.b32.xlu0 %v6567, 126
      %v6732 = vpop.permute.xlu0 %6731
      %6733 = vrot.lane.b32.xlu0 %v6568, 126
      %v6734 = vpop.permute.xlu0 %6733
      %6735 = vrot.lane.b32.xlu0 %v6569, 126
      %v6736 = vpop.permute.xlu0 %6735
      %6737 = vrot.lane.b32.xlu0 %v6570, 126
      %v6738 = vpop.permute.xlu0 %6737
      %v6763 = vadd.f32 %v6667, %v6692
      %v6764 = vadd.f32 %v6668, %v6694
      %v6765 = vadd.f32 %v6669, %v6696
      %v6766 = vadd.f32 %v6670, %v6698
      %v6767 = vadd.f32 %v6671, %v6700
      %v6768 = vadd.f32 %v6672, %v6702
      %v6769 = vadd.f32 %v6673, %v6704
      %v6770 = vadd.f32 %v6674, %v6706
      %v6771 = vadd.f32 %v6675, %v6708
      %v6772 = vadd.f32 %v6676, %v6710
      %v6773 = vadd.f32 %v6677, %v6712
      %v6774 = vadd.f32 %v6678, %v6714
      %v6775 = vadd.f32 %v6679, %v6716
      %v6776 = vadd.f32 %v6680, %v6718
      %v6777 = vadd.f32 %v6681, %v6720
      %v6778 = vadd.f32 %v6682, %v6722
      %v6779 = vadd.f32 %v6683, %v6724
      %v6780 = vadd.f32 %v6684, %v6726
      %v6781 = vadd.f32 %v6685, %v6728
      %v6782 = vadd.f32 %v6686, %v6730
      %v6783 = vadd.f32 %v6687, %v6732
      %v6784 = vadd.f32 %v6688, %v6734
      %v6785 = vadd.f32 %v6689, %v6736
      %v6786 = vadd.f32 %v6690, %v6738
      %6787 = vrot.lane.b32.xlu0 %v6547, 125
      %v6788 = vpop.permute.xlu0 %6787
      %6789 = vrot.lane.b32.xlu0 %v6548, 125
      %v6790 = vpop.permute.xlu0 %6789
      %6791 = vrot.lane.b32.xlu0 %v6549, 125
      %v6792 = vpop.permute.xlu0 %6791
      %6793 = vrot.lane.b32.xlu0 %v6550, 125
      %v6794 = vpop.permute.xlu0 %6793
      %6795 = vrot.lane.b32.xlu0 %v6551, 125
      %v6796 = vpop.permute.xlu0 %6795
      %6797 = vrot.lane.b32.xlu0 %v6552, 125
      %v6798 = vpop.permute.xlu0 %6797
      %6799 = vrot.lane.b32.xlu0 %v6553, 125
      %v6800 = vpop.permute.xlu0 %6799
      %6801 = vrot.lane.b32.xlu0 %v6554, 125
      %v6802 = vpop.permute.xlu0 %6801
      %6803 = vrot.lane.b32.xlu0 %v6555, 125
      %v6804 = vpop.permute.xlu0 %6803
      %6805 = vrot.lane.b32.xlu0 %v6556, 125
      %v6806 = vpop.permute.xlu0 %6805
      %6807 = vrot.lane.b32.xlu0 %v6557, 125
      %v6808 = vpop.permute.xlu0 %6807
      %6809 = vrot.lane.b32.xlu0 %v6558, 125
      %v6810 = vpop.permute.xlu0 %6809
      %6811 = vrot.lane.b32.xlu0 %v6559, 125
      %v6812 = vpop.permute.xlu0 %6811
      %6813 = vrot.lane.b32.xlu0 %v6560, 125
      %v6814 = vpop.permute.xlu0 %6813
      %6815 = vrot.lane.b32.xlu0 %v6561, 125
      %v6816 = vpop.permute.xlu0 %6815
      %6817 = vrot.lane.b32.xlu0 %v6562, 125
      %v6818 = vpop.permute.xlu0 %6817
      %6819 = vrot.lane.b32.xlu0 %v6563, 125
      %v6820 = vpop.permute.xlu0 %6819
      %6821 = vrot.lane.b32.xlu0 %v6564, 125
      %v6822 = vpop.permute.xlu0 %6821
      %6823 = vrot.lane.b32.xlu0 %v6565, 125
      %v6824 = vpop.permute.xlu0 %6823
      %6825 = vrot.lane.b32.xlu0 %v6566, 125
      %v6826 = vpop.permute.xlu0 %6825
      %6827 = vrot.lane.b32.xlu0 %v6567, 125
      %v6828 = vpop.permute.xlu0 %6827
      %6829 = vrot.lane.b32.xlu0 %v6568, 125
      %v6830 = vpop.permute.xlu0 %6829
      %6831 = vrot.lane.b32.xlu0 %v6569, 125
      %v6832 = vpop.permute.xlu0 %6831
      %6833 = vrot.lane.b32.xlu0 %v6570, 125
      %v6834 = vpop.permute.xlu0 %6833
      %v6859 = vadd.f32 %v6763, %v6788
      %v6860 = vadd.f32 %v6764, %v6790
      %v6861 = vadd.f32 %v6765, %v6792
      %v6862 = vadd.f32 %v6766, %v6794
      %v6863 = vadd.f32 %v6767, %v6796
      %v6864 = vadd.f32 %v6768, %v6798
      %v6865 = vadd.f32 %v6769, %v6800
      %v6866 = vadd.f32 %v6770, %v6802
      %v6867 = vadd.f32 %v6771, %v6804
      %v6868 = vadd.f32 %v6772, %v6806
      %v6869 = vadd.f32 %v6773, %v6808
      %v6870 = vadd.f32 %v6774, %v6810
      %v6871 = vadd.f32 %v6775, %v6812
      %v6872 = vadd.f32 %v6776, %v6814
      %v6873 = vadd.f32 %v6777, %v6816
      %v6874 = vadd.f32 %v6778, %v6818
      %v6875 = vadd.f32 %v6779, %v6820
      %v6876 = vadd.f32 %v6780, %v6822
      %v6877 = vadd.f32 %v6781, %v6824
      %v6878 = vadd.f32 %v6782, %v6826
      %v6879 = vadd.f32 %v6783, %v6828
      %v6880 = vadd.f32 %v6784, %v6830
      %v6881 = vadd.f32 %v6785, %v6832
      %v6882 = vadd.f32 %v6786, %v6834
      %6883 = vrot.lane.b32.xlu0 %v6547, 124
      %v6884 = vpop.permute.xlu0 %6883
      %6885 = vrot.lane.b32.xlu0 %v6548, 124
      %v6886 = vpop.permute.xlu0 %6885
      %6887 = vrot.lane.b32.xlu0 %v6549, 124
      %v6888 = vpop.permute.xlu0 %6887
      %6889 = vrot.lane.b32.xlu0 %v6550, 124
      %v6890 = vpop.permute.xlu0 %6889
      %6891 = vrot.lane.b32.xlu0 %v6551, 124
      %v6892 = vpop.permute.xlu0 %6891
      %6893 = vrot.lane.b32.xlu0 %v6552, 124
      %v6894 = vpop.permute.xlu0 %6893
      %6895 = vrot.lane.b32.xlu0 %v6553, 124
      %v6896 = vpop.permute.xlu0 %6895
      %6897 = vrot.lane.b32.xlu0 %v6554, 124
      %v6898 = vpop.permute.xlu0 %6897
      %6899 = vrot.lane.b32.xlu0 %v6555, 124
      %v6900 = vpop.permute.xlu0 %6899
      %6901 = vrot.lane.b32.xlu0 %v6556, 124
      %v6902 = vpop.permute.xlu0 %6901
      %6903 = vrot.lane.b32.xlu0 %v6557, 124
      %v6904 = vpop.permute.xlu0 %6903
      %6905 = vrot.lane.b32.xlu0 %v6558, 124
      %v6906 = vpop.permute.xlu0 %6905
      %6907 = vrot.lane.b32.xlu0 %v6559, 124
      %v6908 = vpop.permute.xlu0 %6907
      %6909 = vrot.lane.b32.xlu0 %v6560, 124
      %v6910 = vpop.permute.xlu0 %6909
      %6911 = vrot.lane.b32.xlu0 %v6561, 124
      %v6912 = vpop.permute.xlu0 %6911
      %6913 = vrot.lane.b32.xlu0 %v6562, 124
      %v6914 = vpop.permute.xlu0 %6913
      %6915 = vrot.lane.b32.xlu0 %v6563, 124
      %v6916 = vpop.permute.xlu0 %6915
      %6917 = vrot.lane.b32.xlu0 %v6564, 124
      %v6918 = vpop.permute.xlu0 %6917
      %6919 = vrot.lane.b32.xlu0 %v6565, 124
      %v6920 = vpop.permute.xlu0 %6919
      %6921 = vrot.lane.b32.xlu0 %v6566, 124
      %v6922 = vpop.permute.xlu0 %6921
      %6923 = vrot.lane.b32.xlu0 %v6567, 124
      %v6924 = vpop.permute.xlu0 %6923
      %6925 = vrot.lane.b32.xlu0 %v6568, 124
      %v6926 = vpop.permute.xlu0 %6925
      %6927 = vrot.lane.b32.xlu0 %v6569, 124
      %v6928 = vpop.permute.xlu0 %6927
      %6929 = vrot.lane.b32.xlu0 %v6570, 124
      %v6930 = vpop.permute.xlu0 %6929
      %v6955 = vadd.f32 %v6859, %v6884
      %v6956 = vadd.f32 %v6860, %v6886
      %v6957 = vadd.f32 %v6861, %v6888
      %v6958 = vadd.f32 %v6862, %v6890
      %v6959 = vadd.f32 %v6863, %v6892
      %v6960 = vadd.f32 %v6864, %v6894
      %v6961 = vadd.f32 %v6865, %v6896
      %v6962 = vadd.f32 %v6866, %v6898
      %v6963 = vadd.f32 %v6867, %v6900
      %v6964 = vadd.f32 %v6868, %v6902
      %v6965 = vadd.f32 %v6869, %v6904
      %v6966 = vadd.f32 %v6870, %v6906
      %v6967 = vadd.f32 %v6871, %v6908
      %v6968 = vadd.f32 %v6872, %v6910
      %v6969 = vadd.f32 %v6873, %v6912
      %v6970 = vadd.f32 %v6874, %v6914
      %v6971 = vadd.f32 %v6875, %v6916
      %v6972 = vadd.f32 %v6876, %v6918
      %v6973 = vadd.f32 %v6877, %v6920
      %v6974 = vadd.f32 %v6878, %v6922
      %v6975 = vadd.f32 %v6879, %v6924
      %v6976 = vadd.f32 %v6880, %v6926
      %v6977 = vadd.f32 %v6881, %v6928
      %v6978 = vadd.f32 %v6882, %v6930
      %v7003 = vrot.slane %v6955, 1
      %v7004 = vrot.slane %v6956, 1
      %v7005 = vsel %vm1276, %v7003, %v7004
      %v7006 = vrot.slane %v6957, 1
      %v7007 = vrot.slane %v6958, 1
      %v7008 = vsel %vm1276, %v7006, %v7007
      %v7009 = vrot.slane %v6959, 1
      %v7010 = vrot.slane %v6960, 1
      %v7011 = vsel %vm1276, %v7009, %v7010
      %v7012 = vrot.slane %v6961, 1
      %v7013 = vrot.slane %v6962, 1
      %v7014 = vsel %vm1276, %v7012, %v7013
      %v7015 = vrot.slane %v6963, 1
      %v7016 = vrot.slane %v6964, 1
      %v7017 = vsel %vm1276, %v7015, %v7016
      %v7018 = vrot.slane %v6965, 1
      %v7019 = vrot.slane %v6966, 1
      %v7020 = vsel %vm1276, %v7018, %v7019
      %v7021 = vrot.slane %v6967, 1
      %v7022 = vrot.slane %v6968, 1
      %v7023 = vsel %vm1276, %v7021, %v7022
      %v7024 = vrot.slane %v6969, 1
      %v7025 = vrot.slane %v6970, 1
      %v7026 = vsel %vm1276, %v7024, %v7025
      %v7027 = vrot.slane %v6971, 1
      %v7028 = vrot.slane %v6972, 1
      %v7029 = vsel %vm1276, %v7027, %v7028
      %v7030 = vrot.slane %v6973, 1
      %v7031 = vrot.slane %v6974, 1
      %v7032 = vsel %vm1276, %v7030, %v7031
      %v7033 = vrot.slane %v6975, 1
      %v7034 = vrot.slane %v6976, 1
      %v7035 = vsel %vm1276, %v7033, %v7034
      %v7036 = vrot.slane %v6977, 1
      %v7037 = vrot.slane %v6978, 1
      %v7038 = vsel %vm1276, %v7036, %v7037
      %v7063 = vadd.f32 %v6955, %v7005
      %v7064 = vadd.f32 %v6956, %v7004
      %v7065 = vadd.f32 %v6957, %v7008
      %v7066 = vadd.f32 %v6958, %v7007
      %v7067 = vadd.f32 %v6959, %v7011
      %v7068 = vadd.f32 %v6960, %v7010
      %v7069 = vadd.f32 %v6961, %v7014
      %v7070 = vadd.f32 %v6962, %v7013
      %v7071 = vadd.f32 %v6963, %v7017
      %v7072 = vadd.f32 %v6964, %v7016
      %v7073 = vadd.f32 %v6965, %v7020
      %v7074 = vadd.f32 %v6966, %v7019
      %v7075 = vadd.f32 %v6967, %v7023
      %v7076 = vadd.f32 %v6968, %v7022
      %v7077 = vadd.f32 %v6969, %v7026
      %v7078 = vadd.f32 %v6970, %v7025
      %v7079 = vadd.f32 %v6971, %v7029
      %v7080 = vadd.f32 %v6972, %v7028
      %v7081 = vadd.f32 %v6973, %v7032
      %v7082 = vadd.f32 %v6974, %v7031
      %v7083 = vadd.f32 %v6975, %v7035
      %v7084 = vadd.f32 %v6976, %v7034
      %v7085 = vadd.f32 %v6977, %v7038
      %v7086 = vadd.f32 %v6978, %v7037
      %v7087 = vrot.slane %v6955, 2
      %v7088 = vrot.slane %v6956, 2
      %v7089 = vsel %vm1361, %v7087, %v7088
      %v7090 = vrot.slane %v6957, 2
      %v7091 = vrot.slane %v6958, 2
      %v7092 = vsel %vm1361, %v7090, %v7091
      %v7093 = vrot.slane %v6959, 2
      %v7094 = vrot.slane %v6960, 2
      %v7095 = vsel %vm1361, %v7093, %v7094
      %v7096 = vrot.slane %v6961, 2
      %v7097 = vrot.slane %v6962, 2
      %v7098 = vsel %vm1361, %v7096, %v7097
      %v7099 = vrot.slane %v6963, 2
      %v7100 = vrot.slane %v6964, 2
      %v7101 = vsel %vm1361, %v7099, %v7100
      %v7102 = vrot.slane %v6965, 2
      %v7103 = vrot.slane %v6966, 2
      %v7104 = vsel %vm1361, %v7102, %v7103
      %v7105 = vrot.slane %v6967, 2
      %v7106 = vrot.slane %v6968, 2
      %v7107 = vsel %vm1361, %v7105, %v7106
      %v7108 = vrot.slane %v6969, 2
      %v7109 = vrot.slane %v6970, 2
      %v7110 = vsel %vm1361, %v7108, %v7109
      %v7111 = vrot.slane %v6971, 2
      %v7112 = vrot.slane %v6972, 2
      %v7113 = vsel %vm1361, %v7111, %v7112
      %v7114 = vrot.slane %v6973, 2
      %v7115 = vrot.slane %v6974, 2
      %v7116 = vsel %vm1361, %v7114, %v7115
      %v7117 = vrot.slane %v6975, 2
      %v7118 = vrot.slane %v6976, 2
      %v7119 = vsel %vm1361, %v7117, %v7118
      %v7120 = vrot.slane %v6977, 2
      %v7121 = vrot.slane %v6978, 2
      %v7122 = vsel %vm1361, %v7120, %v7121
      %v7147 = vadd.f32 %v7063, %v7089
      %v7148 = vadd.f32 %v7064, %v7088
      %v7149 = vadd.f32 %v7065, %v7092
      %v7150 = vadd.f32 %v7066, %v7091
      %v7151 = vadd.f32 %v7067, %v7095
      %v7152 = vadd.f32 %v7068, %v7094
      %v7153 = vadd.f32 %v7069, %v7098
      %v7154 = vadd.f32 %v7070, %v7097
      %v7155 = vadd.f32 %v7071, %v7101
      %v7156 = vadd.f32 %v7072, %v7100
      %v7157 = vadd.f32 %v7073, %v7104
      %v7158 = vadd.f32 %v7074, %v7103
      %v7159 = vadd.f32 %v7075, %v7107
      %v7160 = vadd.f32 %v7076, %v7106
      %v7161 = vadd.f32 %v7077, %v7110
      %v7162 = vadd.f32 %v7078, %v7109
      %v7163 = vadd.f32 %v7079, %v7113
      %v7164 = vadd.f32 %v7080, %v7112
      %v7165 = vadd.f32 %v7081, %v7116
      %v7166 = vadd.f32 %v7082, %v7115
      %v7167 = vadd.f32 %v7083, %v7119
      %v7168 = vadd.f32 %v7084, %v7118
      %v7169 = vadd.f32 %v7085, %v7122
      %v7170 = vadd.f32 %v7086, %v7121
      %v7171 = vrot.slane %v6955, 3
      %v7172 = vrot.slane %v6956, 3
      %v7173 = vsel %vm1446, %v7171, %v7172
      %v7174 = vrot.slane %v6957, 3
      %v7175 = vrot.slane %v6958, 3
      %v7176 = vsel %vm1446, %v7174, %v7175
      %v7177 = vrot.slane %v6959, 3
      %v7178 = vrot.slane %v6960, 3
      %v7179 = vsel %vm1446, %v7177, %v7178
      %v7180 = vrot.slane %v6961, 3
      %v7181 = vrot.slane %v6962, 3
      %v7182 = vsel %vm1446, %v7180, %v7181
      %v7183 = vrot.slane %v6963, 3
      %v7184 = vrot.slane %v6964, 3
      %v7185 = vsel %vm1446, %v7183, %v7184
      %v7186 = vrot.slane %v6965, 3
      %v7187 = vrot.slane %v6966, 3
      %v7188 = vsel %vm1446, %v7186, %v7187
      %v7189 = vrot.slane %v6967, 3
      %v7190 = vrot.slane %v6968, 3
      %v7191 = vsel %vm1446, %v7189, %v7190
      %v7192 = vrot.slane %v6969, 3
      %v7193 = vrot.slane %v6970, 3
      %v7194 = vsel %vm1446, %v7192, %v7193
      %v7195 = vrot.slane %v6971, 3
      %v7196 = vrot.slane %v6972, 3
      %v7197 = vsel %vm1446, %v7195, %v7196
      %v7198 = vrot.slane %v6973, 3
      %v7199 = vrot.slane %v6974, 3
      %v7200 = vsel %vm1446, %v7198, %v7199
      %v7201 = vrot.slane %v6975, 3
      %v7202 = vrot.slane %v6976, 3
      %v7203 = vsel %vm1446, %v7201, %v7202
      %v7204 = vrot.slane %v6977, 3
      %v7205 = vrot.slane %v6978, 3
      %v7206 = vsel %vm1446, %v7204, %v7205
      %v7231 = vadd.f32 %v7147, %v7173
      %v7232 = vadd.f32 %v7148, %v7172
      %v7233 = vadd.f32 %v7149, %v7176
      %v7234 = vadd.f32 %v7150, %v7175
      %v7235 = vadd.f32 %v7151, %v7179
      %v7236 = vadd.f32 %v7152, %v7178
      %v7237 = vadd.f32 %v7153, %v7182
      %v7238 = vadd.f32 %v7154, %v7181
      %v7239 = vadd.f32 %v7155, %v7185
      %v7240 = vadd.f32 %v7156, %v7184
      %v7241 = vadd.f32 %v7157, %v7188
      %v7242 = vadd.f32 %v7158, %v7187
      %v7243 = vadd.f32 %v7159, %v7191
      %v7244 = vadd.f32 %v7160, %v7190
      %v7245 = vadd.f32 %v7161, %v7194
      %v7246 = vadd.f32 %v7162, %v7193
      %v7247 = vadd.f32 %v7163, %v7197
      %v7248 = vadd.f32 %v7164, %v7196
      %v7249 = vadd.f32 %v7165, %v7200
      %v7250 = vadd.f32 %v7166, %v7199
      %v7251 = vadd.f32 %v7167, %v7203
      %v7252 = vadd.f32 %v7168, %v7202
      %v7253 = vadd.f32 %v7169, %v7206
      %v7254 = vadd.f32 %v7170, %v7205
      %v7255 = vrot.slane %v6955, 4
      %v7256 = vrot.slane %v6956, 4
      %v7257 = vsel %vm626, %v7255, %v7256
      %v7258 = vrot.slane %v6957, 4
      %v7259 = vrot.slane %v6958, 4
      %v7260 = vsel %vm626, %v7258, %v7259
      %v7261 = vrot.slane %v6959, 4
      %v7262 = vrot.slane %v6960, 4
      %v7263 = vsel %vm626, %v7261, %v7262
      %v7264 = vrot.slane %v6961, 4
      %v7265 = vrot.slane %v6962, 4
      %v7266 = vsel %vm626, %v7264, %v7265
      %v7267 = vrot.slane %v6963, 4
      %v7268 = vrot.slane %v6964, 4
      %v7269 = vsel %vm626, %v7267, %v7268
      %v7270 = vrot.slane %v6965, 4
      %v7271 = vrot.slane %v6966, 4
      %v7272 = vsel %vm626, %v7270, %v7271
      %v7273 = vrot.slane %v6967, 4
      %v7274 = vrot.slane %v6968, 4
      %v7275 = vsel %vm626, %v7273, %v7274
      %v7276 = vrot.slane %v6969, 4
      %v7277 = vrot.slane %v6970, 4
      %v7278 = vsel %vm626, %v7276, %v7277
      %v7279 = vrot.slane %v6971, 4
      %v7280 = vrot.slane %v6972, 4
      %v7281 = vsel %vm626, %v7279, %v7280
      %v7282 = vrot.slane %v6973, 4
      %v7283 = vrot.slane %v6974, 4
      %v7284 = vsel %vm626, %v7282, %v7283
      %v7285 = vrot.slane %v6975, 4
      %v7286 = vrot.slane %v6976, 4
      %v7287 = vsel %vm626, %v7285, %v7286
      %v7288 = vrot.slane %v6977, 4
      %v7289 = vrot.slane %v6978, 4
      %v7290 = vsel %vm626, %v7288, %v7289
      %v7315 = vadd.f32 %v7231, %v7257
      %v7316 = vadd.f32 %v7232, %v7256
      %v7317 = vadd.f32 %v7233, %v7260
      %v7318 = vadd.f32 %v7234, %v7259
      %v7319 = vadd.f32 %v7235, %v7263
      %v7320 = vadd.f32 %v7236, %v7262
      %v7321 = vadd.f32 %v7237, %v7266
      %v7322 = vadd.f32 %v7238, %v7265
      %v7323 = vadd.f32 %v7239, %v7269
      %v7324 = vadd.f32 %v7240, %v7268
      %v7325 = vadd.f32 %v7241, %v7272
      %v7326 = vadd.f32 %v7242, %v7271
      %v7327 = vadd.f32 %v7243, %v7275
      %v7328 = vadd.f32 %v7244, %v7274
      %v7329 = vadd.f32 %v7245, %v7278
      %v7330 = vadd.f32 %v7246, %v7277
      %v7331 = vadd.f32 %v7247, %v7281
      %v7332 = vadd.f32 %v7248, %v7280
      %v7333 = vadd.f32 %v7249, %v7284
      %v7334 = vadd.f32 %v7250, %v7283
      %v7335 = vadd.f32 %v7251, %v7287
      %v7336 = vadd.f32 %v7252, %v7286
      %v7337 = vadd.f32 %v7253, %v7290
      %v7338 = vadd.f32 %v7254, %v7289
      %v7339 = vadd.f32 %v7315, %v7317
      %v7340 = vadd.f32 %v7316, %v7318
      %v7341 = vadd.f32 %v7317, %v7319
      %v7342 = vadd.f32 %v7318, %v7320
      %v7343 = vadd.f32 %v7319, %v7321
      %v7344 = vadd.f32 %v7320, %v7322
      %v7345 = vadd.f32 %v7321, %v7323
      %v7346 = vadd.f32 %v7322, %v7324
      %v7347 = vadd.f32 %v7323, %v7325
      %v7348 = vadd.f32 %v7324, %v7326
      %v7349 = vadd.f32 %v7325, %v7327
      %v7350 = vadd.f32 %v7326, %v7328
      %v7351 = vadd.f32 %v7327, %v7329
      %v7352 = vadd.f32 %v7328, %v7330
      %v7353 = vadd.f32 %v7329, %v7331
      %v7354 = vadd.f32 %v7330, %v7332
      %v7355 = vadd.f32 %v7339, %v7319
      %v7356 = vadd.f32 %v7340, %v7320
      %v7357 = vadd.f32 %v7341, %v7321
      %v7358 = vadd.f32 %v7342, %v7322
      %v7359 = vadd.f32 %v7343, %v7323
      %v7360 = vadd.f32 %v7344, %v7324
      %v7361 = vadd.f32 %v7345, %v7325
      %v7362 = vadd.f32 %v7346, %v7326
      %v7363 = vadd.f32 %v7347, %v7327
      %v7364 = vadd.f32 %v7348, %v7328
      %v7365 = vadd.f32 %v7349, %v7329
      %v7366 = vadd.f32 %v7350, %v7330
      %v7367 = vadd.f32 %v7351, %v7331
      %v7368 = vadd.f32 %v7352, %v7332
      %v7369 = vadd.f32 %v7353, %v7333
      %v7370 = vadd.f32 %v7354, %v7334
      %v7371 = vadd.f32 %v7355, %v7321
      %v7372 = vadd.f32 %v7356, %v7322
      %v7373 = vadd.f32 %v7357, %v7323
      %v7374 = vadd.f32 %v7358, %v7324
      %v7375 = vadd.f32 %v7359, %v7325
      %v7376 = vadd.f32 %v7360, %v7326
      %v7377 = vadd.f32 %v7361, %v7327
      %v7378 = vadd.f32 %v7362, %v7328
      %v7379 = vadd.f32 %v7363, %v7329
      %v7380 = vadd.f32 %v7364, %v7330
      %v7381 = vadd.f32 %v7365, %v7331
      %v7382 = vadd.f32 %v7366, %v7332
      %v7383 = vadd.f32 %v7367, %v7333
      %v7384 = vadd.f32 %v7368, %v7334
      %v7385 = vadd.f32 %v7369, %v7335
      %v7386 = vadd.f32 %v7370, %v7336
      %v7387 = vadd.f32 %v7371, %v7323
      %v7388 = vadd.f32 %v7372, %v7324
      %v7389 = vadd.f32 %v7373, %v7325
      %v7390 = vadd.f32 %v7374, %v7326
      %v7391 = vadd.f32 %v7375, %v7327
      %v7392 = vadd.f32 %v7376, %v7328
      %v7393 = vadd.f32 %v7377, %v7329
      %v7394 = vadd.f32 %v7378, %v7330
      %v7395 = vadd.f32 %v7379, %v7331
      %v7396 = vadd.f32 %v7380, %v7332
      %v7397 = vadd.f32 %v7381, %v7333
      %v7398 = vadd.f32 %v7382, %v7334
      %v7399 = vadd.f32 %v7383, %v7335
      %v7400 = vadd.f32 %v7384, %v7336
      %v7401 = vadd.f32 %v7385, %v7337
      %v7402 = vadd.f32 %v7386, %v7338
      %v7403 = vmul.f32 %v7387, 0.008
      %v7404 = vmul.f32 %v7388, 0.008
      %v7405 = vmul.f32 %v7389, 0.008
      %v7406 = vmul.f32 %v7390, 0.008
      %v7407 = vmul.f32 %v7391, 0.008
      %v7408 = vmul.f32 %v7392, 0.008
      %v7409 = vmul.f32 %v7393, 0.008
      %v7410 = vmul.f32 %v7394, 0.008
      %v7411 = vmul.f32 %v7395, 0.008
      %v7412 = vmul.f32 %v7396, 0.008
      %v7413 = vmul.f32 %v7397, 0.008
      %v7414 = vmul.f32 %v7398, 0.008
      %v7415 = vmul.f32 %v7399, 0.008
      %v7416 = vmul.f32 %v7400, 0.008
      %v7417 = vmul.f32 %v7401, 0.008
      %v7418 = vmul.f32 %v7402, 0.008
      %s7419 = scalar_lea.vmem %s150, 384
      %7420 = vst.msk [vmem:[%s7419 - $0x2] sm:$0xfc] %vm1759, %v7403
      %7421 = vst.msk [vmem:[%s7419 + $0x6] sm:$0x3] %vm1761, %v7404
      %7422 = vst.msk [vmem:[%s7419 + $0x6] sm:$0xfc] %vm1759, %v7405
      %7423 = vst.msk [vmem:[%s7419 + $0xe] sm:$0x3] %vm1761, %v7406
      %7424 = vst.msk [vmem:[%s7419 + $0xe] sm:$0xfc] %vm1759, %v7407
      %7425 = vst.msk [vmem:[%s7419 + $0x16] sm:$0x3] %vm1761, %v7408
      %7426 = vst.msk [vmem:[%s7419 + $0x16] sm:$0xfc] %vm1759, %v7409
      %7427 = vst.msk [vmem:[%s7419 + $0x1e] sm:$0x3] %vm1761, %v7410
      %7428 = vst.msk [vmem:[%s7419 + $0x1e] sm:$0xfc] %vm1759, %v7411
      %7429 = vst.msk [vmem:[%s7419 + $0x26] sm:$0x3] %vm1761, %v7412
      %7430 = vst.msk [vmem:[%s7419 + $0x26] sm:$0xfc] %vm1759, %v7413
      %7431 = vst.msk [vmem:[%s7419 + $0x2e] sm:$0x3] %vm1761, %v7414
      %7432 = vst.msk [vmem:[%s7419 + $0x2e] sm:$0xfc] %vm1759, %v7415
      %7433 = vst.msk [vmem:[%s7419 + $0x36] sm:$0x3] %vm1761, %v7416
      %7434 = vst.msk [vmem:[%s7419 + $0x36] sm:$0xfc] %vm1759, %v7417
      %7435 = vst.msk [vmem:[%s7419 + $0x3e] sm:$0x3] %vm1761, %v7418
      %7452 = vrot.lane.b32.xlu0 %v7403, 2
      %v7453 = vpop.permute.xlu0 %7452
      %7454 = vrot.lane.b32.xlu0 %v7404, 2
      %v7455 = vpop.permute.xlu0 %7454
      %7456 = vrot.lane.b32.xlu0 %v7405, 2
      %v7457 = vpop.permute.xlu0 %7456
      %7458 = vrot.lane.b32.xlu0 %v7406, 2
      %v7459 = vpop.permute.xlu0 %7458
      %7460 = vrot.lane.b32.xlu0 %v7407, 2
      %v7461 = vpop.permute.xlu0 %7460
      %7462 = vrot.lane.b32.xlu0 %v7408, 2
      %v7463 = vpop.permute.xlu0 %7462
      %7464 = vrot.lane.b32.xlu0 %v7409, 2
      %v7465 = vpop.permute.xlu0 %7464
      %7466 = vrot.lane.b32.xlu0 %v7410, 2
      %v7467 = vpop.permute.xlu0 %7466
      %7468 = vrot.lane.b32.xlu0 %v7411, 2
      %v7469 = vpop.permute.xlu0 %7468
      %7470 = vrot.lane.b32.xlu0 %v7412, 2
      %v7471 = vpop.permute.xlu0 %7470
      %7472 = vrot.lane.b32.xlu0 %v7413, 2
      %v7473 = vpop.permute.xlu0 %7472
      %7474 = vrot.lane.b32.xlu0 %v7414, 2
      %v7475 = vpop.permute.xlu0 %7474
      %7476 = vrot.lane.b32.xlu0 %v7415, 2
      %v7477 = vpop.permute.xlu0 %7476
      %7478 = vrot.lane.b32.xlu0 %v7416, 2
      %v7479 = vpop.permute.xlu0 %7478
      %7480 = vrot.lane.b32.xlu0 %v7417, 2
      %v7481 = vpop.permute.xlu0 %7480
      %7482 = vrot.lane.b32.xlu0 %v7418, 2
      %v7483 = vpop.permute.xlu0 %7482
      %v7500 = vmin.f32 %v6419, %v7453
      %v7501 = vmin.f32 %v6420, %v7455
      %v7502 = vmin.f32 %v6421, %v7457
      %v7503 = vmin.f32 %v6422, %v7459
      %v7504 = vmin.f32 %v6423, %v7461
      %v7505 = vmin.f32 %v6424, %v7463
      %v7506 = vmin.f32 %v6425, %v7465
      %v7507 = vmin.f32 %v6426, %v7467
      %v7508 = vmin.f32 %v6427, %v7469
      %v7509 = vmin.f32 %v6428, %v7471
      %v7510 = vmin.f32 %v6429, %v7473
      %v7511 = vmin.f32 %v6430, %v7475
      %v7512 = vmin.f32 %v6431, %v7477
      %v7513 = vmin.f32 %v6432, %v7479
      %v7514 = vmin.f32 %v6433, %v7481
      %v7515 = vmin.f32 %v6434, %v7483
      %v7516 = vadd.f32 %v6435, %v7453
      %v7517 = vadd.f32 %v6436, %v7455
      %v7518 = vadd.f32 %v6437, %v7457
      %v7519 = vadd.f32 %v6438, %v7459
      %v7520 = vadd.f32 %v6439, %v7461
      %v7521 = vadd.f32 %v6440, %v7463
      %v7522 = vadd.f32 %v6441, %v7465
      %v7523 = vadd.f32 %v6442, %v7467
      %v7524 = vadd.f32 %v6443, %v7469
      %v7525 = vadd.f32 %v6444, %v7471
      %v7526 = vadd.f32 %v6445, %v7473
      %v7527 = vadd.f32 %v6446, %v7475
      %v7528 = vadd.f32 %v6447, %v7477
      %v7529 = vadd.f32 %v6448, %v7479
      %v7530 = vadd.f32 %v6449, %v7481
      %v7531 = vadd.f32 %v6450, %v7483
      %7532 = vrot.lane.b32.xlu0 %v566, 2
      %v7533 = vpop.permute.xlu0 %7532
      %7534 = vrot.lane.b32.xlu0 %v567, 2
      %v7535 = vpop.permute.xlu0 %7534
      %7536 = vrot.lane.b32.xlu0 %v568, 2
      %v7537 = vpop.permute.xlu0 %7536
      %7538 = vrot.lane.b32.xlu0 %v569, 2
      %v7539 = vpop.permute.xlu0 %7538
      %7540 = vrot.lane.b32.xlu0 %v570, 2
      %v7541 = vpop.permute.xlu0 %7540
      %7542 = vrot.lane.b32.xlu0 %v571, 2
      %v7543 = vpop.permute.xlu0 %7542
      %7544 = vrot.lane.b32.xlu0 %v572, 2
      %v7545 = vpop.permute.xlu0 %7544
      %7546 = vrot.lane.b32.xlu0 %v573, 2
      %v7547 = vpop.permute.xlu0 %7546
      %7548 = vrot.lane.b32.xlu0 %v574, 2
      %v7549 = vpop.permute.xlu0 %7548
      %7550 = vrot.lane.b32.xlu0 %v575, 2
      %v7551 = vpop.permute.xlu0 %7550
      %7552 = vrot.lane.b32.xlu0 %v576, 2
      %v7553 = vpop.permute.xlu0 %7552
      %7554 = vrot.lane.b32.xlu0 %v577, 2
      %v7555 = vpop.permute.xlu0 %7554
      %7556 = vrot.lane.b32.xlu0 %v578, 2
      %v7557 = vpop.permute.xlu0 %7556
      %7558 = vrot.lane.b32.xlu0 %v579, 2
      %v7559 = vpop.permute.xlu0 %7558
      %7560 = vrot.lane.b32.xlu0 %v580, 2
      %v7561 = vpop.permute.xlu0 %7560
      %7562 = vrot.lane.b32.xlu0 %v581, 2
      %v7563 = vpop.permute.xlu0 %7562
      %7564 = vrot.lane.b32.xlu0 %v582, 2
      %v7565 = vpop.permute.xlu0 %7564
      %7566 = vrot.lane.b32.xlu0 %v583, 2
      %v7567 = vpop.permute.xlu0 %7566
      %7568 = vrot.lane.b32.xlu0 %v584, 2
      %v7569 = vpop.permute.xlu0 %7568
      %7570 = vrot.lane.b32.xlu0 %v585, 2
      %v7571 = vpop.permute.xlu0 %7570
      %7572 = vrot.lane.b32.xlu0 %v586, 2
      %v7573 = vpop.permute.xlu0 %7572
      %7574 = vrot.lane.b32.xlu0 %v587, 2
      %v7575 = vpop.permute.xlu0 %7574
      %7576 = vrot.lane.b32.xlu0 %v588, 2
      %v7577 = vpop.permute.xlu0 %7576
      %7578 = vrot.lane.b32.xlu0 %v589, 2
      %v7579 = vpop.permute.xlu0 %7578
      %v7604 = vsub.f32 %v590, %v7533
      %v7605 = vsub.f32 %v591, %v7535
      %v7606 = vsub.f32 %v592, %v7537
      %v7607 = vsub.f32 %v593, %v7539
      %v7608 = vsub.f32 %v167, %v7541
      %v7609 = vsub.f32 %v168, %v7543
      %v7610 = vsub.f32 %v594, %v7545
      %v7611 = vsub.f32 %v595, %v7547
      %v7612 = vsub.f32 %v596, %v7549
      %v7613 = vsub.f32 %v597, %v7551
      %v7614 = vsub.f32 %v598, %v7553
      %v7615 = vsub.f32 %v599, %v7555
      %v7616 = vsub.f32 %v600, %v7557
      %v7617 = vsub.f32 %v601, %v7559
      %v7618 = vsub.f32 %v602, %v7561
      %v7619 = vsub.f32 %v603, %v7563
      %v7620 = vsub.f32 %v604, %v7565
      %v7621 = vsub.f32 %v605, %v7567
      %v7622 = vsub.f32 %v606, %v7569
      %v7623 = vsub.f32 %v607, %v7571
      %v7624 = vsub.f32 %v608, %v7573
      %v7625 = vsub.f32 %v609, %v7575
      %v7626 = vsub.f32 %v610, %v7577
      %v7627 = vsub.f32 %v611, %v7579
      %v7628 = vmul.f32 %v7604, %v7604
      %v7629 = vmul.f32 %v7605, %v7605
      %v7630 = vmul.f32 %v7606, %v7606
      %v7631 = vmul.f32 %v7607, %v7607
      %v7632 = vmul.f32 %v7608, %v7608
      %v7633 = vmul.f32 %v7609, %v7609
      %v7634 = vmul.f32 %v7610, %v7610
      %v7635 = vmul.f32 %v7611, %v7611
      %v7636 = vmul.f32 %v7612, %v7612
      %v7637 = vmul.f32 %v7613, %v7613
      %v7638 = vmul.f32 %v7614, %v7614
      %v7639 = vmul.f32 %v7615, %v7615
      %v7640 = vmul.f32 %v7616, %v7616
      %v7641 = vmul.f32 %v7617, %v7617
      %v7642 = vmul.f32 %v7618, %v7618
      %v7643 = vmul.f32 %v7619, %v7619
      %v7644 = vmul.f32 %v7620, %v7620
      %v7645 = vmul.f32 %v7621, %v7621
      %v7646 = vmul.f32 %v7622, %v7622
      %v7647 = vmul.f32 %v7623, %v7623
      %v7648 = vmul.f32 %v7624, %v7624
      %v7649 = vmul.f32 %v7625, %v7625
      %v7650 = vmul.f32 %v7626, %v7626
      %v7651 = vmul.f32 %v7627, %v7627
      %7676 = vrot.lane.b32.xlu0 %v7628, 127
      %v7677 = vpop.permute.xlu0 %7676
      %7678 = vrot.lane.b32.xlu0 %v7629, 127
      %v7679 = vpop.permute.xlu0 %7678
      %7680 = vrot.lane.b32.xlu0 %v7630, 127
      %v7681 = vpop.permute.xlu0 %7680
      %7682 = vrot.lane.b32.xlu0 %v7631, 127
      %v7683 = vpop.permute.xlu0 %7682
      %7684 = vrot.lane.b32.xlu0 %v7632, 127
      %v7685 = vpop.permute.xlu0 %7684
      %7686 = vrot.lane.b32.xlu0 %v7633, 127
      %v7687 = vpop.permute.xlu0 %7686
      %7688 = vrot.lane.b32.xlu0 %v7634, 127
      %v7689 = vpop.permute.xlu0 %7688
      %7690 = vrot.lane.b32.xlu0 %v7635, 127
      %v7691 = vpop.permute.xlu0 %7690
      %7692 = vrot.lane.b32.xlu0 %v7636, 127
      %v7693 = vpop.permute.xlu0 %7692
      %7694 = vrot.lane.b32.xlu0 %v7637, 127
      %v7695 = vpop.permute.xlu0 %7694
      %7696 = vrot.lane.b32.xlu0 %v7638, 127
      %v7697 = vpop.permute.xlu0 %7696
      %7698 = vrot.lane.b32.xlu0 %v7639, 127
      %v7699 = vpop.permute.xlu0 %7698
      %7700 = vrot.lane.b32.xlu0 %v7640, 127
      %v7701 = vpop.permute.xlu0 %7700
      %7702 = vrot.lane.b32.xlu0 %v7641, 127
      %v7703 = vpop.permute.xlu0 %7702
      %7704 = vrot.lane.b32.xlu0 %v7642, 127
      %v7705 = vpop.permute.xlu0 %7704
      %7706 = vrot.lane.b32.xlu0 %v7643, 127
      %v7707 = vpop.permute.xlu0 %7706
      %7708 = vrot.lane.b32.xlu0 %v7644, 127
      %v7709 = vpop.permute.xlu0 %7708
      %7710 = vrot.lane.b32.xlu0 %v7645, 127
      %v7711 = vpop.permute.xlu0 %7710
      %7712 = vrot.lane.b32.xlu0 %v7646, 127
      %v7713 = vpop.permute.xlu0 %7712
      %7714 = vrot.lane.b32.xlu0 %v7647, 127
      %v7715 = vpop.permute.xlu0 %7714
      %7716 = vrot.lane.b32.xlu0 %v7648, 127
      %v7717 = vpop.permute.xlu0 %7716
      %7718 = vrot.lane.b32.xlu0 %v7649, 127
      %v7719 = vpop.permute.xlu0 %7718
      %7720 = vrot.lane.b32.xlu0 %v7650, 127
      %v7721 = vpop.permute.xlu0 %7720
      %7722 = vrot.lane.b32.xlu0 %v7651, 127
      %v7723 = vpop.permute.xlu0 %7722
      %v7748 = vadd.f32 %v7628, %v7677
      %v7749 = vadd.f32 %v7629, %v7679
      %v7750 = vadd.f32 %v7630, %v7681
      %v7751 = vadd.f32 %v7631, %v7683
      %v7752 = vadd.f32 %v7632, %v7685
      %v7753 = vadd.f32 %v7633, %v7687
      %v7754 = vadd.f32 %v7634, %v7689
      %v7755 = vadd.f32 %v7635, %v7691
      %v7756 = vadd.f32 %v7636, %v7693
      %v7757 = vadd.f32 %v7637, %v7695
      %v7758 = vadd.f32 %v7638, %v7697
      %v7759 = vadd.f32 %v7639, %v7699
      %v7760 = vadd.f32 %v7640, %v7701
      %v7761 = vadd.f32 %v7641, %v7703
      %v7762 = vadd.f32 %v7642, %v7705
      %v7763 = vadd.f32 %v7643, %v7707
      %v7764 = vadd.f32 %v7644, %v7709
      %v7765 = vadd.f32 %v7645, %v7711
      %v7766 = vadd.f32 %v7646, %v7713
      %v7767 = vadd.f32 %v7647, %v7715
      %v7768 = vadd.f32 %v7648, %v7717
      %v7769 = vadd.f32 %v7649, %v7719
      %v7770 = vadd.f32 %v7650, %v7721
      %v7771 = vadd.f32 %v7651, %v7723
      %7772 = vrot.lane.b32.xlu0 %v7628, 126
      %v7773 = vpop.permute.xlu0 %7772
      %7774 = vrot.lane.b32.xlu0 %v7629, 126
      %v7775 = vpop.permute.xlu0 %7774
      %7776 = vrot.lane.b32.xlu0 %v7630, 126
      %v7777 = vpop.permute.xlu0 %7776
      %7778 = vrot.lane.b32.xlu0 %v7631, 126
      %v7779 = vpop.permute.xlu0 %7778
      %7780 = vrot.lane.b32.xlu0 %v7632, 126
      %v7781 = vpop.permute.xlu0 %7780
      %7782 = vrot.lane.b32.xlu0 %v7633, 126
      %v7783 = vpop.permute.xlu0 %7782
      %7784 = vrot.lane.b32.xlu0 %v7634, 126
      %v7785 = vpop.permute.xlu0 %7784
      %7786 = vrot.lane.b32.xlu0 %v7635, 126
      %v7787 = vpop.permute.xlu0 %7786
      %7788 = vrot.lane.b32.xlu0 %v7636, 126
      %v7789 = vpop.permute.xlu0 %7788
      %7790 = vrot.lane.b32.xlu0 %v7637, 126
      %v7791 = vpop.permute.xlu0 %7790
      %7792 = vrot.lane.b32.xlu0 %v7638, 126
      %v7793 = vpop.permute.xlu0 %7792
      %7794 = vrot.lane.b32.xlu0 %v7639, 126
      %v7795 = vpop.permute.xlu0 %7794
      %7796 = vrot.lane.b32.xlu0 %v7640, 126
      %v7797 = vpop.permute.xlu0 %7796
      %7798 = vrot.lane.b32.xlu0 %v7641, 126
      %v7799 = vpop.permute.xlu0 %7798
      %7800 = vrot.lane.b32.xlu0 %v7642, 126
      %v7801 = vpop.permute.xlu0 %7800
      %7802 = vrot.lane.b32.xlu0 %v7643, 126
      %v7803 = vpop.permute.xlu0 %7802
      %7804 = vrot.lane.b32.xlu0 %v7644, 126
      %v7805 = vpop.permute.xlu0 %7804
      %7806 = vrot.lane.b32.xlu0 %v7645, 126
      %v7807 = vpop.permute.xlu0 %7806
      %7808 = vrot.lane.b32.xlu0 %v7646, 126
      %v7809 = vpop.permute.xlu0 %7808
      %7810 = vrot.lane.b32.xlu0 %v7647, 126
      %v7811 = vpop.permute.xlu0 %7810
      %7812 = vrot.lane.b32.xlu0 %v7648, 126
      %v7813 = vpop.permute.xlu0 %7812
      %7814 = vrot.lane.b32.xlu0 %v7649, 126
      %v7815 = vpop.permute.xlu0 %7814
      %7816 = vrot.lane.b32.xlu0 %v7650, 126
      %v7817 = vpop.permute.xlu0 %7816
      %7818 = vrot.lane.b32.xlu0 %v7651, 126
      %v7819 = vpop.permute.xlu0 %7818
      %v7844 = vadd.f32 %v7748, %v7773
      %v7845 = vadd.f32 %v7749, %v7775
      %v7846 = vadd.f32 %v7750, %v7777
      %v7847 = vadd.f32 %v7751, %v7779
      %v7848 = vadd.f32 %v7752, %v7781
      %v7849 = vadd.f32 %v7753, %v7783
      %v7850 = vadd.f32 %v7754, %v7785
      %v7851 = vadd.f32 %v7755, %v7787
      %v7852 = vadd.f32 %v7756, %v7789
      %v7853 = vadd.f32 %v7757, %v7791
      %v7854 = vadd.f32 %v7758, %v7793
      %v7855 = vadd.f32 %v7759, %v7795
      %v7856 = vadd.f32 %v7760, %v7797
      %v7857 = vadd.f32 %v7761, %v7799
      %v7858 = vadd.f32 %v7762, %v7801
      %v7859 = vadd.f32 %v7763, %v7803
      %v7860 = vadd.f32 %v7764, %v7805
      %v7861 = vadd.f32 %v7765, %v7807
      %v7862 = vadd.f32 %v7766, %v7809
      %v7863 = vadd.f32 %v7767, %v7811
      %v7864 = vadd.f32 %v7768, %v7813
      %v7865 = vadd.f32 %v7769, %v7815
      %v7866 = vadd.f32 %v7770, %v7817
      %v7867 = vadd.f32 %v7771, %v7819
      %7868 = vrot.lane.b32.xlu0 %v7628, 125
      %v7869 = vpop.permute.xlu0 %7868
      %7870 = vrot.lane.b32.xlu0 %v7629, 125
      %v7871 = vpop.permute.xlu0 %7870
      %7872 = vrot.lane.b32.xlu0 %v7630, 125
      %v7873 = vpop.permute.xlu0 %7872
      %7874 = vrot.lane.b32.xlu0 %v7631, 125
      %v7875 = vpop.permute.xlu0 %7874
      %7876 = vrot.lane.b32.xlu0 %v7632, 125
      %v7877 = vpop.permute.xlu0 %7876
      %7878 = vrot.lane.b32.xlu0 %v7633, 125
      %v7879 = vpop.permute.xlu0 %7878
      %7880 = vrot.lane.b32.xlu0 %v7634, 125
      %v7881 = vpop.permute.xlu0 %7880
      %7882 = vrot.lane.b32.xlu0 %v7635, 125
      %v7883 = vpop.permute.xlu0 %7882
      %7884 = vrot.lane.b32.xlu0 %v7636, 125
      %v7885 = vpop.permute.xlu0 %7884
      %7886 = vrot.lane.b32.xlu0 %v7637, 125
      %v7887 = vpop.permute.xlu0 %7886
      %7888 = vrot.lane.b32.xlu0 %v7638, 125
      %v7889 = vpop.permute.xlu0 %7888
      %7890 = vrot.lane.b32.xlu0 %v7639, 125
      %v7891 = vpop.permute.xlu0 %7890
      %7892 = vrot.lane.b32.xlu0 %v7640, 125
      %v7893 = vpop.permute.xlu0 %7892
      %7894 = vrot.lane.b32.xlu0 %v7641, 125
      %v7895 = vpop.permute.xlu0 %7894
      %7896 = vrot.lane.b32.xlu0 %v7642, 125
      %v7897 = vpop.permute.xlu0 %7896
      %7898 = vrot.lane.b32.xlu0 %v7643, 125
      %v7899 = vpop.permute.xlu0 %7898
      %7900 = vrot.lane.b32.xlu0 %v7644, 125
      %v7901 = vpop.permute.xlu0 %7900
      %7902 = vrot.lane.b32.xlu0 %v7645, 125
      %v7903 = vpop.permute.xlu0 %7902
      %7904 = vrot.lane.b32.xlu0 %v7646, 125
      %v7905 = vpop.permute.xlu0 %7904
      %7906 = vrot.lane.b32.xlu0 %v7647, 125
      %v7907 = vpop.permute.xlu0 %7906
      %7908 = vrot.lane.b32.xlu0 %v7648, 125
      %v7909 = vpop.permute.xlu0 %7908
      %7910 = vrot.lane.b32.xlu0 %v7649, 125
      %v7911 = vpop.permute.xlu0 %7910
      %7912 = vrot.lane.b32.xlu0 %v7650, 125
      %v7913 = vpop.permute.xlu0 %7912
      %7914 = vrot.lane.b32.xlu0 %v7651, 125
      %v7915 = vpop.permute.xlu0 %7914
      %v7940 = vadd.f32 %v7844, %v7869
      %v7941 = vadd.f32 %v7845, %v7871
      %v7942 = vadd.f32 %v7846, %v7873
      %v7943 = vadd.f32 %v7847, %v7875
      %v7944 = vadd.f32 %v7848, %v7877
      %v7945 = vadd.f32 %v7849, %v7879
      %v7946 = vadd.f32 %v7850, %v7881
      %v7947 = vadd.f32 %v7851, %v7883
      %v7948 = vadd.f32 %v7852, %v7885
      %v7949 = vadd.f32 %v7853, %v7887
      %v7950 = vadd.f32 %v7854, %v7889
      %v7951 = vadd.f32 %v7855, %v7891
      %v7952 = vadd.f32 %v7856, %v7893
      %v7953 = vadd.f32 %v7857, %v7895
      %v7954 = vadd.f32 %v7858, %v7897
      %v7955 = vadd.f32 %v7859, %v7899
      %v7956 = vadd.f32 %v7860, %v7901
      %v7957 = vadd.f32 %v7861, %v7903
      %v7958 = vadd.f32 %v7862, %v7905
      %v7959 = vadd.f32 %v7863, %v7907
      %v7960 = vadd.f32 %v7864, %v7909
      %v7961 = vadd.f32 %v7865, %v7911
      %v7962 = vadd.f32 %v7866, %v7913
      %v7963 = vadd.f32 %v7867, %v7915
      %7964 = vrot.lane.b32.xlu0 %v7628, 124
      %v7965 = vpop.permute.xlu0 %7964
      %7966 = vrot.lane.b32.xlu0 %v7629, 124
      %v7967 = vpop.permute.xlu0 %7966
      %7968 = vrot.lane.b32.xlu0 %v7630, 124
      %v7969 = vpop.permute.xlu0 %7968
      %7970 = vrot.lane.b32.xlu0 %v7631, 124
      %v7971 = vpop.permute.xlu0 %7970
      %7972 = vrot.lane.b32.xlu0 %v7632, 124
      %v7973 = vpop.permute.xlu0 %7972
      %7974 = vrot.lane.b32.xlu0 %v7633, 124
      %v7975 = vpop.permute.xlu0 %7974
      %7976 = vrot.lane.b32.xlu0 %v7634, 124
      %v7977 = vpop.permute.xlu0 %7976
      %7978 = vrot.lane.b32.xlu0 %v7635, 124
      %v7979 = vpop.permute.xlu0 %7978
      %7980 = vrot.lane.b32.xlu0 %v7636, 124
      %v7981 = vpop.permute.xlu0 %7980
      %7982 = vrot.lane.b32.xlu0 %v7637, 124
      %v7983 = vpop.permute.xlu0 %7982
      %7984 = vrot.lane.b32.xlu0 %v7638, 124
      %v7985 = vpop.permute.xlu0 %7984
      %7986 = vrot.lane.b32.xlu0 %v7639, 124
      %v7987 = vpop.permute.xlu0 %7986
      %7988 = vrot.lane.b32.xlu0 %v7640, 124
      %v7989 = vpop.permute.xlu0 %7988
      %7990 = vrot.lane.b32.xlu0 %v7641, 124
      %v7991 = vpop.permute.xlu0 %7990
      %7992 = vrot.lane.b32.xlu0 %v7642, 124
      %v7993 = vpop.permute.xlu0 %7992
      %7994 = vrot.lane.b32.xlu0 %v7643, 124
      %v7995 = vpop.permute.xlu0 %7994
      %7996 = vrot.lane.b32.xlu0 %v7644, 124
      %v7997 = vpop.permute.xlu0 %7996
      %7998 = vrot.lane.b32.xlu0 %v7645, 124
      %v7999 = vpop.permute.xlu0 %7998
      %8000 = vrot.lane.b32.xlu0 %v7646, 124
      %v8001 = vpop.permute.xlu0 %8000
      %8002 = vrot.lane.b32.xlu0 %v7647, 124
      %v8003 = vpop.permute.xlu0 %8002
      %8004 = vrot.lane.b32.xlu0 %v7648, 124
      %v8005 = vpop.permute.xlu0 %8004
      %8006 = vrot.lane.b32.xlu0 %v7649, 124
      %v8007 = vpop.permute.xlu0 %8006
      %8008 = vrot.lane.b32.xlu0 %v7650, 124
      %v8009 = vpop.permute.xlu0 %8008
      %8010 = vrot.lane.b32.xlu0 %v7651, 124
      %v8011 = vpop.permute.xlu0 %8010
      %v8036 = vadd.f32 %v7940, %v7965
      %v8037 = vadd.f32 %v7941, %v7967
      %v8038 = vadd.f32 %v7942, %v7969
      %v8039 = vadd.f32 %v7943, %v7971
      %v8040 = vadd.f32 %v7944, %v7973
      %v8041 = vadd.f32 %v7945, %v7975
      %v8042 = vadd.f32 %v7946, %v7977
      %v8043 = vadd.f32 %v7947, %v7979
      %v8044 = vadd.f32 %v7948, %v7981
      %v8045 = vadd.f32 %v7949, %v7983
      %v8046 = vadd.f32 %v7950, %v7985
      %v8047 = vadd.f32 %v7951, %v7987
      %v8048 = vadd.f32 %v7952, %v7989
      %v8049 = vadd.f32 %v7953, %v7991
      %v8050 = vadd.f32 %v7954, %v7993
      %v8051 = vadd.f32 %v7955, %v7995
      %v8052 = vadd.f32 %v7956, %v7997
      %v8053 = vadd.f32 %v7957, %v7999
      %v8054 = vadd.f32 %v7958, %v8001
      %v8055 = vadd.f32 %v7959, %v8003
      %v8056 = vadd.f32 %v7960, %v8005
      %v8057 = vadd.f32 %v7961, %v8007
      %v8058 = vadd.f32 %v7962, %v8009
      %v8059 = vadd.f32 %v7963, %v8011
      %v8084 = vrot.slane %v8036, 1
      %v8085 = vrot.slane %v8037, 1
      %v8086 = vsel %vm1276, %v8084, %v8085
      %v8087 = vrot.slane %v8038, 1
      %v8088 = vrot.slane %v8039, 1
      %v8089 = vsel %vm1276, %v8087, %v8088
      %v8090 = vrot.slane %v8040, 1
      %v8091 = vrot.slane %v8041, 1
      %v8092 = vsel %vm1276, %v8090, %v8091
      %v8093 = vrot.slane %v8042, 1
      %v8094 = vrot.slane %v8043, 1
      %v8095 = vsel %vm1276, %v8093, %v8094
      %v8096 = vrot.slane %v8044, 1
      %v8097 = vrot.slane %v8045, 1
      %v8098 = vsel %vm1276, %v8096, %v8097
      %v8099 = vrot.slane %v8046, 1
      %v8100 = vrot.slane %v8047, 1
      %v8101 = vsel %vm1276, %v8099, %v8100
      %v8102 = vrot.slane %v8048, 1
      %v8103 = vrot.slane %v8049, 1
      %v8104 = vsel %vm1276, %v8102, %v8103
      %v8105 = vrot.slane %v8050, 1
      %v8106 = vrot.slane %v8051, 1
      %v8107 = vsel %vm1276, %v8105, %v8106
      %v8108 = vrot.slane %v8052, 1
      %v8109 = vrot.slane %v8053, 1
      %v8110 = vsel %vm1276, %v8108, %v8109
      %v8111 = vrot.slane %v8054, 1
      %v8112 = vrot.slane %v8055, 1
      %v8113 = vsel %vm1276, %v8111, %v8112
      %v8114 = vrot.slane %v8056, 1
      %v8115 = vrot.slane %v8057, 1
      %v8116 = vsel %vm1276, %v8114, %v8115
      %v8117 = vrot.slane %v8058, 1
      %v8118 = vrot.slane %v8059, 1
      %v8119 = vsel %vm1276, %v8117, %v8118
      %v8144 = vadd.f32 %v8036, %v8086
      %v8145 = vadd.f32 %v8037, %v8085
      %v8146 = vadd.f32 %v8038, %v8089
      %v8147 = vadd.f32 %v8039, %v8088
      %v8148 = vadd.f32 %v8040, %v8092
      %v8149 = vadd.f32 %v8041, %v8091
      %v8150 = vadd.f32 %v8042, %v8095
      %v8151 = vadd.f32 %v8043, %v8094
      %v8152 = vadd.f32 %v8044, %v8098
      %v8153 = vadd.f32 %v8045, %v8097
      %v8154 = vadd.f32 %v8046, %v8101
      %v8155 = vadd.f32 %v8047, %v8100
      %v8156 = vadd.f32 %v8048, %v8104
      %v8157 = vadd.f32 %v8049, %v8103
      %v8158 = vadd.f32 %v8050, %v8107
      %v8159 = vadd.f32 %v8051, %v8106
      %v8160 = vadd.f32 %v8052, %v8110
      %v8161 = vadd.f32 %v8053, %v8109
      %v8162 = vadd.f32 %v8054, %v8113
      %v8163 = vadd.f32 %v8055, %v8112
      %v8164 = vadd.f32 %v8056, %v8116
      %v8165 = vadd.f32 %v8057, %v8115
      %v8166 = vadd.f32 %v8058, %v8119
      %v8167 = vadd.f32 %v8059, %v8118
      %v8168 = vrot.slane %v8036, 2
      %v8169 = vrot.slane %v8037, 2
      %v8170 = vsel %vm1361, %v8168, %v8169
      %v8171 = vrot.slane %v8038, 2
      %v8172 = vrot.slane %v8039, 2
      %v8173 = vsel %vm1361, %v8171, %v8172
      %v8174 = vrot.slane %v8040, 2
      %v8175 = vrot.slane %v8041, 2
      %v8176 = vsel %vm1361, %v8174, %v8175
      %v8177 = vrot.slane %v8042, 2
      %v8178 = vrot.slane %v8043, 2
      %v8179 = vsel %vm1361, %v8177, %v8178
      %v8180 = vrot.slane %v8044, 2
      %v8181 = vrot.slane %v8045, 2
      %v8182 = vsel %vm1361, %v8180, %v8181
      %v8183 = vrot.slane %v8046, 2
      %v8184 = vrot.slane %v8047, 2
      %v8185 = vsel %vm1361, %v8183, %v8184
      %v8186 = vrot.slane %v8048, 2
      %v8187 = vrot.slane %v8049, 2
      %v8188 = vsel %vm1361, %v8186, %v8187
      %v8189 = vrot.slane %v8050, 2
      %v8190 = vrot.slane %v8051, 2
      %v8191 = vsel %vm1361, %v8189, %v8190
      %v8192 = vrot.slane %v8052, 2
      %v8193 = vrot.slane %v8053, 2
      %v8194 = vsel %vm1361, %v8192, %v8193
      %v8195 = vrot.slane %v8054, 2
      %v8196 = vrot.slane %v8055, 2
      %v8197 = vsel %vm1361, %v8195, %v8196
      %v8198 = vrot.slane %v8056, 2
      %v8199 = vrot.slane %v8057, 2
      %v8200 = vsel %vm1361, %v8198, %v8199
      %v8201 = vrot.slane %v8058, 2
      %v8202 = vrot.slane %v8059, 2
      %v8203 = vsel %vm1361, %v8201, %v8202
      %v8228 = vadd.f32 %v8144, %v8170
      %v8229 = vadd.f32 %v8145, %v8169
      %v8230 = vadd.f32 %v8146, %v8173
      %v8231 = vadd.f32 %v8147, %v8172
      %v8232 = vadd.f32 %v8148, %v8176
      %v8233 = vadd.f32 %v8149, %v8175
      %v8234 = vadd.f32 %v8150, %v8179
      %v8235 = vadd.f32 %v8151, %v8178
      %v8236 = vadd.f32 %v8152, %v8182
      %v8237 = vadd.f32 %v8153, %v8181
      %v8238 = vadd.f32 %v8154, %v8185
      %v8239 = vadd.f32 %v8155, %v8184
      %v8240 = vadd.f32 %v8156, %v8188
      %v8241 = vadd.f32 %v8157, %v8187
      %v8242 = vadd.f32 %v8158, %v8191
      %v8243 = vadd.f32 %v8159, %v8190
      %v8244 = vadd.f32 %v8160, %v8194
      %v8245 = vadd.f32 %v8161, %v8193
      %v8246 = vadd.f32 %v8162, %v8197
      %v8247 = vadd.f32 %v8163, %v8196
      %v8248 = vadd.f32 %v8164, %v8200
      %v8249 = vadd.f32 %v8165, %v8199
      %v8250 = vadd.f32 %v8166, %v8203
      %v8251 = vadd.f32 %v8167, %v8202
      %v8252 = vrot.slane %v8036, 3
      %v8253 = vrot.slane %v8037, 3
      %v8254 = vsel %vm1446, %v8252, %v8253
      %v8255 = vrot.slane %v8038, 3
      %v8256 = vrot.slane %v8039, 3
      %v8257 = vsel %vm1446, %v8255, %v8256
      %v8258 = vrot.slane %v8040, 3
      %v8259 = vrot.slane %v8041, 3
      %v8260 = vsel %vm1446, %v8258, %v8259
      %v8261 = vrot.slane %v8042, 3
      %v8262 = vrot.slane %v8043, 3
      %v8263 = vsel %vm1446, %v8261, %v8262
      %v8264 = vrot.slane %v8044, 3
      %v8265 = vrot.slane %v8045, 3
      %v8266 = vsel %vm1446, %v8264, %v8265
      %v8267 = vrot.slane %v8046, 3
      %v8268 = vrot.slane %v8047, 3
      %v8269 = vsel %vm1446, %v8267, %v8268
      %v8270 = vrot.slane %v8048, 3
      %v8271 = vrot.slane %v8049, 3
      %v8272 = vsel %vm1446, %v8270, %v8271
      %v8273 = vrot.slane %v8050, 3
      %v8274 = vrot.slane %v8051, 3
      %v8275 = vsel %vm1446, %v8273, %v8274
      %v8276 = vrot.slane %v8052, 3
      %v8277 = vrot.slane %v8053, 3
      %v8278 = vsel %vm1446, %v8276, %v8277
      %v8279 = vrot.slane %v8054, 3
      %v8280 = vrot.slane %v8055, 3
      %v8281 = vsel %vm1446, %v8279, %v8280
      %v8282 = vrot.slane %v8056, 3
      %v8283 = vrot.slane %v8057, 3
      %v8284 = vsel %vm1446, %v8282, %v8283
      %v8285 = vrot.slane %v8058, 3
      %v8286 = vrot.slane %v8059, 3
      %v8287 = vsel %vm1446, %v8285, %v8286
      %v8312 = vadd.f32 %v8228, %v8254
      %v8313 = vadd.f32 %v8229, %v8253
      %v8314 = vadd.f32 %v8230, %v8257
      %v8315 = vadd.f32 %v8231, %v8256
      %v8316 = vadd.f32 %v8232, %v8260
      %v8317 = vadd.f32 %v8233, %v8259
      %v8318 = vadd.f32 %v8234, %v8263
      %v8319 = vadd.f32 %v8235, %v8262
      %v8320 = vadd.f32 %v8236, %v8266
      %v8321 = vadd.f32 %v8237, %v8265
      %v8322 = vadd.f32 %v8238, %v8269
      %v8323 = vadd.f32 %v8239, %v8268
      %v8324 = vadd.f32 %v8240, %v8272
      %v8325 = vadd.f32 %v8241, %v8271
      %v8326 = vadd.f32 %v8242, %v8275
      %v8327 = vadd.f32 %v8243, %v8274
      %v8328 = vadd.f32 %v8244, %v8278
      %v8329 = vadd.f32 %v8245, %v8277
      %v8330 = vadd.f32 %v8246, %v8281
      %v8331 = vadd.f32 %v8247, %v8280
      %v8332 = vadd.f32 %v8248, %v8284
      %v8333 = vadd.f32 %v8249, %v8283
      %v8334 = vadd.f32 %v8250, %v8287
      %v8335 = vadd.f32 %v8251, %v8286
      %v8336 = vrot.slane %v8036, 4
      %v8337 = vrot.slane %v8037, 4
      %v8338 = vsel %vm626, %v8336, %v8337
      %v8339 = vrot.slane %v8038, 4
      %v8340 = vrot.slane %v8039, 4
      %v8341 = vsel %vm626, %v8339, %v8340
      %v8342 = vrot.slane %v8040, 4
      %v8343 = vrot.slane %v8041, 4
      %v8344 = vsel %vm626, %v8342, %v8343
      %v8345 = vrot.slane %v8042, 4
      %v8346 = vrot.slane %v8043, 4
      %v8347 = vsel %vm626, %v8345, %v8346
      %v8348 = vrot.slane %v8044, 4
      %v8349 = vrot.slane %v8045, 4
      %v8350 = vsel %vm626, %v8348, %v8349
      %v8351 = vrot.slane %v8046, 4
      %v8352 = vrot.slane %v8047, 4
      %v8353 = vsel %vm626, %v8351, %v8352
      %v8354 = vrot.slane %v8048, 4
      %v8355 = vrot.slane %v8049, 4
      %v8356 = vsel %vm626, %v8354, %v8355
      %v8357 = vrot.slane %v8050, 4
      %v8358 = vrot.slane %v8051, 4
      %v8359 = vsel %vm626, %v8357, %v8358
      %v8360 = vrot.slane %v8052, 4
      %v8361 = vrot.slane %v8053, 4
      %v8362 = vsel %vm626, %v8360, %v8361
      %v8363 = vrot.slane %v8054, 4
      %v8364 = vrot.slane %v8055, 4
      %v8365 = vsel %vm626, %v8363, %v8364
      %v8366 = vrot.slane %v8056, 4
      %v8367 = vrot.slane %v8057, 4
      %v8368 = vsel %vm626, %v8366, %v8367
      %v8369 = vrot.slane %v8058, 4
      %v8370 = vrot.slane %v8059, 4
      %v8371 = vsel %vm626, %v8369, %v8370
      %v8396 = vadd.f32 %v8312, %v8338
      %v8397 = vadd.f32 %v8313, %v8337
      %v8398 = vadd.f32 %v8314, %v8341
      %v8399 = vadd.f32 %v8315, %v8340
      %v8400 = vadd.f32 %v8316, %v8344
      %v8401 = vadd.f32 %v8317, %v8343
      %v8402 = vadd.f32 %v8318, %v8347
      %v8403 = vadd.f32 %v8319, %v8346
      %v8404 = vadd.f32 %v8320, %v8350
      %v8405 = vadd.f32 %v8321, %v8349
      %v8406 = vadd.f32 %v8322, %v8353
      %v8407 = vadd.f32 %v8323, %v8352
      %v8408 = vadd.f32 %v8324, %v8356
      %v8409 = vadd.f32 %v8325, %v8355
      %v8410 = vadd.f32 %v8326, %v8359
      %v8411 = vadd.f32 %v8327, %v8358
      %v8412 = vadd.f32 %v8328, %v8362
      %v8413 = vadd.f32 %v8329, %v8361
      %v8414 = vadd.f32 %v8330, %v8365
      %v8415 = vadd.f32 %v8331, %v8364
      %v8416 = vadd.f32 %v8332, %v8368
      %v8417 = vadd.f32 %v8333, %v8367
      %v8418 = vadd.f32 %v8334, %v8371
      %v8419 = vadd.f32 %v8335, %v8370
      %v8420 = vadd.f32 %v8396, %v8398
      %v8421 = vadd.f32 %v8397, %v8399
      %v8422 = vadd.f32 %v8398, %v8400
      %v8423 = vadd.f32 %v8399, %v8401
      %v8424 = vadd.f32 %v8400, %v8402
      %v8425 = vadd.f32 %v8401, %v8403
      %v8426 = vadd.f32 %v8402, %v8404
      %v8427 = vadd.f32 %v8403, %v8405
      %v8428 = vadd.f32 %v8404, %v8406
      %v8429 = vadd.f32 %v8405, %v8407
      %v8430 = vadd.f32 %v8406, %v8408
      %v8431 = vadd.f32 %v8407, %v8409
      %v8432 = vadd.f32 %v8408, %v8410
      %v8433 = vadd.f32 %v8409, %v8411
      %v8434 = vadd.f32 %v8410, %v8412
      %v8435 = vadd.f32 %v8411, %v8413
      %v8436 = vadd.f32 %v8420, %v8400
      %v8437 = vadd.f32 %v8421, %v8401
      %v8438 = vadd.f32 %v8422, %v8402
      %v8439 = vadd.f32 %v8423, %v8403
      %v8440 = vadd.f32 %v8424, %v8404
      %v8441 = vadd.f32 %v8425, %v8405
      %v8442 = vadd.f32 %v8426, %v8406
      %v8443 = vadd.f32 %v8427, %v8407
      %v8444 = vadd.f32 %v8428, %v8408
      %v8445 = vadd.f32 %v8429, %v8409
      %v8446 = vadd.f32 %v8430, %v8410
      %v8447 = vadd.f32 %v8431, %v8411
      %v8448 = vadd.f32 %v8432, %v8412
      %v8449 = vadd.f32 %v8433, %v8413
      %v8450 = vadd.f32 %v8434, %v8414
      %v8451 = vadd.f32 %v8435, %v8415
      %v8452 = vadd.f32 %v8436, %v8402
      %v8453 = vadd.f32 %v8437, %v8403
      %v8454 = vadd.f32 %v8438, %v8404
      %v8455 = vadd.f32 %v8439, %v8405
      %v8456 = vadd.f32 %v8440, %v8406
      %v8457 = vadd.f32 %v8441, %v8407
      %v8458 = vadd.f32 %v8442, %v8408
      %v8459 = vadd.f32 %v8443, %v8409
      %v8460 = vadd.f32 %v8444, %v8410
      %v8461 = vadd.f32 %v8445, %v8411
      %v8462 = vadd.f32 %v8446, %v8412
      %v8463 = vadd.f32 %v8447, %v8413
      %v8464 = vadd.f32 %v8448, %v8414
      %v8465 = vadd.f32 %v8449, %v8415
      %v8466 = vadd.f32 %v8450, %v8416
      %v8467 = vadd.f32 %v8451, %v8417
      %v8468 = vadd.f32 %v8452, %v8404
      %v8469 = vadd.f32 %v8453, %v8405
      %v8470 = vadd.f32 %v8454, %v8406
      %v8471 = vadd.f32 %v8455, %v8407
      %v8472 = vadd.f32 %v8456, %v8408
      %v8473 = vadd.f32 %v8457, %v8409
      %v8474 = vadd.f32 %v8458, %v8410
      %v8475 = vadd.f32 %v8459, %v8411
      %v8476 = vadd.f32 %v8460, %v8412
      %v8477 = vadd.f32 %v8461, %v8413
      %v8478 = vadd.f32 %v8462, %v8414
      %v8479 = vadd.f32 %v8463, %v8415
      %v8480 = vadd.f32 %v8464, %v8416
      %v8481 = vadd.f32 %v8465, %v8417
      %v8482 = vadd.f32 %v8466, %v8418
      %v8483 = vadd.f32 %v8467, %v8419
      %v8484 = vmul.f32 %v8468, 0.008
      %v8485 = vmul.f32 %v8469, 0.008
      %v8486 = vmul.f32 %v8470, 0.008
      %v8487 = vmul.f32 %v8471, 0.008
      %v8488 = vmul.f32 %v8472, 0.008
      %v8489 = vmul.f32 %v8473, 0.008
      %v8490 = vmul.f32 %v8474, 0.008
      %v8491 = vmul.f32 %v8475, 0.008
      %v8492 = vmul.f32 %v8476, 0.008
      %v8493 = vmul.f32 %v8477, 0.008
      %v8494 = vmul.f32 %v8478, 0.008
      %v8495 = vmul.f32 %v8479, 0.008
      %v8496 = vmul.f32 %v8480, 0.008
      %v8497 = vmul.f32 %v8481, 0.008
      %v8498 = vmul.f32 %v8482, 0.008
      %v8499 = vmul.f32 %v8483, 0.008
      %8516 = vrot.lane.b32.xlu0 %v8484, 126
      %v8517 = vpop.permute.xlu0 %8516
      %8518 = vrot.lane.b32.xlu0 %v8485, 126
      %v8519 = vpop.permute.xlu0 %8518
      %8520 = vrot.lane.b32.xlu0 %v8486, 126
      %v8521 = vpop.permute.xlu0 %8520
      %8522 = vrot.lane.b32.xlu0 %v8487, 126
      %v8523 = vpop.permute.xlu0 %8522
      %8524 = vrot.lane.b32.xlu0 %v8488, 126
      %v8525 = vpop.permute.xlu0 %8524
      %8526 = vrot.lane.b32.xlu0 %v8489, 126
      %v8527 = vpop.permute.xlu0 %8526
      %8528 = vrot.lane.b32.xlu0 %v8490, 126
      %v8529 = vpop.permute.xlu0 %8528
      %8530 = vrot.lane.b32.xlu0 %v8491, 126
      %v8531 = vpop.permute.xlu0 %8530
      %8532 = vrot.lane.b32.xlu0 %v8492, 126
      %v8533 = vpop.permute.xlu0 %8532
      %8534 = vrot.lane.b32.xlu0 %v8493, 126
      %v8535 = vpop.permute.xlu0 %8534
      %8536 = vrot.lane.b32.xlu0 %v8494, 126
      %v8537 = vpop.permute.xlu0 %8536
      %8538 = vrot.lane.b32.xlu0 %v8495, 126
      %v8539 = vpop.permute.xlu0 %8538
      %8540 = vrot.lane.b32.xlu0 %v8496, 126
      %v8541 = vpop.permute.xlu0 %8540
      %8542 = vrot.lane.b32.xlu0 %v8497, 126
      %v8543 = vpop.permute.xlu0 %8542
      %8544 = vrot.lane.b32.xlu0 %v8498, 126
      %v8545 = vpop.permute.xlu0 %8544
      %8546 = vrot.lane.b32.xlu0 %v8499, 126
      %v8547 = vpop.permute.xlu0 %8546
      %s8564 = scalar_lea.vmem %s150, 448
      %8565 = vst.msk [vmem:[%s8564 - $0x2] sm:$0xfc] %vm1759, %v8517
      %8566 = vst.msk [vmem:[%s8564 + $0x6] sm:$0x3] %vm1761, %v8519
      %8567 = vst.msk [vmem:[%s8564 + $0x6] sm:$0xfc] %vm1759, %v8521
      %8568 = vst.msk [vmem:[%s8564 + $0xe] sm:$0x3] %vm1761, %v8523
      %8569 = vst.msk [vmem:[%s8564 + $0xe] sm:$0xfc] %vm1759, %v8525
      %8570 = vst.msk [vmem:[%s8564 + $0x16] sm:$0x3] %vm1761, %v8527
      %8571 = vst.msk [vmem:[%s8564 + $0x16] sm:$0xfc] %vm1759, %v8529
      %8572 = vst.msk [vmem:[%s8564 + $0x1e] sm:$0x3] %vm1761, %v8531
      %8573 = vst.msk [vmem:[%s8564 + $0x1e] sm:$0xfc] %vm1759, %v8533
      %8574 = vst.msk [vmem:[%s8564 + $0x26] sm:$0x3] %vm1761, %v8535
      %8575 = vst.msk [vmem:[%s8564 + $0x26] sm:$0xfc] %vm1759, %v8537
      %8576 = vst.msk [vmem:[%s8564 + $0x2e] sm:$0x3] %vm1761, %v8539
      %8577 = vst.msk [vmem:[%s8564 + $0x2e] sm:$0xfc] %vm1759, %v8541
      %8578 = vst.msk [vmem:[%s8564 + $0x36] sm:$0x3] %vm1761, %v8543
      %8579 = vst.msk [vmem:[%s8564 + $0x36] sm:$0xfc] %vm1759, %v8545
      %8580 = vst.msk [vmem:[%s8564 + $0x3e] sm:$0x3] %vm1761, %v8547
      %v8581 = vmin.f32 %v7500, %v8484
      %v8582 = vmin.f32 %v7501, %v8485
      %v8583 = vmin.f32 %v7502, %v8486
      %v8584 = vmin.f32 %v7503, %v8487
      %v8585 = vmin.f32 %v7504, %v8488
      %v8586 = vmin.f32 %v7505, %v8489
      %v8587 = vmin.f32 %v7506, %v8490
      %v8588 = vmin.f32 %v7507, %v8491
      %v8589 = vmin.f32 %v7508, %v8492
      %v8590 = vmin.f32 %v7509, %v8493
      %v8591 = vmin.f32 %v7510, %v8494
      %v8592 = vmin.f32 %v7511, %v8495
      %v8593 = vmin.f32 %v7512, %v8496
      %v8594 = vmin.f32 %v7513, %v8497
      %v8595 = vmin.f32 %v7514, %v8498
      %v8596 = vmin.f32 %v7515, %v8499
      %v8597 = vadd.f32 %v7516, %v8484
      %v8598 = vadd.f32 %v7517, %v8485
      %v8599 = vadd.f32 %v7518, %v8486
      %v8600 = vadd.f32 %v7519, %v8487
      %v8601 = vadd.f32 %v7520, %v8488
      %v8602 = vadd.f32 %v7521, %v8489
      %v8603 = vadd.f32 %v7522, %v8490
      %v8604 = vadd.f32 %v7523, %v8491
      %v8605 = vadd.f32 %v7524, %v8492
      %v8606 = vadd.f32 %v7525, %v8493
      %v8607 = vadd.f32 %v7526, %v8494
      %v8608 = vadd.f32 %v7527, %v8495
      %v8609 = vadd.f32 %v7528, %v8496
      %v8610 = vadd.f32 %v7529, %v8497
      %v8611 = vadd.f32 %v7530, %v8498
      %v8612 = vadd.f32 %v7531, %v8499
      %v8613 = vsub.f32 %v687, %v4550
      %v8614 = vsub.f32 %v688, %v4552
      %v8615 = vsub.f32 %v689, %v4554
      %v8616 = vsub.f32 %v690, %v4556
      %v8617 = vsub.f32 %v691, %v4558
      %v8618 = vsub.f32 %v692, %v4560
      %v8619 = vsub.f32 %v693, %v4562
      %v8620 = vsub.f32 %v694, %v4564
      %v8621 = vsub.f32 %v695, %v4566
      %v8622 = vsub.f32 %v696, %v4568
      %v8623 = vsub.f32 %v697, %v4570
      %v8624 = vsub.f32 %v698, %v4572
      %v8625 = vsub.f32 %v699, %v4574
      %v8626 = vsub.f32 %v700, %v4576
      %v8627 = vsub.f32 %v701, %v4578
      %v8628 = vsub.f32 %v702, %v4580
      %v8629 = vsub.f32 %v703, %v4582
      %v8630 = vsub.f32 %v704, %v4584
      %v8631 = vsub.f32 %v705, %v4586
      %v8632 = vsub.f32 %v706, %v4588
      %v8633 = vsub.f32 %v707, %v4590
      %v8634 = vsub.f32 %v708, %v4592
      %v8635 = vsub.f32 %v709, %v4594
      %v8636 = vsub.f32 %v710, %v4596
      %v8637 = vmul.f32 %v8613, %v8613
      %v8638 = vmul.f32 %v8614, %v8614
      %v8639 = vmul.f32 %v8615, %v8615
      %v8640 = vmul.f32 %v8616, %v8616
      %v8641 = vmul.f32 %v8617, %v8617
      %v8642 = vmul.f32 %v8618, %v8618
      %v8643 = vmul.f32 %v8619, %v8619
      %v8644 = vmul.f32 %v8620, %v8620
      %v8645 = vmul.f32 %v8621, %v8621
      %v8646 = vmul.f32 %v8622, %v8622
      %v8647 = vmul.f32 %v8623, %v8623
      %v8648 = vmul.f32 %v8624, %v8624
      %v8649 = vmul.f32 %v8625, %v8625
      %v8650 = vmul.f32 %v8626, %v8626
      %v8651 = vmul.f32 %v8627, %v8627
      %v8652 = vmul.f32 %v8628, %v8628
      %v8653 = vmul.f32 %v8629, %v8629
      %v8654 = vmul.f32 %v8630, %v8630
      %v8655 = vmul.f32 %v8631, %v8631
      %v8656 = vmul.f32 %v8632, %v8632
      %v8657 = vmul.f32 %v8633, %v8633
      %v8658 = vmul.f32 %v8634, %v8634
      %v8659 = vmul.f32 %v8635, %v8635
      %v8660 = vmul.f32 %v8636, %v8636
      %8685 = vrot.lane.b32.xlu0 %v8637, 127
      %v8686 = vpop.permute.xlu0 %8685
      %8687 = vrot.lane.b32.xlu0 %v8638, 127
      %v8688 = vpop.permute.xlu0 %8687
      %8689 = vrot.lane.b32.xlu0 %v8639, 127
      %v8690 = vpop.permute.xlu0 %8689
      %8691 = vrot.lane.b32.xlu0 %v8640, 127
      %v8692 = vpop.permute.xlu0 %8691
      %8693 = vrot.lane.b32.xlu0 %v8641, 127
      %v8694 = vpop.permute.xlu0 %8693
      %8695 = vrot.lane.b32.xlu0 %v8642, 127
      %v8696 = vpop.permute.xlu0 %8695
      %8697 = vrot.lane.b32.xlu0 %v8643, 127
      %v8698 = vpop.permute.xlu0 %8697
      %8699 = vrot.lane.b32.xlu0 %v8644, 127
      %v8700 = vpop.permute.xlu0 %8699
      %8701 = vrot.lane.b32.xlu0 %v8645, 127
      %v8702 = vpop.permute.xlu0 %8701
      %8703 = vrot.lane.b32.xlu0 %v8646, 127
      %v8704 = vpop.permute.xlu0 %8703
      %8705 = vrot.lane.b32.xlu0 %v8647, 127
      %v8706 = vpop.permute.xlu0 %8705
      %8707 = vrot.lane.b32.xlu0 %v8648, 127
      %v8708 = vpop.permute.xlu0 %8707
      %8709 = vrot.lane.b32.xlu0 %v8649, 127
      %v8710 = vpop.permute.xlu0 %8709
      %8711 = vrot.lane.b32.xlu0 %v8650, 127
      %v8712 = vpop.permute.xlu0 %8711
      %8713 = vrot.lane.b32.xlu0 %v8651, 127
      %v8714 = vpop.permute.xlu0 %8713
      %8715 = vrot.lane.b32.xlu0 %v8652, 127
      %v8716 = vpop.permute.xlu0 %8715
      %8717 = vrot.lane.b32.xlu0 %v8653, 127
      %v8718 = vpop.permute.xlu0 %8717
      %8719 = vrot.lane.b32.xlu0 %v8654, 127
      %v8720 = vpop.permute.xlu0 %8719
      %8721 = vrot.lane.b32.xlu0 %v8655, 127
      %v8722 = vpop.permute.xlu0 %8721
      %8723 = vrot.lane.b32.xlu0 %v8656, 127
      %v8724 = vpop.permute.xlu0 %8723
      %8725 = vrot.lane.b32.xlu0 %v8657, 127
      %v8726 = vpop.permute.xlu0 %8725
      %8727 = vrot.lane.b32.xlu0 %v8658, 127
      %v8728 = vpop.permute.xlu0 %8727
      %8729 = vrot.lane.b32.xlu0 %v8659, 127
      %v8730 = vpop.permute.xlu0 %8729
      %8731 = vrot.lane.b32.xlu0 %v8660, 127
      %v8732 = vpop.permute.xlu0 %8731
      %v8757 = vadd.f32 %v8637, %v8686
      %v8758 = vadd.f32 %v8638, %v8688
      %v8759 = vadd.f32 %v8639, %v8690
      %v8760 = vadd.f32 %v8640, %v8692
      %v8761 = vadd.f32 %v8641, %v8694
      %v8762 = vadd.f32 %v8642, %v8696
      %v8763 = vadd.f32 %v8643, %v8698
      %v8764 = vadd.f32 %v8644, %v8700
      %v8765 = vadd.f32 %v8645, %v8702
      %v8766 = vadd.f32 %v8646, %v8704
      %v8767 = vadd.f32 %v8647, %v8706
      %v8768 = vadd.f32 %v8648, %v8708
      %v8769 = vadd.f32 %v8649, %v8710
      %v8770 = vadd.f32 %v8650, %v8712
      %v8771 = vadd.f32 %v8651, %v8714
      %v8772 = vadd.f32 %v8652, %v8716
      %v8773 = vadd.f32 %v8653, %v8718
      %v8774 = vadd.f32 %v8654, %v8720
      %v8775 = vadd.f32 %v8655, %v8722
      %v8776 = vadd.f32 %v8656, %v8724
      %v8777 = vadd.f32 %v8657, %v8726
      %v8778 = vadd.f32 %v8658, %v8728
      %v8779 = vadd.f32 %v8659, %v8730
      %v8780 = vadd.f32 %v8660, %v8732
      %8781 = vrot.lane.b32.xlu0 %v8637, 126
      %v8782 = vpop.permute.xlu0 %8781
      %8783 = vrot.lane.b32.xlu0 %v8638, 126
      %v8784 = vpop.permute.xlu0 %8783
      %8785 = vrot.lane.b32.xlu0 %v8639, 126
      %v8786 = vpop.permute.xlu0 %8785
      %8787 = vrot.lane.b32.xlu0 %v8640, 126
      %v8788 = vpop.permute.xlu0 %8787
      %8789 = vrot.lane.b32.xlu0 %v8641, 126
      %v8790 = vpop.permute.xlu0 %8789
      %8791 = vrot.lane.b32.xlu0 %v8642, 126
      %v8792 = vpop.permute.xlu0 %8791
      %8793 = vrot.lane.b32.xlu0 %v8643, 126
      %v8794 = vpop.permute.xlu0 %8793
      %8795 = vrot.lane.b32.xlu0 %v8644, 126
      %v8796 = vpop.permute.xlu0 %8795
      %8797 = vrot.lane.b32.xlu0 %v8645, 126
      %v8798 = vpop.permute.xlu0 %8797
      %8799 = vrot.lane.b32.xlu0 %v8646, 126
      %v8800 = vpop.permute.xlu0 %8799
      %8801 = vrot.lane.b32.xlu0 %v8647, 126
      %v8802 = vpop.permute.xlu0 %8801
      %8803 = vrot.lane.b32.xlu0 %v8648, 126
      %v8804 = vpop.permute.xlu0 %8803
      %8805 = vrot.lane.b32.xlu0 %v8649, 126
      %v8806 = vpop.permute.xlu0 %8805
      %8807 = vrot.lane.b32.xlu0 %v8650, 126
      %v8808 = vpop.permute.xlu0 %8807
      %8809 = vrot.lane.b32.xlu0 %v8651, 126
      %v8810 = vpop.permute.xlu0 %8809
      %8811 = vrot.lane.b32.xlu0 %v8652, 126
      %v8812 = vpop.permute.xlu0 %8811
      %8813 = vrot.lane.b32.xlu0 %v8653, 126
      %v8814 = vpop.permute.xlu0 %8813
      %8815 = vrot.lane.b32.xlu0 %v8654, 126
      %v8816 = vpop.permute.xlu0 %8815
      %8817 = vrot.lane.b32.xlu0 %v8655, 126
      %v8818 = vpop.permute.xlu0 %8817
      %8819 = vrot.lane.b32.xlu0 %v8656, 126
      %v8820 = vpop.permute.xlu0 %8819
      %8821 = vrot.lane.b32.xlu0 %v8657, 126
      %v8822 = vpop.permute.xlu0 %8821
      %8823 = vrot.lane.b32.xlu0 %v8658, 126
      %v8824 = vpop.permute.xlu0 %8823
      %8825 = vrot.lane.b32.xlu0 %v8659, 126
      %v8826 = vpop.permute.xlu0 %8825
      %8827 = vrot.lane.b32.xlu0 %v8660, 126
      %v8828 = vpop.permute.xlu0 %8827
      %v8853 = vadd.f32 %v8757, %v8782
      %v8854 = vadd.f32 %v8758, %v8784
      %v8855 = vadd.f32 %v8759, %v8786
      %v8856 = vadd.f32 %v8760, %v8788
      %v8857 = vadd.f32 %v8761, %v8790
      %v8858 = vadd.f32 %v8762, %v8792
      %v8859 = vadd.f32 %v8763, %v8794
      %v8860 = vadd.f32 %v8764, %v8796
      %v8861 = vadd.f32 %v8765, %v8798
      %v8862 = vadd.f32 %v8766, %v8800
      %v8863 = vadd.f32 %v8767, %v8802
      %v8864 = vadd.f32 %v8768, %v8804
      %v8865 = vadd.f32 %v8769, %v8806
      %v8866 = vadd.f32 %v8770, %v8808
      %v8867 = vadd.f32 %v8771, %v8810
      %v8868 = vadd.f32 %v8772, %v8812
      %v8869 = vadd.f32 %v8773, %v8814
      %v8870 = vadd.f32 %v8774, %v8816
      %v8871 = vadd.f32 %v8775, %v8818
      %v8872 = vadd.f32 %v8776, %v8820
      %v8873 = vadd.f32 %v8777, %v8822
      %v8874 = vadd.f32 %v8778, %v8824
      %v8875 = vadd.f32 %v8779, %v8826
      %v8876 = vadd.f32 %v8780, %v8828
      %8877 = vrot.lane.b32.xlu0 %v8637, 125
      %v8878 = vpop.permute.xlu0 %8877
      %8879 = vrot.lane.b32.xlu0 %v8638, 125
      %v8880 = vpop.permute.xlu0 %8879
      %8881 = vrot.lane.b32.xlu0 %v8639, 125
      %v8882 = vpop.permute.xlu0 %8881
      %8883 = vrot.lane.b32.xlu0 %v8640, 125
      %v8884 = vpop.permute.xlu0 %8883
      %8885 = vrot.lane.b32.xlu0 %v8641, 125
      %v8886 = vpop.permute.xlu0 %8885
      %8887 = vrot.lane.b32.xlu0 %v8642, 125
      %v8888 = vpop.permute.xlu0 %8887
      %8889 = vrot.lane.b32.xlu0 %v8643, 125
      %v8890 = vpop.permute.xlu0 %8889
      %8891 = vrot.lane.b32.xlu0 %v8644, 125
      %v8892 = vpop.permute.xlu0 %8891
      %8893 = vrot.lane.b32.xlu0 %v8645, 125
      %v8894 = vpop.permute.xlu0 %8893
      %8895 = vrot.lane.b32.xlu0 %v8646, 125
      %v8896 = vpop.permute.xlu0 %8895
      %8897 = vrot.lane.b32.xlu0 %v8647, 125
      %v8898 = vpop.permute.xlu0 %8897
      %8899 = vrot.lane.b32.xlu0 %v8648, 125
      %v8900 = vpop.permute.xlu0 %8899
      %8901 = vrot.lane.b32.xlu0 %v8649, 125
      %v8902 = vpop.permute.xlu0 %8901
      %8903 = vrot.lane.b32.xlu0 %v8650, 125
      %v8904 = vpop.permute.xlu0 %8903
      %8905 = vrot.lane.b32.xlu0 %v8651, 125
      %v8906 = vpop.permute.xlu0 %8905
      %8907 = vrot.lane.b32.xlu0 %v8652, 125
      %v8908 = vpop.permute.xlu0 %8907
      %8909 = vrot.lane.b32.xlu0 %v8653, 125
      %v8910 = vpop.permute.xlu0 %8909
      %8911 = vrot.lane.b32.xlu0 %v8654, 125
      %v8912 = vpop.permute.xlu0 %8911
      %8913 = vrot.lane.b32.xlu0 %v8655, 125
      %v8914 = vpop.permute.xlu0 %8913
      %8915 = vrot.lane.b32.xlu0 %v8656, 125
      %v8916 = vpop.permute.xlu0 %8915
      %8917 = vrot.lane.b32.xlu0 %v8657, 125
      %v8918 = vpop.permute.xlu0 %8917
      %8919 = vrot.lane.b32.xlu0 %v8658, 125
      %v8920 = vpop.permute.xlu0 %8919
      %8921 = vrot.lane.b32.xlu0 %v8659, 125
      %v8922 = vpop.permute.xlu0 %8921
      %8923 = vrot.lane.b32.xlu0 %v8660, 125
      %v8924 = vpop.permute.xlu0 %8923
      %v8949 = vadd.f32 %v8853, %v8878
      %v8950 = vadd.f32 %v8854, %v8880
      %v8951 = vadd.f32 %v8855, %v8882
      %v8952 = vadd.f32 %v8856, %v8884
      %v8953 = vadd.f32 %v8857, %v8886
      %v8954 = vadd.f32 %v8858, %v8888
      %v8955 = vadd.f32 %v8859, %v8890
      %v8956 = vadd.f32 %v8860, %v8892
      %v8957 = vadd.f32 %v8861, %v8894
      %v8958 = vadd.f32 %v8862, %v8896
      %v8959 = vadd.f32 %v8863, %v8898
      %v8960 = vadd.f32 %v8864, %v8900
      %v8961 = vadd.f32 %v8865, %v8902
      %v8962 = vadd.f32 %v8866, %v8904
      %v8963 = vadd.f32 %v8867, %v8906
      %v8964 = vadd.f32 %v8868, %v8908
      %v8965 = vadd.f32 %v8869, %v8910
      %v8966 = vadd.f32 %v8870, %v8912
      %v8967 = vadd.f32 %v8871, %v8914
      %v8968 = vadd.f32 %v8872, %v8916
      %v8969 = vadd.f32 %v8873, %v8918
      %v8970 = vadd.f32 %v8874, %v8920
      %v8971 = vadd.f32 %v8875, %v8922
      %v8972 = vadd.f32 %v8876, %v8924
      %8973 = vrot.lane.b32.xlu0 %v8637, 124
      %v8974 = vpop.permute.xlu0 %8973
      %8975 = vrot.lane.b32.xlu0 %v8638, 124
      %v8976 = vpop.permute.xlu0 %8975
      %8977 = vrot.lane.b32.xlu0 %v8639, 124
      %v8978 = vpop.permute.xlu0 %8977
      %8979 = vrot.lane.b32.xlu0 %v8640, 124
      %v8980 = vpop.permute.xlu0 %8979
      %8981 = vrot.lane.b32.xlu0 %v8641, 124
      %v8982 = vpop.permute.xlu0 %8981
      %8983 = vrot.lane.b32.xlu0 %v8642, 124
      %v8984 = vpop.permute.xlu0 %8983
      %8985 = vrot.lane.b32.xlu0 %v8643, 124
      %v8986 = vpop.permute.xlu0 %8985
      %8987 = vrot.lane.b32.xlu0 %v8644, 124
      %v8988 = vpop.permute.xlu0 %8987
      %8989 = vrot.lane.b32.xlu0 %v8645, 124
      %v8990 = vpop.permute.xlu0 %8989
      %8991 = vrot.lane.b32.xlu0 %v8646, 124
      %v8992 = vpop.permute.xlu0 %8991
      %8993 = vrot.lane.b32.xlu0 %v8647, 124
      %v8994 = vpop.permute.xlu0 %8993
      %8995 = vrot.lane.b32.xlu0 %v8648, 124
      %v8996 = vpop.permute.xlu0 %8995
      %8997 = vrot.lane.b32.xlu0 %v8649, 124
      %v8998 = vpop.permute.xlu0 %8997
      %8999 = vrot.lane.b32.xlu0 %v8650, 124
      %v9000 = vpop.permute.xlu0 %8999
      %9001 = vrot.lane.b32.xlu0 %v8651, 124
      %v9002 = vpop.permute.xlu0 %9001
      %9003 = vrot.lane.b32.xlu0 %v8652, 124
      %v9004 = vpop.permute.xlu0 %9003
      %9005 = vrot.lane.b32.xlu0 %v8653, 124
      %v9006 = vpop.permute.xlu0 %9005
      %9007 = vrot.lane.b32.xlu0 %v8654, 124
      %v9008 = vpop.permute.xlu0 %9007
      %9009 = vrot.lane.b32.xlu0 %v8655, 124
      %v9010 = vpop.permute.xlu0 %9009
      %9011 = vrot.lane.b32.xlu0 %v8656, 124
      %v9012 = vpop.permute.xlu0 %9011
      %9013 = vrot.lane.b32.xlu0 %v8657, 124
      %v9014 = vpop.permute.xlu0 %9013
      %9015 = vrot.lane.b32.xlu0 %v8658, 124
      %v9016 = vpop.permute.xlu0 %9015
      %9017 = vrot.lane.b32.xlu0 %v8659, 124
      %v9018 = vpop.permute.xlu0 %9017
      %9019 = vrot.lane.b32.xlu0 %v8660, 124
      %v9020 = vpop.permute.xlu0 %9019
      %v9045 = vadd.f32 %v8949, %v8974
      %v9046 = vadd.f32 %v8950, %v8976
      %v9047 = vadd.f32 %v8951, %v8978
      %v9048 = vadd.f32 %v8952, %v8980
      %v9049 = vadd.f32 %v8953, %v8982
      %v9050 = vadd.f32 %v8954, %v8984
      %v9051 = vadd.f32 %v8955, %v8986
      %v9052 = vadd.f32 %v8956, %v8988
      %v9053 = vadd.f32 %v8957, %v8990
      %v9054 = vadd.f32 %v8958, %v8992
      %v9055 = vadd.f32 %v8959, %v8994
      %v9056 = vadd.f32 %v8960, %v8996
      %v9057 = vadd.f32 %v8961, %v8998
      %v9058 = vadd.f32 %v8962, %v9000
      %v9059 = vadd.f32 %v8963, %v9002
      %v9060 = vadd.f32 %v8964, %v9004
      %v9061 = vadd.f32 %v8965, %v9006
      %v9062 = vadd.f32 %v8966, %v9008
      %v9063 = vadd.f32 %v8967, %v9010
      %v9064 = vadd.f32 %v8968, %v9012
      %v9065 = vadd.f32 %v8969, %v9014
      %v9066 = vadd.f32 %v8970, %v9016
      %v9067 = vadd.f32 %v8971, %v9018
      %v9068 = vadd.f32 %v8972, %v9020
      %v9093 = vrot.slane %v9045, 1
      %v9094 = vrot.slane %v9046, 1
      %v9095 = vsel %vm1276, %v9093, %v9094
      %v9096 = vrot.slane %v9047, 1
      %v9097 = vrot.slane %v9048, 1
      %v9098 = vsel %vm1276, %v9096, %v9097
      %v9099 = vrot.slane %v9049, 1
      %v9100 = vrot.slane %v9050, 1
      %v9101 = vsel %vm1276, %v9099, %v9100
      %v9102 = vrot.slane %v9051, 1
      %v9103 = vrot.slane %v9052, 1
      %v9104 = vsel %vm1276, %v9102, %v9103
      %v9105 = vrot.slane %v9053, 1
      %v9106 = vrot.slane %v9054, 1
      %v9107 = vsel %vm1276, %v9105, %v9106
      %v9108 = vrot.slane %v9055, 1
      %v9109 = vrot.slane %v9056, 1
      %v9110 = vsel %vm1276, %v9108, %v9109
      %v9111 = vrot.slane %v9057, 1
      %v9112 = vrot.slane %v9058, 1
      %v9113 = vsel %vm1276, %v9111, %v9112
      %v9114 = vrot.slane %v9059, 1
      %v9115 = vrot.slane %v9060, 1
      %v9116 = vsel %vm1276, %v9114, %v9115
      %v9117 = vrot.slane %v9061, 1
      %v9118 = vrot.slane %v9062, 1
      %v9119 = vsel %vm1276, %v9117, %v9118
      %v9120 = vrot.slane %v9063, 1
      %v9121 = vrot.slane %v9064, 1
      %v9122 = vsel %vm1276, %v9120, %v9121
      %v9123 = vrot.slane %v9065, 1
      %v9124 = vrot.slane %v9066, 1
      %v9125 = vsel %vm1276, %v9123, %v9124
      %v9126 = vrot.slane %v9067, 1
      %v9127 = vrot.slane %v9068, 1
      %v9128 = vsel %vm1276, %v9126, %v9127
      %v9141 = vadd.f32 %v9045, %v9095
      %v9142 = vadd.f32 %v9047, %v9098
      %v9143 = vadd.f32 %v9049, %v9101
      %v9144 = vadd.f32 %v9051, %v9104
      %v9145 = vadd.f32 %v9053, %v9107
      %v9146 = vadd.f32 %v9055, %v9110
      %v9147 = vadd.f32 %v9057, %v9113
      %v9148 = vadd.f32 %v9059, %v9116
      %v9149 = vadd.f32 %v9061, %v9119
      %v9150 = vadd.f32 %v9063, %v9122
      %v9151 = vadd.f32 %v9065, %v9125
      %v9152 = vadd.f32 %v9067, %v9128
      %v9153 = vrot.slane %v9045, 2
      %v9154 = vrot.slane %v9046, 2
      %v9155 = vsel %vm1361, %v9153, %v9154
      %v9156 = vrot.slane %v9047, 2
      %v9157 = vrot.slane %v9048, 2
      %v9158 = vsel %vm1361, %v9156, %v9157
      %v9159 = vrot.slane %v9049, 2
      %v9160 = vrot.slane %v9050, 2
      %v9161 = vsel %vm1361, %v9159, %v9160
      %v9162 = vrot.slane %v9051, 2
      %v9163 = vrot.slane %v9052, 2
      %v9164 = vsel %vm1361, %v9162, %v9163
      %v9165 = vrot.slane %v9053, 2
      %v9166 = vrot.slane %v9054, 2
      %v9167 = vsel %vm1361, %v9165, %v9166
      %v9168 = vrot.slane %v9055, 2
      %v9169 = vrot.slane %v9056, 2
      %v9170 = vsel %vm1361, %v9168, %v9169
      %v9171 = vrot.slane %v9057, 2
      %v9172 = vrot.slane %v9058, 2
      %v9173 = vsel %vm1361, %v9171, %v9172
      %v9174 = vrot.slane %v9059, 2
      %v9175 = vrot.slane %v9060, 2
      %v9176 = vsel %vm1361, %v9174, %v9175
      %v9177 = vrot.slane %v9061, 2
      %v9178 = vrot.slane %v9062, 2
      %v9179 = vsel %vm1361, %v9177, %v9178
      %v9180 = vrot.slane %v9063, 2
      %v9181 = vrot.slane %v9064, 2
      %v9182 = vsel %vm1361, %v9180, %v9181
      %v9183 = vrot.slane %v9065, 2
      %v9184 = vrot.slane %v9066, 2
      %v9185 = vsel %vm1361, %v9183, %v9184
      %v9186 = vrot.slane %v9067, 2
      %v9187 = vrot.slane %v9068, 2
      %v9188 = vsel %vm1361, %v9186, %v9187
      %v9201 = vadd.f32 %v9141, %v9155
      %v9202 = vadd.f32 %v9142, %v9158
      %v9203 = vadd.f32 %v9143, %v9161
      %v9204 = vadd.f32 %v9144, %v9164
      %v9205 = vadd.f32 %v9145, %v9167
      %v9206 = vadd.f32 %v9146, %v9170
      %v9207 = vadd.f32 %v9147, %v9173
      %v9208 = vadd.f32 %v9148, %v9176
      %v9209 = vadd.f32 %v9149, %v9179
      %v9210 = vadd.f32 %v9150, %v9182
      %v9211 = vadd.f32 %v9151, %v9185
      %v9212 = vadd.f32 %v9152, %v9188
      %v9213 = vrot.slane %v9045, 3
      %v9214 = vrot.slane %v9046, 3
      %v9215 = vsel %vm1446, %v9213, %v9214
      %v9216 = vrot.slane %v9047, 3
      %v9217 = vrot.slane %v9048, 3
      %v9218 = vsel %vm1446, %v9216, %v9217
      %v9219 = vrot.slane %v9049, 3
      %v9220 = vrot.slane %v9050, 3
      %v9221 = vsel %vm1446, %v9219, %v9220
      %v9222 = vrot.slane %v9051, 3
      %v9223 = vrot.slane %v9052, 3
      %v9224 = vsel %vm1446, %v9222, %v9223
      %v9225 = vrot.slane %v9053, 3
      %v9226 = vrot.slane %v9054, 3
      %v9227 = vsel %vm1446, %v9225, %v9226
      %v9228 = vrot.slane %v9055, 3
      %v9229 = vrot.slane %v9056, 3
      %v9230 = vsel %vm1446, %v9228, %v9229
      %v9231 = vrot.slane %v9057, 3
      %v9232 = vrot.slane %v9058, 3
      %v9233 = vsel %vm1446, %v9231, %v9232
      %v9234 = vrot.slane %v9059, 3
      %v9235 = vrot.slane %v9060, 3
      %v9236 = vsel %vm1446, %v9234, %v9235
      %v9237 = vrot.slane %v9061, 3
      %v9238 = vrot.slane %v9062, 3
      %v9239 = vsel %vm1446, %v9237, %v9238
      %v9240 = vrot.slane %v9063, 3
      %v9241 = vrot.slane %v9064, 3
      %v9242 = vsel %vm1446, %v9240, %v9241
      %v9243 = vrot.slane %v9065, 3
      %v9244 = vrot.slane %v9066, 3
      %v9245 = vsel %vm1446, %v9243, %v9244
      %v9246 = vrot.slane %v9067, 3
      %v9247 = vrot.slane %v9068, 3
      %v9248 = vsel %vm1446, %v9246, %v9247
      %v9261 = vadd.f32 %v9201, %v9215
      %v9262 = vadd.f32 %v9202, %v9218
      %v9263 = vadd.f32 %v9203, %v9221
      %v9264 = vadd.f32 %v9204, %v9224
      %v9265 = vadd.f32 %v9205, %v9227
      %v9266 = vadd.f32 %v9206, %v9230
      %v9267 = vadd.f32 %v9207, %v9233
      %v9268 = vadd.f32 %v9208, %v9236
      %v9269 = vadd.f32 %v9209, %v9239
      %v9270 = vadd.f32 %v9210, %v9242
      %v9271 = vadd.f32 %v9211, %v9245
      %v9272 = vadd.f32 %v9212, %v9248
      %v9273 = vrot.slane %v9045, 4
      %v9274 = vrot.slane %v9046, 4
      %v9275 = vsel %vm626, %v9273, %v9274
      %v9276 = vrot.slane %v9047, 4
      %v9277 = vrot.slane %v9048, 4
      %v9278 = vsel %vm626, %v9276, %v9277
      %v9279 = vrot.slane %v9049, 4
      %v9280 = vrot.slane %v9050, 4
      %v9281 = vsel %vm626, %v9279, %v9280
      %v9282 = vrot.slane %v9051, 4
      %v9283 = vrot.slane %v9052, 4
      %v9284 = vsel %vm626, %v9282, %v9283
      %v9285 = vrot.slane %v9053, 4
      %v9286 = vrot.slane %v9054, 4
      %v9287 = vsel %vm626, %v9285, %v9286
      %v9288 = vrot.slane %v9055, 4
      %v9289 = vrot.slane %v9056, 4
      %v9290 = vsel %vm626, %v9288, %v9289
      %v9291 = vrot.slane %v9057, 4
      %v9292 = vrot.slane %v9058, 4
      %v9293 = vsel %vm626, %v9291, %v9292
      %v9294 = vrot.slane %v9059, 4
      %v9295 = vrot.slane %v9060, 4
      %v9296 = vsel %vm626, %v9294, %v9295
      %v9297 = vrot.slane %v9061, 4
      %v9298 = vrot.slane %v9062, 4
      %v9299 = vsel %vm626, %v9297, %v9298
      %v9300 = vrot.slane %v9063, 4
      %v9301 = vrot.slane %v9064, 4
      %v9302 = vsel %vm626, %v9300, %v9301
      %v9303 = vrot.slane %v9065, 4
      %v9304 = vrot.slane %v9066, 4
      %v9305 = vsel %vm626, %v9303, %v9304
      %v9306 = vrot.slane %v9067, 4
      %v9307 = vrot.slane %v9068, 4
      %v9308 = vsel %vm626, %v9306, %v9307
      %v9321 = vadd.f32 %v9261, %v9275
      %v9322 = vadd.f32 %v9262, %v9278
      %v9323 = vadd.f32 %v9263, %v9281
      %v9324 = vadd.f32 %v9264, %v9284
      %v9325 = vadd.f32 %v9265, %v9287
      %v9326 = vadd.f32 %v9266, %v9290
      %v9327 = vadd.f32 %v9267, %v9293
      %v9328 = vadd.f32 %v9268, %v9296
      %v9329 = vadd.f32 %v9269, %v9299
      %v9330 = vadd.f32 %v9270, %v9302
      %v9331 = vadd.f32 %v9271, %v9305
      %v9332 = vadd.f32 %v9272, %v9308
      %v9333 = vadd.f32 %v9321, %v9322
      %v9334 = vadd.f32 %v9322, %v9323
      %v9335 = vadd.f32 %v9323, %v9324
      %v9336 = vadd.f32 %v9324, %v9325
      %v9337 = vadd.f32 %v9325, %v9326
      %v9338 = vadd.f32 %v9326, %v9327
      %v9339 = vadd.f32 %v9327, %v9328
      %v9340 = vadd.f32 %v9328, %v9329
      %v9341 = vadd.f32 %v9333, %v9323
      %v9342 = vadd.f32 %v9334, %v9324
      %v9343 = vadd.f32 %v9335, %v9325
      %v9344 = vadd.f32 %v9336, %v9326
      %v9345 = vadd.f32 %v9337, %v9327
      %v9346 = vadd.f32 %v9338, %v9328
      %v9347 = vadd.f32 %v9339, %v9329
      %v9348 = vadd.f32 %v9340, %v9330
      %v9349 = vadd.f32 %v9341, %v9324
      %v9350 = vadd.f32 %v9342, %v9325
      %v9351 = vadd.f32 %v9343, %v9326
      %v9352 = vadd.f32 %v9344, %v9327
      %v9353 = vadd.f32 %v9345, %v9328
      %v9354 = vadd.f32 %v9346, %v9329
      %v9355 = vadd.f32 %v9347, %v9330
      %v9356 = vadd.f32 %v9348, %v9331
      %v9357 = vadd.f32 %v9349, %v9325
      %v9358 = vadd.f32 %v9350, %v9326
      %v9359 = vadd.f32 %v9351, %v9327
      %v9360 = vadd.f32 %v9352, %v9328
      %v9361 = vadd.f32 %v9353, %v9329
      %v9362 = vadd.f32 %v9354, %v9330
      %v9363 = vadd.f32 %v9355, %v9331
      %v9364 = vadd.f32 %v9356, %v9332
      %v9365 = vmul.f32 %v9357, 0.008
      %v9366 = vmul.f32 %v9358, 0.008
      %v9367 = vmul.f32 %v9359, 0.008
      %v9368 = vmul.f32 %v9360, 0.008
      %v9369 = vmul.f32 %v9361, 0.008
      %v9370 = vmul.f32 %v9362, 0.008
      %v9371 = vmul.f32 %v9363, 0.008
      %v9372 = vmul.f32 %v9364, 0.008
      %9381 = vrot.lane.b32.xlu0 %v9365, 126
      %v9382 = vpop.permute.xlu0 %9381
      %9383 = vrot.lane.b32.xlu0 %v9366, 126
      %v9384 = vpop.permute.xlu0 %9383
      %9385 = vrot.lane.b32.xlu0 %v9367, 126
      %v9386 = vpop.permute.xlu0 %9385
      %9387 = vrot.lane.b32.xlu0 %v9368, 126
      %v9388 = vpop.permute.xlu0 %9387
      %9389 = vrot.lane.b32.xlu0 %v9369, 126
      %v9390 = vpop.permute.xlu0 %9389
      %9391 = vrot.lane.b32.xlu0 %v9370, 126
      %v9392 = vpop.permute.xlu0 %9391
      %9393 = vrot.lane.b32.xlu0 %v9371, 126
      %v9394 = vpop.permute.xlu0 %9393
      %9395 = vrot.lane.b32.xlu0 %v9372, 126
      %v9396 = vpop.permute.xlu0 %9395
      %s9405 = scalar_lea.vmem %s150, 512
      %9406 = vst.msk [vmem:[%s9405] sm:$0xff] %vm2652, %v9382
      %9407 = vst.msk [vmem:[%s9405 + $0x8] sm:$0xff] %vm2652, %v9384
      %9408 = vst.msk [vmem:[%s9405 + $0x10] sm:$0xff] %vm2652, %v9386
      %9409 = vst.msk [vmem:[%s9405 + $0x18] sm:$0xff] %vm2652, %v9388
      %9410 = vst.msk [vmem:[%s9405 + $0x20] sm:$0xff] %vm2652, %v9390
      %9411 = vst.msk [vmem:[%s9405 + $0x28] sm:$0xff] %vm2652, %v9392
      %9412 = vst.msk [vmem:[%s9405 + $0x30] sm:$0xff] %vm2652, %v9394
      %9413 = vst.msk [vmem:[%s9405 + $0x38] sm:$0xff] %vm2652, %v9396
      %v9414 = vrot.slane %v9365, 6
      %v9415 = vrot.slane %v9366, 6
      %v9416 = vrot.slane %v9367, 6
      %v9417 = vrot.slane %v9368, 6
      %v9418 = vrot.slane %v9369, 6
      %v9419 = vrot.slane %v9370, 6
      %v9420 = vrot.slane %v9371, 6
      %v9421 = vrot.slane %v9372, 6
      %v9430 = vmin.f32 %v8581, %v9414
      %v9431 = vmin.f32 %v8582, %v9414
      %v9432 = vmin.f32 %v8583, %v9415
      %v9433 = vmin.f32 %v8584, %v9415
      %v9434 = vmin.f32 %v8585, %v9416
      %v9435 = vmin.f32 %v8586, %v9416
      %v9436 = vmin.f32 %v8587, %v9417
      %v9437 = vmin.f32 %v8588, %v9417
      %v9438 = vmin.f32 %v8589, %v9418
      %v9439 = vmin.f32 %v8590, %v9418
      %v9440 = vmin.f32 %v8591, %v9419
      %v9441 = vmin.f32 %v8592, %v9419
      %v9442 = vmin.f32 %v8593, %v9420
      %v9443 = vmin.f32 %v8594, %v9420
      %v9444 = vmin.f32 %v8595, %v9421
      %v9445 = vmin.f32 %v8596, %v9421
      %v9446 = vadd.f32 %v8597, %v9414
      %v9447 = vadd.f32 %v8598, %v9414
      %v9448 = vadd.f32 %v8599, %v9415
      %v9449 = vadd.f32 %v8600, %v9415
      %v9450 = vadd.f32 %v8601, %v9416
      %v9451 = vadd.f32 %v8602, %v9416
      %v9452 = vadd.f32 %v8603, %v9417
      %v9453 = vadd.f32 %v8604, %v9417
      %v9454 = vadd.f32 %v8605, %v9418
      %v9455 = vadd.f32 %v8606, %v9418
      %v9456 = vadd.f32 %v8607, %v9419
      %v9457 = vadd.f32 %v8608, %v9419
      %v9458 = vadd.f32 %v8609, %v9420
      %v9459 = vadd.f32 %v8610, %v9420
      %v9460 = vadd.f32 %v8611, %v9421
      %v9461 = vadd.f32 %v8612, %v9421
      %9462 = vrot.lane.b32.xlu0 %v736, 126
      %v9463 = vpop.permute.xlu0 %9462
      %9464 = vrot.lane.b32.xlu0 %v738, 126
      %v9465 = vpop.permute.xlu0 %9464
      %9466 = vrot.lane.b32.xlu0 %v739, 126
      %v9467 = vpop.permute.xlu0 %9466
      %9468 = vrot.lane.b32.xlu0 %v741, 126
      %v9469 = vpop.permute.xlu0 %9468
      %9470 = vrot.lane.b32.xlu0 %v742, 126
      %v9471 = vpop.permute.xlu0 %9470
      %9472 = vrot.lane.b32.xlu0 %v744, 126
      %v9473 = vpop.permute.xlu0 %9472
      %9474 = vrot.lane.b32.xlu0 %v745, 126
      %v9475 = vpop.permute.xlu0 %9474
      %9476 = vrot.lane.b32.xlu0 %v747, 126
      %v9477 = vpop.permute.xlu0 %9476
      %9478 = vrot.lane.b32.xlu0 %v748, 126
      %v9479 = vpop.permute.xlu0 %9478
      %9480 = vrot.lane.b32.xlu0 %v750, 126
      %v9481 = vpop.permute.xlu0 %9480
      %9482 = vrot.lane.b32.xlu0 %v751, 126
      %v9483 = vpop.permute.xlu0 %9482
      %9484 = vrot.lane.b32.xlu0 %v753, 126
      %v9485 = vpop.permute.xlu0 %9484
      %9486 = vrot.lane.b32.xlu0 %v754, 126
      %v9487 = vpop.permute.xlu0 %9486
      %9488 = vrot.lane.b32.xlu0 %v756, 126
      %v9489 = vpop.permute.xlu0 %9488
      %9490 = vrot.lane.b32.xlu0 %v757, 126
      %v9491 = vpop.permute.xlu0 %9490
      %9492 = vrot.lane.b32.xlu0 %v759, 126
      %v9493 = vpop.permute.xlu0 %9492
      %9494 = vrot.lane.b32.xlu0 %v760, 126
      %v9495 = vpop.permute.xlu0 %9494
      %9496 = vrot.lane.b32.xlu0 %v762, 126
      %v9497 = vpop.permute.xlu0 %9496
      %9498 = vrot.lane.b32.xlu0 %v763, 126
      %v9499 = vpop.permute.xlu0 %9498
      %9500 = vrot.lane.b32.xlu0 %v765, 126
      %v9501 = vpop.permute.xlu0 %9500
      %9502 = vrot.lane.b32.xlu0 %v766, 126
      %v9503 = vpop.permute.xlu0 %9502
      %9504 = vrot.lane.b32.xlu0 %v768, 126
      %v9505 = vpop.permute.xlu0 %9504
      %9506 = vrot.lane.b32.xlu0 %v769, 126
      %v9507 = vpop.permute.xlu0 %9506
      %9508 = vrot.lane.b32.xlu0 %v771, 126
      %v9509 = vpop.permute.xlu0 %9508
      %v9534 = vsub.f32 %v566, %v9463
      %v9535 = vsub.f32 %v567, %v9465
      %v9536 = vsub.f32 %v568, %v9467
      %v9537 = vsub.f32 %v569, %v9469
      %v9538 = vsub.f32 %v570, %v9471
      %v9539 = vsub.f32 %v571, %v9473
      %v9540 = vsub.f32 %v572, %v9475
      %v9541 = vsub.f32 %v573, %v9477
      %v9542 = vsub.f32 %v574, %v9479
      %v9543 = vsub.f32 %v575, %v9481
      %v9544 = vsub.f32 %v576, %v9483
      %v9545 = vsub.f32 %v577, %v9485
      %v9546 = vsub.f32 %v578, %v9487
      %v9547 = vsub.f32 %v579, %v9489
      %v9548 = vsub.f32 %v580, %v9491
      %v9549 = vsub.f32 %v581, %v9493
      %v9550 = vsub.f32 %v582, %v9495
      %v9551 = vsub.f32 %v583, %v9497
      %v9552 = vsub.f32 %v584, %v9499
      %v9553 = vsub.f32 %v585, %v9501
      %v9554 = vsub.f32 %v586, %v9503
      %v9555 = vsub.f32 %v587, %v9505
      %v9556 = vsub.f32 %v588, %v9507
      %v9557 = vsub.f32 %v589, %v9509
      %v9558 = vmul.f32 %v9534, %v9534
      %v9559 = vmul.f32 %v9535, %v9535
      %v9560 = vmul.f32 %v9536, %v9536
      %v9561 = vmul.f32 %v9537, %v9537
      %v9562 = vmul.f32 %v9538, %v9538
      %v9563 = vmul.f32 %v9539, %v9539
      %v9564 = vmul.f32 %v9540, %v9540
      %v9565 = vmul.f32 %v9541, %v9541
      %v9566 = vmul.f32 %v9542, %v9542
      %v9567 = vmul.f32 %v9543, %v9543
      %v9568 = vmul.f32 %v9544, %v9544
      %v9569 = vmul.f32 %v9545, %v9545
      %v9570 = vmul.f32 %v9546, %v9546
      %v9571 = vmul.f32 %v9547, %v9547
      %v9572 = vmul.f32 %v9548, %v9548
      %v9573 = vmul.f32 %v9549, %v9549
      %v9574 = vmul.f32 %v9550, %v9550
      %v9575 = vmul.f32 %v9551, %v9551
      %v9576 = vmul.f32 %v9552, %v9552
      %v9577 = vmul.f32 %v9553, %v9553
      %v9578 = vmul.f32 %v9554, %v9554
      %v9579 = vmul.f32 %v9555, %v9555
      %v9580 = vmul.f32 %v9556, %v9556
      %v9581 = vmul.f32 %v9557, %v9557
      %9606 = vrot.lane.b32.xlu0 %v9558, 127
      %v9607 = vpop.permute.xlu0 %9606
      %9608 = vrot.lane.b32.xlu0 %v9559, 127
      %v9609 = vpop.permute.xlu0 %9608
      %9610 = vrot.lane.b32.xlu0 %v9560, 127
      %v9611 = vpop.permute.xlu0 %9610
      %9612 = vrot.lane.b32.xlu0 %v9561, 127
      %v9613 = vpop.permute.xlu0 %9612
      %9614 = vrot.lane.b32.xlu0 %v9562, 127
      %v9615 = vpop.permute.xlu0 %9614
      %9616 = vrot.lane.b32.xlu0 %v9563, 127
      %v9617 = vpop.permute.xlu0 %9616
      %9618 = vrot.lane.b32.xlu0 %v9564, 127
      %v9619 = vpop.permute.xlu0 %9618
      %9620 = vrot.lane.b32.xlu0 %v9565, 127
      %v9621 = vpop.permute.xlu0 %9620
      %9622 = vrot.lane.b32.xlu0 %v9566, 127
      %v9623 = vpop.permute.xlu0 %9622
      %9624 = vrot.lane.b32.xlu0 %v9567, 127
      %v9625 = vpop.permute.xlu0 %9624
      %9626 = vrot.lane.b32.xlu0 %v9568, 127
      %v9627 = vpop.permute.xlu0 %9626
      %9628 = vrot.lane.b32.xlu0 %v9569, 127
      %v9629 = vpop.permute.xlu0 %9628
      %9630 = vrot.lane.b32.xlu0 %v9570, 127
      %v9631 = vpop.permute.xlu0 %9630
      %9632 = vrot.lane.b32.xlu0 %v9571, 127
      %v9633 = vpop.permute.xlu0 %9632
      %9634 = vrot.lane.b32.xlu0 %v9572, 127
      %v9635 = vpop.permute.xlu0 %9634
      %9636 = vrot.lane.b32.xlu0 %v9573, 127
      %v9637 = vpop.permute.xlu0 %9636
      %9638 = vrot.lane.b32.xlu0 %v9574, 127
      %v9639 = vpop.permute.xlu0 %9638
      %9640 = vrot.lane.b32.xlu0 %v9575, 127
      %v9641 = vpop.permute.xlu0 %9640
      %9642 = vrot.lane.b32.xlu0 %v9576, 127
      %v9643 = vpop.permute.xlu0 %9642
      %9644 = vrot.lane.b32.xlu0 %v9577, 127
      %v9645 = vpop.permute.xlu0 %9644
      %9646 = vrot.lane.b32.xlu0 %v9578, 127
      %v9647 = vpop.permute.xlu0 %9646
      %9648 = vrot.lane.b32.xlu0 %v9579, 127
      %v9649 = vpop.permute.xlu0 %9648
      %9650 = vrot.lane.b32.xlu0 %v9580, 127
      %v9651 = vpop.permute.xlu0 %9650
      %9652 = vrot.lane.b32.xlu0 %v9581, 127
      %v9653 = vpop.permute.xlu0 %9652
      %v9678 = vadd.f32 %v9558, %v9607
      %v9679 = vadd.f32 %v9559, %v9609
      %v9680 = vadd.f32 %v9560, %v9611
      %v9681 = vadd.f32 %v9561, %v9613
      %v9682 = vadd.f32 %v9562, %v9615
      %v9683 = vadd.f32 %v9563, %v9617
      %v9684 = vadd.f32 %v9564, %v9619
      %v9685 = vadd.f32 %v9565, %v9621
      %v9686 = vadd.f32 %v9566, %v9623
      %v9687 = vadd.f32 %v9567, %v9625
      %v9688 = vadd.f32 %v9568, %v9627
      %v9689 = vadd.f32 %v9569, %v9629
      %v9690 = vadd.f32 %v9570, %v9631
      %v9691 = vadd.f32 %v9571, %v9633
      %v9692 = vadd.f32 %v9572, %v9635
      %v9693 = vadd.f32 %v9573, %v9637
      %v9694 = vadd.f32 %v9574, %v9639
      %v9695 = vadd.f32 %v9575, %v9641
      %v9696 = vadd.f32 %v9576, %v9643
      %v9697 = vadd.f32 %v9577, %v9645
      %v9698 = vadd.f32 %v9578, %v9647
      %v9699 = vadd.f32 %v9579, %v9649
      %v9700 = vadd.f32 %v9580, %v9651
      %v9701 = vadd.f32 %v9581, %v9653
      %9702 = vrot.lane.b32.xlu0 %v9558, 126
      %v9703 = vpop.permute.xlu0 %9702
      %9704 = vrot.lane.b32.xlu0 %v9559, 126
      %v9705 = vpop.permute.xlu0 %9704
      %9706 = vrot.lane.b32.xlu0 %v9560, 126
      %v9707 = vpop.permute.xlu0 %9706
      %9708 = vrot.lane.b32.xlu0 %v9561, 126
      %v9709 = vpop.permute.xlu0 %9708
      %9710 = vrot.lane.b32.xlu0 %v9562, 126
      %v9711 = vpop.permute.xlu0 %9710
      %9712 = vrot.lane.b32.xlu0 %v9563, 126
      %v9713 = vpop.permute.xlu0 %9712
      %9714 = vrot.lane.b32.xlu0 %v9564, 126
      %v9715 = vpop.permute.xlu0 %9714
      %9716 = vrot.lane.b32.xlu0 %v9565, 126
      %v9717 = vpop.permute.xlu0 %9716
      %9718 = vrot.lane.b32.xlu0 %v9566, 126
      %v9719 = vpop.permute.xlu0 %9718
      %9720 = vrot.lane.b32.xlu0 %v9567, 126
      %v9721 = vpop.permute.xlu0 %9720
      %9722 = vrot.lane.b32.xlu0 %v9568, 126
      %v9723 = vpop.permute.xlu0 %9722
      %9724 = vrot.lane.b32.xlu0 %v9569, 126
      %v9725 = vpop.permute.xlu0 %9724
      %9726 = vrot.lane.b32.xlu0 %v9570, 126
      %v9727 = vpop.permute.xlu0 %9726
      %9728 = vrot.lane.b32.xlu0 %v9571, 126
      %v9729 = vpop.permute.xlu0 %9728
      %9730 = vrot.lane.b32.xlu0 %v9572, 126
      %v9731 = vpop.permute.xlu0 %9730
      %9732 = vrot.lane.b32.xlu0 %v9573, 126
      %v9733 = vpop.permute.xlu0 %9732
      %9734 = vrot.lane.b32.xlu0 %v9574, 126
      %v9735 = vpop.permute.xlu0 %9734
      %9736 = vrot.lane.b32.xlu0 %v9575, 126
      %v9737 = vpop.permute.xlu0 %9736
      %9738 = vrot.lane.b32.xlu0 %v9576, 126
      %v9739 = vpop.permute.xlu0 %9738
      %9740 = vrot.lane.b32.xlu0 %v9577, 126
      %v9741 = vpop.permute.xlu0 %9740
      %9742 = vrot.lane.b32.xlu0 %v9578, 126
      %v9743 = vpop.permute.xlu0 %9742
      %9744 = vrot.lane.b32.xlu0 %v9579, 126
      %v9745 = vpop.permute.xlu0 %9744
      %9746 = vrot.lane.b32.xlu0 %v9580, 126
      %v9747 = vpop.permute.xlu0 %9746
      %9748 = vrot.lane.b32.xlu0 %v9581, 126
      %v9749 = vpop.permute.xlu0 %9748
      %v9774 = vadd.f32 %v9678, %v9703
      %v9775 = vadd.f32 %v9679, %v9705
      %v9776 = vadd.f32 %v9680, %v9707
      %v9777 = vadd.f32 %v9681, %v9709
      %v9778 = vadd.f32 %v9682, %v9711
      %v9779 = vadd.f32 %v9683, %v9713
      %v9780 = vadd.f32 %v9684, %v9715
      %v9781 = vadd.f32 %v9685, %v9717
      %v9782 = vadd.f32 %v9686, %v9719
      %v9783 = vadd.f32 %v9687, %v9721
      %v9784 = vadd.f32 %v9688, %v9723
      %v9785 = vadd.f32 %v9689, %v9725
      %v9786 = vadd.f32 %v9690, %v9727
      %v9787 = vadd.f32 %v9691, %v9729
      %v9788 = vadd.f32 %v9692, %v9731
      %v9789 = vadd.f32 %v9693, %v9733
      %v9790 = vadd.f32 %v9694, %v9735
      %v9791 = vadd.f32 %v9695, %v9737
      %v9792 = vadd.f32 %v9696, %v9739
      %v9793 = vadd.f32 %v9697, %v9741
      %v9794 = vadd.f32 %v9698, %v9743
      %v9795 = vadd.f32 %v9699, %v9745
      %v9796 = vadd.f32 %v9700, %v9747
      %v9797 = vadd.f32 %v9701, %v9749
      %9798 = vrot.lane.b32.xlu0 %v9558, 125
      %v9799 = vpop.permute.xlu0 %9798
      %9800 = vrot.lane.b32.xlu0 %v9559, 125
      %v9801 = vpop.permute.xlu0 %9800
      %9802 = vrot.lane.b32.xlu0 %v9560, 125
      %v9803 = vpop.permute.xlu0 %9802
      %9804 = vrot.lane.b32.xlu0 %v9561, 125
      %v9805 = vpop.permute.xlu0 %9804
      %9806 = vrot.lane.b32.xlu0 %v9562, 125
      %v9807 = vpop.permute.xlu0 %9806
      %9808 = vrot.lane.b32.xlu0 %v9563, 125
      %v9809 = vpop.permute.xlu0 %9808
      %9810 = vrot.lane.b32.xlu0 %v9564, 125
      %v9811 = vpop.permute.xlu0 %9810
      %9812 = vrot.lane.b32.xlu0 %v9565, 125
      %v9813 = vpop.permute.xlu0 %9812
      %9814 = vrot.lane.b32.xlu0 %v9566, 125
      %v9815 = vpop.permute.xlu0 %9814
      %9816 = vrot.lane.b32.xlu0 %v9567, 125
      %v9817 = vpop.permute.xlu0 %9816
      %9818 = vrot.lane.b32.xlu0 %v9568, 125
      %v9819 = vpop.permute.xlu0 %9818
      %9820 = vrot.lane.b32.xlu0 %v9569, 125
      %v9821 = vpop.permute.xlu0 %9820
      %9822 = vrot.lane.b32.xlu0 %v9570, 125
      %v9823 = vpop.permute.xlu0 %9822
      %9824 = vrot.lane.b32.xlu0 %v9571, 125
      %v9825 = vpop.permute.xlu0 %9824
      %9826 = vrot.lane.b32.xlu0 %v9572, 125
      %v9827 = vpop.permute.xlu0 %9826
      %9828 = vrot.lane.b32.xlu0 %v9573, 125
      %v9829 = vpop.permute.xlu0 %9828
      %9830 = vrot.lane.b32.xlu0 %v9574, 125
      %v9831 = vpop.permute.xlu0 %9830
      %9832 = vrot.lane.b32.xlu0 %v9575, 125
      %v9833 = vpop.permute.xlu0 %9832
      %9834 = vrot.lane.b32.xlu0 %v9576, 125
      %v9835 = vpop.permute.xlu0 %9834
      %9836 = vrot.lane.b32.xlu0 %v9577, 125
      %v9837 = vpop.permute.xlu0 %9836
      %9838 = vrot.lane.b32.xlu0 %v9578, 125
      %v9839 = vpop.permute.xlu0 %9838
      %9840 = vrot.lane.b32.xlu0 %v9579, 125
      %v9841 = vpop.permute.xlu0 %9840
      %9842 = vrot.lane.b32.xlu0 %v9580, 125
      %v9843 = vpop.permute.xlu0 %9842
      %9844 = vrot.lane.b32.xlu0 %v9581, 125
      %v9845 = vpop.permute.xlu0 %9844
      %v9870 = vadd.f32 %v9774, %v9799
      %v9871 = vadd.f32 %v9775, %v9801
      %v9872 = vadd.f32 %v9776, %v9803
      %v9873 = vadd.f32 %v9777, %v9805
      %v9874 = vadd.f32 %v9778, %v9807
      %v9875 = vadd.f32 %v9779, %v9809
      %v9876 = vadd.f32 %v9780, %v9811
      %v9877 = vadd.f32 %v9781, %v9813
      %v9878 = vadd.f32 %v9782, %v9815
      %v9879 = vadd.f32 %v9783, %v9817
      %v9880 = vadd.f32 %v9784, %v9819
      %v9881 = vadd.f32 %v9785, %v9821
      %v9882 = vadd.f32 %v9786, %v9823
      %v9883 = vadd.f32 %v9787, %v9825
      %v9884 = vadd.f32 %v9788, %v9827
      %v9885 = vadd.f32 %v9789, %v9829
      %v9886 = vadd.f32 %v9790, %v9831
      %v9887 = vadd.f32 %v9791, %v9833
      %v9888 = vadd.f32 %v9792, %v9835
      %v9889 = vadd.f32 %v9793, %v9837
      %v9890 = vadd.f32 %v9794, %v9839
      %v9891 = vadd.f32 %v9795, %v9841
      %v9892 = vadd.f32 %v9796, %v9843
      %v9893 = vadd.f32 %v9797, %v9845
      %9894 = vrot.lane.b32.xlu0 %v9558, 124
      %v9895 = vpop.permute.xlu0 %9894
      %9896 = vrot.lane.b32.xlu0 %v9559, 124
      %v9897 = vpop.permute.xlu0 %9896
      %9898 = vrot.lane.b32.xlu0 %v9560, 124
      %v9899 = vpop.permute.xlu0 %9898
      %9900 = vrot.lane.b32.xlu0 %v9561, 124
      %v9901 = vpop.permute.xlu0 %9900
      %9902 = vrot.lane.b32.xlu0 %v9562, 124
      %v9903 = vpop.permute.xlu0 %9902
      %9904 = vrot.lane.b32.xlu0 %v9563, 124
      %v9905 = vpop.permute.xlu0 %9904
      %9906 = vrot.lane.b32.xlu0 %v9564, 124
      %v9907 = vpop.permute.xlu0 %9906
      %9908 = vrot.lane.b32.xlu0 %v9565, 124
      %v9909 = vpop.permute.xlu0 %9908
      %9910 = vrot.lane.b32.xlu0 %v9566, 124
      %v9911 = vpop.permute.xlu0 %9910
      %9912 = vrot.lane.b32.xlu0 %v9567, 124
      %v9913 = vpop.permute.xlu0 %9912
      %9914 = vrot.lane.b32.xlu0 %v9568, 124
      %v9915 = vpop.permute.xlu0 %9914
      %9916 = vrot.lane.b32.xlu0 %v9569, 124
      %v9917 = vpop.permute.xlu0 %9916
      %9918 = vrot.lane.b32.xlu0 %v9570, 124
      %v9919 = vpop.permute.xlu0 %9918
      %9920 = vrot.lane.b32.xlu0 %v9571, 124
      %v9921 = vpop.permute.xlu0 %9920
      %9922 = vrot.lane.b32.xlu0 %v9572, 124
      %v9923 = vpop.permute.xlu0 %9922
      %9924 = vrot.lane.b32.xlu0 %v9573, 124
      %v9925 = vpop.permute.xlu0 %9924
      %9926 = vrot.lane.b32.xlu0 %v9574, 124
      %v9927 = vpop.permute.xlu0 %9926
      %9928 = vrot.lane.b32.xlu0 %v9575, 124
      %v9929 = vpop.permute.xlu0 %9928
      %9930 = vrot.lane.b32.xlu0 %v9576, 124
      %v9931 = vpop.permute.xlu0 %9930
      %9932 = vrot.lane.b32.xlu0 %v9577, 124
      %v9933 = vpop.permute.xlu0 %9932
      %9934 = vrot.lane.b32.xlu0 %v9578, 124
      %v9935 = vpop.permute.xlu0 %9934
      %9936 = vrot.lane.b32.xlu0 %v9579, 124
      %v9937 = vpop.permute.xlu0 %9936
      %9938 = vrot.lane.b32.xlu0 %v9580, 124
      %v9939 = vpop.permute.xlu0 %9938
      %9940 = vrot.lane.b32.xlu0 %v9581, 124
      %v9941 = vpop.permute.xlu0 %9940
      %v9966 = vadd.f32 %v9870, %v9895
      %v9967 = vadd.f32 %v9871, %v9897
      %v9968 = vadd.f32 %v9872, %v9899
      %v9969 = vadd.f32 %v9873, %v9901
      %v9970 = vadd.f32 %v9874, %v9903
      %v9971 = vadd.f32 %v9875, %v9905
      %v9972 = vadd.f32 %v9876, %v9907
      %v9973 = vadd.f32 %v9877, %v9909
      %v9974 = vadd.f32 %v9878, %v9911
      %v9975 = vadd.f32 %v9879, %v9913
      %v9976 = vadd.f32 %v9880, %v9915
      %v9977 = vadd.f32 %v9881, %v9917
      %v9978 = vadd.f32 %v9882, %v9919
      %v9979 = vadd.f32 %v9883, %v9921
      %v9980 = vadd.f32 %v9884, %v9923
      %v9981 = vadd.f32 %v9885, %v9925
      %v9982 = vadd.f32 %v9886, %v9927
      %v9983 = vadd.f32 %v9887, %v9929
      %v9984 = vadd.f32 %v9888, %v9931
      %v9985 = vadd.f32 %v9889, %v9933
      %v9986 = vadd.f32 %v9890, %v9935
      %v9987 = vadd.f32 %v9891, %v9937
      %v9988 = vadd.f32 %v9892, %v9939
      %v9989 = vadd.f32 %v9893, %v9941
      %v10014 = vrot.slane %v9966, 1
      %v10015 = vrot.slane %v9967, 1
      %v10016 = vsel %vm1276, %v10014, %v10015
      %v10017 = vrot.slane %v9968, 1
      %v10018 = vrot.slane %v9969, 1
      %v10019 = vsel %vm1276, %v10017, %v10018
      %v10020 = vrot.slane %v9970, 1
      %v10021 = vrot.slane %v9971, 1
      %v10022 = vsel %vm1276, %v10020, %v10021
      %v10023 = vrot.slane %v9972, 1
      %v10024 = vrot.slane %v9973, 1
      %v10025 = vsel %vm1276, %v10023, %v10024
      %v10026 = vrot.slane %v9974, 1
      %v10027 = vrot.slane %v9975, 1
      %v10028 = vsel %vm1276, %v10026, %v10027
      %v10029 = vrot.slane %v9976, 1
      %v10030 = vrot.slane %v9977, 1
      %v10031 = vsel %vm1276, %v10029, %v10030
      %v10032 = vrot.slane %v9978, 1
      %v10033 = vrot.slane %v9979, 1
      %v10034 = vsel %vm1276, %v10032, %v10033
      %v10035 = vrot.slane %v9980, 1
      %v10036 = vrot.slane %v9981, 1
      %v10037 = vsel %vm1276, %v10035, %v10036
      %v10038 = vrot.slane %v9982, 1
      %v10039 = vrot.slane %v9983, 1
      %v10040 = vsel %vm1276, %v10038, %v10039
      %v10041 = vrot.slane %v9984, 1
      %v10042 = vrot.slane %v9985, 1
      %v10043 = vsel %vm1276, %v10041, %v10042
      %v10044 = vrot.slane %v9986, 1
      %v10045 = vrot.slane %v9987, 1
      %v10046 = vsel %vm1276, %v10044, %v10045
      %v10047 = vrot.slane %v9988, 1
      %v10048 = vrot.slane %v9989, 1
      %v10049 = vsel %vm1276, %v10047, %v10048
      %v10074 = vadd.f32 %v9966, %v10016
      %v10075 = vadd.f32 %v9967, %v10015
      %v10076 = vadd.f32 %v9968, %v10019
      %v10077 = vadd.f32 %v9969, %v10018
      %v10078 = vadd.f32 %v9970, %v10022
      %v10079 = vadd.f32 %v9971, %v10021
      %v10080 = vadd.f32 %v9972, %v10025
      %v10081 = vadd.f32 %v9973, %v10024
      %v10082 = vadd.f32 %v9974, %v10028
      %v10083 = vadd.f32 %v9975, %v10027
      %v10084 = vadd.f32 %v9976, %v10031
      %v10085 = vadd.f32 %v9977, %v10030
      %v10086 = vadd.f32 %v9978, %v10034
      %v10087 = vadd.f32 %v9979, %v10033
      %v10088 = vadd.f32 %v9980, %v10037
      %v10089 = vadd.f32 %v9981, %v10036
      %v10090 = vadd.f32 %v9982, %v10040
      %v10091 = vadd.f32 %v9983, %v10039
      %v10092 = vadd.f32 %v9984, %v10043
      %v10093 = vadd.f32 %v9985, %v10042
      %v10094 = vadd.f32 %v9986, %v10046
      %v10095 = vadd.f32 %v9987, %v10045
      %v10096 = vadd.f32 %v9988, %v10049
      %v10097 = vadd.f32 %v9989, %v10048
      %v10098 = vrot.slane %v9966, 2
      %v10099 = vrot.slane %v9967, 2
      %v10100 = vsel %vm1361, %v10098, %v10099
      %v10101 = vrot.slane %v9968, 2
      %v10102 = vrot.slane %v9969, 2
      %v10103 = vsel %vm1361, %v10101, %v10102
      %v10104 = vrot.slane %v9970, 2
      %v10105 = vrot.slane %v9971, 2
      %v10106 = vsel %vm1361, %v10104, %v10105
      %v10107 = vrot.slane %v9972, 2
      %v10108 = vrot.slane %v9973, 2
      %v10109 = vsel %vm1361, %v10107, %v10108
      %v10110 = vrot.slane %v9974, 2
      %v10111 = vrot.slane %v9975, 2
      %v10112 = vsel %vm1361, %v10110, %v10111
      %v10113 = vrot.slane %v9976, 2
      %v10114 = vrot.slane %v9977, 2
      %v10115 = vsel %vm1361, %v10113, %v10114
      %v10116 = vrot.slane %v9978, 2
      %v10117 = vrot.slane %v9979, 2
      %v10118 = vsel %vm1361, %v10116, %v10117
      %v10119 = vrot.slane %v9980, 2
      %v10120 = vrot.slane %v9981, 2
      %v10121 = vsel %vm1361, %v10119, %v10120
      %v10122 = vrot.slane %v9982, 2
      %v10123 = vrot.slane %v9983, 2
      %v10124 = vsel %vm1361, %v10122, %v10123
      %v10125 = vrot.slane %v9984, 2
      %v10126 = vrot.slane %v9985, 2
      %v10127 = vsel %vm1361, %v10125, %v10126
      %v10128 = vrot.slane %v9986, 2
      %v10129 = vrot.slane %v9987, 2
      %v10130 = vsel %vm1361, %v10128, %v10129
      %v10131 = vrot.slane %v9988, 2
      %v10132 = vrot.slane %v9989, 2
      %v10133 = vsel %vm1361, %v10131, %v10132
      %v10158 = vadd.f32 %v10074, %v10100
      %v10159 = vadd.f32 %v10075, %v10099
      %v10160 = vadd.f32 %v10076, %v10103
      %v10161 = vadd.f32 %v10077, %v10102
      %v10162 = vadd.f32 %v10078, %v10106
      %v10163 = vadd.f32 %v10079, %v10105
      %v10164 = vadd.f32 %v10080, %v10109
      %v10165 = vadd.f32 %v10081, %v10108
      %v10166 = vadd.f32 %v10082, %v10112
      %v10167 = vadd.f32 %v10083, %v10111
      %v10168 = vadd.f32 %v10084, %v10115
      %v10169 = vadd.f32 %v10085, %v10114
      %v10170 = vadd.f32 %v10086, %v10118
      %v10171 = vadd.f32 %v10087, %v10117
      %v10172 = vadd.f32 %v10088, %v10121
      %v10173 = vadd.f32 %v10089, %v10120
      %v10174 = vadd.f32 %v10090, %v10124
      %v10175 = vadd.f32 %v10091, %v10123
      %v10176 = vadd.f32 %v10092, %v10127
      %v10177 = vadd.f32 %v10093, %v10126
      %v10178 = vadd.f32 %v10094, %v10130
      %v10179 = vadd.f32 %v10095, %v10129
      %v10180 = vadd.f32 %v10096, %v10133
      %v10181 = vadd.f32 %v10097, %v10132
      %v10182 = vrot.slane %v9966, 3
      %v10183 = vrot.slane %v9967, 3
      %v10184 = vsel %vm1446, %v10182, %v10183
      %v10185 = vrot.slane %v9968, 3
      %v10186 = vrot.slane %v9969, 3
      %v10187 = vsel %vm1446, %v10185, %v10186
      %v10188 = vrot.slane %v9970, 3
      %v10189 = vrot.slane %v9971, 3
      %v10190 = vsel %vm1446, %v10188, %v10189
      %v10191 = vrot.slane %v9972, 3
      %v10192 = vrot.slane %v9973, 3
      %v10193 = vsel %vm1446, %v10191, %v10192
      %v10194 = vrot.slane %v9974, 3
      %v10195 = vrot.slane %v9975, 3
      %v10196 = vsel %vm1446, %v10194, %v10195
      %v10197 = vrot.slane %v9976, 3
      %v10198 = vrot.slane %v9977, 3
      %v10199 = vsel %vm1446, %v10197, %v10198
      %v10200 = vrot.slane %v9978, 3
      %v10201 = vrot.slane %v9979, 3
      %v10202 = vsel %vm1446, %v10200, %v10201
      %v10203 = vrot.slane %v9980, 3
      %v10204 = vrot.slane %v9981, 3
      %v10205 = vsel %vm1446, %v10203, %v10204
      %v10206 = vrot.slane %v9982, 3
      %v10207 = vrot.slane %v9983, 3
      %v10208 = vsel %vm1446, %v10206, %v10207
      %v10209 = vrot.slane %v9984, 3
      %v10210 = vrot.slane %v9985, 3
      %v10211 = vsel %vm1446, %v10209, %v10210
      %v10212 = vrot.slane %v9986, 3
      %v10213 = vrot.slane %v9987, 3
      %v10214 = vsel %vm1446, %v10212, %v10213
      %v10215 = vrot.slane %v9988, 3
      %v10216 = vrot.slane %v9989, 3
      %v10217 = vsel %vm1446, %v10215, %v10216
      %v10242 = vadd.f32 %v10158, %v10184
      %v10243 = vadd.f32 %v10159, %v10183
      %v10244 = vadd.f32 %v10160, %v10187
      %v10245 = vadd.f32 %v10161, %v10186
      %v10246 = vadd.f32 %v10162, %v10190
      %v10247 = vadd.f32 %v10163, %v10189
      %v10248 = vadd.f32 %v10164, %v10193
      %v10249 = vadd.f32 %v10165, %v10192
      %v10250 = vadd.f32 %v10166, %v10196
      %v10251 = vadd.f32 %v10167, %v10195
      %v10252 = vadd.f32 %v10168, %v10199
      %v10253 = vadd.f32 %v10169, %v10198
      %v10254 = vadd.f32 %v10170, %v10202
      %v10255 = vadd.f32 %v10171, %v10201
      %v10256 = vadd.f32 %v10172, %v10205
      %v10257 = vadd.f32 %v10173, %v10204
      %v10258 = vadd.f32 %v10174, %v10208
      %v10259 = vadd.f32 %v10175, %v10207
      %v10260 = vadd.f32 %v10176, %v10211
      %v10261 = vadd.f32 %v10177, %v10210
      %v10262 = vadd.f32 %v10178, %v10214
      %v10263 = vadd.f32 %v10179, %v10213
      %v10264 = vadd.f32 %v10180, %v10217
      %v10265 = vadd.f32 %v10181, %v10216
      %v10266 = vrot.slane %v9966, 4
      %v10267 = vrot.slane %v9967, 4
      %v10268 = vsel %vm626, %v10266, %v10267
      %v10269 = vrot.slane %v9968, 4
      %v10270 = vrot.slane %v9969, 4
      %v10271 = vsel %vm626, %v10269, %v10270
      %v10272 = vrot.slane %v9970, 4
      %v10273 = vrot.slane %v9971, 4
      %v10274 = vsel %vm626, %v10272, %v10273
      %v10275 = vrot.slane %v9972, 4
      %v10276 = vrot.slane %v9973, 4
      %v10277 = vsel %vm626, %v10275, %v10276
      %v10278 = vrot.slane %v9974, 4
      %v10279 = vrot.slane %v9975, 4
      %v10280 = vsel %vm626, %v10278, %v10279
      %v10281 = vrot.slane %v9976, 4
      %v10282 = vrot.slane %v9977, 4
      %v10283 = vsel %vm626, %v10281, %v10282
      %v10284 = vrot.slane %v9978, 4
      %v10285 = vrot.slane %v9979, 4
      %v10286 = vsel %vm626, %v10284, %v10285
      %v10287 = vrot.slane %v9980, 4
      %v10288 = vrot.slane %v9981, 4
      %v10289 = vsel %vm626, %v10287, %v10288
      %v10290 = vrot.slane %v9982, 4
      %v10291 = vrot.slane %v9983, 4
      %v10292 = vsel %vm626, %v10290, %v10291
      %v10293 = vrot.slane %v9984, 4
      %v10294 = vrot.slane %v9985, 4
      %v10295 = vsel %vm626, %v10293, %v10294
      %v10296 = vrot.slane %v9986, 4
      %v10297 = vrot.slane %v9987, 4
      %v10298 = vsel %vm626, %v10296, %v10297
      %v10299 = vrot.slane %v9988, 4
      %v10300 = vrot.slane %v9989, 4
      %v10301 = vsel %vm626, %v10299, %v10300
      %v10326 = vadd.f32 %v10242, %v10268
      %v10327 = vadd.f32 %v10243, %v10267
      %v10328 = vadd.f32 %v10244, %v10271
      %v10329 = vadd.f32 %v10245, %v10270
      %v10330 = vadd.f32 %v10246, %v10274
      %v10331 = vadd.f32 %v10247, %v10273
      %v10332 = vadd.f32 %v10248, %v10277
      %v10333 = vadd.f32 %v10249, %v10276
      %v10334 = vadd.f32 %v10250, %v10280
      %v10335 = vadd.f32 %v10251, %v10279
      %v10336 = vadd.f32 %v10252, %v10283
      %v10337 = vadd.f32 %v10253, %v10282
      %v10338 = vadd.f32 %v10254, %v10286
      %v10339 = vadd.f32 %v10255, %v10285
      %v10340 = vadd.f32 %v10256, %v10289
      %v10341 = vadd.f32 %v10257, %v10288
      %v10342 = vadd.f32 %v10258, %v10292
      %v10343 = vadd.f32 %v10259, %v10291
      %v10344 = vadd.f32 %v10260, %v10295
      %v10345 = vadd.f32 %v10261, %v10294
      %v10346 = vadd.f32 %v10262, %v10298
      %v10347 = vadd.f32 %v10263, %v10297
      %v10348 = vadd.f32 %v10264, %v10301
      %v10349 = vadd.f32 %v10265, %v10300
      %v10350 = vadd.f32 %v10326, %v10328
      %v10351 = vadd.f32 %v10327, %v10329
      %v10352 = vadd.f32 %v10328, %v10330
      %v10353 = vadd.f32 %v10329, %v10331
      %v10354 = vadd.f32 %v10330, %v10332
      %v10355 = vadd.f32 %v10331, %v10333
      %v10356 = vadd.f32 %v10332, %v10334
      %v10357 = vadd.f32 %v10333, %v10335
      %v10358 = vadd.f32 %v10334, %v10336
      %v10359 = vadd.f32 %v10335, %v10337
      %v10360 = vadd.f32 %v10336, %v10338
      %v10361 = vadd.f32 %v10337, %v10339
      %v10362 = vadd.f32 %v10338, %v10340
      %v10363 = vadd.f32 %v10339, %v10341
      %v10364 = vadd.f32 %v10340, %v10342
      %v10365 = vadd.f32 %v10341, %v10343
      %v10366 = vadd.f32 %v10350, %v10330
      %v10367 = vadd.f32 %v10351, %v10331
      %v10368 = vadd.f32 %v10352, %v10332
      %v10369 = vadd.f32 %v10353, %v10333
      %v10370 = vadd.f32 %v10354, %v10334
      %v10371 = vadd.f32 %v10355, %v10335
      %v10372 = vadd.f32 %v10356, %v10336
      %v10373 = vadd.f32 %v10357, %v10337
      %v10374 = vadd.f32 %v10358, %v10338
      %v10375 = vadd.f32 %v10359, %v10339
      %v10376 = vadd.f32 %v10360, %v10340
      %v10377 = vadd.f32 %v10361, %v10341
      %v10378 = vadd.f32 %v10362, %v10342
      %v10379 = vadd.f32 %v10363, %v10343
      %v10380 = vadd.f32 %v10364, %v10344
      %v10381 = vadd.f32 %v10365, %v10345
      %v10382 = vadd.f32 %v10366, %v10332
      %v10383 = vadd.f32 %v10367, %v10333
      %v10384 = vadd.f32 %v10368, %v10334
      %v10385 = vadd.f32 %v10369, %v10335
      %v10386 = vadd.f32 %v10370, %v10336
      %v10387 = vadd.f32 %v10371, %v10337
      %v10388 = vadd.f32 %v10372, %v10338
      %v10389 = vadd.f32 %v10373, %v10339
      %v10390 = vadd.f32 %v10374, %v10340
      %v10391 = vadd.f32 %v10375, %v10341
      %v10392 = vadd.f32 %v10376, %v10342
      %v10393 = vadd.f32 %v10377, %v10343
      %v10394 = vadd.f32 %v10378, %v10344
      %v10395 = vadd.f32 %v10379, %v10345
      %v10396 = vadd.f32 %v10380, %v10346
      %v10397 = vadd.f32 %v10381, %v10347
      %v10398 = vadd.f32 %v10382, %v10334
      %v10399 = vadd.f32 %v10383, %v10335
      %v10400 = vadd.f32 %v10384, %v10336
      %v10401 = vadd.f32 %v10385, %v10337
      %v10402 = vadd.f32 %v10386, %v10338
      %v10403 = vadd.f32 %v10387, %v10339
      %v10404 = vadd.f32 %v10388, %v10340
      %v10405 = vadd.f32 %v10389, %v10341
      %v10406 = vadd.f32 %v10390, %v10342
      %v10407 = vadd.f32 %v10391, %v10343
      %v10408 = vadd.f32 %v10392, %v10344
      %v10409 = vadd.f32 %v10393, %v10345
      %v10410 = vadd.f32 %v10394, %v10346
      %v10411 = vadd.f32 %v10395, %v10347
      %v10412 = vadd.f32 %v10396, %v10348
      %v10413 = vadd.f32 %v10397, %v10349
      %v10414 = vmul.f32 %v10398, 0.008
      %v10415 = vmul.f32 %v10399, 0.008
      %v10416 = vmul.f32 %v10400, 0.008
      %v10417 = vmul.f32 %v10401, 0.008
      %v10418 = vmul.f32 %v10402, 0.008
      %v10419 = vmul.f32 %v10403, 0.008
      %v10420 = vmul.f32 %v10404, 0.008
      %v10421 = vmul.f32 %v10405, 0.008
      %v10422 = vmul.f32 %v10406, 0.008
      %v10423 = vmul.f32 %v10407, 0.008
      %v10424 = vmul.f32 %v10408, 0.008
      %v10425 = vmul.f32 %v10409, 0.008
      %v10426 = vmul.f32 %v10410, 0.008
      %v10427 = vmul.f32 %v10411, 0.008
      %v10428 = vmul.f32 %v10412, 0.008
      %v10429 = vmul.f32 %v10413, 0.008
      %s10430 = scalar_lea.vmem %s150, 576
      %10431 = vst.msk [vmem:[%s10430 - $0x2] sm:$0xfc] %vm1759, %v10414
      %10432 = vst.msk [vmem:[%s10430 + $0x6] sm:$0x3] %vm1761, %v10415
      %10433 = vst.msk [vmem:[%s10430 + $0x6] sm:$0xfc] %vm1759, %v10416
      %10434 = vst.msk [vmem:[%s10430 + $0xe] sm:$0x3] %vm1761, %v10417
      %10435 = vst.msk [vmem:[%s10430 + $0xe] sm:$0xfc] %vm1759, %v10418
      %10436 = vst.msk [vmem:[%s10430 + $0x16] sm:$0x3] %vm1761, %v10419
      %10437 = vst.msk [vmem:[%s10430 + $0x16] sm:$0xfc] %vm1759, %v10420
      %10438 = vst.msk [vmem:[%s10430 + $0x1e] sm:$0x3] %vm1761, %v10421
      %10439 = vst.msk [vmem:[%s10430 + $0x1e] sm:$0xfc] %vm1759, %v10422
      %10440 = vst.msk [vmem:[%s10430 + $0x26] sm:$0x3] %vm1761, %v10423
      %10441 = vst.msk [vmem:[%s10430 + $0x26] sm:$0xfc] %vm1759, %v10424
      %10442 = vst.msk [vmem:[%s10430 + $0x2e] sm:$0x3] %vm1761, %v10425
      %10443 = vst.msk [vmem:[%s10430 + $0x2e] sm:$0xfc] %vm1759, %v10426
      %10444 = vst.msk [vmem:[%s10430 + $0x36] sm:$0x3] %vm1761, %v10427
      %10445 = vst.msk [vmem:[%s10430 + $0x36] sm:$0xfc] %vm1759, %v10428
      %10446 = vst.msk [vmem:[%s10430 + $0x3e] sm:$0x3] %vm1761, %v10429
      %10463 = vrot.lane.b32.xlu0 %v10414, 2
      %v10464 = vpop.permute.xlu0 %10463
      %10465 = vrot.lane.b32.xlu0 %v10415, 2
      %v10466 = vpop.permute.xlu0 %10465
      %10467 = vrot.lane.b32.xlu0 %v10416, 2
      %v10468 = vpop.permute.xlu0 %10467
      %10469 = vrot.lane.b32.xlu0 %v10417, 2
      %v10470 = vpop.permute.xlu0 %10469
      %10471 = vrot.lane.b32.xlu0 %v10418, 2
      %v10472 = vpop.permute.xlu0 %10471
      %10473 = vrot.lane.b32.xlu0 %v10419, 2
      %v10474 = vpop.permute.xlu0 %10473
      %10475 = vrot.lane.b32.xlu0 %v10420, 2
      %v10476 = vpop.permute.xlu0 %10475
      %10477 = vrot.lane.b32.xlu0 %v10421, 2
      %v10478 = vpop.permute.xlu0 %10477
      %10479 = vrot.lane.b32.xlu0 %v10422, 2
      %v10480 = vpop.permute.xlu0 %10479
      %10481 = vrot.lane.b32.xlu0 %v10423, 2
      %v10482 = vpop.permute.xlu0 %10481
      %10483 = vrot.lane.b32.xlu0 %v10424, 2
      %v10484 = vpop.permute.xlu0 %10483
      %10485 = vrot.lane.b32.xlu0 %v10425, 2
      %v10486 = vpop.permute.xlu0 %10485
      %10487 = vrot.lane.b32.xlu0 %v10426, 2
      %v10488 = vpop.permute.xlu0 %10487
      %10489 = vrot.lane.b32.xlu0 %v10427, 2
      %v10490 = vpop.permute.xlu0 %10489
      %10491 = vrot.lane.b32.xlu0 %v10428, 2
      %v10492 = vpop.permute.xlu0 %10491
      %10493 = vrot.lane.b32.xlu0 %v10429, 2
      %v10494 = vpop.permute.xlu0 %10493
      %v10511 = vmin.f32 %v9430, %v10464
      %v10512 = vmin.f32 %v9431, %v10466
      %v10513 = vmin.f32 %v9432, %v10468
      %v10514 = vmin.f32 %v9433, %v10470
      %v10515 = vmin.f32 %v9434, %v10472
      %v10516 = vmin.f32 %v9435, %v10474
      %v10517 = vmin.f32 %v9436, %v10476
      %v10518 = vmin.f32 %v9437, %v10478
      %v10519 = vmin.f32 %v9438, %v10480
      %v10520 = vmin.f32 %v9439, %v10482
      %v10521 = vmin.f32 %v9440, %v10484
      %v10522 = vmin.f32 %v9441, %v10486
      %v10523 = vmin.f32 %v9442, %v10488
      %v10524 = vmin.f32 %v9443, %v10490
      %v10525 = vmin.f32 %v9444, %v10492
      %v10526 = vmin.f32 %v9445, %v10494
      %v10527 = vadd.f32 %v9446, %v10464
      %v10528 = vadd.f32 %v9447, %v10466
      %v10529 = vadd.f32 %v9448, %v10468
      %v10530 = vadd.f32 %v9449, %v10470
      %v10531 = vadd.f32 %v9450, %v10472
      %v10532 = vadd.f32 %v9451, %v10474
      %v10533 = vadd.f32 %v9452, %v10476
      %v10534 = vadd.f32 %v9453, %v10478
      %v10535 = vadd.f32 %v9454, %v10480
      %v10536 = vadd.f32 %v9455, %v10482
      %v10537 = vadd.f32 %v9456, %v10484
      %v10538 = vadd.f32 %v9457, %v10486
      %v10539 = vadd.f32 %v9458, %v10488
      %v10540 = vadd.f32 %v9459, %v10490
      %v10541 = vadd.f32 %v9460, %v10492
      %v10542 = vadd.f32 %v9461, %v10494
      %10543 = vrot.lane.b32.xlu0 %v332, 2
      %v10544 = vpop.permute.xlu0 %10543
      %10545 = vrot.lane.b32.xlu0 %v333, 2
      %v10546 = vpop.permute.xlu0 %10545
      %10547 = vrot.lane.b32.xlu0 %v334, 2
      %v10548 = vpop.permute.xlu0 %10547
      %10549 = vrot.lane.b32.xlu0 %v335, 2
      %v10550 = vpop.permute.xlu0 %10549
      %10551 = vrot.lane.b32.xlu0 %v336, 2
      %v10552 = vpop.permute.xlu0 %10551
      %10553 = vrot.lane.b32.xlu0 %v337, 2
      %v10554 = vpop.permute.xlu0 %10553
      %10555 = vrot.lane.b32.xlu0 %v338, 2
      %v10556 = vpop.permute.xlu0 %10555
      %10557 = vrot.lane.b32.xlu0 %v339, 2
      %v10558 = vpop.permute.xlu0 %10557
      %10559 = vrot.lane.b32.xlu0 %v340, 2
      %v10560 = vpop.permute.xlu0 %10559
      %10561 = vrot.lane.b32.xlu0 %v341, 2
      %v10562 = vpop.permute.xlu0 %10561
      %10563 = vrot.lane.b32.xlu0 %v342, 2
      %v10564 = vpop.permute.xlu0 %10563
      %10565 = vrot.lane.b32.xlu0 %v343, 2
      %v10566 = vpop.permute.xlu0 %10565
      %10567 = vrot.lane.b32.xlu0 %v344, 2
      %v10568 = vpop.permute.xlu0 %10567
      %10569 = vrot.lane.b32.xlu0 %v345, 2
      %v10570 = vpop.permute.xlu0 %10569
      %10571 = vrot.lane.b32.xlu0 %v346, 2
      %v10572 = vpop.permute.xlu0 %10571
      %10573 = vrot.lane.b32.xlu0 %v347, 2
      %v10574 = vpop.permute.xlu0 %10573
      %10575 = vrot.lane.b32.xlu0 %v348, 2
      %v10576 = vpop.permute.xlu0 %10575
      %10577 = vrot.lane.b32.xlu0 %v349, 2
      %v10578 = vpop.permute.xlu0 %10577
      %10579 = vrot.lane.b32.xlu0 %v350, 2
      %v10580 = vpop.permute.xlu0 %10579
      %10581 = vrot.lane.b32.xlu0 %v351, 2
      %v10582 = vpop.permute.xlu0 %10581
      %10583 = vrot.lane.b32.xlu0 %v352, 2
      %v10584 = vpop.permute.xlu0 %10583
      %10585 = vrot.lane.b32.xlu0 %v353, 2
      %v10586 = vpop.permute.xlu0 %10585
      %10587 = vrot.lane.b32.xlu0 %v354, 2
      %v10588 = vpop.permute.xlu0 %10587
      %10589 = vrot.lane.b32.xlu0 %v355, 2
      %v10590 = vpop.permute.xlu0 %10589
      %v10615 = vsub.f32 %v590, %v10544
      %v10616 = vsub.f32 %v591, %v10546
      %v10617 = vsub.f32 %v592, %v10548
      %v10618 = vsub.f32 %v593, %v10550
      %v10619 = vsub.f32 %v167, %v10552
      %v10620 = vsub.f32 %v168, %v10554
      %v10621 = vsub.f32 %v594, %v10556
      %v10622 = vsub.f32 %v595, %v10558
      %v10623 = vsub.f32 %v596, %v10560
      %v10624 = vsub.f32 %v597, %v10562
      %v10625 = vsub.f32 %v598, %v10564
      %v10626 = vsub.f32 %v599, %v10566
      %v10627 = vsub.f32 %v600, %v10568
      %v10628 = vsub.f32 %v601, %v10570
      %v10629 = vsub.f32 %v602, %v10572
      %v10630 = vsub.f32 %v603, %v10574
      %v10631 = vsub.f32 %v604, %v10576
      %v10632 = vsub.f32 %v605, %v10578
      %v10633 = vsub.f32 %v606, %v10580
      %v10634 = vsub.f32 %v607, %v10582
      %v10635 = vsub.f32 %v608, %v10584
      %v10636 = vsub.f32 %v609, %v10586
      %v10637 = vsub.f32 %v610, %v10588
      %v10638 = vsub.f32 %v611, %v10590
      %v10639 = vmul.f32 %v10615, %v10615
      %v10640 = vmul.f32 %v10616, %v10616
      %v10641 = vmul.f32 %v10617, %v10617
      %v10642 = vmul.f32 %v10618, %v10618
      %v10643 = vmul.f32 %v10619, %v10619
      %v10644 = vmul.f32 %v10620, %v10620
      %v10645 = vmul.f32 %v10621, %v10621
      %v10646 = vmul.f32 %v10622, %v10622
      %v10647 = vmul.f32 %v10623, %v10623
      %v10648 = vmul.f32 %v10624, %v10624
      %v10649 = vmul.f32 %v10625, %v10625
      %v10650 = vmul.f32 %v10626, %v10626
      %v10651 = vmul.f32 %v10627, %v10627
      %v10652 = vmul.f32 %v10628, %v10628
      %v10653 = vmul.f32 %v10629, %v10629
      %v10654 = vmul.f32 %v10630, %v10630
      %v10655 = vmul.f32 %v10631, %v10631
      %v10656 = vmul.f32 %v10632, %v10632
      %v10657 = vmul.f32 %v10633, %v10633
      %v10658 = vmul.f32 %v10634, %v10634
      %v10659 = vmul.f32 %v10635, %v10635
      %v10660 = vmul.f32 %v10636, %v10636
      %v10661 = vmul.f32 %v10637, %v10637
      %v10662 = vmul.f32 %v10638, %v10638
      %10687 = vrot.lane.b32.xlu0 %v10639, 127
      %v10688 = vpop.permute.xlu0 %10687
      %10689 = vrot.lane.b32.xlu0 %v10640, 127
      %v10690 = vpop.permute.xlu0 %10689
      %10691 = vrot.lane.b32.xlu0 %v10641, 127
      %v10692 = vpop.permute.xlu0 %10691
      %10693 = vrot.lane.b32.xlu0 %v10642, 127
      %v10694 = vpop.permute.xlu0 %10693
      %10695 = vrot.lane.b32.xlu0 %v10643, 127
      %v10696 = vpop.permute.xlu0 %10695
      %10697 = vrot.lane.b32.xlu0 %v10644, 127
      %v10698 = vpop.permute.xlu0 %10697
      %10699 = vrot.lane.b32.xlu0 %v10645, 127
      %v10700 = vpop.permute.xlu0 %10699
      %10701 = vrot.lane.b32.xlu0 %v10646, 127
      %v10702 = vpop.permute.xlu0 %10701
      %10703 = vrot.lane.b32.xlu0 %v10647, 127
      %v10704 = vpop.permute.xlu0 %10703
      %10705 = vrot.lane.b32.xlu0 %v10648, 127
      %v10706 = vpop.permute.xlu0 %10705
      %10707 = vrot.lane.b32.xlu0 %v10649, 127
      %v10708 = vpop.permute.xlu0 %10707
      %10709 = vrot.lane.b32.xlu0 %v10650, 127
      %v10710 = vpop.permute.xlu0 %10709
      %10711 = vrot.lane.b32.xlu0 %v10651, 127
      %v10712 = vpop.permute.xlu0 %10711
      %10713 = vrot.lane.b32.xlu0 %v10652, 127
      %v10714 = vpop.permute.xlu0 %10713
      %10715 = vrot.lane.b32.xlu0 %v10653, 127
      %v10716 = vpop.permute.xlu0 %10715
      %10717 = vrot.lane.b32.xlu0 %v10654, 127
      %v10718 = vpop.permute.xlu0 %10717
      %10719 = vrot.lane.b32.xlu0 %v10655, 127
      %v10720 = vpop.permute.xlu0 %10719
      %10721 = vrot.lane.b32.xlu0 %v10656, 127
      %v10722 = vpop.permute.xlu0 %10721
      %10723 = vrot.lane.b32.xlu0 %v10657, 127
      %v10724 = vpop.permute.xlu0 %10723
      %10725 = vrot.lane.b32.xlu0 %v10658, 127
      %v10726 = vpop.permute.xlu0 %10725
      %10727 = vrot.lane.b32.xlu0 %v10659, 127
      %v10728 = vpop.permute.xlu0 %10727
      %10729 = vrot.lane.b32.xlu0 %v10660, 127
      %v10730 = vpop.permute.xlu0 %10729
      %10731 = vrot.lane.b32.xlu0 %v10661, 127
      %v10732 = vpop.permute.xlu0 %10731
      %10733 = vrot.lane.b32.xlu0 %v10662, 127
      %v10734 = vpop.permute.xlu0 %10733
      %v10759 = vadd.f32 %v10639, %v10688
      %v10760 = vadd.f32 %v10640, %v10690
      %v10761 = vadd.f32 %v10641, %v10692
      %v10762 = vadd.f32 %v10642, %v10694
      %v10763 = vadd.f32 %v10643, %v10696
      %v10764 = vadd.f32 %v10644, %v10698
      %v10765 = vadd.f32 %v10645, %v10700
      %v10766 = vadd.f32 %v10646, %v10702
      %v10767 = vadd.f32 %v10647, %v10704
      %v10768 = vadd.f32 %v10648, %v10706
      %v10769 = vadd.f32 %v10649, %v10708
      %v10770 = vadd.f32 %v10650, %v10710
      %v10771 = vadd.f32 %v10651, %v10712
      %v10772 = vadd.f32 %v10652, %v10714
      %v10773 = vadd.f32 %v10653, %v10716
      %v10774 = vadd.f32 %v10654, %v10718
      %v10775 = vadd.f32 %v10655, %v10720
      %v10776 = vadd.f32 %v10656, %v10722
      %v10777 = vadd.f32 %v10657, %v10724
      %v10778 = vadd.f32 %v10658, %v10726
      %v10779 = vadd.f32 %v10659, %v10728
      %v10780 = vadd.f32 %v10660, %v10730
      %v10781 = vadd.f32 %v10661, %v10732
      %v10782 = vadd.f32 %v10662, %v10734
      %10783 = vrot.lane.b32.xlu0 %v10639, 126
      %v10784 = vpop.permute.xlu0 %10783
      %10785 = vrot.lane.b32.xlu0 %v10640, 126
      %v10786 = vpop.permute.xlu0 %10785
      %10787 = vrot.lane.b32.xlu0 %v10641, 126
      %v10788 = vpop.permute.xlu0 %10787
      %10789 = vrot.lane.b32.xlu0 %v10642, 126
      %v10790 = vpop.permute.xlu0 %10789
      %10791 = vrot.lane.b32.xlu0 %v10643, 126
      %v10792 = vpop.permute.xlu0 %10791
      %10793 = vrot.lane.b32.xlu0 %v10644, 126
      %v10794 = vpop.permute.xlu0 %10793
      %10795 = vrot.lane.b32.xlu0 %v10645, 126
      %v10796 = vpop.permute.xlu0 %10795
      %10797 = vrot.lane.b32.xlu0 %v10646, 126
      %v10798 = vpop.permute.xlu0 %10797
      %10799 = vrot.lane.b32.xlu0 %v10647, 126
      %v10800 = vpop.permute.xlu0 %10799
      %10801 = vrot.lane.b32.xlu0 %v10648, 126
      %v10802 = vpop.permute.xlu0 %10801
      %10803 = vrot.lane.b32.xlu0 %v10649, 126
      %v10804 = vpop.permute.xlu0 %10803
      %10805 = vrot.lane.b32.xlu0 %v10650, 126
      %v10806 = vpop.permute.xlu0 %10805
      %10807 = vrot.lane.b32.xlu0 %v10651, 126
      %v10808 = vpop.permute.xlu0 %10807
      %10809 = vrot.lane.b32.xlu0 %v10652, 126
      %v10810 = vpop.permute.xlu0 %10809
      %10811 = vrot.lane.b32.xlu0 %v10653, 126
      %v10812 = vpop.permute.xlu0 %10811
      %10813 = vrot.lane.b32.xlu0 %v10654, 126
      %v10814 = vpop.permute.xlu0 %10813
      %10815 = vrot.lane.b32.xlu0 %v10655, 126
      %v10816 = vpop.permute.xlu0 %10815
      %10817 = vrot.lane.b32.xlu0 %v10656, 126
      %v10818 = vpop.permute.xlu0 %10817
      %10819 = vrot.lane.b32.xlu0 %v10657, 126
      %v10820 = vpop.permute.xlu0 %10819
      %10821 = vrot.lane.b32.xlu0 %v10658, 126
      %v10822 = vpop.permute.xlu0 %10821
      %10823 = vrot.lane.b32.xlu0 %v10659, 126
      %v10824 = vpop.permute.xlu0 %10823
      %10825 = vrot.lane.b32.xlu0 %v10660, 126
      %v10826 = vpop.permute.xlu0 %10825
      %10827 = vrot.lane.b32.xlu0 %v10661, 126
      %v10828 = vpop.permute.xlu0 %10827
      %10829 = vrot.lane.b32.xlu0 %v10662, 126
      %v10830 = vpop.permute.xlu0 %10829
      %v10855 = vadd.f32 %v10759, %v10784
      %v10856 = vadd.f32 %v10760, %v10786
      %v10857 = vadd.f32 %v10761, %v10788
      %v10858 = vadd.f32 %v10762, %v10790
      %v10859 = vadd.f32 %v10763, %v10792
      %v10860 = vadd.f32 %v10764, %v10794
      %v10861 = vadd.f32 %v10765, %v10796
      %v10862 = vadd.f32 %v10766, %v10798
      %v10863 = vadd.f32 %v10767, %v10800
      %v10864 = vadd.f32 %v10768, %v10802
      %v10865 = vadd.f32 %v10769, %v10804
      %v10866 = vadd.f32 %v10770, %v10806
      %v10867 = vadd.f32 %v10771, %v10808
      %v10868 = vadd.f32 %v10772, %v10810
      %v10869 = vadd.f32 %v10773, %v10812
      %v10870 = vadd.f32 %v10774, %v10814
      %v10871 = vadd.f32 %v10775, %v10816
      %v10872 = vadd.f32 %v10776, %v10818
      %v10873 = vadd.f32 %v10777, %v10820
      %v10874 = vadd.f32 %v10778, %v10822
      %v10875 = vadd.f32 %v10779, %v10824
      %v10876 = vadd.f32 %v10780, %v10826
      %v10877 = vadd.f32 %v10781, %v10828
      %v10878 = vadd.f32 %v10782, %v10830
      %10879 = vrot.lane.b32.xlu0 %v10639, 125
      %v10880 = vpop.permute.xlu0 %10879
      %10881 = vrot.lane.b32.xlu0 %v10640, 125
      %v10882 = vpop.permute.xlu0 %10881
      %10883 = vrot.lane.b32.xlu0 %v10641, 125
      %v10884 = vpop.permute.xlu0 %10883
      %10885 = vrot.lane.b32.xlu0 %v10642, 125
      %v10886 = vpop.permute.xlu0 %10885
      %10887 = vrot.lane.b32.xlu0 %v10643, 125
      %v10888 = vpop.permute.xlu0 %10887
      %10889 = vrot.lane.b32.xlu0 %v10644, 125
      %v10890 = vpop.permute.xlu0 %10889
      %10891 = vrot.lane.b32.xlu0 %v10645, 125
      %v10892 = vpop.permute.xlu0 %10891
      %10893 = vrot.lane.b32.xlu0 %v10646, 125
      %v10894 = vpop.permute.xlu0 %10893
      %10895 = vrot.lane.b32.xlu0 %v10647, 125
      %v10896 = vpop.permute.xlu0 %10895
      %10897 = vrot.lane.b32.xlu0 %v10648, 125
      %v10898 = vpop.permute.xlu0 %10897
      %10899 = vrot.lane.b32.xlu0 %v10649, 125
      %v10900 = vpop.permute.xlu0 %10899
      %10901 = vrot.lane.b32.xlu0 %v10650, 125
      %v10902 = vpop.permute.xlu0 %10901
      %10903 = vrot.lane.b32.xlu0 %v10651, 125
      %v10904 = vpop.permute.xlu0 %10903
      %10905 = vrot.lane.b32.xlu0 %v10652, 125
      %v10906 = vpop.permute.xlu0 %10905
      %10907 = vrot.lane.b32.xlu0 %v10653, 125
      %v10908 = vpop.permute.xlu0 %10907
      %10909 = vrot.lane.b32.xlu0 %v10654, 125
      %v10910 = vpop.permute.xlu0 %10909
      %10911 = vrot.lane.b32.xlu0 %v10655, 125
      %v10912 = vpop.permute.xlu0 %10911
      %10913 = vrot.lane.b32.xlu0 %v10656, 125
      %v10914 = vpop.permute.xlu0 %10913
      %10915 = vrot.lane.b32.xlu0 %v10657, 125
      %v10916 = vpop.permute.xlu0 %10915
      %10917 = vrot.lane.b32.xlu0 %v10658, 125
      %v10918 = vpop.permute.xlu0 %10917
      %10919 = vrot.lane.b32.xlu0 %v10659, 125
      %v10920 = vpop.permute.xlu0 %10919
      %10921 = vrot.lane.b32.xlu0 %v10660, 125
      %v10922 = vpop.permute.xlu0 %10921
      %10923 = vrot.lane.b32.xlu0 %v10661, 125
      %v10924 = vpop.permute.xlu0 %10923
      %10925 = vrot.lane.b32.xlu0 %v10662, 125
      %v10926 = vpop.permute.xlu0 %10925
      %v10951 = vadd.f32 %v10855, %v10880
      %v10952 = vadd.f32 %v10856, %v10882
      %v10953 = vadd.f32 %v10857, %v10884
      %v10954 = vadd.f32 %v10858, %v10886
      %v10955 = vadd.f32 %v10859, %v10888
      %v10956 = vadd.f32 %v10860, %v10890
      %v10957 = vadd.f32 %v10861, %v10892
      %v10958 = vadd.f32 %v10862, %v10894
      %v10959 = vadd.f32 %v10863, %v10896
      %v10960 = vadd.f32 %v10864, %v10898
      %v10961 = vadd.f32 %v10865, %v10900
      %v10962 = vadd.f32 %v10866, %v10902
      %v10963 = vadd.f32 %v10867, %v10904
      %v10964 = vadd.f32 %v10868, %v10906
      %v10965 = vadd.f32 %v10869, %v10908
      %v10966 = vadd.f32 %v10870, %v10910
      %v10967 = vadd.f32 %v10871, %v10912
      %v10968 = vadd.f32 %v10872, %v10914
      %v10969 = vadd.f32 %v10873, %v10916
      %v10970 = vadd.f32 %v10874, %v10918
      %v10971 = vadd.f32 %v10875, %v10920
      %v10972 = vadd.f32 %v10876, %v10922
      %v10973 = vadd.f32 %v10877, %v10924
      %v10974 = vadd.f32 %v10878, %v10926
      %10975 = vrot.lane.b32.xlu0 %v10639, 124
      %v10976 = vpop.permute.xlu0 %10975
      %10977 = vrot.lane.b32.xlu0 %v10640, 124
      %v10978 = vpop.permute.xlu0 %10977
      %10979 = vrot.lane.b32.xlu0 %v10641, 124
      %v10980 = vpop.permute.xlu0 %10979
      %10981 = vrot.lane.b32.xlu0 %v10642, 124
      %v10982 = vpop.permute.xlu0 %10981
      %10983 = vrot.lane.b32.xlu0 %v10643, 124
      %v10984 = vpop.permute.xlu0 %10983
      %10985 = vrot.lane.b32.xlu0 %v10644, 124
      %v10986 = vpop.permute.xlu0 %10985
      %10987 = vrot.lane.b32.xlu0 %v10645, 124
      %v10988 = vpop.permute.xlu0 %10987
      %10989 = vrot.lane.b32.xlu0 %v10646, 124
      %v10990 = vpop.permute.xlu0 %10989
      %10991 = vrot.lane.b32.xlu0 %v10647, 124
      %v10992 = vpop.permute.xlu0 %10991
      %10993 = vrot.lane.b32.xlu0 %v10648, 124
      %v10994 = vpop.permute.xlu0 %10993
      %10995 = vrot.lane.b32.xlu0 %v10649, 124
      %v10996 = vpop.permute.xlu0 %10995
      %10997 = vrot.lane.b32.xlu0 %v10650, 124
      %v10998 = vpop.permute.xlu0 %10997
      %10999 = vrot.lane.b32.xlu0 %v10651, 124
      %v11000 = vpop.permute.xlu0 %10999
      %11001 = vrot.lane.b32.xlu0 %v10652, 124
      %v11002 = vpop.permute.xlu0 %11001
      %11003 = vrot.lane.b32.xlu0 %v10653, 124
      %v11004 = vpop.permute.xlu0 %11003
      %11005 = vrot.lane.b32.xlu0 %v10654, 124
      %v11006 = vpop.permute.xlu0 %11005
      %11007 = vrot.lane.b32.xlu0 %v10655, 124
      %v11008 = vpop.permute.xlu0 %11007
      %11009 = vrot.lane.b32.xlu0 %v10656, 124
      %v11010 = vpop.permute.xlu0 %11009
      %11011 = vrot.lane.b32.xlu0 %v10657, 124
      %v11012 = vpop.permute.xlu0 %11011
      %11013 = vrot.lane.b32.xlu0 %v10658, 124
      %v11014 = vpop.permute.xlu0 %11013
      %11015 = vrot.lane.b32.xlu0 %v10659, 124
      %v11016 = vpop.permute.xlu0 %11015
      %11017 = vrot.lane.b32.xlu0 %v10660, 124
      %v11018 = vpop.permute.xlu0 %11017
      %11019 = vrot.lane.b32.xlu0 %v10661, 124
      %v11020 = vpop.permute.xlu0 %11019
      %11021 = vrot.lane.b32.xlu0 %v10662, 124
      %v11022 = vpop.permute.xlu0 %11021
      %v11047 = vadd.f32 %v10951, %v10976
      %v11048 = vadd.f32 %v10952, %v10978
      %v11049 = vadd.f32 %v10953, %v10980
      %v11050 = vadd.f32 %v10954, %v10982
      %v11051 = vadd.f32 %v10955, %v10984
      %v11052 = vadd.f32 %v10956, %v10986
      %v11053 = vadd.f32 %v10957, %v10988
      %v11054 = vadd.f32 %v10958, %v10990
      %v11055 = vadd.f32 %v10959, %v10992
      %v11056 = vadd.f32 %v10960, %v10994
      %v11057 = vadd.f32 %v10961, %v10996
      %v11058 = vadd.f32 %v10962, %v10998
      %v11059 = vadd.f32 %v10963, %v11000
      %v11060 = vadd.f32 %v10964, %v11002
      %v11061 = vadd.f32 %v10965, %v11004
      %v11062 = vadd.f32 %v10966, %v11006
      %v11063 = vadd.f32 %v10967, %v11008
      %v11064 = vadd.f32 %v10968, %v11010
      %v11065 = vadd.f32 %v10969, %v11012
      %v11066 = vadd.f32 %v10970, %v11014
      %v11067 = vadd.f32 %v10971, %v11016
      %v11068 = vadd.f32 %v10972, %v11018
      %v11069 = vadd.f32 %v10973, %v11020
      %v11070 = vadd.f32 %v10974, %v11022
      %v11095 = vrot.slane %v11047, 1
      %v11096 = vrot.slane %v11048, 1
      %v11097 = vsel %vm1276, %v11095, %v11096
      %v11098 = vrot.slane %v11049, 1
      %v11099 = vrot.slane %v11050, 1
      %v11100 = vsel %vm1276, %v11098, %v11099
      %v11101 = vrot.slane %v11051, 1
      %v11102 = vrot.slane %v11052, 1
      %v11103 = vsel %vm1276, %v11101, %v11102
      %v11104 = vrot.slane %v11053, 1
      %v11105 = vrot.slane %v11054, 1
      %v11106 = vsel %vm1276, %v11104, %v11105
      %v11107 = vrot.slane %v11055, 1
      %v11108 = vrot.slane %v11056, 1
      %v11109 = vsel %vm1276, %v11107, %v11108
      %v11110 = vrot.slane %v11057, 1
      %v11111 = vrot.slane %v11058, 1
      %v11112 = vsel %vm1276, %v11110, %v11111
      %v11113 = vrot.slane %v11059, 1
      %v11114 = vrot.slane %v11060, 1
      %v11115 = vsel %vm1276, %v11113, %v11114
      %v11116 = vrot.slane %v11061, 1
      %v11117 = vrot.slane %v11062, 1
      %v11118 = vsel %vm1276, %v11116, %v11117
      %v11119 = vrot.slane %v11063, 1
      %v11120 = vrot.slane %v11064, 1
      %v11121 = vsel %vm1276, %v11119, %v11120
      %v11122 = vrot.slane %v11065, 1
      %v11123 = vrot.slane %v11066, 1
      %v11124 = vsel %vm1276, %v11122, %v11123
      %v11125 = vrot.slane %v11067, 1
      %v11126 = vrot.slane %v11068, 1
      %v11127 = vsel %vm1276, %v11125, %v11126
      %v11128 = vrot.slane %v11069, 1
      %v11129 = vrot.slane %v11070, 1
      %v11130 = vsel %vm1276, %v11128, %v11129
      %v11155 = vadd.f32 %v11047, %v11097
      %v11156 = vadd.f32 %v11048, %v11096
      %v11157 = vadd.f32 %v11049, %v11100
      %v11158 = vadd.f32 %v11050, %v11099
      %v11159 = vadd.f32 %v11051, %v11103
      %v11160 = vadd.f32 %v11052, %v11102
      %v11161 = vadd.f32 %v11053, %v11106
      %v11162 = vadd.f32 %v11054, %v11105
      %v11163 = vadd.f32 %v11055, %v11109
      %v11164 = vadd.f32 %v11056, %v11108
      %v11165 = vadd.f32 %v11057, %v11112
      %v11166 = vadd.f32 %v11058, %v11111
      %v11167 = vadd.f32 %v11059, %v11115
      %v11168 = vadd.f32 %v11060, %v11114
      %v11169 = vadd.f32 %v11061, %v11118
      %v11170 = vadd.f32 %v11062, %v11117
      %v11171 = vadd.f32 %v11063, %v11121
      %v11172 = vadd.f32 %v11064, %v11120
      %v11173 = vadd.f32 %v11065, %v11124
      %v11174 = vadd.f32 %v11066, %v11123
      %v11175 = vadd.f32 %v11067, %v11127
      %v11176 = vadd.f32 %v11068, %v11126
      %v11177 = vadd.f32 %v11069, %v11130
      %v11178 = vadd.f32 %v11070, %v11129
      %v11179 = vrot.slane %v11047, 2
      %v11180 = vrot.slane %v11048, 2
      %v11181 = vsel %vm1361, %v11179, %v11180
      %v11182 = vrot.slane %v11049, 2
      %v11183 = vrot.slane %v11050, 2
      %v11184 = vsel %vm1361, %v11182, %v11183
      %v11185 = vrot.slane %v11051, 2
      %v11186 = vrot.slane %v11052, 2
      %v11187 = vsel %vm1361, %v11185, %v11186
      %v11188 = vrot.slane %v11053, 2
      %v11189 = vrot.slane %v11054, 2
      %v11190 = vsel %vm1361, %v11188, %v11189
      %v11191 = vrot.slane %v11055, 2
      %v11192 = vrot.slane %v11056, 2
      %v11193 = vsel %vm1361, %v11191, %v11192
      %v11194 = vrot.slane %v11057, 2
      %v11195 = vrot.slane %v11058, 2
      %v11196 = vsel %vm1361, %v11194, %v11195
      %v11197 = vrot.slane %v11059, 2
      %v11198 = vrot.slane %v11060, 2
      %v11199 = vsel %vm1361, %v11197, %v11198
      %v11200 = vrot.slane %v11061, 2
      %v11201 = vrot.slane %v11062, 2
      %v11202 = vsel %vm1361, %v11200, %v11201
      %v11203 = vrot.slane %v11063, 2
      %v11204 = vrot.slane %v11064, 2
      %v11205 = vsel %vm1361, %v11203, %v11204
      %v11206 = vrot.slane %v11065, 2
      %v11207 = vrot.slane %v11066, 2
      %v11208 = vsel %vm1361, %v11206, %v11207
      %v11209 = vrot.slane %v11067, 2
      %v11210 = vrot.slane %v11068, 2
      %v11211 = vsel %vm1361, %v11209, %v11210
      %v11212 = vrot.slane %v11069, 2
      %v11213 = vrot.slane %v11070, 2
      %v11214 = vsel %vm1361, %v11212, %v11213
      %v11239 = vadd.f32 %v11155, %v11181
      %v11240 = vadd.f32 %v11156, %v11180
      %v11241 = vadd.f32 %v11157, %v11184
      %v11242 = vadd.f32 %v11158, %v11183
      %v11243 = vadd.f32 %v11159, %v11187
      %v11244 = vadd.f32 %v11160, %v11186
      %v11245 = vadd.f32 %v11161, %v11190
      %v11246 = vadd.f32 %v11162, %v11189
      %v11247 = vadd.f32 %v11163, %v11193
      %v11248 = vadd.f32 %v11164, %v11192
      %v11249 = vadd.f32 %v11165, %v11196
      %v11250 = vadd.f32 %v11166, %v11195
      %v11251 = vadd.f32 %v11167, %v11199
      %v11252 = vadd.f32 %v11168, %v11198
      %v11253 = vadd.f32 %v11169, %v11202
      %v11254 = vadd.f32 %v11170, %v11201
      %v11255 = vadd.f32 %v11171, %v11205
      %v11256 = vadd.f32 %v11172, %v11204
      %v11257 = vadd.f32 %v11173, %v11208
      %v11258 = vadd.f32 %v11174, %v11207
      %v11259 = vadd.f32 %v11175, %v11211
      %v11260 = vadd.f32 %v11176, %v11210
      %v11261 = vadd.f32 %v11177, %v11214
      %v11262 = vadd.f32 %v11178, %v11213
      %v11263 = vrot.slane %v11047, 3
      %v11264 = vrot.slane %v11048, 3
      %v11265 = vsel %vm1446, %v11263, %v11264
      %v11266 = vrot.slane %v11049, 3
      %v11267 = vrot.slane %v11050, 3
      %v11268 = vsel %vm1446, %v11266, %v11267
      %v11269 = vrot.slane %v11051, 3
      %v11270 = vrot.slane %v11052, 3
      %v11271 = vsel %vm1446, %v11269, %v11270
      %v11272 = vrot.slane %v11053, 3
      %v11273 = vrot.slane %v11054, 3
      %v11274 = vsel %vm1446, %v11272, %v11273
      %v11275 = vrot.slane %v11055, 3
      %v11276 = vrot.slane %v11056, 3
      %v11277 = vsel %vm1446, %v11275, %v11276
      %v11278 = vrot.slane %v11057, 3
      %v11279 = vrot.slane %v11058, 3
      %v11280 = vsel %vm1446, %v11278, %v11279
      %v11281 = vrot.slane %v11059, 3
      %v11282 = vrot.slane %v11060, 3
      %v11283 = vsel %vm1446, %v11281, %v11282
      %v11284 = vrot.slane %v11061, 3
      %v11285 = vrot.slane %v11062, 3
      %v11286 = vsel %vm1446, %v11284, %v11285
      %v11287 = vrot.slane %v11063, 3
      %v11288 = vrot.slane %v11064, 3
      %v11289 = vsel %vm1446, %v11287, %v11288
      %v11290 = vrot.slane %v11065, 3
      %v11291 = vrot.slane %v11066, 3
      %v11292 = vsel %vm1446, %v11290, %v11291
      %v11293 = vrot.slane %v11067, 3
      %v11294 = vrot.slane %v11068, 3
      %v11295 = vsel %vm1446, %v11293, %v11294
      %v11296 = vrot.slane %v11069, 3
      %v11297 = vrot.slane %v11070, 3
      %v11298 = vsel %vm1446, %v11296, %v11297
      %v11323 = vadd.f32 %v11239, %v11265
      %v11324 = vadd.f32 %v11240, %v11264
      %v11325 = vadd.f32 %v11241, %v11268
      %v11326 = vadd.f32 %v11242, %v11267
      %v11327 = vadd.f32 %v11243, %v11271
      %v11328 = vadd.f32 %v11244, %v11270
      %v11329 = vadd.f32 %v11245, %v11274
      %v11330 = vadd.f32 %v11246, %v11273
      %v11331 = vadd.f32 %v11247, %v11277
      %v11332 = vadd.f32 %v11248, %v11276
      %v11333 = vadd.f32 %v11249, %v11280
      %v11334 = vadd.f32 %v11250, %v11279
      %v11335 = vadd.f32 %v11251, %v11283
      %v11336 = vadd.f32 %v11252, %v11282
      %v11337 = vadd.f32 %v11253, %v11286
      %v11338 = vadd.f32 %v11254, %v11285
      %v11339 = vadd.f32 %v11255, %v11289
      %v11340 = vadd.f32 %v11256, %v11288
      %v11341 = vadd.f32 %v11257, %v11292
      %v11342 = vadd.f32 %v11258, %v11291
      %v11343 = vadd.f32 %v11259, %v11295
      %v11344 = vadd.f32 %v11260, %v11294
      %v11345 = vadd.f32 %v11261, %v11298
      %v11346 = vadd.f32 %v11262, %v11297
      %v11347 = vrot.slane %v11047, 4
      %v11348 = vrot.slane %v11048, 4
      %v11349 = vsel %vm626, %v11347, %v11348
      %v11350 = vrot.slane %v11049, 4
      %v11351 = vrot.slane %v11050, 4
      %v11352 = vsel %vm626, %v11350, %v11351
      %v11353 = vrot.slane %v11051, 4
      %v11354 = vrot.slane %v11052, 4
      %v11355 = vsel %vm626, %v11353, %v11354
      %v11356 = vrot.slane %v11053, 4
      %v11357 = vrot.slane %v11054, 4
      %v11358 = vsel %vm626, %v11356, %v11357
      %v11359 = vrot.slane %v11055, 4
      %v11360 = vrot.slane %v11056, 4
      %v11361 = vsel %vm626, %v11359, %v11360
      %v11362 = vrot.slane %v11057, 4
      %v11363 = vrot.slane %v11058, 4
      %v11364 = vsel %vm626, %v11362, %v11363
      %v11365 = vrot.slane %v11059, 4
      %v11366 = vrot.slane %v11060, 4
      %v11367 = vsel %vm626, %v11365, %v11366
      %v11368 = vrot.slane %v11061, 4
      %v11369 = vrot.slane %v11062, 4
      %v11370 = vsel %vm626, %v11368, %v11369
      %v11371 = vrot.slane %v11063, 4
      %v11372 = vrot.slane %v11064, 4
      %v11373 = vsel %vm626, %v11371, %v11372
      %v11374 = vrot.slane %v11065, 4
      %v11375 = vrot.slane %v11066, 4
      %v11376 = vsel %vm626, %v11374, %v11375
      %v11377 = vrot.slane %v11067, 4
      %v11378 = vrot.slane %v11068, 4
      %v11379 = vsel %vm626, %v11377, %v11378
      %v11380 = vrot.slane %v11069, 4
      %v11381 = vrot.slane %v11070, 4
      %v11382 = vsel %vm626, %v11380, %v11381
      %v11407 = vadd.f32 %v11323, %v11349
      %v11408 = vadd.f32 %v11324, %v11348
      %v11409 = vadd.f32 %v11325, %v11352
      %v11410 = vadd.f32 %v11326, %v11351
      %v11411 = vadd.f32 %v11327, %v11355
      %v11412 = vadd.f32 %v11328, %v11354
      %v11413 = vadd.f32 %v11329, %v11358
      %v11414 = vadd.f32 %v11330, %v11357
      %v11415 = vadd.f32 %v11331, %v11361
      %v11416 = vadd.f32 %v11332, %v11360
      %v11417 = vadd.f32 %v11333, %v11364
      %v11418 = vadd.f32 %v11334, %v11363
      %v11419 = vadd.f32 %v11335, %v11367
      %v11420 = vadd.f32 %v11336, %v11366
      %v11421 = vadd.f32 %v11337, %v11370
      %v11422 = vadd.f32 %v11338, %v11369
      %v11423 = vadd.f32 %v11339, %v11373
      %v11424 = vadd.f32 %v11340, %v11372
      %v11425 = vadd.f32 %v11341, %v11376
      %v11426 = vadd.f32 %v11342, %v11375
      %v11427 = vadd.f32 %v11343, %v11379
      %v11428 = vadd.f32 %v11344, %v11378
      %v11429 = vadd.f32 %v11345, %v11382
      %v11430 = vadd.f32 %v11346, %v11381
      %v11431 = vadd.f32 %v11407, %v11409
      %v11432 = vadd.f32 %v11408, %v11410
      %v11433 = vadd.f32 %v11409, %v11411
      %v11434 = vadd.f32 %v11410, %v11412
      %v11435 = vadd.f32 %v11411, %v11413
      %v11436 = vadd.f32 %v11412, %v11414
      %v11437 = vadd.f32 %v11413, %v11415
      %v11438 = vadd.f32 %v11414, %v11416
      %v11439 = vadd.f32 %v11415, %v11417
      %v11440 = vadd.f32 %v11416, %v11418
      %v11441 = vadd.f32 %v11417, %v11419
      %v11442 = vadd.f32 %v11418, %v11420
      %v11443 = vadd.f32 %v11419, %v11421
      %v11444 = vadd.f32 %v11420, %v11422
      %v11445 = vadd.f32 %v11421, %v11423
      %v11446 = vadd.f32 %v11422, %v11424
      %v11447 = vadd.f32 %v11431, %v11411
      %v11448 = vadd.f32 %v11432, %v11412
      %v11449 = vadd.f32 %v11433, %v11413
      %v11450 = vadd.f32 %v11434, %v11414
      %v11451 = vadd.f32 %v11435, %v11415
      %v11452 = vadd.f32 %v11436, %v11416
      %v11453 = vadd.f32 %v11437, %v11417
      %v11454 = vadd.f32 %v11438, %v11418
      %v11455 = vadd.f32 %v11439, %v11419
      %v11456 = vadd.f32 %v11440, %v11420
      %v11457 = vadd.f32 %v11441, %v11421
      %v11458 = vadd.f32 %v11442, %v11422
      %v11459 = vadd.f32 %v11443, %v11423
      %v11460 = vadd.f32 %v11444, %v11424
      %v11461 = vadd.f32 %v11445, %v11425
      %v11462 = vadd.f32 %v11446, %v11426
      %v11463 = vadd.f32 %v11447, %v11413
      %v11464 = vadd.f32 %v11448, %v11414
      %v11465 = vadd.f32 %v11449, %v11415
      %v11466 = vadd.f32 %v11450, %v11416
      %v11467 = vadd.f32 %v11451, %v11417
      %v11468 = vadd.f32 %v11452, %v11418
      %v11469 = vadd.f32 %v11453, %v11419
      %v11470 = vadd.f32 %v11454, %v11420
      %v11471 = vadd.f32 %v11455, %v11421
      %v11472 = vadd.f32 %v11456, %v11422
      %v11473 = vadd.f32 %v11457, %v11423
      %v11474 = vadd.f32 %v11458, %v11424
      %v11475 = vadd.f32 %v11459, %v11425
      %v11476 = vadd.f32 %v11460, %v11426
      %v11477 = vadd.f32 %v11461, %v11427
      %v11478 = vadd.f32 %v11462, %v11428
      %v11479 = vadd.f32 %v11463, %v11415
      %v11480 = vadd.f32 %v11464, %v11416
      %v11481 = vadd.f32 %v11465, %v11417
      %v11482 = vadd.f32 %v11466, %v11418
      %v11483 = vadd.f32 %v11467, %v11419
      %v11484 = vadd.f32 %v11468, %v11420
      %v11485 = vadd.f32 %v11469, %v11421
      %v11486 = vadd.f32 %v11470, %v11422
      %v11487 = vadd.f32 %v11471, %v11423
      %v11488 = vadd.f32 %v11472, %v11424
      %v11489 = vadd.f32 %v11473, %v11425
      %v11490 = vadd.f32 %v11474, %v11426
      %v11491 = vadd.f32 %v11475, %v11427
      %v11492 = vadd.f32 %v11476, %v11428
      %v11493 = vadd.f32 %v11477, %v11429
      %v11494 = vadd.f32 %v11478, %v11430
      %v11495 = vmul.f32 %v11479, 0.008
      %v11496 = vmul.f32 %v11480, 0.008
      %v11497 = vmul.f32 %v11481, 0.008
      %v11498 = vmul.f32 %v11482, 0.008
      %v11499 = vmul.f32 %v11483, 0.008
      %v11500 = vmul.f32 %v11484, 0.008
      %v11501 = vmul.f32 %v11485, 0.008
      %v11502 = vmul.f32 %v11486, 0.008
      %v11503 = vmul.f32 %v11487, 0.008
      %v11504 = vmul.f32 %v11488, 0.008
      %v11505 = vmul.f32 %v11489, 0.008
      %v11506 = vmul.f32 %v11490, 0.008
      %v11507 = vmul.f32 %v11491, 0.008
      %v11508 = vmul.f32 %v11492, 0.008
      %v11509 = vmul.f32 %v11493, 0.008
      %v11510 = vmul.f32 %v11494, 0.008
      %11527 = vrot.lane.b32.xlu0 %v11495, 126
      %v11528 = vpop.permute.xlu0 %11527
      %11529 = vrot.lane.b32.xlu0 %v11496, 126
      %v11530 = vpop.permute.xlu0 %11529
      %11531 = vrot.lane.b32.xlu0 %v11497, 126
      %v11532 = vpop.permute.xlu0 %11531
      %11533 = vrot.lane.b32.xlu0 %v11498, 126
      %v11534 = vpop.permute.xlu0 %11533
      %11535 = vrot.lane.b32.xlu0 %v11499, 126
      %v11536 = vpop.permute.xlu0 %11535
      %11537 = vrot.lane.b32.xlu0 %v11500, 126
      %v11538 = vpop.permute.xlu0 %11537
      %11539 = vrot.lane.b32.xlu0 %v11501, 126
      %v11540 = vpop.permute.xlu0 %11539
      %11541 = vrot.lane.b32.xlu0 %v11502, 126
      %v11542 = vpop.permute.xlu0 %11541
      %11543 = vrot.lane.b32.xlu0 %v11503, 126
      %v11544 = vpop.permute.xlu0 %11543
      %11545 = vrot.lane.b32.xlu0 %v11504, 126
      %v11546 = vpop.permute.xlu0 %11545
      %11547 = vrot.lane.b32.xlu0 %v11505, 126
      %v11548 = vpop.permute.xlu0 %11547
      %11549 = vrot.lane.b32.xlu0 %v11506, 126
      %v11550 = vpop.permute.xlu0 %11549
      %11551 = vrot.lane.b32.xlu0 %v11507, 126
      %v11552 = vpop.permute.xlu0 %11551
      %11553 = vrot.lane.b32.xlu0 %v11508, 126
      %v11554 = vpop.permute.xlu0 %11553
      %11555 = vrot.lane.b32.xlu0 %v11509, 126
      %v11556 = vpop.permute.xlu0 %11555
      %11557 = vrot.lane.b32.xlu0 %v11510, 126
      %v11558 = vpop.permute.xlu0 %11557
      %s11575 = scalar_lea.vmem %s150, 640
      %11576 = vst.msk [vmem:[%s11575 - $0x2] sm:$0xfc] %vm1759, %v11528
      %11577 = vst.msk [vmem:[%s11575 + $0x6] sm:$0x3] %vm1761, %v11530
      %11578 = vst.msk [vmem:[%s11575 + $0x6] sm:$0xfc] %vm1759, %v11532
      %11579 = vst.msk [vmem:[%s11575 + $0xe] sm:$0x3] %vm1761, %v11534
      %11580 = vst.msk [vmem:[%s11575 + $0xe] sm:$0xfc] %vm1759, %v11536
      %11581 = vst.msk [vmem:[%s11575 + $0x16] sm:$0x3] %vm1761, %v11538
      %11582 = vst.msk [vmem:[%s11575 + $0x16] sm:$0xfc] %vm1759, %v11540
      %11583 = vst.msk [vmem:[%s11575 + $0x1e] sm:$0x3] %vm1761, %v11542
      %11584 = vst.msk [vmem:[%s11575 + $0x1e] sm:$0xfc] %vm1759, %v11544
      %11585 = vst.msk [vmem:[%s11575 + $0x26] sm:$0x3] %vm1761, %v11546
      %11586 = vst.msk [vmem:[%s11575 + $0x26] sm:$0xfc] %vm1759, %v11548
      %11587 = vst.msk [vmem:[%s11575 + $0x2e] sm:$0x3] %vm1761, %v11550
      %11588 = vst.msk [vmem:[%s11575 + $0x2e] sm:$0xfc] %vm1759, %v11552
      %11589 = vst.msk [vmem:[%s11575 + $0x36] sm:$0x3] %vm1761, %v11554
      %11590 = vst.msk [vmem:[%s11575 + $0x36] sm:$0xfc] %vm1759, %v11556
      %11591 = vst.msk [vmem:[%s11575 + $0x3e] sm:$0x3] %vm1761, %v11558
      %v11592 = vmin.f32 %v10511, %v11495
      %v11593 = vmin.f32 %v10512, %v11496
      %v11594 = vmin.f32 %v10513, %v11497
      %v11595 = vmin.f32 %v10514, %v11498
      %v11596 = vmin.f32 %v10515, %v11499
      %v11597 = vmin.f32 %v10516, %v11500
      %v11598 = vmin.f32 %v10517, %v11501
      %v11599 = vmin.f32 %v10518, %v11502
      %v11600 = vmin.f32 %v10519, %v11503
      %v11601 = vmin.f32 %v10520, %v11504
      %v11602 = vmin.f32 %v10521, %v11505
      %v11603 = vmin.f32 %v10522, %v11506
      %v11604 = vmin.f32 %v10523, %v11507
      %v11605 = vmin.f32 %v10524, %v11508
      %v11606 = vmin.f32 %v10525, %v11509
      %v11607 = vmin.f32 %v10526, %v11510
      %v11608 = vadd.f32 %v10527, %v11495
      %v11609 = vadd.f32 %v10528, %v11496
      %v11610 = vadd.f32 %v10529, %v11497
      %v11611 = vadd.f32 %v10530, %v11498
      %v11612 = vadd.f32 %v10531, %v11499
      %v11613 = vadd.f32 %v10532, %v11500
      %v11614 = vadd.f32 %v10533, %v11501
      %v11615 = vadd.f32 %v10534, %v11502
      %v11616 = vadd.f32 %v10535, %v11503
      %v11617 = vadd.f32 %v10536, %v11504
      %v11618 = vadd.f32 %v10537, %v11505
      %v11619 = vadd.f32 %v10538, %v11506
      %v11620 = vadd.f32 %v10539, %v11507
      %v11621 = vadd.f32 %v10540, %v11508
      %v11622 = vadd.f32 %v10541, %v11509
      %v11623 = vadd.f32 %v10542, %v11510
      %v11624 = vsub.f32 %v566, %v6452
      %v11625 = vsub.f32 %v567, %v6454
      %v11626 = vsub.f32 %v568, %v6456
      %v11627 = vsub.f32 %v569, %v6458
      %v11628 = vsub.f32 %v570, %v6460
      %v11629 = vsub.f32 %v571, %v6462
      %v11630 = vsub.f32 %v572, %v6464
      %v11631 = vsub.f32 %v573, %v6466
      %v11632 = vsub.f32 %v574, %v6468
      %v11633 = vsub.f32 %v575, %v6470
      %v11634 = vsub.f32 %v576, %v6472
      %v11635 = vsub.f32 %v577, %v6474
      %v11636 = vsub.f32 %v578, %v6476
      %v11637 = vsub.f32 %v579, %v6478
      %v11638 = vsub.f32 %v580, %v6480
      %v11639 = vsub.f32 %v581, %v6482
      %v11640 = vsub.f32 %v582, %v6484
      %v11641 = vsub.f32 %v583, %v6486
      %v11642 = vsub.f32 %v584, %v6488
      %v11643 = vsub.f32 %v585, %v6490
      %v11644 = vsub.f32 %v586, %v6492
      %v11645 = vsub.f32 %v587, %v6494
      %v11646 = vsub.f32 %v588, %v6496
      %v11647 = vsub.f32 %v589, %v6498
      %v11648 = vmul.f32 %v11624, %v11624
      %v11649 = vmul.f32 %v11625, %v11625
      %v11650 = vmul.f32 %v11626, %v11626
      %v11651 = vmul.f32 %v11627, %v11627
      %v11652 = vmul.f32 %v11628, %v11628
      %v11653 = vmul.f32 %v11629, %v11629
      %v11654 = vmul.f32 %v11630, %v11630
      %v11655 = vmul.f32 %v11631, %v11631
      %v11656 = vmul.f32 %v11632, %v11632
      %v11657 = vmul.f32 %v11633, %v11633
      %v11658 = vmul.f32 %v11634, %v11634
      %v11659 = vmul.f32 %v11635, %v11635
      %v11660 = vmul.f32 %v11636, %v11636
      %v11661 = vmul.f32 %v11637, %v11637
      %v11662 = vmul.f32 %v11638, %v11638
      %v11663 = vmul.f32 %v11639, %v11639
      %v11664 = vmul.f32 %v11640, %v11640
      %v11665 = vmul.f32 %v11641, %v11641
      %v11666 = vmul.f32 %v11642, %v11642
      %v11667 = vmul.f32 %v11643, %v11643
      %v11668 = vmul.f32 %v11644, %v11644
      %v11669 = vmul.f32 %v11645, %v11645
      %v11670 = vmul.f32 %v11646, %v11646
      %v11671 = vmul.f32 %v11647, %v11647
      %11696 = vrot.lane.b32.xlu0 %v11648, 127
      %v11697 = vpop.permute.xlu0 %11696
      %11698 = vrot.lane.b32.xlu0 %v11649, 127
      %v11699 = vpop.permute.xlu0 %11698
      %11700 = vrot.lane.b32.xlu0 %v11650, 127
      %v11701 = vpop.permute.xlu0 %11700
      %11702 = vrot.lane.b32.xlu0 %v11651, 127
      %v11703 = vpop.permute.xlu0 %11702
      %11704 = vrot.lane.b32.xlu0 %v11652, 127
      %v11705 = vpop.permute.xlu0 %11704
      %11706 = vrot.lane.b32.xlu0 %v11653, 127
      %v11707 = vpop.permute.xlu0 %11706
      %11708 = vrot.lane.b32.xlu0 %v11654, 127
      %v11709 = vpop.permute.xlu0 %11708
      %11710 = vrot.lane.b32.xlu0 %v11655, 127
      %v11711 = vpop.permute.xlu0 %11710
      %11712 = vrot.lane.b32.xlu0 %v11656, 127
      %v11713 = vpop.permute.xlu0 %11712
      %11714 = vrot.lane.b32.xlu0 %v11657, 127
      %v11715 = vpop.permute.xlu0 %11714
      %11716 = vrot.lane.b32.xlu0 %v11658, 127
      %v11717 = vpop.permute.xlu0 %11716
      %11718 = vrot.lane.b32.xlu0 %v11659, 127
      %v11719 = vpop.permute.xlu0 %11718
      %11720 = vrot.lane.b32.xlu0 %v11660, 127
      %v11721 = vpop.permute.xlu0 %11720
      %11722 = vrot.lane.b32.xlu0 %v11661, 127
      %v11723 = vpop.permute.xlu0 %11722
      %11724 = vrot.lane.b32.xlu0 %v11662, 127
      %v11725 = vpop.permute.xlu0 %11724
      %11726 = vrot.lane.b32.xlu0 %v11663, 127
      %v11727 = vpop.permute.xlu0 %11726
      %11728 = vrot.lane.b32.xlu0 %v11664, 127
      %v11729 = vpop.permute.xlu0 %11728
      %11730 = vrot.lane.b32.xlu0 %v11665, 127
      %v11731 = vpop.permute.xlu0 %11730
      %11732 = vrot.lane.b32.xlu0 %v11666, 127
      %v11733 = vpop.permute.xlu0 %11732
      %11734 = vrot.lane.b32.xlu0 %v11667, 127
      %v11735 = vpop.permute.xlu0 %11734
      %11736 = vrot.lane.b32.xlu0 %v11668, 127
      %v11737 = vpop.permute.xlu0 %11736
      %11738 = vrot.lane.b32.xlu0 %v11669, 127
      %v11739 = vpop.permute.xlu0 %11738
      %11740 = vrot.lane.b32.xlu0 %v11670, 127
      %v11741 = vpop.permute.xlu0 %11740
      %11742 = vrot.lane.b32.xlu0 %v11671, 127
      %v11743 = vpop.permute.xlu0 %11742
      %v11768 = vadd.f32 %v11648, %v11697
      %v11769 = vadd.f32 %v11649, %v11699
      %v11770 = vadd.f32 %v11650, %v11701
      %v11771 = vadd.f32 %v11651, %v11703
      %v11772 = vadd.f32 %v11652, %v11705
      %v11773 = vadd.f32 %v11653, %v11707
      %v11774 = vadd.f32 %v11654, %v11709
      %v11775 = vadd.f32 %v11655, %v11711
      %v11776 = vadd.f32 %v11656, %v11713
      %v11777 = vadd.f32 %v11657, %v11715
      %v11778 = vadd.f32 %v11658, %v11717
      %v11779 = vadd.f32 %v11659, %v11719
      %v11780 = vadd.f32 %v11660, %v11721
      %v11781 = vadd.f32 %v11661, %v11723
      %v11782 = vadd.f32 %v11662, %v11725
      %v11783 = vadd.f32 %v11663, %v11727
      %v11784 = vadd.f32 %v11664, %v11729
      %v11785 = vadd.f32 %v11665, %v11731
      %v11786 = vadd.f32 %v11666, %v11733
      %v11787 = vadd.f32 %v11667, %v11735
      %v11788 = vadd.f32 %v11668, %v11737
      %v11789 = vadd.f32 %v11669, %v11739
      %v11790 = vadd.f32 %v11670, %v11741
      %v11791 = vadd.f32 %v11671, %v11743
      %11792 = vrot.lane.b32.xlu0 %v11648, 126
      %v11793 = vpop.permute.xlu0 %11792
      %11794 = vrot.lane.b32.xlu0 %v11649, 126
      %v11795 = vpop.permute.xlu0 %11794
      %11796 = vrot.lane.b32.xlu0 %v11650, 126
      %v11797 = vpop.permute.xlu0 %11796
      %11798 = vrot.lane.b32.xlu0 %v11651, 126
      %v11799 = vpop.permute.xlu0 %11798
      %11800 = vrot.lane.b32.xlu0 %v11652, 126
      %v11801 = vpop.permute.xlu0 %11800
      %11802 = vrot.lane.b32.xlu0 %v11653, 126
      %v11803 = vpop.permute.xlu0 %11802
      %11804 = vrot.lane.b32.xlu0 %v11654, 126
      %v11805 = vpop.permute.xlu0 %11804
      %11806 = vrot.lane.b32.xlu0 %v11655, 126
      %v11807 = vpop.permute.xlu0 %11806
      %11808 = vrot.lane.b32.xlu0 %v11656, 126
      %v11809 = vpop.permute.xlu0 %11808
      %11810 = vrot.lane.b32.xlu0 %v11657, 126
      %v11811 = vpop.permute.xlu0 %11810
      %11812 = vrot.lane.b32.xlu0 %v11658, 126
      %v11813 = vpop.permute.xlu0 %11812
      %11814 = vrot.lane.b32.xlu0 %v11659, 126
      %v11815 = vpop.permute.xlu0 %11814
      %11816 = vrot.lane.b32.xlu0 %v11660, 126
      %v11817 = vpop.permute.xlu0 %11816
      %11818 = vrot.lane.b32.xlu0 %v11661, 126
      %v11819 = vpop.permute.xlu0 %11818
      %11820 = vrot.lane.b32.xlu0 %v11662, 126
      %v11821 = vpop.permute.xlu0 %11820
      %11822 = vrot.lane.b32.xlu0 %v11663, 126
      %v11823 = vpop.permute.xlu0 %11822
      %11824 = vrot.lane.b32.xlu0 %v11664, 126
      %v11825 = vpop.permute.xlu0 %11824
      %11826 = vrot.lane.b32.xlu0 %v11665, 126
      %v11827 = vpop.permute.xlu0 %11826
      %11828 = vrot.lane.b32.xlu0 %v11666, 126
      %v11829 = vpop.permute.xlu0 %11828
      %11830 = vrot.lane.b32.xlu0 %v11667, 126
      %v11831 = vpop.permute.xlu0 %11830
      %11832 = vrot.lane.b32.xlu0 %v11668, 126
      %v11833 = vpop.permute.xlu0 %11832
      %11834 = vrot.lane.b32.xlu0 %v11669, 126
      %v11835 = vpop.permute.xlu0 %11834
      %11836 = vrot.lane.b32.xlu0 %v11670, 126
      %v11837 = vpop.permute.xlu0 %11836
      %11838 = vrot.lane.b32.xlu0 %v11671, 126
      %v11839 = vpop.permute.xlu0 %11838
      %v11864 = vadd.f32 %v11768, %v11793
      %v11865 = vadd.f32 %v11769, %v11795
      %v11866 = vadd.f32 %v11770, %v11797
      %v11867 = vadd.f32 %v11771, %v11799
      %v11868 = vadd.f32 %v11772, %v11801
      %v11869 = vadd.f32 %v11773, %v11803
      %v11870 = vadd.f32 %v11774, %v11805
      %v11871 = vadd.f32 %v11775, %v11807
      %v11872 = vadd.f32 %v11776, %v11809
      %v11873 = vadd.f32 %v11777, %v11811
      %v11874 = vadd.f32 %v11778, %v11813
      %v11875 = vadd.f32 %v11779, %v11815
      %v11876 = vadd.f32 %v11780, %v11817
      %v11877 = vadd.f32 %v11781, %v11819
      %v11878 = vadd.f32 %v11782, %v11821
      %v11879 = vadd.f32 %v11783, %v11823
      %v11880 = vadd.f32 %v11784, %v11825
      %v11881 = vadd.f32 %v11785, %v11827
      %v11882 = vadd.f32 %v11786, %v11829
      %v11883 = vadd.f32 %v11787, %v11831
      %v11884 = vadd.f32 %v11788, %v11833
      %v11885 = vadd.f32 %v11789, %v11835
      %v11886 = vadd.f32 %v11790, %v11837
      %v11887 = vadd.f32 %v11791, %v11839
      %11888 = vrot.lane.b32.xlu0 %v11648, 125
      %v11889 = vpop.permute.xlu0 %11888
      %11890 = vrot.lane.b32.xlu0 %v11649, 125
      %v11891 = vpop.permute.xlu0 %11890
      %11892 = vrot.lane.b32.xlu0 %v11650, 125
      %v11893 = vpop.permute.xlu0 %11892
      %11894 = vrot.lane.b32.xlu0 %v11651, 125
      %v11895 = vpop.permute.xlu0 %11894
      %11896 = vrot.lane.b32.xlu0 %v11652, 125
      %v11897 = vpop.permute.xlu0 %11896
      %11898 = vrot.lane.b32.xlu0 %v11653, 125
      %v11899 = vpop.permute.xlu0 %11898
      %11900 = vrot.lane.b32.xlu0 %v11654, 125
      %v11901 = vpop.permute.xlu0 %11900
      %11902 = vrot.lane.b32.xlu0 %v11655, 125
      %v11903 = vpop.permute.xlu0 %11902
      %11904 = vrot.lane.b32.xlu0 %v11656, 125
      %v11905 = vpop.permute.xlu0 %11904
      %11906 = vrot.lane.b32.xlu0 %v11657, 125
      %v11907 = vpop.permute.xlu0 %11906
      %11908 = vrot.lane.b32.xlu0 %v11658, 125
      %v11909 = vpop.permute.xlu0 %11908
      %11910 = vrot.lane.b32.xlu0 %v11659, 125
      %v11911 = vpop.permute.xlu0 %11910
      %11912 = vrot.lane.b32.xlu0 %v11660, 125
      %v11913 = vpop.permute.xlu0 %11912
      %11914 = vrot.lane.b32.xlu0 %v11661, 125
      %v11915 = vpop.permute.xlu0 %11914
      %11916 = vrot.lane.b32.xlu0 %v11662, 125
      %v11917 = vpop.permute.xlu0 %11916
      %11918 = vrot.lane.b32.xlu0 %v11663, 125
      %v11919 = vpop.permute.xlu0 %11918
      %11920 = vrot.lane.b32.xlu0 %v11664, 125
      %v11921 = vpop.permute.xlu0 %11920
      %11922 = vrot.lane.b32.xlu0 %v11665, 125
      %v11923 = vpop.permute.xlu0 %11922
      %11924 = vrot.lane.b32.xlu0 %v11666, 125
      %v11925 = vpop.permute.xlu0 %11924
      %11926 = vrot.lane.b32.xlu0 %v11667, 125
      %v11927 = vpop.permute.xlu0 %11926
      %11928 = vrot.lane.b32.xlu0 %v11668, 125
      %v11929 = vpop.permute.xlu0 %11928
      %11930 = vrot.lane.b32.xlu0 %v11669, 125
      %v11931 = vpop.permute.xlu0 %11930
      %11932 = vrot.lane.b32.xlu0 %v11670, 125
      %v11933 = vpop.permute.xlu0 %11932
      %11934 = vrot.lane.b32.xlu0 %v11671, 125
      %v11935 = vpop.permute.xlu0 %11934
      %v11960 = vadd.f32 %v11864, %v11889
      %v11961 = vadd.f32 %v11865, %v11891
      %v11962 = vadd.f32 %v11866, %v11893
      %v11963 = vadd.f32 %v11867, %v11895
      %v11964 = vadd.f32 %v11868, %v11897
      %v11965 = vadd.f32 %v11869, %v11899
      %v11966 = vadd.f32 %v11870, %v11901
      %v11967 = vadd.f32 %v11871, %v11903
      %v11968 = vadd.f32 %v11872, %v11905
      %v11969 = vadd.f32 %v11873, %v11907
      %v11970 = vadd.f32 %v11874, %v11909
      %v11971 = vadd.f32 %v11875, %v11911
      %v11972 = vadd.f32 %v11876, %v11913
      %v11973 = vadd.f32 %v11877, %v11915
      %v11974 = vadd.f32 %v11878, %v11917
      %v11975 = vadd.f32 %v11879, %v11919
      %v11976 = vadd.f32 %v11880, %v11921
      %v11977 = vadd.f32 %v11881, %v11923
      %v11978 = vadd.f32 %v11882, %v11925
      %v11979 = vadd.f32 %v11883, %v11927
      %v11980 = vadd.f32 %v11884, %v11929
      %v11981 = vadd.f32 %v11885, %v11931
      %v11982 = vadd.f32 %v11886, %v11933
      %v11983 = vadd.f32 %v11887, %v11935
      %11984 = vrot.lane.b32.xlu0 %v11648, 124
      %v11985 = vpop.permute.xlu0 %11984
      %11986 = vrot.lane.b32.xlu0 %v11649, 124
      %v11987 = vpop.permute.xlu0 %11986
      %11988 = vrot.lane.b32.xlu0 %v11650, 124
      %v11989 = vpop.permute.xlu0 %11988
      %11990 = vrot.lane.b32.xlu0 %v11651, 124
      %v11991 = vpop.permute.xlu0 %11990
      %11992 = vrot.lane.b32.xlu0 %v11652, 124
      %v11993 = vpop.permute.xlu0 %11992
      %11994 = vrot.lane.b32.xlu0 %v11653, 124
      %v11995 = vpop.permute.xlu0 %11994
      %11996 = vrot.lane.b32.xlu0 %v11654, 124
      %v11997 = vpop.permute.xlu0 %11996
      %11998 = vrot.lane.b32.xlu0 %v11655, 124
      %v11999 = vpop.permute.xlu0 %11998
      %12000 = vrot.lane.b32.xlu0 %v11656, 124
      %v12001 = vpop.permute.xlu0 %12000
      %12002 = vrot.lane.b32.xlu0 %v11657, 124
      %v12003 = vpop.permute.xlu0 %12002
      %12004 = vrot.lane.b32.xlu0 %v11658, 124
      %v12005 = vpop.permute.xlu0 %12004
      %12006 = vrot.lane.b32.xlu0 %v11659, 124
      %v12007 = vpop.permute.xlu0 %12006
      %12008 = vrot.lane.b32.xlu0 %v11660, 124
      %v12009 = vpop.permute.xlu0 %12008
      %12010 = vrot.lane.b32.xlu0 %v11661, 124
      %v12011 = vpop.permute.xlu0 %12010
      %12012 = vrot.lane.b32.xlu0 %v11662, 124
      %v12013 = vpop.permute.xlu0 %12012
      %12014 = vrot.lane.b32.xlu0 %v11663, 124
      %v12015 = vpop.permute.xlu0 %12014
      %12016 = vrot.lane.b32.xlu0 %v11664, 124
      %v12017 = vpop.permute.xlu0 %12016
      %12018 = vrot.lane.b32.xlu0 %v11665, 124
      %v12019 = vpop.permute.xlu0 %12018
      %12020 = vrot.lane.b32.xlu0 %v11666, 124
      %v12021 = vpop.permute.xlu0 %12020
      %12022 = vrot.lane.b32.xlu0 %v11667, 124
      %v12023 = vpop.permute.xlu0 %12022
      %12024 = vrot.lane.b32.xlu0 %v11668, 124
      %v12025 = vpop.permute.xlu0 %12024
      %12026 = vrot.lane.b32.xlu0 %v11669, 124
      %v12027 = vpop.permute.xlu0 %12026
      %12028 = vrot.lane.b32.xlu0 %v11670, 124
      %v12029 = vpop.permute.xlu0 %12028
      %12030 = vrot.lane.b32.xlu0 %v11671, 124
      %v12031 = vpop.permute.xlu0 %12030
      %v12056 = vadd.f32 %v11960, %v11985
      %v12057 = vadd.f32 %v11961, %v11987
      %v12058 = vadd.f32 %v11962, %v11989
      %v12059 = vadd.f32 %v11963, %v11991
      %v12060 = vadd.f32 %v11964, %v11993
      %v12061 = vadd.f32 %v11965, %v11995
      %v12062 = vadd.f32 %v11966, %v11997
      %v12063 = vadd.f32 %v11967, %v11999
      %v12064 = vadd.f32 %v11968, %v12001
      %v12065 = vadd.f32 %v11969, %v12003
      %v12066 = vadd.f32 %v11970, %v12005
      %v12067 = vadd.f32 %v11971, %v12007
      %v12068 = vadd.f32 %v11972, %v12009
      %v12069 = vadd.f32 %v11973, %v12011
      %v12070 = vadd.f32 %v11974, %v12013
      %v12071 = vadd.f32 %v11975, %v12015
      %v12072 = vadd.f32 %v11976, %v12017
      %v12073 = vadd.f32 %v11977, %v12019
      %v12074 = vadd.f32 %v11978, %v12021
      %v12075 = vadd.f32 %v11979, %v12023
      %v12076 = vadd.f32 %v11980, %v12025
      %v12077 = vadd.f32 %v11981, %v12027
      %v12078 = vadd.f32 %v11982, %v12029
      %v12079 = vadd.f32 %v11983, %v12031
      %v12104 = vrot.slane %v12056, 1
      %v12105 = vrot.slane %v12057, 1
      %v12106 = vsel %vm1276, %v12104, %v12105
      %v12107 = vrot.slane %v12058, 1
      %v12108 = vrot.slane %v12059, 1
      %v12109 = vsel %vm1276, %v12107, %v12108
      %v12110 = vrot.slane %v12060, 1
      %v12111 = vrot.slane %v12061, 1
      %v12112 = vsel %vm1276, %v12110, %v12111
      %v12113 = vrot.slane %v12062, 1
      %v12114 = vrot.slane %v12063, 1
      %v12115 = vsel %vm1276, %v12113, %v12114
      %v12116 = vrot.slane %v12064, 1
      %v12117 = vrot.slane %v12065, 1
      %v12118 = vsel %vm1276, %v12116, %v12117
      %v12119 = vrot.slane %v12066, 1
      %v12120 = vrot.slane %v12067, 1
      %v12121 = vsel %vm1276, %v12119, %v12120
      %v12122 = vrot.slane %v12068, 1
      %v12123 = vrot.slane %v12069, 1
      %v12124 = vsel %vm1276, %v12122, %v12123
      %v12125 = vrot.slane %v12070, 1
      %v12126 = vrot.slane %v12071, 1
      %v12127 = vsel %vm1276, %v12125, %v12126
      %v12128 = vrot.slane %v12072, 1
      %v12129 = vrot.slane %v12073, 1
      %v12130 = vsel %vm1276, %v12128, %v12129
      %v12131 = vrot.slane %v12074, 1
      %v12132 = vrot.slane %v12075, 1
      %v12133 = vsel %vm1276, %v12131, %v12132
      %v12134 = vrot.slane %v12076, 1
      %v12135 = vrot.slane %v12077, 1
      %v12136 = vsel %vm1276, %v12134, %v12135
      %v12137 = vrot.slane %v12078, 1
      %v12138 = vrot.slane %v12079, 1
      %v12139 = vsel %vm1276, %v12137, %v12138
      %v12164 = vadd.f32 %v12056, %v12106
      %v12165 = vadd.f32 %v12057, %v12105
      %v12166 = vadd.f32 %v12058, %v12109
      %v12167 = vadd.f32 %v12059, %v12108
      %v12168 = vadd.f32 %v12060, %v12112
      %v12169 = vadd.f32 %v12061, %v12111
      %v12170 = vadd.f32 %v12062, %v12115
      %v12171 = vadd.f32 %v12063, %v12114
      %v12172 = vadd.f32 %v12064, %v12118
      %v12173 = vadd.f32 %v12065, %v12117
      %v12174 = vadd.f32 %v12066, %v12121
      %v12175 = vadd.f32 %v12067, %v12120
      %v12176 = vadd.f32 %v12068, %v12124
      %v12177 = vadd.f32 %v12069, %v12123
      %v12178 = vadd.f32 %v12070, %v12127
      %v12179 = vadd.f32 %v12071, %v12126
      %v12180 = vadd.f32 %v12072, %v12130
      %v12181 = vadd.f32 %v12073, %v12129
      %v12182 = vadd.f32 %v12074, %v12133
      %v12183 = vadd.f32 %v12075, %v12132
      %v12184 = vadd.f32 %v12076, %v12136
      %v12185 = vadd.f32 %v12077, %v12135
      %v12186 = vadd.f32 %v12078, %v12139
      %v12187 = vadd.f32 %v12079, %v12138
      %v12188 = vrot.slane %v12056, 2
      %v12189 = vrot.slane %v12057, 2
      %v12190 = vsel %vm1361, %v12188, %v12189
      %v12191 = vrot.slane %v12058, 2
      %v12192 = vrot.slane %v12059, 2
      %v12193 = vsel %vm1361, %v12191, %v12192
      %v12194 = vrot.slane %v12060, 2
      %v12195 = vrot.slane %v12061, 2
      %v12196 = vsel %vm1361, %v12194, %v12195
      %v12197 = vrot.slane %v12062, 2
      %v12198 = vrot.slane %v12063, 2
      %v12199 = vsel %vm1361, %v12197, %v12198
      %v12200 = vrot.slane %v12064, 2
      %v12201 = vrot.slane %v12065, 2
      %v12202 = vsel %vm1361, %v12200, %v12201
      %v12203 = vrot.slane %v12066, 2
      %v12204 = vrot.slane %v12067, 2
      %v12205 = vsel %vm1361, %v12203, %v12204
      %v12206 = vrot.slane %v12068, 2
      %v12207 = vrot.slane %v12069, 2
      %v12208 = vsel %vm1361, %v12206, %v12207
      %v12209 = vrot.slane %v12070, 2
      %v12210 = vrot.slane %v12071, 2
      %v12211 = vsel %vm1361, %v12209, %v12210
      %v12212 = vrot.slane %v12072, 2
      %v12213 = vrot.slane %v12073, 2
      %v12214 = vsel %vm1361, %v12212, %v12213
      %v12215 = vrot.slane %v12074, 2
      %v12216 = vrot.slane %v12075, 2
      %v12217 = vsel %vm1361, %v12215, %v12216
      %v12218 = vrot.slane %v12076, 2
      %v12219 = vrot.slane %v12077, 2
      %v12220 = vsel %vm1361, %v12218, %v12219
      %v12221 = vrot.slane %v12078, 2
      %v12222 = vrot.slane %v12079, 2
      %v12223 = vsel %vm1361, %v12221, %v12222
      %v12248 = vadd.f32 %v12164, %v12190
      %v12249 = vadd.f32 %v12165, %v12189
      %v12250 = vadd.f32 %v12166, %v12193
      %v12251 = vadd.f32 %v12167, %v12192
      %v12252 = vadd.f32 %v12168, %v12196
      %v12253 = vadd.f32 %v12169, %v12195
      %v12254 = vadd.f32 %v12170, %v12199
      %v12255 = vadd.f32 %v12171, %v12198
      %v12256 = vadd.f32 %v12172, %v12202
      %v12257 = vadd.f32 %v12173, %v12201
      %v12258 = vadd.f32 %v12174, %v12205
      %v12259 = vadd.f32 %v12175, %v12204
      %v12260 = vadd.f32 %v12176, %v12208
      %v12261 = vadd.f32 %v12177, %v12207
      %v12262 = vadd.f32 %v12178, %v12211
      %v12263 = vadd.f32 %v12179, %v12210
      %v12264 = vadd.f32 %v12180, %v12214
      %v12265 = vadd.f32 %v12181, %v12213
      %v12266 = vadd.f32 %v12182, %v12217
      %v12267 = vadd.f32 %v12183, %v12216
      %v12268 = vadd.f32 %v12184, %v12220
      %v12269 = vadd.f32 %v12185, %v12219
      %v12270 = vadd.f32 %v12186, %v12223
      %v12271 = vadd.f32 %v12187, %v12222
      %v12272 = vrot.slane %v12056, 3
      %v12273 = vrot.slane %v12057, 3
      %v12274 = vsel %vm1446, %v12272, %v12273
      %v12275 = vrot.slane %v12058, 3
      %v12276 = vrot.slane %v12059, 3
      %v12277 = vsel %vm1446, %v12275, %v12276
      %v12278 = vrot.slane %v12060, 3
      %v12279 = vrot.slane %v12061, 3
      %v12280 = vsel %vm1446, %v12278, %v12279
      %v12281 = vrot.slane %v12062, 3
      %v12282 = vrot.slane %v12063, 3
      %v12283 = vsel %vm1446, %v12281, %v12282
      %v12284 = vrot.slane %v12064, 3
      %v12285 = vrot.slane %v12065, 3
      %v12286 = vsel %vm1446, %v12284, %v12285
      %v12287 = vrot.slane %v12066, 3
      %v12288 = vrot.slane %v12067, 3
      %v12289 = vsel %vm1446, %v12287, %v12288
      %v12290 = vrot.slane %v12068, 3
      %v12291 = vrot.slane %v12069, 3
      %v12292 = vsel %vm1446, %v12290, %v12291
      %v12293 = vrot.slane %v12070, 3
      %v12294 = vrot.slane %v12071, 3
      %v12295 = vsel %vm1446, %v12293, %v12294
      %v12296 = vrot.slane %v12072, 3
      %v12297 = vrot.slane %v12073, 3
      %v12298 = vsel %vm1446, %v12296, %v12297
      %v12299 = vrot.slane %v12074, 3
      %v12300 = vrot.slane %v12075, 3
      %v12301 = vsel %vm1446, %v12299, %v12300
      %v12302 = vrot.slane %v12076, 3
      %v12303 = vrot.slane %v12077, 3
      %v12304 = vsel %vm1446, %v12302, %v12303
      %v12305 = vrot.slane %v12078, 3
      %v12306 = vrot.slane %v12079, 3
      %v12307 = vsel %vm1446, %v12305, %v12306
      %v12332 = vadd.f32 %v12248, %v12274
      %v12333 = vadd.f32 %v12249, %v12273
      %v12334 = vadd.f32 %v12250, %v12277
      %v12335 = vadd.f32 %v12251, %v12276
      %v12336 = vadd.f32 %v12252, %v12280
      %v12337 = vadd.f32 %v12253, %v12279
      %v12338 = vadd.f32 %v12254, %v12283
      %v12339 = vadd.f32 %v12255, %v12282
      %v12340 = vadd.f32 %v12256, %v12286
      %v12341 = vadd.f32 %v12257, %v12285
      %v12342 = vadd.f32 %v12258, %v12289
      %v12343 = vadd.f32 %v12259, %v12288
      %v12344 = vadd.f32 %v12260, %v12292
      %v12345 = vadd.f32 %v12261, %v12291
      %v12346 = vadd.f32 %v12262, %v12295
      %v12347 = vadd.f32 %v12263, %v12294
      %v12348 = vadd.f32 %v12264, %v12298
      %v12349 = vadd.f32 %v12265, %v12297
      %v12350 = vadd.f32 %v12266, %v12301
      %v12351 = vadd.f32 %v12267, %v12300
      %v12352 = vadd.f32 %v12268, %v12304
      %v12353 = vadd.f32 %v12269, %v12303
      %v12354 = vadd.f32 %v12270, %v12307
      %v12355 = vadd.f32 %v12271, %v12306
      %v12356 = vrot.slane %v12056, 4
      %v12357 = vrot.slane %v12057, 4
      %v12358 = vsel %vm626, %v12356, %v12357
      %v12359 = vrot.slane %v12058, 4
      %v12360 = vrot.slane %v12059, 4
      %v12361 = vsel %vm626, %v12359, %v12360
      %v12362 = vrot.slane %v12060, 4
      %v12363 = vrot.slane %v12061, 4
      %v12364 = vsel %vm626, %v12362, %v12363
      %v12365 = vrot.slane %v12062, 4
      %v12366 = vrot.slane %v12063, 4
      %v12367 = vsel %vm626, %v12365, %v12366
      %v12368 = vrot.slane %v12064, 4
      %v12369 = vrot.slane %v12065, 4
      %v12370 = vsel %vm626, %v12368, %v12369
      %v12371 = vrot.slane %v12066, 4
      %v12372 = vrot.slane %v12067, 4
      %v12373 = vsel %vm626, %v12371, %v12372
      %v12374 = vrot.slane %v12068, 4
      %v12375 = vrot.slane %v12069, 4
      %v12376 = vsel %vm626, %v12374, %v12375
      %v12377 = vrot.slane %v12070, 4
      %v12378 = vrot.slane %v12071, 4
      %v12379 = vsel %vm626, %v12377, %v12378
      %v12380 = vrot.slane %v12072, 4
      %v12381 = vrot.slane %v12073, 4
      %v12382 = vsel %vm626, %v12380, %v12381
      %v12383 = vrot.slane %v12074, 4
      %v12384 = vrot.slane %v12075, 4
      %v12385 = vsel %vm626, %v12383, %v12384
      %v12386 = vrot.slane %v12076, 4
      %v12387 = vrot.slane %v12077, 4
      %v12388 = vsel %vm626, %v12386, %v12387
      %v12389 = vrot.slane %v12078, 4
      %v12390 = vrot.slane %v12079, 4
      %v12391 = vsel %vm626, %v12389, %v12390
      %v12416 = vadd.f32 %v12332, %v12358
      %v12417 = vadd.f32 %v12333, %v12357
      %v12418 = vadd.f32 %v12334, %v12361
      %v12419 = vadd.f32 %v12335, %v12360
      %v12420 = vadd.f32 %v12336, %v12364
      %v12421 = vadd.f32 %v12337, %v12363
      %v12422 = vadd.f32 %v12338, %v12367
      %v12423 = vadd.f32 %v12339, %v12366
      %v12424 = vadd.f32 %v12340, %v12370
      %v12425 = vadd.f32 %v12341, %v12369
      %v12426 = vadd.f32 %v12342, %v12373
      %v12427 = vadd.f32 %v12343, %v12372
      %v12428 = vadd.f32 %v12344, %v12376
      %v12429 = vadd.f32 %v12345, %v12375
      %v12430 = vadd.f32 %v12346, %v12379
      %v12431 = vadd.f32 %v12347, %v12378
      %v12432 = vadd.f32 %v12348, %v12382
      %v12433 = vadd.f32 %v12349, %v12381
      %v12434 = vadd.f32 %v12350, %v12385
      %v12435 = vadd.f32 %v12351, %v12384
      %v12436 = vadd.f32 %v12352, %v12388
      %v12437 = vadd.f32 %v12353, %v12387
      %v12438 = vadd.f32 %v12354, %v12391
      %v12439 = vadd.f32 %v12355, %v12390
      %v12440 = vadd.f32 %v12416, %v12418
      %v12441 = vadd.f32 %v12417, %v12419
      %v12442 = vadd.f32 %v12418, %v12420
      %v12443 = vadd.f32 %v12419, %v12421
      %v12444 = vadd.f32 %v12420, %v12422
      %v12445 = vadd.f32 %v12421, %v12423
      %v12446 = vadd.f32 %v12422, %v12424
      %v12447 = vadd.f32 %v12423, %v12425
      %v12448 = vadd.f32 %v12424, %v12426
      %v12449 = vadd.f32 %v12425, %v12427
      %v12450 = vadd.f32 %v12426, %v12428
      %v12451 = vadd.f32 %v12427, %v12429
      %v12452 = vadd.f32 %v12428, %v12430
      %v12453 = vadd.f32 %v12429, %v12431
      %v12454 = vadd.f32 %v12430, %v12432
      %v12455 = vadd.f32 %v12431, %v12433
      %v12456 = vadd.f32 %v12440, %v12420
      %v12457 = vadd.f32 %v12441, %v12421
      %v12458 = vadd.f32 %v12442, %v12422
      %v12459 = vadd.f32 %v12443, %v12423
      %v12460 = vadd.f32 %v12444, %v12424
      %v12461 = vadd.f32 %v12445, %v12425
      %v12462 = vadd.f32 %v12446, %v12426
      %v12463 = vadd.f32 %v12447, %v12427
      %v12464 = vadd.f32 %v12448, %v12428
      %v12465 = vadd.f32 %v12449, %v12429
      %v12466 = vadd.f32 %v12450, %v12430
      %v12467 = vadd.f32 %v12451, %v12431
      %v12468 = vadd.f32 %v12452, %v12432
      %v12469 = vadd.f32 %v12453, %v12433
      %v12470 = vadd.f32 %v12454, %v12434
      %v12471 = vadd.f32 %v12455, %v12435
      %v12472 = vadd.f32 %v12456, %v12422
      %v12473 = vadd.f32 %v12457, %v12423
      %v12474 = vadd.f32 %v12458, %v12424
      %v12475 = vadd.f32 %v12459, %v12425
      %v12476 = vadd.f32 %v12460, %v12426
      %v12477 = vadd.f32 %v12461, %v12427
      %v12478 = vadd.f32 %v12462, %v12428
      %v12479 = vadd.f32 %v12463, %v12429
      %v12480 = vadd.f32 %v12464, %v12430
      %v12481 = vadd.f32 %v12465, %v12431
      %v12482 = vadd.f32 %v12466, %v12432
      %v12483 = vadd.f32 %v12467, %v12433
      %v12484 = vadd.f32 %v12468, %v12434
      %v12485 = vadd.f32 %v12469, %v12435
      %v12486 = vadd.f32 %v12470, %v12436
      %v12487 = vadd.f32 %v12471, %v12437
      %v12488 = vadd.f32 %v12472, %v12424
      %v12489 = vadd.f32 %v12473, %v12425
      %v12490 = vadd.f32 %v12474, %v12426
      %v12491 = vadd.f32 %v12475, %v12427
      %v12492 = vadd.f32 %v12476, %v12428
      %v12493 = vadd.f32 %v12477, %v12429
      %v12494 = vadd.f32 %v12478, %v12430
      %v12495 = vadd.f32 %v12479, %v12431
      %v12496 = vadd.f32 %v12480, %v12432
      %v12497 = vadd.f32 %v12481, %v12433
      %v12498 = vadd.f32 %v12482, %v12434
      %v12499 = vadd.f32 %v12483, %v12435
      %v12500 = vadd.f32 %v12484, %v12436
      %v12501 = vadd.f32 %v12485, %v12437
      %v12502 = vadd.f32 %v12486, %v12438
      %v12503 = vadd.f32 %v12487, %v12439
      %v12504 = vmul.f32 %v12488, 0.008
      %v12505 = vmul.f32 %v12489, 0.008
      %v12506 = vmul.f32 %v12490, 0.008
      %v12507 = vmul.f32 %v12491, 0.008
      %v12508 = vmul.f32 %v12492, 0.008
      %v12509 = vmul.f32 %v12493, 0.008
      %v12510 = vmul.f32 %v12494, 0.008
      %v12511 = vmul.f32 %v12495, 0.008
      %v12512 = vmul.f32 %v12496, 0.008
      %v12513 = vmul.f32 %v12497, 0.008
      %v12514 = vmul.f32 %v12498, 0.008
      %v12515 = vmul.f32 %v12499, 0.008
      %v12516 = vmul.f32 %v12500, 0.008
      %v12517 = vmul.f32 %v12501, 0.008
      %v12518 = vmul.f32 %v12502, 0.008
      %v12519 = vmul.f32 %v12503, 0.008
      %s12520 = scalar_lea.vmem %s150, 704
      %12521 = vst.msk [vmem:[%s12520 - $0x2] sm:$0xfc] %vm1759, %v12504
      %12522 = vst.msk [vmem:[%s12520 + $0x6] sm:$0x3] %vm1761, %v12505
      %12523 = vst.msk [vmem:[%s12520 + $0x6] sm:$0xfc] %vm1759, %v12506
      %12524 = vst.msk [vmem:[%s12520 + $0xe] sm:$0x3] %vm1761, %v12507
      %12525 = vst.msk [vmem:[%s12520 + $0xe] sm:$0xfc] %vm1759, %v12508
      %12526 = vst.msk [vmem:[%s12520 + $0x16] sm:$0x3] %vm1761, %v12509
      %12527 = vst.msk [vmem:[%s12520 + $0x16] sm:$0xfc] %vm1759, %v12510
      %12528 = vst.msk [vmem:[%s12520 + $0x1e] sm:$0x3] %vm1761, %v12511
      %12529 = vst.msk [vmem:[%s12520 + $0x1e] sm:$0xfc] %vm1759, %v12512
      %12530 = vst.msk [vmem:[%s12520 + $0x26] sm:$0x3] %vm1761, %v12513
      %12531 = vst.msk [vmem:[%s12520 + $0x26] sm:$0xfc] %vm1759, %v12514
      %12532 = vst.msk [vmem:[%s12520 + $0x2e] sm:$0x3] %vm1761, %v12515
      %12533 = vst.msk [vmem:[%s12520 + $0x2e] sm:$0xfc] %vm1759, %v12516
      %12534 = vst.msk [vmem:[%s12520 + $0x36] sm:$0x3] %vm1761, %v12517
      %12535 = vst.msk [vmem:[%s12520 + $0x36] sm:$0xfc] %vm1759, %v12518
      %12536 = vst.msk [vmem:[%s12520 + $0x3e] sm:$0x3] %vm1761, %v12519
      %12553 = vrot.lane.b32.xlu0 %v12504, 2
      %v12554 = vpop.permute.xlu0 %12553
      %12555 = vrot.lane.b32.xlu0 %v12505, 2
      %v12556 = vpop.permute.xlu0 %12555
      %12557 = vrot.lane.b32.xlu0 %v12506, 2
      %v12558 = vpop.permute.xlu0 %12557
      %12559 = vrot.lane.b32.xlu0 %v12507, 2
      %v12560 = vpop.permute.xlu0 %12559
      %12561 = vrot.lane.b32.xlu0 %v12508, 2
      %v12562 = vpop.permute.xlu0 %12561
      %12563 = vrot.lane.b32.xlu0 %v12509, 2
      %v12564 = vpop.permute.xlu0 %12563
      %12565 = vrot.lane.b32.xlu0 %v12510, 2
      %v12566 = vpop.permute.xlu0 %12565
      %12567 = vrot.lane.b32.xlu0 %v12511, 2
      %v12568 = vpop.permute.xlu0 %12567
      %12569 = vrot.lane.b32.xlu0 %v12512, 2
      %v12570 = vpop.permute.xlu0 %12569
      %12571 = vrot.lane.b32.xlu0 %v12513, 2
      %v12572 = vpop.permute.xlu0 %12571
      %12573 = vrot.lane.b32.xlu0 %v12514, 2
      %v12574 = vpop.permute.xlu0 %12573
      %12575 = vrot.lane.b32.xlu0 %v12515, 2
      %v12576 = vpop.permute.xlu0 %12575
      %12577 = vrot.lane.b32.xlu0 %v12516, 2
      %v12578 = vpop.permute.xlu0 %12577
      %12579 = vrot.lane.b32.xlu0 %v12517, 2
      %v12580 = vpop.permute.xlu0 %12579
      %12581 = vrot.lane.b32.xlu0 %v12518, 2
      %v12582 = vpop.permute.xlu0 %12581
      %12583 = vrot.lane.b32.xlu0 %v12519, 2
      %v12584 = vpop.permute.xlu0 %12583
      %v12601 = vmin.f32 %v11592, %v12554
      %v12602 = vmin.f32 %v11593, %v12556
      %v12603 = vmin.f32 %v11594, %v12558
      %v12604 = vmin.f32 %v11595, %v12560
      %v12605 = vmin.f32 %v11596, %v12562
      %v12606 = vmin.f32 %v11597, %v12564
      %v12607 = vmin.f32 %v11598, %v12566
      %v12608 = vmin.f32 %v11599, %v12568
      %v12609 = vmin.f32 %v11600, %v12570
      %v12610 = vmin.f32 %v11601, %v12572
      %v12611 = vmin.f32 %v11602, %v12574
      %v12612 = vmin.f32 %v11603, %v12576
      %v12613 = vmin.f32 %v11604, %v12578
      %v12614 = vmin.f32 %v11605, %v12580
      %v12615 = vmin.f32 %v11606, %v12582
      %v12616 = vmin.f32 %v11607, %v12584
      %v12617 = vadd.f32 %v11608, %v12554
      %v12618 = vadd.f32 %v11609, %v12556
      %v12619 = vadd.f32 %v11610, %v12558
      %v12620 = vadd.f32 %v11611, %v12560
      %v12621 = vadd.f32 %v11612, %v12562
      %v12622 = vadd.f32 %v11613, %v12564
      %v12623 = vadd.f32 %v11614, %v12566
      %v12624 = vadd.f32 %v11615, %v12568
      %v12625 = vadd.f32 %v11616, %v12570
      %v12626 = vadd.f32 %v11617, %v12572
      %v12627 = vadd.f32 %v11618, %v12574
      %v12628 = vadd.f32 %v11619, %v12576
      %v12629 = vadd.f32 %v11620, %v12578
      %v12630 = vadd.f32 %v11621, %v12580
      %v12631 = vadd.f32 %v11622, %v12582
      %v12632 = vadd.f32 %v11623, %v12584
      %v12633 = vmul.f32 %v12617, 0.083333336
      %v12634 = vmul.f32 %v12618, 0.083333336
      %v12635 = vmul.f32 %v12619, 0.083333336
      %v12636 = vmul.f32 %v12620, 0.083333336
      %v12637 = vmul.f32 %v12621, 0.083333336
      %v12638 = vmul.f32 %v12622, 0.083333336
      %v12639 = vmul.f32 %v12623, 0.083333336
      %v12640 = vmul.f32 %v12624, 0.083333336
      %v12641 = vmul.f32 %v12625, 0.083333336
      %v12642 = vmul.f32 %v12626, 0.083333336
      %v12643 = vmul.f32 %v12627, 0.083333336
      %v12644 = vmul.f32 %v12628, 0.083333336
      %v12645 = vmul.f32 %v12629, 0.083333336
      %v12646 = vmul.f32 %v12630, 0.083333336
      %v12647 = vmul.f32 %v12631, 0.083333336
      %v12648 = vmul.f32 %v12632, 0.083333336
      %v12649 = vsub.f32 %v12633, %v12601
      %v12650 = vsub.f32 %v12634, %v12602
      %v12651 = vsub.f32 %v12635, %v12603
      %v12652 = vsub.f32 %v12636, %v12604
      %v12653 = vsub.f32 %v12637, %v12605
      %v12654 = vsub.f32 %v12638, %v12606
      %v12655 = vsub.f32 %v12639, %v12607
      %v12656 = vsub.f32 %v12640, %v12608
      %v12657 = vsub.f32 %v12641, %v12609
      %v12658 = vsub.f32 %v12642, %v12610
      %v12659 = vsub.f32 %v12643, %v12611
      %v12660 = vsub.f32 %v12644, %v12612
      %v12661 = vsub.f32 %v12645, %v12613
      %v12662 = vsub.f32 %v12646, %v12614
      %v12663 = vsub.f32 %v12647, %v12615
      %v12664 = vsub.f32 %v12648, %v12616
      %v12681 = vrot.slane %v12649, 2
      %v12682 = vrot.slane %v12650, 2
      %v12683 = vsel %vm1361, %v12681, %v12682
      %v12684 = vrot.slane %v12651, 2
      %v12685 = vrot.slane %v12652, 2
      %v12686 = vsel %vm1361, %v12684, %v12685
      %v12687 = vrot.slane %v12653, 2
      %v12688 = vrot.slane %v12654, 2
      %v12689 = vsel %vm1361, %v12687, %v12688
      %v12690 = vrot.slane %v12655, 2
      %v12691 = vrot.slane %v12656, 2
      %v12692 = vsel %vm1361, %v12690, %v12691
      %v12693 = vrot.slane %v12657, 2
      %v12694 = vrot.slane %v12658, 2
      %v12695 = vsel %vm1361, %v12693, %v12694
      %v12696 = vrot.slane %v12659, 2
      %v12697 = vrot.slane %v12660, 2
      %v12698 = vsel %vm1361, %v12696, %v12697
      %v12699 = vrot.slane %v12661, 2
      %v12700 = vrot.slane %v12662, 2
      %v12701 = vsel %vm1361, %v12699, %v12700
      %v12702 = vrot.slane %v12663, 2
      %v12703 = vrot.slane %v12664, 2
      %v12704 = vsel %vm1361, %v12702, %v12703
      %12705 = vrot.lane.b32.xlu0 %v12683, 126
      %v12706 = vpop.permute.xlu0 %12705
      %12707 = vrot.lane.b32.xlu0 %v12686, 126
      %v12708 = vpop.permute.xlu0 %12707
      %12709 = vrot.lane.b32.xlu0 %v12689, 126
      %v12710 = vpop.permute.xlu0 %12709
      %12711 = vrot.lane.b32.xlu0 %v12692, 126
      %v12712 = vpop.permute.xlu0 %12711
      %12713 = vrot.lane.b32.xlu0 %v12695, 126
      %v12714 = vpop.permute.xlu0 %12713
      %12715 = vrot.lane.b32.xlu0 %v12698, 126
      %v12716 = vpop.permute.xlu0 %12715
      %12717 = vrot.lane.b32.xlu0 %v12701, 126
      %v12718 = vpop.permute.xlu0 %12717
      %12719 = vrot.lane.b32.xlu0 %v12704, 126
      %v12720 = vpop.permute.xlu0 %12719
      %v12729 = vsel %vm2652, %v12706, 0.0
      %v12730 = vsel %vm2652, %v12708, 0.0
      %v12731 = vadd.f32 %v12729, %v12730
      %v12732 = vsel %vm2652, %v12710, 0.0
      %v12733 = vadd.f32 %v12731, %v12732
      %v12734 = vsel %vm2652, %v12712, 0.0
      %v12735 = vadd.f32 %v12733, %v12734
      %v12736 = vsel %vm2652, %v12714, 0.0
      %v12737 = vadd.f32 %v12735, %v12736
      %v12738 = vsel %vm2652, %v12716, 0.0
      %v12739 = vadd.f32 %v12737, %v12738
      %v12740 = vsel %vm2652, %v12718, 0.0
      %v12741 = vadd.f32 %v12739, %v12740
      %v12742 = vsel %vm2652, %v12720, 0.0
      %v12743 = vadd.f32 %v12741, %v12742
      %12744 = vadd.xlane.f32.xlu0 %v12743
      %v12745 = vpop.xlane.xlu0 %12744
      %v12746 = vrot.slane %v12745, 4
      %v12747 = vadd.f32 %v12745, %v12746
      %v12748 = vrot.slane %v12747, 2
      %v12749 = vadd.f32 %v12747, %v12748
      %v12750 = vrot.slane %v12749, 1
      %v12751 = vadd.f32 %v12749, %v12750
      %s12752 = vtos %v12751
      %v12753 = vstv %s12752
      %12754 = vst [vmem:[%s154] sm:$0xff] %v12753
      %p12755 = scmp.lt.s32.totalorder %s14, 1
      %s12756 = scalar_select %p12755, %s14, 1
      %s12757 = smul.addr %s12756, 96
      %s12758 = smul.addr %s12757, 8
      %s12759 = scalar_lea.vmem %s1, %s12758
      %p12760 = scmp.lt.s32.totalorder %s14, 1
      %s12761 = scalar_select %p12760, %s14, 1
      %s12762 = smul.addr %s12761, 8
      %s12763 = scalar_lea.vmem %s2, %s12762
      // Predicated region
      $region25: #{mind_loss.4} parent=23 // pred_check
        %p12764 = pneg %p58
      $region26: #{mind_loss.4} parent=23 // pred_check_branch
        %12766 = sbr.rel (%p12764) target = $region28
      $region27: #{mind_loss.4} parent=23 // pred_region
        _
      $region28: #{mind_loss.4} parent=23 // pred_fallthru
        _
      // Predicated region
      $region29: #{mind_loss.4} parent=23 // pred_check
        %p12767 = pneg %p84
      $region30: #{mind_loss.4} parent=23 // pred_check_branch
        %12769 = sbr.rel (%p12767) target = $region32
      $region31: #{mind_loss.4} parent=23 // pred_region
        _
      $region32: #{mind_loss.4} parent=23 // pred_fallthru
        _
    $region24: #{mind_loss.4} parent=5 // pred_fallthru
      _
    %p12770 = scmp.le.s32.totalorder 2, %s9
    // Predicated region
    $region33: #{mind_loss.4} parent=5 // pred_check
      %p12771 = pneg %p12770
    $region34: #{mind_loss.4} parent=5 // pred_check_branch
      %12773 = sbr.rel (%p12771) target = $region36
    $region35: #{mind_loss.4} parent=5 // pred_region
      %s12774 = ssub.s32 %s9, 2
      // Predicated region
      $region37: #{mind_loss.4} parent=35 // pred_check
        %p12775 = pneg %p64
      $region38: #{mind_loss.4} parent=35 // pred_check_branch
        %12777 = sbr.rel (%p12775) target = $region40
      $region39: #{mind_loss.4} parent=35 // pred_region
        %p12778 = scmp.lt.s32.totalorder %s15, 1
        %s12779 = scalar_select %p12778, %s15, 1
        %s12780 = smul.addr %s12779, 96
        %s12781 = smul.addr %s12780, 8
        %s12782 = scalar_lea.vmem %s1, %s12781
      $region40: #{mind_loss.4} parent=35 // pred_fallthru
        _
      // Predicated region
      $region41: #{mind_loss.4} parent=35 // pred_check
        %p12783 = pneg %p90
      $region42: #{mind_loss.4} parent=35 // pred_check_branch
        %12785 = sbr.rel (%p12783) target = $region44
      $region43: #{mind_loss.4} parent=35 // pred_region
        %p12786 = scmp.lt.s32.totalorder %s15, 1
        %s12787 = scalar_select %p12786, %s15, 1
        %s12788 = smul.addr %s12787, 8
        %s12789 = scalar_lea.vmem %s2, %s12788
      $region44: #{mind_loss.4} parent=35 // pred_fallthru
        _
    $region36: #{mind_loss.4} parent=5 // pred_fallthru
      _
  $region6: #{mind_loss.4} parent=0 // loop_footer
    %s13 = sadd.s32 1, %s9
  $region7: #{mind_loss.4} parent=0 // loop_footer_branch
    %8 = sbr.rel target = $region3
  $region8: #{mind_loss.4} parent=0 // loop_exit
    _

</llo_original>
